<compile_context>
chip_gen: v7x
topology: tpu7x:2x2x1
jax: 0.10.0
libtpu: 0.0.40
codegen_flags: <defaults>
</compile_context>

<pallas_src>
import math

import jax
import jax.numpy as jnp
import numpy as np
from jax import lax
from jax.experimental import pallas as pl
from jax.experimental.pallas import tpu as pltpu

BATCH_TILE = 128          # images per grid step -> full 128-lane density
H_PAD = 128               # lin1 hidden dim padded 84 -> 128 (MXU N)
KPAD = 28 * 32            # flatten dim padded 784 -> 896 (8-aligned row blocks)


# ----------------------------------------------------------------------------
# Fused kernel: conv branch + MLP head for one batch tile of BATCH_TILE images.
#   xp_ref : (32, 32, Bt)  zero-padded input, batch on lanes
#   flat   : (896, Bt)     VMEM scratch; row h*32 + w  holds avg[h, w, :]
# ----------------------------------------------------------------------------
def fused_kernel(xp_ref, w1_ref, b1_ref, w1p_ref, b1p_ref,
                 w2_ref, b2_ref, w2p_ref, b2p_ref,
                 lw1_ref, lb1_ref, lw2_ref, lb2_ref,
                 out_ref, flat_ref):
    bt = xp_ref.shape[2]

    # Zero the scratch so the 4 pad rows per 32-row block are exactly 0
    # (their lw1 columns are 0 too; avoids 0 * garbage).
    flat_ref[...] = jnp.zeros_like(flat_ref)

    def row_body(h, carry):
        # 5 padded input rows needed for output row h (aligned full-row loads),
        # then the 25 shifted (28, Bt) windows, shared across all channels.
        rows = [xp_ref[h + ki] for ki in range(5)]              # (32, Bt) each
        win = [[rows[ki][kj:kj + 28, :] for kj in range(5)]     # (28, Bt) each
               for ki in range(5)]

        # conv1 (1->5, 3x3, pad=1) -> relu -> conv1_p (5->1, 1x1) -> relu
        # pad=1 offsets are the (ki+1, kj+1) subset of the pad=2 windows.
        out1 = None
        for c in range(5):
            acc = None
            for ki in range(3):
                for kj in range(3):
                    t = w1_ref[c * 9 + ki * 3 + kj] * win[ki + 1][kj + 1]
                    acc = t if acc is None else acc + t
            acc = jnp.maximum(acc + b1_ref[c], 0.0)
            t = w1p_ref[c] * acc
            out1 = t if out1 is None else out1 + t
        out1 = jnp.maximum(out1 + b1p_ref[0], 0.0)

        # conv2 (1->10, 5x5, pad=2) -> relu -> conv2_p (10->1, 1x1) -> relu
        out2 = None
        for c in range(10):
            acc = None
            for ki in range(5):
                for kj in range(5):
                    t = w2_ref[c * 25 + ki * 5 + kj] * win[ki][kj]
                    acc = t if acc is None else acc + t
            acc = jnp.maximum(acc + b2_ref[c], 0.0)
            t = w2p_ref[c] * acc
            out2 = t if out2 is None else out2 + t
        out2 = jnp.maximum(out2 + b2p_ref[0], 0.0)

        avg = (out1 + out2) * 0.5                               # (28, Bt) f32
        base = pl.multiple_of(h * 32, 32)                       # 8-aligned
        flat_ref[pl.ds(base, 28), :] = avg
        return carry

    lax.fori_loop(0, 28, row_body, 0)

    # lin1 on the MXU: (128, 896) bf16 @ (896, Bt) bf16 -> (128, Bt) f32
    h1 = jnp.dot(lw1_ref[...], flat_ref[...].astype(jnp.bfloat16),
                 preferred_element_type=jnp.float32)
    h1 = jnp.maximum(h1 + lb1_ref[...], 0.0)                    # (128, Bt)

    # lin2 (84 -> 1): VPU multiply + sublane reduce (no N=1 matmul)
    y = jnp.sum(h1 * lw2_ref[...], axis=0, keepdims=True)       # (1, Bt)
    out_ref[0] = jnp.maximum(y + lb2_ref[0], 0.0)


def fused_forward(xp, w1f, b1, w1p, b1p, w2f, b2, w2p, b2p,
                  lw1, lb1, lw2, lb2, *, num_tiles, batch_tile):
    smem = pl.BlockSpec(memory_space=pltpu.SMEM)
    return pl.pallas_call(
        fused_kernel,
        out_shape=jax.ShapeDtypeStruct((num_tiles, 1, batch_tile), jnp.float32),
        grid_spec=pltpu.PrefetchScalarGridSpec(
            num_scalar_prefetch=0,
            grid=(num_tiles,),
            in_specs=[
                pl.BlockSpec((32, 32, batch_tile), lambda g: (0, 0, g)),
                smem, smem, smem, smem,      # conv1 / conv1_p params (flat 1-D)
                smem, smem, smem, smem,      # conv2 / conv2_p params (flat 1-D)
                pl.BlockSpec(lw1.shape, lambda g: (0, 0)),   # (128, 896) bf16
                pl.BlockSpec(lb1.shape, lambda g: (0, 0)),   # (128, 1)   f32
                pl.BlockSpec(lw2.shape, lambda g: (0, 0)),   # (128, 1)   f32
                smem,                                        # lb2 (1,)   f32
            ],
            out_specs=pl.BlockSpec((1, 1, batch_tile), lambda g: (g, 0, 0)),
            scratch_shapes=[pltpu.VMEM((KPAD, batch_tile), jnp.float32)],
        ),
        compiler_params=pltpu.CompilerParams(
            dimension_semantics=("parallel",)),
    )(xp, w1f, b1, w1p, b1p, w2f, b2, w2p, b2p, lw1, lb1, lw2, lb2)


# ----------------------------------------------------------------------------
# Parameter init (deterministic, PyTorch-default-style uniform ranges)
# ----------------------------------------------------------------------------
def _uniform(key, shape, fan_in):
    bound = 1.0 / math.sqrt(fan_in)
    return jax.random.uniform(key, shape, jnp.float32, -bound, bound)


def init_params(key):
    ks = jax.random.split(key, 12)
    p = {}
    p["conv1_w"] = _uniform(ks[0], (5, 3, 3), 1 * 3 * 3)     # (5,1,3,3) squeezed
    p["conv1_b"] = _uniform(ks[1], (5,), 1 * 3 * 3)
    p["conv1p_w"] = _uniform(ks[2], (5,), 5)                 # (1,5,1,1) squeezed
    p["conv1p_b"] = _uniform(ks[3], (1,), 5)
    p["conv2_w"] = _uniform(ks[4], (10, 5, 5), 1 * 5 * 5)    # (10,1,5,5) squeezed
    p["conv2_b"] = _uniform(ks[5], (10,), 1 * 5 * 5)
    p["conv2p_w"] = _uniform(ks[6], (10,), 10)               # (1,10,1,1) squeezed
    p["conv2p_b"] = _uniform(ks[7], (1,), 10)
    p["lin1_w"] = _uniform(ks[8], (84, 784), 784)
    p["lin1_b"] = _uniform(ks[9], (84,), 784)
    p["lin2_w"] = _uniform(ks[10], (1, 84), 84)
    p["lin2_b"] = _uniform(ks[11], (1,), 84)
    return p


@jax.jit
def model_forward(x_nchw, p):
    # x_nchw: (B, 1, 28, 28) float32 — matches the PyTorch forward input
    B = x_nchw.shape[0]
    G = -(-B // BATCH_TILE)
    # Batch-on-lanes layout: (28,28,B) -> pad spatial by 2 and batch to G*128
    x = jnp.transpose(x_nchw[:, 0], (1, 2, 0))                      # (28,28,B)
    xp = jnp.pad(x, ((2, 2), (2, 2), (0, G * BATCH_TILE - B)))      # (32,32,GB)

    # Kernel-layout parameters
    w1f = p["conv1_w"].reshape(-1)                                  # (45,)
    w2f = p["conv2_w"].reshape(-1)                                  # (250,)
    # lin1 weight: (84,784) -> (84,28,28) -> pad to (128,28,32) -> (128,896)
    lw1 = jnp.pad(p["lin1_w"].reshape(84, 28, 28),
                  ((0, H_PAD - 84), (0, 0), (0, 4))).reshape(H_PAD, KPAD)
    lw1 = lw1.astype(jnp.bfloat16)
    lb1 = jnp.pad(p["lin1_b"], (0, H_PAD - 84)).reshape(H_PAD, 1)
    lw2 = jnp.pad(p["lin2_w"][0], (0, H_PAD - 84)).reshape(H_PAD, 1)

    out = fused_forward(xp, w1f, p["conv1_b"], p["conv1p_w"], p["conv1p_b"],
                        w2f, p["conv2_b"], p["conv2p_w"], p["conv2p_b"],
                        lw1, lb1, lw2, p["lin2_b"],
                        num_tiles=G, batch_tile=BATCH_TILE)         # (G,1,128)
    return out.reshape(G * BATCH_TILE, 1)[:B]                       # (B,1)


# ----------------------------------------------------------------------------
# Pure-JAX reference (f32 everywhere) for the correctness check
# ----------------------------------------------------------------------------
def reference_forward(x_nchw, p):
    dn = lax.conv_dimension_numbers(x_nchw.shape, (5, 1, 3, 3),
                                    ("NCHW", "OIHW", "NCHW"))
    c1 = lax.conv_general_dilated(x_nchw, p["conv1_w"][:, None], (1, 1),
                                  ((1, 1), (1, 1)), dimension_numbers=dn)
    c1 = jax.nn.relu(c1 + p["conv1_b"][None, :, None, None])
    c1p = jnp.einsum("bchw,c->bhw", c1, p["conv1p_w"]) + p["conv1p_b"][0]
    out1 = jax.nn.relu(c1p)

    c2 = lax.conv_general_dilated(x_nchw, p["conv2_w"][:, None], (1, 1),
                                  ((2, 2), (2, 2)), dimension_numbers=dn)
    c2 = jax.nn.relu(c2 + p["conv2_b"][None, :, None, None])
    c2p = jnp.einsum("bchw,c->bhw", c2, p["conv2p_w"]) + p["conv2p_b"][0]
    out2 = jax.nn.relu(c2p)

    avg = (out1 + out2) / 2.0
    flat = avg.reshape(avg.shape[0], -1)
    h = jax.nn.relu(flat @ p["lin1_w"].T + p["lin1_b"])
    return jax.nn.relu(h @ p["lin2_w"].T + p["lin2_b"])


if __name__ == "__main__":
    key = jax.random.PRNGKey(0)
    k_x, k_p = jax.random.split(key)
    batch = 2
    x = jax.random.normal(k_x, (batch, 1, 28, 28), jnp.float32)
    params = init_params(k_p)

    y = model_forward(x, params)
    jax.block_until_ready(y)

    y_ref = reference_forward(x, params)
    # Tolerance accommodates bf16 inputs (f32 accumulation) on the lin1 matmul.
    np.testing.assert_allclose(np.asarray(y), np.asarray(y_ref),
                               rtol=1e-2, atol=1e-2)
    assert y.shape == (batch, 1)
    print("KERNEL_OK")
</pallas_src>

<mosaic_0001>
module attributes {stable_mosaic.version = 11 : i64} {
  func.func @fused_kernel(%arg0: i32, %arg1: memref<32x32x128xf32, #tpu.memory_space<vmem>>, %arg2: memref<45xf32, #tpu.memory_space<smem>>, %arg3: memref<5xf32, #tpu.memory_space<smem>>, %arg4: memref<5xf32, #tpu.memory_space<smem>>, %arg5: memref<1xf32, #tpu.memory_space<smem>>, %arg6: memref<250xf32, #tpu.memory_space<smem>>, %arg7: memref<10xf32, #tpu.memory_space<smem>>, %arg8: memref<10xf32, #tpu.memory_space<smem>>, %arg9: memref<1xf32, #tpu.memory_space<smem>>, %arg10: memref<128x896xbf16, #tpu.memory_space<vmem>>, %arg11: memref<128x1xf32, #tpu.memory_space<vmem>>, %arg12: memref<128x1xf32, #tpu.memory_space<vmem>>, %arg13: memref<1xf32, #tpu.memory_space<smem>>, %arg14: memref<1x1x128xf32, #tpu.memory_space<vmem>>, %arg15: memref<896x128xf32, #tpu.memory_space<vmem>>) attributes {dimension_semantics = [#tpu.dimension_semantics<parallel>], iteration_bounds = array<i64: 1>, scalar_prefetch = 0 : i64, scratch_operands = 1 : i64, tpu.core_type = #tpu.core_type<tc>, window_params = [{transform_indices = @transform_0, window_bounds = array<i64: 32, 32, 128>}, {transform_indices = @transform_1, window_bounds = array<i64: 45>}, {transform_indices = @transform_2, window_bounds = array<i64: 5>}, {transform_indices = @transform_3, window_bounds = array<i64: 5>}, {transform_indices = @transform_4, window_bounds = array<i64: 1>}, {transform_indices = @transform_5, window_bounds = array<i64: 250>}, {transform_indices = @transform_6, window_bounds = array<i64: 10>}, {transform_indices = @transform_7, window_bounds = array<i64: 10>}, {transform_indices = @transform_8, window_bounds = array<i64: 1>}, {pipeline_mode = #tpu.pipeline_mode<synchronous>, transform_indices = @transform_9, window_bounds = array<i64: 128, 896>}, {pipeline_mode = #tpu.pipeline_mode<synchronous>, transform_indices = @transform_10, window_bounds = array<i64: 128, 1>}, {pipeline_mode = #tpu.pipeline_mode<synchronous>, transform_indices = @transform_11, window_bounds = array<i64: 128, 1>}, {transform_indices = @transform_12, window_bounds = array<i64: 1>}, {transform_indices = @transform_13, window_bounds = array<i64: 1, 1, 128>}]} {
    %cst = arith.constant 0.000000e+00 : f32
    %0 = vector.broadcast %cst : f32 to vector<896x128xf32>
    %c0 = arith.constant 0 : index
    %c0_0 = arith.constant 0 : index
    %1 = vector.load %arg15[%c0, %c0_0] : memref<896x128xf32, #tpu.memory_space<vmem>>, vector<896x128xf32>
    tpu.vector_store %arg15[%c0, %c0_0], %0 {strides = array<i32>} : memref<896x128xf32, #tpu.memory_space<vmem>>, vector<896x128xf32>,
    %c0_i32 = arith.constant 0 : i32
    %c28_i32 = arith.constant 28 : i32
    %2 = arith.addi %c0_i32, %c28_i32 : i32
    %c1_i32 = arith.constant 1 : i32
    scf.for %arg16 = %c0_i32 to %2 step %c1_i32  : i32 {
      %c0_i32_18 = arith.constant 0 : i32
      %25 = arith.addi %arg16, %c0_i32_18 : i32
      %26 = arith.index_cast %25 : i32 to index
      %c0_19 = arith.constant 0 : index
      %c0_20 = arith.constant 0 : index
      %27 = vector.load %arg1[%26, %c0_19, %c0_20] : memref<32x32x128xf32, #tpu.memory_space<vmem>>, vector<1x32x128xf32>
      %28 = vector.shape_cast %27 : vector<1x32x128xf32> to vector<32x128xf32>
      %c1_i32_21 = arith.constant 1 : i32
      %29 = arith.addi %arg16, %c1_i32_21 : i32
      %30 = arith.index_cast %29 : i32 to index
      %c0_22 = arith.constant 0 : index
      %c0_23 = arith.constant 0 : index
      %31 = vector.load %arg1[%30, %c0_22, %c0_23] : memref<32x32x128xf32, #tpu.memory_space<vmem>>, vector<1x32x128xf32>
      %32 = vector.shape_cast %31 : vector<1x32x128xf32> to vector<32x128xf32>
      %c2_i32 = arith.constant 2 : i32
      %33 = arith.addi %arg16, %c2_i32 : i32
      %34 = arith.index_cast %33 : i32 to index
      %c0_24 = arith.constant 0 : index
      %c0_25 = arith.constant 0 : index
      %35 = vector.load %arg1[%34, %c0_24, %c0_25] : memref<32x32x128xf32, #tpu.memory_space<vmem>>, vector<1x32x128xf32>
      %36 = vector.shape_cast %35 : vector<1x32x128xf32> to vector<32x128xf32>
      %c3_i32 = arith.constant 3 : i32
      %37 = arith.addi %arg16, %c3_i32 : i32
      %38 = arith.index_cast %37 : i32 to index
      %c0_26 = arith.constant 0 : index
      %c0_27 = arith.constant 0 : index
      %39 = vector.load %arg1[%38, %c0_26, %c0_27] : memref<32x32x128xf32, #tpu.memory_space<vmem>>, vector<1x32x128xf32>
      %40 = vector.shape_cast %39 : vector<1x32x128xf32> to vector<32x128xf32>
      %c4_i32 = arith.constant 4 : i32
      %41 = arith.addi %arg16, %c4_i32 : i32
      %42 = arith.index_cast %41 : i32 to index
      %c0_28 = arith.constant 0 : index
      %c0_29 = arith.constant 0 : index
      %43 = vector.load %arg1[%42, %c0_28, %c0_29] : memref<32x32x128xf32, #tpu.memory_space<vmem>>, vector<1x32x128xf32>
      %44 = vector.shape_cast %43 : vector<1x32x128xf32> to vector<32x128xf32>
      %45 = vector.extract_strided_slice %28 {offsets = [0, 0], sizes = [28, 128], strides = [1, 1]} : vector<32x128xf32> to vector<28x128xf32>
      %46 = vector.extract_strided_slice %28 {offsets = [1, 0], sizes = [28, 128], strides = [1, 1]} : vector<32x128xf32> to vector<28x128xf32>
      %47 = vector.extract_strided_slice %28 {offsets = [2, 0], sizes = [28, 128], strides = [1, 1]} : vector<32x128xf32> to vector<28x128xf32>
      %48 = vector.extract_strided_slice %28 {offsets = [3, 0], sizes = [28, 128], strides = [1, 1]} : vector<32x128xf32> to vector<28x128xf32>
      %49 = vector.extract_strided_slice %28 {offsets = [4, 0], sizes = [28, 128], strides = [1, 1]} : vector<32x128xf32> to vector<28x128xf32>
      %50 = vector.extract_strided_slice %32 {offsets = [0, 0], sizes = [28, 128], strides = [1, 1]} : vector<32x128xf32> to vector<28x128xf32>
      %51 = vector.extract_strided_slice %32 {offsets = [1, 0], sizes = [28, 128], strides = [1, 1]} : vector<32x128xf32> to vector<28x128xf32>
      %52 = vector.extract_strided_slice %32 {offsets = [2, 0], sizes = [28, 128], strides = [1, 1]} : vector<32x128xf32> to vector<28x128xf32>
      %53 = vector.extract_strided_slice %32 {offsets = [3, 0], sizes = [28, 128], strides = [1, 1]} : vector<32x128xf32> to vector<28x128xf32>
      %54 = vector.extract_strided_slice %32 {offsets = [4, 0], sizes = [28, 128], strides = [1, 1]} : vector<32x128xf32> to vector<28x128xf32>
      %55 = vector.extract_strided_slice %36 {offsets = [0, 0], sizes = [28, 128], strides = [1, 1]} : vector<32x128xf32> to vector<28x128xf32>
      %56 = vector.extract_strided_slice %36 {offsets = [1, 0], sizes = [28, 128], strides = [1, 1]} : vector<32x128xf32> to vector<28x128xf32>
      %57 = vector.extract_strided_slice %36 {offsets = [2, 0], sizes = [28, 128], strides = [1, 1]} : vector<32x128xf32> to vector<28x128xf32>
      %58 = vector.extract_strided_slice %36 {offsets = [3, 0], sizes = [28, 128], strides = [1, 1]} : vector<32x128xf32> to vector<28x128xf32>
      %59 = vector.extract_strided_slice %36 {offsets = [4, 0], sizes = [28, 128], strides = [1, 1]} : vector<32x128xf32> to vector<28x128xf32>
      %60 = vector.extract_strided_slice %40 {offsets = [0, 0], sizes = [28, 128], strides = [1, 1]} : vector<32x128xf32> to vector<28x128xf32>
      %61 = vector.extract_strided_slice %40 {offsets = [1, 0], sizes = [28, 128], strides = [1, 1]} : vector<32x128xf32> to vector<28x128xf32>
      %62 = vector.extract_strided_slice %40 {offsets = [2, 0], sizes = [28, 128], strides = [1, 1]} : vector<32x128xf32> to vector<28x128xf32>
      %63 = vector.extract_strided_slice %40 {offsets = [3, 0], sizes = [28, 128], strides = [1, 1]} : vector<32x128xf32> to vector<28x128xf32>
      %64 = vector.extract_strided_slice %40 {offsets = [4, 0], sizes = [28, 128], strides = [1, 1]} : vector<32x128xf32> to vector<28x128xf32>
      %65 = vector.extract_strided_slice %44 {offsets = [0, 0], sizes = [28, 128], strides = [1, 1]} : vector<32x128xf32> to vector<28x128xf32>
      %66 = vector.extract_strided_slice %44 {offsets = [1, 0], sizes = [28, 128], strides = [1, 1]} : vector<32x128xf32> to vector<28x128xf32>
      %67 = vector.extract_strided_slice %44 {offsets = [2, 0], sizes = [28, 128], strides = [1, 1]} : vector<32x128xf32> to vector<28x128xf32>
      %68 = vector.extract_strided_slice %44 {offsets = [3, 0], sizes = [28, 128], strides = [1, 1]} : vector<32x128xf32> to vector<28x128xf32>
      %69 = vector.extract_strided_slice %44 {offsets = [4, 0], sizes = [28, 128], strides = [1, 1]} : vector<32x128xf32> to vector<28x128xf32>
      %c0_30 = arith.constant 0 : index
      %70 = memref.load %arg2[%c0_30] : memref<45xf32, #tpu.memory_space<smem>>
      %71 = vector.broadcast %70 : f32 to vector<28x128xf32>
      %72 = arith.mulf %71, %51 : vector<28x128xf32>
      %c1 = arith.constant 1 : index
      %73 = memref.load %arg2[%c1] : memref<45xf32, #tpu.memory_space<smem>>
      %74 = vector.broadcast %73 : f32 to vector<28x128xf32>
      %75 = arith.mulf %74, %52 : vector<28x128xf32>
      %76 = arith.addf %72, %75 : vector<28x128xf32>
      %c2 = arith.constant 2 : index
      %77 = memref.load %arg2[%c2] : memref<45xf32, #tpu.memory_space<smem>>
      %78 = vector.broadcast %77 : f32 to vector<28x128xf32>
      %79 = arith.mulf %78, %53 : vector<28x128xf32>
      %80 = arith.addf %76, %79 : vector<28x128xf32>
      %c3 = arith.constant 3 : index
      %81 = memref.load %arg2[%c3] : memref<45xf32, #tpu.memory_space<smem>>
      %82 = vector.broadcast %81 : f32 to vector<28x128xf32>
      %83 = arith.mulf %82, %56 : vector<28x128xf32>
      %84 = arith.addf %80, %83 : vector<28x128xf32>
      %c4 = arith.constant 4 : index
      %85 = memref.load %arg2[%c4] : memref<45xf32, #tpu.memory_space<smem>>
      %86 = vector.broadcast %85 : f32 to vector<28x128xf32>
      %87 = arith.mulf %86, %57 : vector<28x128xf32>
      %88 = arith.addf %84, %87 : vector<28x128xf32>
      %c5 = arith.constant 5 : index
      %89 = memref.load %arg2[%c5] : memref<45xf32, #tpu.memory_space<smem>>
      %90 = vector.broadcast %89 : f32 to vector<28x128xf32>
      %91 = arith.mulf %90, %58 : vector<28x128xf32>
      %92 = arith.addf %88, %91 : vector<28x128xf32>
      %c6 = arith.constant 6 : index
      %93 = memref.load %arg2[%c6] : memref<45xf32, #tpu.memory_space<smem>>
      %94 = vector.broadcast %93 : f32 to vector<28x128xf32>
      %95 = arith.mulf %94, %61 : vector<28x128xf32>
      %96 = arith.addf %92, %95 : vector<28x128xf32>
      %c7 = arith.constant 7 : index
      %97 = memref.load %arg2[%c7] : memref<45xf32, #tpu.memory_space<smem>>
      %98 = vector.broadcast %97 : f32 to vector<28x128xf32>
      %99 = arith.mulf %98, %62 : vector<28x128xf32>
      %100 = arith.addf %96, %99 : vector<28x128xf32>
      %c8 = arith.constant 8 : index
      %101 = memref.load %arg2[%c8] : memref<45xf32, #tpu.memory_space<smem>>
      %102 = vector.broadcast %101 : f32 to vector<28x128xf32>
      %103 = arith.mulf %102, %63 : vector<28x128xf32>
      %104 = arith.addf %100, %103 : vector<28x128xf32>
      %c0_31 = arith.constant 0 : index
      %105 = memref.load %arg3[%c0_31] : memref<5xf32, #tpu.memory_space<smem>>
      %106 = vector.broadcast %105 : f32 to vector<28x128xf32>
      %107 = arith.addf %104, %106 : vector<28x128xf32>
      %cst_32 = arith.constant 0.000000e+00 : f32
      %108 = vector.broadcast %cst_32 : f32 to vector<28x128xf32>
      %109 = arith.maximumf %107, %108 : vector<28x128xf32>
      %c0_33 = arith.constant 0 : index
      %110 = memref.load %arg4[%c0_33] : memref<5xf32, #tpu.memory_space<smem>>
      %111 = vector.broadcast %110 : f32 to vector<28x128xf32>
      %112 = arith.mulf %111, %109 : vector<28x128xf32>
      %c9 = arith.constant 9 : index
      %113 = memref.load %arg2[%c9] : memref<45xf32, #tpu.memory_space<smem>>
      %114 = vector.broadcast %113 : f32 to vector<28x128xf32>
      %115 = arith.mulf %114, %51 : vector<28x128xf32>
      %c10 = arith.constant 10 : index
      %116 = memref.load %arg2[%c10] : memref<45xf32, #tpu.memory_space<smem>>
      %117 = vector.broadcast %116 : f32 to vector<28x128xf32>
      %118 = arith.mulf %117, %52 : vector<28x128xf32>
      %119 = arith.addf %115, %118 : vector<28x128xf32>
      %c11 = arith.constant 11 : index
      %120 = memref.load %arg2[%c11] : memref<45xf32, #tpu.memory_space<smem>>
      %121 = vector.broadcast %120 : f32 to vector<28x128xf32>
      %122 = arith.mulf %121, %53 : vector<28x128xf32>
      %123 = arith.addf %119, %122 : vector<28x128xf32>
      %c12 = arith.constant 12 : index
      %124 = memref.load %arg2[%c12] : memref<45xf32, #tpu.memory_space<smem>>
      %125 = vector.broadcast %124 : f32 to vector<28x128xf32>
      %126 = arith.mulf %125, %56 : vector<28x128xf32>
      %127 = arith.addf %123, %126 : vector<28x128xf32>
      %c13 = arith.constant 13 : index
      %128 = memref.load %arg2[%c13] : memref<45xf32, #tpu.memory_space<smem>>
      %129 = vector.broadcast %128 : f32 to vector<28x128xf32>
      %130 = arith.mulf %129, %57 : vector<28x128xf32>
      %131 = arith.addf %127, %130 : vector<28x128xf32>
      %c14 = arith.constant 14 : index
      %132 = memref.load %arg2[%c14] : memref<45xf32, #tpu.memory_space<smem>>
      %133 = vector.broadcast %132 : f32 to vector<28x128xf32>
      %134 = arith.mulf %133, %58 : vector<28x128xf32>
      %135 = arith.addf %131, %134 : vector<28x128xf32>
      %c15 = arith.constant 15 : index
      %136 = memref.load %arg2[%c15] : memref<45xf32, #tpu.memory_space<smem>>
      %137 = vector.broadcast %136 : f32 to vector<28x128xf32>
      %138 = arith.mulf %137, %61 : vector<28x128xf32>
      %139 = arith.addf %135, %138 : vector<28x128xf32>
      %c16 = arith.constant 16 : index
      %140 = memref.load %arg2[%c16] : memref<45xf32, #tpu.memory_space<smem>>
      %141 = vector.broadcast %140 : f32 to vector<28x128xf32>
      %142 = arith.mulf %141, %62 : vector<28x128xf32>
      %143 = arith.addf %139, %142 : vector<28x128xf32>
      %c17 = arith.constant 17 : index
      %144 = memref.load %arg2[%c17] : memref<45xf32, #tpu.memory_space<smem>>
      %145 = vector.broadcast %144 : f32 to vector<28x128xf32>
      %146 = arith.mulf %145, %63 : vector<28x128xf32>
      %147 = arith.addf %143, %146 : vector<28x128xf32>
      %c1_34 = arith.constant 1 : index
      %148 = memref.load %arg3[%c1_34] : memref<5xf32, #tpu.memory_space<smem>>
      %149 = vector.broadcast %148 : f32 to vector<28x128xf32>
      %150 = arith.addf %147, %149 : vector<28x128xf32>
      %cst_35 = arith.constant 0.000000e+00 : f32
      %151 = vector.broadcast %cst_35 : f32 to vector<28x128xf32>
      %152 = arith.maximumf %150, %151 : vector<28x128xf32>
      %c1_36 = arith.constant 1 : index
      %153 = memref.load %arg4[%c1_36] : memref<5xf32, #tpu.memory_space<smem>>
      %154 = vector.broadcast %153 : f32 to vector<28x128xf32>
      %155 = arith.mulf %154, %152 : vector<28x128xf32>
      %156 = arith.addf %112, %155 : vector<28x128xf32>
      %c18 = arith.constant 18 : index
      %157 = memref.load %arg2[%c18] : memref<45xf32, #tpu.memory_space<smem>>
      %158 = vector.broadcast %157 : f32 to vector<28x128xf32>
      %159 = arith.mulf %158, %51 : vector<28x128xf32>
      %c19 = arith.constant 19 : index
      %160 = memref.load %arg2[%c19] : memref<45xf32, #tpu.memory_space<smem>>
      %161 = vector.broadcast %160 : f32 to vector<28x128xf32>
      %162 = arith.mulf %161, %52 : vector<28x128xf32>
      %163 = arith.addf %159, %162 : vector<28x128xf32>
      %c20 = arith.constant 20 : index
      %164 = memref.load %arg2[%c20] : memref<45xf32, #tpu.memory_space<smem>>
      %165 = vector.broadcast %164 : f32 to vector<28x128xf32>
      %166 = arith.mulf %165, %53 : vector<28x128xf32>
      %167 = arith.addf %163, %166 : vector<28x128xf32>
      %c21 = arith.constant 21 : index
      %168 = memref.load %arg2[%c21] : memref<45xf32, #tpu.memory_space<smem>>
      %169 = vector.broadcast %168 : f32 to vector<28x128xf32>
      %170 = arith.mulf %169, %56 : vector<28x128xf32>
      %171 = arith.addf %167, %170 : vector<28x128xf32>
      %c22 = arith.constant 22 : index
      %172 = memref.load %arg2[%c22] : memref<45xf32, #tpu.memory_space<smem>>
      %173 = vector.broadcast %172 : f32 to vector<28x128xf32>
      %174 = arith.mulf %173, %57 : vector<28x128xf32>
      %175 = arith.addf %171, %174 : vector<28x128xf32>
      %c23 = arith.constant 23 : index
      %176 = memref.load %arg2[%c23] : memref<45xf32, #tpu.memory_space<smem>>
      %177 = vector.broadcast %176 : f32 to vector<28x128xf32>
      %178 = arith.mulf %177, %58 : vector<28x128xf32>
      %179 = arith.addf %175, %178 : vector<28x128xf32>
      %c24 = arith.constant 24 : index
      %180 = memref.load %arg2[%c24] : memref<45xf32, #tpu.memory_space<smem>>
      %181 = vector.broadcast %180 : f32 to vector<28x128xf32>
      %182 = arith.mulf %181, %61 : vector<28x128xf32>
      %183 = arith.addf %179, %182 : vector<28x128xf32>
      %c25 = arith.constant 25 : index
      %184 = memref.load %arg2[%c25] : memref<45xf32, #tpu.memory_space<smem>>
      %185 = vector.broadcast %184 : f32 to vector<28x128xf32>
      %186 = arith.mulf %185, %62 : vector<28x128xf32>
      %187 = arith.addf %183, %186 : vector<28x128xf32>
      %c26 = arith.constant 26 : index
      %188 = memref.load %arg2[%c26] : memref<45xf32, #tpu.memory_space<smem>>
      %189 = vector.broadcast %188 : f32 to vector<28x128xf32>
      %190 = arith.mulf %189, %63 : vector<28x128xf32>
      %191 = arith.addf %187, %190 : vector<28x128xf32>
      %c2_37 = arith.constant 2 : index
      %192 = memref.load %arg3[%c2_37] : memref<5xf32, #tpu.memory_space<smem>>
      %193 = vector.broadcast %192 : f32 to vector<28x128xf32>
      %194 = arith.addf %191, %193 : vector<28x128xf32>
      %cst_38 = arith.constant 0.000000e+00 : f32
      %195 = vector.broadcast %cst_38 : f32 to vector<28x128xf32>
      %196 = arith.maximumf %194, %195 : vector<28x128xf32>
      %c2_39 = arith.constant 2 : index
      %197 = memref.load %arg4[%c2_39] : memref<5xf32, #tpu.memory_space<smem>>
      %198 = vector.broadcast %197 : f32 to vector<28x128xf32>
      %199 = arith.mulf %198, %196 : vector<28x128xf32>
      %200 = arith.addf %156, %199 : vector<28x128xf32>
      %c27 = arith.constant 27 : index
      %201 = memref.load %arg2[%c27] : memref<45xf32, #tpu.memory_space<smem>>
      %202 = vector.broadcast %201 : f32 to vector<28x128xf32>
      %203 = arith.mulf %202, %51 : vector<28x128xf32>
      %c28 = arith.constant 28 : index
      %204 = memref.load %arg2[%c28] : memref<45xf32, #tpu.memory_space<smem>>
      %205 = vector.broadcast %204 : f32 to vector<28x128xf32>
      %206 = arith.mulf %205, %52 : vector<28x128xf32>
      %207 = arith.addf %203, %206 : vector<28x128xf32>
      %c29 = arith.constant 29 : index
      %208 = memref.load %arg2[%c29] : memref<45xf32, #tpu.memory_space<smem>>
      %209 = vector.broadcast %208 : f32 to vector<28x128xf32>
      %210 = arith.mulf %209, %53 : vector<28x128xf32>
      %211 = arith.addf %207, %210 : vector<28x128xf32>
      %c30 = arith.constant 30 : index
      %212 = memref.load %arg2[%c30] : memref<45xf32, #tpu.memory_space<smem>>
      %213 = vector.broadcast %212 : f32 to vector<28x128xf32>
      %214 = arith.mulf %213, %56 : vector<28x128xf32>
      %215 = arith.addf %211, %214 : vector<28x128xf32>
      %c31 = arith.constant 31 : index
      %216 = memref.load %arg2[%c31] : memref<45xf32, #tpu.memory_space<smem>>
      %217 = vector.broadcast %216 : f32 to vector<28x128xf32>
      %218 = arith.mulf %217, %57 : vector<28x128xf32>
      %219 = arith.addf %215, %218 : vector<28x128xf32>
      %c32 = arith.constant 32 : index
      %220 = memref.load %arg2[%c32] : memref<45xf32, #tpu.memory_space<smem>>
      %221 = vector.broadcast %220 : f32 to vector<28x128xf32>
      %222 = arith.mulf %221, %58 : vector<28x128xf32>
      %223 = arith.addf %219, %222 : vector<28x128xf32>
      %c33 = arith.constant 33 : index
      %224 = memref.load %arg2[%c33] : memref<45xf32, #tpu.memory_space<smem>>
      %225 = vector.broadcast %224 : f32 to vector<28x128xf32>
      %226 = arith.mulf %225, %61 : vector<28x128xf32>
      %227 = arith.addf %223, %226 : vector<28x128xf32>
      %c34 = arith.constant 34 : index
      %228 = memref.load %arg2[%c34] : memref<45xf32, #tpu.memory_space<smem>>
      %229 = vector.broadcast %228 : f32 to vector<28x128xf32>
      %230 = arith.mulf %229, %62 : vector<28x128xf32>
      %231 = arith.addf %227, %230 : vector<28x128xf32>
      %c35 = arith.constant 35 : index
      %232 = memref.load %arg2[%c35] : memref<45xf32, #tpu.memory_space<smem>>
      %233 = vector.broadcast %232 : f32 to vector<28x128xf32>
      %234 = arith.mulf %233, %63 : vector<28x128xf32>
      %235 = arith.addf %231, %234 : vector<28x128xf32>
      %c3_40 = arith.constant 3 : index
      %236 = memref.load %arg3[%c3_40] : memref<5xf32, #tpu.memory_space<smem>>
      %237 = vector.broadcast %236 : f32 to vector<28x128xf32>
      %238 = arith.addf %235, %237 : vector<28x128xf32>
      %cst_41 = arith.constant 0.000000e+00 : f32
      %239 = vector.broadcast %cst_41 : f32 to vector<28x128xf32>
      %240 = arith.maximumf %238, %239 : vector<28x128xf32>
      %c3_42 = arith.constant 3 : index
      %241 = memref.load %arg4[%c3_42] : memref<5xf32, #tpu.memory_space<smem>>
      %242 = vector.broadcast %241 : f32 to vector<28x128xf32>
      %243 = arith.mulf %242, %240 : vector<28x128xf32>
      %244 = arith.addf %200, %243 : vector<28x128xf32>
      %c36 = arith.constant 36 : index
      %245 = memref.load %arg2[%c36] : memref<45xf32, #tpu.memory_space<smem>>
      %246 = vector.broadcast %245 : f32 to vector<28x128xf32>
      %247 = arith.mulf %246, %51 : vector<28x128xf32>
      %c37 = arith.constant 37 : index
      %248 = memref.load %arg2[%c37] : memref<45xf32, #tpu.memory_space<smem>>
      %249 = vector.broadcast %248 : f32 to vector<28x128xf32>
      %250 = arith.mulf %249, %52 : vector<28x128xf32>
      %251 = arith.addf %247, %250 : vector<28x128xf32>
      %c38 = arith.constant 38 : index
      %252 = memref.load %arg2[%c38] : memref<45xf32, #tpu.memory_space<smem>>
      %253 = vector.broadcast %252 : f32 to vector<28x128xf32>
      %254 = arith.mulf %253, %53 : vector<28x128xf32>
      %255 = arith.addf %251, %254 : vector<28x128xf32>
      %c39 = arith.constant 39 : index
      %256 = memref.load %arg2[%c39] : memref<45xf32, #tpu.memory_space<smem>>
      %257 = vector.broadcast %256 : f32 to vector<28x128xf32>
      %258 = arith.mulf %257, %56 : vector<28x128xf32>
      %259 = arith.addf %255, %258 : vector<28x128xf32>
      %c40 = arith.constant 40 : index
      %260 = memref.load %arg2[%c40] : memref<45xf32, #tpu.memory_space<smem>>
      %261 = vector.broadcast %260 : f32 to vector<28x128xf32>
      %262 = arith.mulf %261, %57 : vector<28x128xf32>
      %263 = arith.addf %259, %262 : vector<28x128xf32>
      %c41 = arith.constant 41 : index
      %264 = memref.load %arg2[%c41] : memref<45xf32, #tpu.memory_space<smem>>
      %265 = vector.broadcast %264 : f32 to vector<28x128xf32>
      %266 = arith.mulf %265, %58 : vector<28x128xf32>
      %267 = arith.addf %263, %266 : vector<28x128xf32>
      %c42 = arith.constant 42 : index
      %268 = memref.load %arg2[%c42] : memref<45xf32, #tpu.memory_space<smem>>
      %269 = vector.broadcast %268 : f32 to vector<28x128xf32>
      %270 = arith.mulf %269, %61 : vector<28x128xf32>
      %271 = arith.addf %267, %270 : vector<28x128xf32>
      %c43 = arith.constant 43 : index
      %272 = memref.load %arg2[%c43] : memref<45xf32, #tpu.memory_space<smem>>
      %273 = vector.broadcast %272 : f32 to vector<28x128xf32>
      %274 = arith.mulf %273, %62 : vector<28x128xf32>
      %275 = arith.addf %271, %274 : vector<28x128xf32>
      %c44 = arith.constant 44 : index
      %276 = memref.load %arg2[%c44] : memref<45xf32, #tpu.memory_space<smem>>
      %277 = vector.broadcast %276 : f32 to vector<28x128xf32>
      %278 = arith.mulf %277, %63 : vector<28x128xf32>
      %279 = arith.addf %275, %278 : vector<28x128xf32>
      %c4_43 = arith.constant 4 : index
      %280 = memref.load %arg3[%c4_43] : memref<5xf32, #tpu.memory_space<smem>>
      %281 = vector.broadcast %280 : f32 to vector<28x128xf32>
      %282 = arith.addf %279, %281 : vector<28x128xf32>
      %cst_44 = arith.constant 0.000000e+00 : f32
      %283 = vector.broadcast %cst_44 : f32 to vector<28x128xf32>
      %284 = arith.maximumf %282, %283 : vector<28x128xf32>
      %c4_45 = arith.constant 4 : index
      %285 = memref.load %arg4[%c4_45] : memref<5xf32, #tpu.memory_space<smem>>
      %286 = vector.broadcast %285 : f32 to vector<28x128xf32>
      %287 = arith.mulf %286, %284 : vector<28x128xf32>
      %288 = arith.addf %244, %287 : vector<28x128xf32>
      %c0_46 = arith.constant 0 : index
      %289 = memref.load %arg5[%c0_46] : memref<1xf32, #tpu.memory_space<smem>>
      %290 = vector.broadcast %289 : f32 to vector<28x128xf32>
      %291 = arith.addf %288, %290 : vector<28x128xf32>
      %cst_47 = arith.constant 0.000000e+00 : f32
      %292 = vector.broadcast %cst_47 : f32 to vector<28x128xf32>
      %293 = arith.maximumf %291, %292 : vector<28x128xf32>
      %c0_48 = arith.constant 0 : index
      %294 = memref.load %arg6[%c0_48] : memref<250xf32, #tpu.memory_space<smem>>
      %295 = vector.broadcast %294 : f32 to vector<28x128xf32>
      %296 = arith.mulf %295, %45 : vector<28x128xf32>
      %c1_49 = arith.constant 1 : index
      %297 = memref.load %arg6[%c1_49] : memref<250xf32, #tpu.memory_space<smem>>
      %298 = vector.broadcast %297 : f32 to vector<28x128xf32>
      %299 = arith.mulf %298, %46 : vector<28x128xf32>
      %300 = arith.addf %296, %299 : vector<28x128xf32>
      %c2_50 = arith.constant 2 : index
      %301 = memref.load %arg6[%c2_50] : memref<250xf32, #tpu.memory_space<smem>>
      %302 = vector.broadcast %301 : f32 to vector<28x128xf32>
      %303 = arith.mulf %302, %47 : vector<28x128xf32>
      %304 = arith.addf %300, %303 : vector<28x128xf32>
      %c3_51 = arith.constant 3 : index
      %305 = memref.load %arg6[%c3_51] : memref<250xf32, #tpu.memory_space<smem>>
      %306 = vector.broadcast %305 : f32 to vector<28x128xf32>
      %307 = arith.mulf %306, %48 : vector<28x128xf32>
      %308 = arith.addf %304, %307 : vector<28x128xf32>
      %c4_52 = arith.constant 4 : index
      %309 = memref.load %arg6[%c4_52] : memref<250xf32, #tpu.memory_space<smem>>
      %310 = vector.broadcast %309 : f32 to vector<28x128xf32>
      %311 = arith.mulf %310, %49 : vector<28x128xf32>
      %312 = arith.addf %308, %311 : vector<28x128xf32>
      %c5_53 = arith.constant 5 : index
      %313 = memref.load %arg6[%c5_53] : memref<250xf32, #tpu.memory_space<smem>>
      %314 = vector.broadcast %313 : f32 to vector<28x128xf32>
      %315 = arith.mulf %314, %50 : vector<28x128xf32>
      %316 = arith.addf %312, %315 : vector<28x128xf32>
      %c6_54 = arith.constant 6 : index
      %317 = memref.load %arg6[%c6_54] : memref<250xf32, #tpu.memory_space<smem>>
      %318 = vector.broadcast %317 : f32 to vector<28x128xf32>
      %319 = arith.mulf %318, %51 : vector<28x128xf32>
      %320 = arith.addf %316, %319 : vector<28x128xf32>
      %c7_55 = arith.constant 7 : index
      %321 = memref.load %arg6[%c7_55] : memref<250xf32, #tpu.memory_space<smem>>
      %322 = vector.broadcast %321 : f32 to vector<28x128xf32>
      %323 = arith.mulf %322, %52 : vector<28x128xf32>
      %324 = arith.addf %320, %323 : vector<28x128xf32>
      %c8_56 = arith.constant 8 : index
      %325 = memref.load %arg6[%c8_56] : memref<250xf32, #tpu.memory_space<smem>>
      %326 = vector.broadcast %325 : f32 to vector<28x128xf32>
      %327 = arith.mulf %326, %53 : vector<28x128xf32>
      %328 = arith.addf %324, %327 : vector<28x128xf32>
      %c9_57 = arith.constant 9 : index
      %329 = memref.load %arg6[%c9_57] : memref<250xf32, #tpu.memory_space<smem>>
      %330 = vector.broadcast %329 : f32 to vector<28x128xf32>
      %331 = arith.mulf %330, %54 : vector<28x128xf32>
      %332 = arith.addf %328, %331 : vector<28x128xf32>
      %c10_58 = arith.constant 10 : index
      %333 = memref.load %arg6[%c10_58] : memref<250xf32, #tpu.memory_space<smem>>
      %334 = vector.broadcast %333 : f32 to vector<28x128xf32>
      %335 = arith.mulf %334, %55 : vector<28x128xf32>
      %336 = arith.addf %332, %335 : vector<28x128xf32>
      %c11_59 = arith.constant 11 : index
      %337 = memref.load %arg6[%c11_59] : memref<250xf32, #tpu.memory_space<smem>>
      %338 = vector.broadcast %337 : f32 to vector<28x128xf32>
      %339 = arith.mulf %338, %56 : vector<28x128xf32>
      %340 = arith.addf %336, %339 : vector<28x128xf32>
      %c12_60 = arith.constant 12 : index
      %341 = memref.load %arg6[%c12_60] : memref<250xf32, #tpu.memory_space<smem>>
      %342 = vector.broadcast %341 : f32 to vector<28x128xf32>
      %343 = arith.mulf %342, %57 : vector<28x128xf32>
      %344 = arith.addf %340, %343 : vector<28x128xf32>
      %c13_61 = arith.constant 13 : index
      %345 = memref.load %arg6[%c13_61] : memref<250xf32, #tpu.memory_space<smem>>
      %346 = vector.broadcast %345 : f32 to vector<28x128xf32>
      %347 = arith.mulf %346, %58 : vector<28x128xf32>
      %348 = arith.addf %344, %347 : vector<28x128xf32>
      %c14_62 = arith.constant 14 : index
      %349 = memref.load %arg6[%c14_62] : memref<250xf32, #tpu.memory_space<smem>>
      %350 = vector.broadcast %349 : f32 to vector<28x128xf32>
      %351 = arith.mulf %350, %59 : vector<28x128xf32>
      %352 = arith.addf %348, %351 : vector<28x128xf32>
      %c15_63 = arith.constant 15 : index
      %353 = memref.load %arg6[%c15_63] : memref<250xf32, #tpu.memory_space<smem>>
      %354 = vector.broadcast %353 : f32 to vector<28x128xf32>
      %355 = arith.mulf %354, %60 : vector<28x128xf32>
      %356 = arith.addf %352, %355 : vector<28x128xf32>
      %c16_64 = arith.constant 16 : index
      %357 = memref.load %arg6[%c16_64] : memref<250xf32, #tpu.memory_space<smem>>
      %358 = vector.broadcast %357 : f32 to vector<28x128xf32>
      %359 = arith.mulf %358, %61 : vector<28x128xf32>
      %360 = arith.addf %356, %359 : vector<28x128xf32>
      %c17_65 = arith.constant 17 : index
      %361 = memref.load %arg6[%c17_65] : memref<250xf32, #tpu.memory_space<smem>>
      %362 = vector.broadcast %361 : f32 to vector<28x128xf32>
      %363 = arith.mulf %362, %62 : vector<28x128xf32>
      %364 = arith.addf %360, %363 : vector<28x128xf32>
      %c18_66 = arith.constant 18 : index
      %365 = memref.load %arg6[%c18_66] : memref<250xf32, #tpu.memory_space<smem>>
      %366 = vector.broadcast %365 : f32 to vector<28x128xf32>
      %367 = arith.mulf %366, %63 : vector<28x128xf32>
      %368 = arith.addf %364, %367 : vector<28x128xf32>
      %c19_67 = arith.constant 19 : index
      %369 = memref.load %arg6[%c19_67] : memref<250xf32, #tpu.memory_space<smem>>
      %370 = vector.broadcast %369 : f32 to vector<28x128xf32>
      %371 = arith.mulf %370, %64 : vector<28x128xf32>
      %372 = arith.addf %368, %371 : vector<28x128xf32>
      %c20_68 = arith.constant 20 : index
      %373 = memref.load %arg6[%c20_68] : memref<250xf32, #tpu.memory_space<smem>>
      %374 = vector.broadcast %373 : f32 to vector<28x128xf32>
      %375 = arith.mulf %374, %65 : vector<28x128xf32>
      %376 = arith.addf %372, %375 : vector<28x128xf32>
      %c21_69 = arith.constant 21 : index
      %377 = memref.load %arg6[%c21_69] : memref<250xf32, #tpu.memory_space<smem>>
      %378 = vector.broadcast %377 : f32 to vector<28x128xf32>
      %379 = arith.mulf %378, %66 : vector<28x128xf32>
      %380 = arith.addf %376, %379 : vector<28x128xf32>
      %c22_70 = arith.constant 22 : index
      %381 = memref.load %arg6[%c22_70] : memref<250xf32, #tpu.memory_space<smem>>
      %382 = vector.broadcast %381 : f32 to vector<28x128xf32>
      %383 = arith.mulf %382, %67 : vector<28x128xf32>
      %384 = arith.addf %380, %383 : vector<28x128xf32>
      %c23_71 = arith.constant 23 : index
      %385 = memref.load %arg6[%c23_71] : memref<250xf32, #tpu.memory_space<smem>>
      %386 = vector.broadcast %385 : f32 to vector<28x128xf32>
      %387 = arith.mulf %386, %68 : vector<28x128xf32>
      %388 = arith.addf %384, %387 : vector<28x128xf32>
      %c24_72 = arith.constant 24 : index
      %389 = memref.load %arg6[%c24_72] : memref<250xf32, #tpu.memory_space<smem>>
      %390 = vector.broadcast %389 : f32 to vector<28x128xf32>
      %391 = arith.mulf %390, %69 : vector<28x128xf32>
      %392 = arith.addf %388, %391 : vector<28x128xf32>
      %c0_73 = arith.constant 0 : index
      %393 = memref.load %arg7[%c0_73] : memref<10xf32, #tpu.memory_space<smem>>
      %394 = vector.broadcast %393 : f32 to vector<28x128xf32>
      %395 = arith.addf %392, %394 : vector<28x128xf32>
      %cst_74 = arith.constant 0.000000e+00 : f32
      %396 = vector.broadcast %cst_74 : f32 to vector<28x128xf32>
      %397 = arith.maximumf %395, %396 : vector<28x128xf32>
      %c0_75 = arith.constant 0 : index
      %398 = memref.load %arg8[%c0_75] : memref<10xf32, #tpu.memory_space<smem>>
      %399 = vector.broadcast %398 : f32 to vector<28x128xf32>
      %400 = arith.mulf %399, %397 : vector<28x128xf32>
      %c25_76 = arith.constant 25 : index
      %401 = memref.load %arg6[%c25_76] : memref<250xf32, #tpu.memory_space<smem>>
      %402 = vector.broadcast %401 : f32 to vector<28x128xf32>
      %403 = arith.mulf %402, %45 : vector<28x128xf32>
      %c26_77 = arith.constant 26 : index
      %404 = memref.load %arg6[%c26_77] : memref<250xf32, #tpu.memory_space<smem>>
      %405 = vector.broadcast %404 : f32 to vector<28x128xf32>
      %406 = arith.mulf %405, %46 : vector<28x128xf32>
      %407 = arith.addf %403, %406 : vector<28x128xf32>
      %c27_78 = arith.constant 27 : index
      %408 = memref.load %arg6[%c27_78] : memref<250xf32, #tpu.memory_space<smem>>
      %409 = vector.broadcast %408 : f32 to vector<28x128xf32>
      %410 = arith.mulf %409, %47 : vector<28x128xf32>
      %411 = arith.addf %407, %410 : vector<28x128xf32>
      %c28_79 = arith.constant 28 : index
      %412 = memref.load %arg6[%c28_79] : memref<250xf32, #tpu.memory_space<smem>>
      %413 = vector.broadcast %412 : f32 to vector<28x128xf32>
      %414 = arith.mulf %413, %48 : vector<28x128xf32>
      %415 = arith.addf %411, %414 : vector<28x128xf32>
      %c29_80 = arith.constant 29 : index
      %416 = memref.load %arg6[%c29_80] : memref<250xf32, #tpu.memory_space<smem>>
      %417 = vector.broadcast %416 : f32 to vector<28x128xf32>
      %418 = arith.mulf %417, %49 : vector<28x128xf32>
      %419 = arith.addf %415, %418 : vector<28x128xf32>
      %c30_81 = arith.constant 30 : index
      %420 = memref.load %arg6[%c30_81] : memref<250xf32, #tpu.memory_space<smem>>
      %421 = vector.broadcast %420 : f32 to vector<28x128xf32>
      %422 = arith.mulf %421, %50 : vector<28x128xf32>
      %423 = arith.addf %419, %422 : vector<28x128xf32>
      %c31_82 = arith.constant 31 : index
      %424 = memref.load %arg6[%c31_82] : memref<250xf32, #tpu.memory_space<smem>>
      %425 = vector.broadcast %424 : f32 to vector<28x128xf32>
      %426 = arith.mulf %425, %51 : vector<28x128xf32>
      %427 = arith.addf %423, %426 : vector<28x128xf32>
      %c32_83 = arith.constant 32 : index
      %428 = memref.load %arg6[%c32_83] : memref<250xf32, #tpu.memory_space<smem>>
      %429 = vector.broadcast %428 : f32 to vector<28x128xf32>
      %430 = arith.mulf %429, %52 : vector<28x128xf32>
      %431 = arith.addf %427, %430 : vector<28x128xf32>
      %c33_84 = arith.constant 33 : index
      %432 = memref.load %arg6[%c33_84] : memref<250xf32, #tpu.memory_space<smem>>
      %433 = vector.broadcast %432 : f32 to vector<28x128xf32>
      %434 = arith.mulf %433, %53 : vector<28x128xf32>
      %435 = arith.addf %431, %434 : vector<28x128xf32>
      %c34_85 = arith.constant 34 : index
      %436 = memref.load %arg6[%c34_85] : memref<250xf32, #tpu.memory_space<smem>>
      %437 = vector.broadcast %436 : f32 to vector<28x128xf32>
      %438 = arith.mulf %437, %54 : vector<28x128xf32>
      %439 = arith.addf %435, %438 : vector<28x128xf32>
      %c35_86 = arith.constant 35 : index
      %440 = memref.load %arg6[%c35_86] : memref<250xf32, #tpu.memory_space<smem>>
      %441 = vector.broadcast %440 : f32 to vector<28x128xf32>
      %442 = arith.mulf %441, %55 : vector<28x128xf32>
      %443 = arith.addf %439, %442 : vector<28x128xf32>
      %c36_87 = arith.constant 36 : index
      %444 = memref.load %arg6[%c36_87] : memref<250xf32, #tpu.memory_space<smem>>
      %445 = vector.broadcast %444 : f32 to vector<28x128xf32>
      %446 = arith.mulf %445, %56 : vector<28x128xf32>
      %447 = arith.addf %443, %446 : vector<28x128xf32>
      %c37_88 = arith.constant 37 : index
      %448 = memref.load %arg6[%c37_88] : memref<250xf32, #tpu.memory_space<smem>>
      %449 = vector.broadcast %448 : f32 to vector<28x128xf32>
      %450 = arith.mulf %449, %57 : vector<28x128xf32>
      %451 = arith.addf %447, %450 : vector<28x128xf32>
      %c38_89 = arith.constant 38 : index
      %452 = memref.load %arg6[%c38_89] : memref<250xf32, #tpu.memory_space<smem>>
      %453 = vector.broadcast %452 : f32 to vector<28x128xf32>
      %454 = arith.mulf %453, %58 : vector<28x128xf32>
      %455 = arith.addf %451, %454 : vector<28x128xf32>
      %c39_90 = arith.constant 39 : index
      %456 = memref.load %arg6[%c39_90] : memref<250xf32, #tpu.memory_space<smem>>
      %457 = vector.broadcast %456 : f32 to vector<28x128xf32>
      %458 = arith.mulf %457, %59 : vector<28x128xf32>
      %459 = arith.addf %455, %458 : vector<28x128xf32>
      %c40_91 = arith.constant 40 : index
      %460 = memref.load %arg6[%c40_91] : memref<250xf32, #tpu.memory_space<smem>>
      %461 = vector.broadcast %460 : f32 to vector<28x128xf32>
      %462 = arith.mulf %461, %60 : vector<28x128xf32>
      %463 = arith.addf %459, %462 : vector<28x128xf32>
      %c41_92 = arith.constant 41 : index
      %464 = memref.load %arg6[%c41_92] : memref<250xf32, #tpu.memory_space<smem>>
      %465 = vector.broadcast %464 : f32 to vector<28x128xf32>
      %466 = arith.mulf %465, %61 : vector<28x128xf32>
      %467 = arith.addf %463, %466 : vector<28x128xf32>
      %c42_93 = arith.constant 42 : index
      %468 = memref.load %arg6[%c42_93] : memref<250xf32, #tpu.memory_space<smem>>
      %469 = vector.broadcast %468 : f32 to vector<28x128xf32>
      %470 = arith.mulf %469, %62 : vector<28x128xf32>
      %471 = arith.addf %467, %470 : vector<28x128xf32>
      %c43_94 = arith.constant 43 : index
      %472 = memref.load %arg6[%c43_94] : memref<250xf32, #tpu.memory_space<smem>>
      %473 = vector.broadcast %472 : f32 to vector<28x128xf32>
      %474 = arith.mulf %473, %63 : vector<28x128xf32>
      %475 = arith.addf %471, %474 : vector<28x128xf32>
      %c44_95 = arith.constant 44 : index
      %476 = memref.load %arg6[%c44_95] : memref<250xf32, #tpu.memory_space<smem>>
      %477 = vector.broadcast %476 : f32 to vector<28x128xf32>
      %478 = arith.mulf %477, %64 : vector<28x128xf32>
      %479 = arith.addf %475, %478 : vector<28x128xf32>
      %c45 = arith.constant 45 : index
      %480 = memref.load %arg6[%c45] : memref<250xf32, #tpu.memory_space<smem>>
      %481 = vector.broadcast %480 : f32 to vector<28x128xf32>
      %482 = arith.mulf %481, %65 : vector<28x128xf32>
      %483 = arith.addf %479, %482 : vector<28x128xf32>
      %c46 = arith.constant 46 : index
      %484 = memref.load %arg6[%c46] : memref<250xf32, #tpu.memory_space<smem>>
      %485 = vector.broadcast %484 : f32 to vector<28x128xf32>
      %486 = arith.mulf %485, %66 : vector<28x128xf32>
      %487 = arith.addf %483, %486 : vector<28x128xf32>
      %c47 = arith.constant 47 : index
      %488 = memref.load %arg6[%c47] : memref<250xf32, #tpu.memory_space<smem>>
      %489 = vector.broadcast %488 : f32 to vector<28x128xf32>
      %490 = arith.mulf %489, %67 : vector<28x128xf32>
      %491 = arith.addf %487, %490 : vector<28x128xf32>
      %c48 = arith.constant 48 : index
      %492 = memref.load %arg6[%c48] : memref<250xf32, #tpu.memory_space<smem>>
      %493 = vector.broadcast %492 : f32 to vector<28x128xf32>
      %494 = arith.mulf %493, %68 : vector<28x128xf32>
      %495 = arith.addf %491, %494 : vector<28x128xf32>
      %c49 = arith.constant 49 : index
      %496 = memref.load %arg6[%c49] : memref<250xf32, #tpu.memory_space<smem>>
      %497 = vector.broadcast %496 : f32 to vector<28x128xf32>
      %498 = arith.mulf %497, %69 : vector<28x128xf32>
      %499 = arith.addf %495, %498 : vector<28x128xf32>
      %c1_96 = arith.constant 1 : index
      %500 = memref.load %arg7[%c1_96] : memref<10xf32, #tpu.memory_space<smem>>
      %501 = vector.broadcast %500 : f32 to vector<28x128xf32>
      %502 = arith.addf %499, %501 : vector<28x128xf32>
      %cst_97 = arith.constant 0.000000e+00 : f32
      %503 = vector.broadcast %cst_97 : f32 to vector<28x128xf32>
      %504 = arith.maximumf %502, %503 : vector<28x128xf32>
      %c1_98 = arith.constant 1 : index
      %505 = memref.load %arg8[%c1_98] : memref<10xf32, #tpu.memory_space<smem>>
      %506 = vector.broadcast %505 : f32 to vector<28x128xf32>
      %507 = arith.mulf %506, %504 : vector<28x128xf32>
      %508 = arith.addf %400, %507 : vector<28x128xf32>
      %c50 = arith.constant 50 : index
      %509 = memref.load %arg6[%c50] : memref<250xf32, #tpu.memory_space<smem>>
      %510 = vector.broadcast %509 : f32 to vector<28x128xf32>
      %511 = arith.mulf %510, %45 : vector<28x128xf32>
      %c51 = arith.constant 51 : index
      %512 = memref.load %arg6[%c51] : memref<250xf32, #tpu.memory_space<smem>>
      %513 = vector.broadcast %512 : f32 to vector<28x128xf32>
      %514 = arith.mulf %513, %46 : vector<28x128xf32>
      %515 = arith.addf %511, %514 : vector<28x128xf32>
      %c52 = arith.constant 52 : index
      %516 = memref.load %arg6[%c52] : memref<250xf32, #tpu.memory_space<smem>>
      %517 = vector.broadcast %516 : f32 to vector<28x128xf32>
      %518 = arith.mulf %517, %47 : vector<28x128xf32>
      %519 = arith.addf %515, %518 : vector<28x128xf32>
      %c53 = arith.constant 53 : index
      %520 = memref.load %arg6[%c53] : memref<250xf32, #tpu.memory_space<smem>>
      %521 = vector.broadcast %520 : f32 to vector<28x128xf32>
      %522 = arith.mulf %521, %48 : vector<28x128xf32>
      %523 = arith.addf %519, %522 : vector<28x128xf32>
      %c54 = arith.constant 54 : index
      %524 = memref.load %arg6[%c54] : memref<250xf32, #tpu.memory_space<smem>>
      %525 = vector.broadcast %524 : f32 to vector<28x128xf32>
      %526 = arith.mulf %525, %49 : vector<28x128xf32>
      %527 = arith.addf %523, %526 : vector<28x128xf32>
      %c55 = arith.constant 55 : index
      %528 = memref.load %arg6[%c55] : memref<250xf32, #tpu.memory_space<smem>>
      %529 = vector.broadcast %528 : f32 to vector<28x128xf32>
      %530 = arith.mulf %529, %50 : vector<28x128xf32>
      %531 = arith.addf %527, %530 : vector<28x128xf32>
      %c56 = arith.constant 56 : index
      %532 = memref.load %arg6[%c56] : memref<250xf32, #tpu.memory_space<smem>>
      %533 = vector.broadcast %532 : f32 to vector<28x128xf32>
      %534 = arith.mulf %533, %51 : vector<28x128xf32>
      %535 = arith.addf %531, %534 : vector<28x128xf32>
      %c57 = arith.constant 57 : index
      %536 = memref.load %arg6[%c57] : memref<250xf32, #tpu.memory_space<smem>>
      %537 = vector.broadcast %536 : f32 to vector<28x128xf32>
      %538 = arith.mulf %537, %52 : vector<28x128xf32>
      %539 = arith.addf %535, %538 : vector<28x128xf32>
      %c58 = arith.constant 58 : index
      %540 = memref.load %arg6[%c58] : memref<250xf32, #tpu.memory_space<smem>>
      %541 = vector.broadcast %540 : f32 to vector<28x128xf32>
      %542 = arith.mulf %541, %53 : vector<28x128xf32>
      %543 = arith.addf %539, %542 : vector<28x128xf32>
      %c59 = arith.constant 59 : index
      %544 = memref.load %arg6[%c59] : memref<250xf32, #tpu.memory_space<smem>>
      %545 = vector.broadcast %544 : f32 to vector<28x128xf32>
      %546 = arith.mulf %545, %54 : vector<28x128xf32>
      %547 = arith.addf %543, %546 : vector<28x128xf32>
      %c60 = arith.constant 60 : index
      %548 = memref.load %arg6[%c60] : memref<250xf32, #tpu.memory_space<smem>>
      %549 = vector.broadcast %548 : f32 to vector<28x128xf32>
      %550 = arith.mulf %549, %55 : vector<28x128xf32>
      %551 = arith.addf %547, %550 : vector<28x128xf32>
      %c61 = arith.constant 61 : index
      %552 = memref.load %arg6[%c61] : memref<250xf32, #tpu.memory_space<smem>>
      %553 = vector.broadcast %552 : f32 to vector<28x128xf32>
      %554 = arith.mulf %553, %56 : vector<28x128xf32>
      %555 = arith.addf %551, %554 : vector<28x128xf32>
      %c62 = arith.constant 62 : index
      %556 = memref.load %arg6[%c62] : memref<250xf32, #tpu.memory_space<smem>>
      %557 = vector.broadcast %556 : f32 to vector<28x128xf32>
      %558 = arith.mulf %557, %57 : vector<28x128xf32>
      %559 = arith.addf %555, %558 : vector<28x128xf32>
      %c63 = arith.constant 63 : index
      %560 = memref.load %arg6[%c63] : memref<250xf32, #tpu.memory_space<smem>>
      %561 = vector.broadcast %560 : f32 to vector<28x128xf32>
      %562 = arith.mulf %561, %58 : vector<28x128xf32>
      %563 = arith.addf %559, %562 : vector<28x128xf32>
      %c64 = arith.constant 64 : index
      %564 = memref.load %arg6[%c64] : memref<250xf32, #tpu.memory_space<smem>>
      %565 = vector.broadcast %564 : f32 to vector<28x128xf32>
      %566 = arith.mulf %565, %59 : vector<28x128xf32>
      %567 = arith.addf %563, %566 : vector<28x128xf32>
      %c65 = arith.constant 65 : index
      %568 = memref.load %arg6[%c65] : memref<250xf32, #tpu.memory_space<smem>>
      %569 = vector.broadcast %568 : f32 to vector<28x128xf32>
      %570 = arith.mulf %569, %60 : vector<28x128xf32>
      %571 = arith.addf %567, %570 : vector<28x128xf32>
      %c66 = arith.constant 66 : index
      %572 = memref.load %arg6[%c66] : memref<250xf32, #tpu.memory_space<smem>>
      %573 = vector.broadcast %572 : f32 to vector<28x128xf32>
      %574 = arith.mulf %573, %61 : vector<28x128xf32>
      %575 = arith.addf %571, %574 : vector<28x128xf32>
      %c67 = arith.constant 67 : index
      %576 = memref.load %arg6[%c67] : memref<250xf32, #tpu.memory_space<smem>>
      %577 = vector.broadcast %576 : f32 to vector<28x128xf32>
      %578 = arith.mulf %577, %62 : vector<28x128xf32>
      %579 = arith.addf %575, %578 : vector<28x128xf32>
      %c68 = arith.constant 68 : index
      %580 = memref.load %arg6[%c68] : memref<250xf32, #tpu.memory_space<smem>>
      %581 = vector.broadcast %580 : f32 to vector<28x128xf32>
      %582 = arith.mulf %581, %63 : vector<28x128xf32>
      %583 = arith.addf %579, %582 : vector<28x128xf32>
      %c69 = arith.constant 69 : index
      %584 = memref.load %arg6[%c69] : memref<250xf32, #tpu.memory_space<smem>>
      %585 = vector.broadcast %584 : f32 to vector<28x128xf32>
      %586 = arith.mulf %585, %64 : vector<28x128xf32>
      %587 = arith.addf %583, %586 : vector<28x128xf32>
      %c70 = arith.constant 70 : index
      %588 = memref.load %arg6[%c70] : memref<250xf32, #tpu.memory_space<smem>>
      %589 = vector.broadcast %588 : f32 to vector<28x128xf32>
      %590 = arith.mulf %589, %65 : vector<28x128xf32>
      %591 = arith.addf %587, %590 : vector<28x128xf32>
      %c71 = arith.constant 71 : index
      %592 = memref.load %arg6[%c71] : memref<250xf32, #tpu.memory_space<smem>>
      %593 = vector.broadcast %592 : f32 to vector<28x128xf32>
      %594 = arith.mulf %593, %66 : vector<28x128xf32>
      %595 = arith.addf %591, %594 : vector<28x128xf32>
      %c72 = arith.constant 72 : index
      %596 = memref.load %arg6[%c72] : memref<250xf32, #tpu.memory_space<smem>>
      %597 = vector.broadcast %596 : f32 to vector<28x128xf32>
      %598 = arith.mulf %597, %67 : vector<28x128xf32>
      %599 = arith.addf %595, %598 : vector<28x128xf32>
      %c73 = arith.constant 73 : index
      %600 = memref.load %arg6[%c73] : memref<250xf32, #tpu.memory_space<smem>>
      %601 = vector.broadcast %600 : f32 to vector<28x128xf32>
      %602 = arith.mulf %601, %68 : vector<28x128xf32>
      %603 = arith.addf %599, %602 : vector<28x128xf32>
      %c74 = arith.constant 74 : index
      %604 = memref.load %arg6[%c74] : memref<250xf32, #tpu.memory_space<smem>>
      %605 = vector.broadcast %604 : f32 to vector<28x128xf32>
      %606 = arith.mulf %605, %69 : vector<28x128xf32>
      %607 = arith.addf %603, %606 : vector<28x128xf32>
      %c2_99 = arith.constant 2 : index
      %608 = memref.load %arg7[%c2_99] : memref<10xf32, #tpu.memory_space<smem>>
      %609 = vector.broadcast %608 : f32 to vector<28x128xf32>
      %610 = arith.addf %607, %609 : vector<28x128xf32>
      %cst_100 = arith.constant 0.000000e+00 : f32
      %611 = vector.broadcast %cst_100 : f32 to vector<28x128xf32>
      %612 = arith.maximumf %610, %611 : vector<28x128xf32>
      %c2_101 = arith.constant 2 : index
      %613 = memref.load %arg8[%c2_101] : memref<10xf32, #tpu.memory_space<smem>>
      %614 = vector.broadcast %613 : f32 to vector<28x128xf32>
      %615 = arith.mulf %614, %612 : vector<28x128xf32>
      %616 = arith.addf %508, %615 : vector<28x128xf32>
      %c75 = arith.constant 75 : index
      %617 = memref.load %arg6[%c75] : memref<250xf32, #tpu.memory_space<smem>>
      %618 = vector.broadcast %617 : f32 to vector<28x128xf32>
      %619 = arith.mulf %618, %45 : vector<28x128xf32>
      %c76 = arith.constant 76 : index
      %620 = memref.load %arg6[%c76] : memref<250xf32, #tpu.memory_space<smem>>
      %621 = vector.broadcast %620 : f32 to vector<28x128xf32>
      %622 = arith.mulf %621, %46 : vector<28x128xf32>
      %623 = arith.addf %619, %622 : vector<28x128xf32>
      %c77 = arith.constant 77 : index
      %624 = memref.load %arg6[%c77] : memref<250xf32, #tpu.memory_space<smem>>
      %625 = vector.broadcast %624 : f32 to vector<28x128xf32>
      %626 = arith.mulf %625, %47 : vector<28x128xf32>
      %627 = arith.addf %623, %626 : vector<28x128xf32>
      %c78 = arith.constant 78 : index
      %628 = memref.load %arg6[%c78] : memref<250xf32, #tpu.memory_space<smem>>
      %629 = vector.broadcast %628 : f32 to vector<28x128xf32>
      %630 = arith.mulf %629, %48 : vector<28x128xf32>
      %631 = arith.addf %627, %630 : vector<28x128xf32>
      %c79 = arith.constant 79 : index
      %632 = memref.load %arg6[%c79] : memref<250xf32, #tpu.memory_space<smem>>
      %633 = vector.broadcast %632 : f32 to vector<28x128xf32>
      %634 = arith.mulf %633, %49 : vector<28x128xf32>
      %635 = arith.addf %631, %634 : vector<28x128xf32>
      %c80 = arith.constant 80 : index
      %636 = memref.load %arg6[%c80] : memref<250xf32, #tpu.memory_space<smem>>
      %637 = vector.broadcast %636 : f32 to vector<28x128xf32>
      %638 = arith.mulf %637, %50 : vector<28x128xf32>
      %639 = arith.addf %635, %638 : vector<28x128xf32>
      %c81 = arith.constant 81 : index
      %640 = memref.load %arg6[%c81] : memref<250xf32, #tpu.memory_space<smem>>
      %641 = vector.broadcast %640 : f32 to vector<28x128xf32>
      %642 = arith.mulf %641, %51 : vector<28x128xf32>
      %643 = arith.addf %639, %642 : vector<28x128xf32>
      %c82 = arith.constant 82 : index
      %644 = memref.load %arg6[%c82] : memref<250xf32, #tpu.memory_space<smem>>
      %645 = vector.broadcast %644 : f32 to vector<28x128xf32>
      %646 = arith.mulf %645, %52 : vector<28x128xf32>
      %647 = arith.addf %643, %646 : vector<28x128xf32>
      %c83 = arith.constant 83 : index
      %648 = memref.load %arg6[%c83] : memref<250xf32, #tpu.memory_space<smem>>
      %649 = vector.broadcast %648 : f32 to vector<28x128xf32>
      %650 = arith.mulf %649, %53 : vector<28x128xf32>
      %651 = arith.addf %647, %650 : vector<28x128xf32>
      %c84 = arith.constant 84 : index
      %652 = memref.load %arg6[%c84] : memref<250xf32, #tpu.memory_space<smem>>
      %653 = vector.broadcast %652 : f32 to vector<28x128xf32>
      %654 = arith.mulf %653, %54 : vector<28x128xf32>
      %655 = arith.addf %651, %654 : vector<28x128xf32>
      %c85 = arith.constant 85 : index
      %656 = memref.load %arg6[%c85] : memref<250xf32, #tpu.memory_space<smem>>
      %657 = vector.broadcast %656 : f32 to vector<28x128xf32>
      %658 = arith.mulf %657, %55 : vector<28x128xf32>
      %659 = arith.addf %655, %658 : vector<28x128xf32>
      %c86 = arith.constant 86 : index
      %660 = memref.load %arg6[%c86] : memref<250xf32, #tpu.memory_space<smem>>
      %661 = vector.broadcast %660 : f32 to vector<28x128xf32>
      %662 = arith.mulf %661, %56 : vector<28x128xf32>
      %663 = arith.addf %659, %662 : vector<28x128xf32>
      %c87 = arith.constant 87 : index
      %664 = memref.load %arg6[%c87] : memref<250xf32, #tpu.memory_space<smem>>
      %665 = vector.broadcast %664 : f32 to vector<28x128xf32>
      %666 = arith.mulf %665, %57 : vector<28x128xf32>
      %667 = arith.addf %663, %666 : vector<28x128xf32>
      %c88 = arith.constant 88 : index
      %668 = memref.load %arg6[%c88] : memref<250xf32, #tpu.memory_space<smem>>
      %669 = vector.broadcast %668 : f32 to vector<28x128xf32>
      %670 = arith.mulf %669, %58 : vector<28x128xf32>
      %671 = arith.addf %667, %670 : vector<28x128xf32>
      %c89 = arith.constant 89 : index
      %672 = memref.load %arg6[%c89] : memref<250xf32, #tpu.memory_space<smem>>
      %673 = vector.broadcast %672 : f32 to vector<28x128xf32>
      %674 = arith.mulf %673, %59 : vector<28x128xf32>
      %675 = arith.addf %671, %674 : vector<28x128xf32>
      %c90 = arith.constant 90 : index
      %676 = memref.load %arg6[%c90] : memref<250xf32, #tpu.memory_space<smem>>
      %677 = vector.broadcast %676 : f32 to vector<28x128xf32>
      %678 = arith.mulf %677, %60 : vector<28x128xf32>
      %679 = arith.addf %675, %678 : vector<28x128xf32>
      %c91 = arith.constant 91 : index
      %680 = memref.load %arg6[%c91] : memref<250xf32, #tpu.memory_space<smem>>
      %681 = vector.broadcast %680 : f32 to vector<28x128xf32>
      %682 = arith.mulf %681, %61 : vector<28x128xf32>
      %683 = arith.addf %679, %682 : vector<28x128xf32>
      %c92 = arith.constant 92 : index
      %684 = memref.load %arg6[%c92] : memref<250xf32, #tpu.memory_space<smem>>
      %685 = vector.broadcast %684 : f32 to vector<28x128xf32>
      %686 = arith.mulf %685, %62 : vector<28x128xf32>
      %687 = arith.addf %683, %686 : vector<28x128xf32>
      %c93 = arith.constant 93 : index
      %688 = memref.load %arg6[%c93] : memref<250xf32, #tpu.memory_space<smem>>
      %689 = vector.broadcast %688 : f32 to vector<28x128xf32>
      %690 = arith.mulf %689, %63 : vector<28x128xf32>
      %691 = arith.addf %687, %690 : vector<28x128xf32>
      %c94 = arith.constant 94 : index
      %692 = memref.load %arg6[%c94] : memref<250xf32, #tpu.memory_space<smem>>
      %693 = vector.broadcast %692 : f32 to vector<28x128xf32>
      %694 = arith.mulf %693, %64 : vector<28x128xf32>
      %695 = arith.addf %691, %694 : vector<28x128xf32>
      %c95 = arith.constant 95 : index
      %696 = memref.load %arg6[%c95] : memref<250xf32, #tpu.memory_space<smem>>
      %697 = vector.broadcast %696 : f32 to vector<28x128xf32>
      %698 = arith.mulf %697, %65 : vector<28x128xf32>
      %699 = arith.addf %695, %698 : vector<28x128xf32>
      %c96 = arith.constant 96 : index
      %700 = memref.load %arg6[%c96] : memref<250xf32, #tpu.memory_space<smem>>
      %701 = vector.broadcast %700 : f32 to vector<28x128xf32>
      %702 = arith.mulf %701, %66 : vector<28x128xf32>
      %703 = arith.addf %699, %702 : vector<28x128xf32>
      %c97 = arith.constant 97 : index
      %704 = memref.load %arg6[%c97] : memref<250xf32, #tpu.memory_space<smem>>
      %705 = vector.broadcast %704 : f32 to vector<28x128xf32>
      %706 = arith.mulf %705, %67 : vector<28x128xf32>
      %707 = arith.addf %703, %706 : vector<28x128xf32>
      %c98 = arith.constant 98 : index
      %708 = memref.load %arg6[%c98] : memref<250xf32, #tpu.memory_space<smem>>
      %709 = vector.broadcast %708 : f32 to vector<28x128xf32>
      %710 = arith.mulf %709, %68 : vector<28x128xf32>
      %711 = arith.addf %707, %710 : vector<28x128xf32>
      %c99 = arith.constant 99 : index
      %712 = memref.load %arg6[%c99] : memref<250xf32, #tpu.memory_space<smem>>
      %713 = vector.broadcast %712 : f32 to vector<28x128xf32>
      %714 = arith.mulf %713, %69 : vector<28x128xf32>
      %715 = arith.addf %711, %714 : vector<28x128xf32>
      %c3_102 = arith.constant 3 : index
      %716 = memref.load %arg7[%c3_102] : memref<10xf32, #tpu.memory_space<smem>>
      %717 = vector.broadcast %716 : f32 to vector<28x128xf32>
      %718 = arith.addf %715, %717 : vector<28x128xf32>
      %cst_103 = arith.constant 0.000000e+00 : f32
      %719 = vector.broadcast %cst_103 : f32 to vector<28x128xf32>
      %720 = arith.maximumf %718, %719 : vector<28x128xf32>
      %c3_104 = arith.constant 3 : index
      %721 = memref.load %arg8[%c3_104] : memref<10xf32, #tpu.memory_space<smem>>
      %722 = vector.broadcast %721 : f32 to vector<28x128xf32>
      %723 = arith.mulf %722, %720 : vector<28x128xf32>
      %724 = arith.addf %616, %723 : vector<28x128xf32>
      %c100 = arith.constant 100 : index
      %725 = memref.load %arg6[%c100] : memref<250xf32, #tpu.memory_space<smem>>
      %726 = vector.broadcast %725 : f32 to vector<28x128xf32>
      %727 = arith.mulf %726, %45 : vector<28x128xf32>
      %c101 = arith.constant 101 : index
      %728 = memref.load %arg6[%c101] : memref<250xf32, #tpu.memory_space<smem>>
      %729 = vector.broadcast %728 : f32 to vector<28x128xf32>
      %730 = arith.mulf %729, %46 : vector<28x128xf32>
      %731 = arith.addf %727, %730 : vector<28x128xf32>
      %c102 = arith.constant 102 : index
      %732 = memref.load %arg6[%c102] : memref<250xf32, #tpu.memory_space<smem>>
      %733 = vector.broadcast %732 : f32 to vector<28x128xf32>
      %734 = arith.mulf %733, %47 : vector<28x128xf32>
      %735 = arith.addf %731, %734 : vector<28x128xf32>
      %c103 = arith.constant 103 : index
      %736 = memref.load %arg6[%c103] : memref<250xf32, #tpu.memory_space<smem>>
      %737 = vector.broadcast %736 : f32 to vector<28x128xf32>
      %738 = arith.mulf %737, %48 : vector<28x128xf32>
      %739 = arith.addf %735, %738 : vector<28x128xf32>
      %c104 = arith.constant 104 : index
      %740 = memref.load %arg6[%c104] : memref<250xf32, #tpu.memory_space<smem>>
      %741 = vector.broadcast %740 : f32 to vector<28x128xf32>
      %742 = arith.mulf %741, %49 : vector<28x128xf32>
      %743 = arith.addf %739, %742 : vector<28x128xf32>
      %c105 = arith.constant 105 : index
      %744 = memref.load %arg6[%c105] : memref<250xf32, #tpu.memory_space<smem>>
      %745 = vector.broadcast %744 : f32 to vector<28x128xf32>
      %746 = arith.mulf %745, %50 : vector<28x128xf32>
      %747 = arith.addf %743, %746 : vector<28x128xf32>
      %c106 = arith.constant 106 : index
      %748 = memref.load %arg6[%c106] : memref<250xf32, #tpu.memory_space<smem>>
      %749 = vector.broadcast %748 : f32 to vector<28x128xf32>
      %750 = arith.mulf %749, %51 : vector<28x128xf32>
      %751 = arith.addf %747, %750 : vector<28x128xf32>
      %c107 = arith.constant 107 : index
      %752 = memref.load %arg6[%c107] : memref<250xf32, #tpu.memory_space<smem>>
      %753 = vector.broadcast %752 : f32 to vector<28x128xf32>
      %754 = arith.mulf %753, %52 : vector<28x128xf32>
      %755 = arith.addf %751, %754 : vector<28x128xf32>
      %c108 = arith.constant 108 : index
      %756 = memref.load %arg6[%c108] : memref<250xf32, #tpu.memory_space<smem>>
      %757 = vector.broadcast %756 : f32 to vector<28x128xf32>
      %758 = arith.mulf %757, %53 : vector<28x128xf32>
      %759 = arith.addf %755, %758 : vector<28x128xf32>
      %c109 = arith.constant 109 : index
      %760 = memref.load %arg6[%c109] : memref<250xf32, #tpu.memory_space<smem>>
      %761 = vector.broadcast %760 : f32 to vector<28x128xf32>
      %762 = arith.mulf %761, %54 : vector<28x128xf32>
      %763 = arith.addf %759, %762 : vector<28x128xf32>
      %c110 = arith.constant 110 : index
      %764 = memref.load %arg6[%c110] : memref<250xf32, #tpu.memory_space<smem>>
      %765 = vector.broadcast %764 : f32 to vector<28x128xf32>
      %766 = arith.mulf %765, %55 : vector<28x128xf32>
      %767 = arith.addf %763, %766 : vector<28x128xf32>
      %c111 = arith.constant 111 : index
      %768 = memref.load %arg6[%c111] : memref<250xf32, #tpu.memory_space<smem>>
      %769 = vector.broadcast %768 : f32 to vector<28x128xf32>
      %770 = arith.mulf %769, %56 : vector<28x128xf32>
      %771 = arith.addf %767, %770 : vector<28x128xf32>
      %c112 = arith.constant 112 : index
      %772 = memref.load %arg6[%c112] : memref<250xf32, #tpu.memory_space<smem>>
      %773 = vector.broadcast %772 : f32 to vector<28x128xf32>
      %774 = arith.mulf %773, %57 : vector<28x128xf32>
      %775 = arith.addf %771, %774 : vector<28x128xf32>
      %c113 = arith.constant 113 : index
      %776 = memref.load %arg6[%c113] : memref<250xf32, #tpu.memory_space<smem>>
      %777 = vector.broadcast %776 : f32 to vector<28x128xf32>
      %778 = arith.mulf %777, %58 : vector<28x128xf32>
      %779 = arith.addf %775, %778 : vector<28x128xf32>
      %c114 = arith.constant 114 : index
      %780 = memref.load %arg6[%c114] : memref<250xf32, #tpu.memory_space<smem>>
      %781 = vector.broadcast %780 : f32 to vector<28x128xf32>
      %782 = arith.mulf %781, %59 : vector<28x128xf32>
      %783 = arith.addf %779, %782 : vector<28x128xf32>
      %c115 = arith.constant 115 : index
      %784 = memref.load %arg6[%c115] : memref<250xf32, #tpu.memory_space<smem>>
      %785 = vector.broadcast %784 : f32 to vector<28x128xf32>
      %786 = arith.mulf %785, %60 : vector<28x128xf32>
      %787 = arith.addf %783, %786 : vector<28x128xf32>
      %c116 = arith.constant 116 : index
      %788 = memref.load %arg6[%c116] : memref<250xf32, #tpu.memory_space<smem>>
      %789 = vector.broadcast %788 : f32 to vector<28x128xf32>
      %790 = arith.mulf %789, %61 : vector<28x128xf32>
      %791 = arith.addf %787, %790 : vector<28x128xf32>
      %c117 = arith.constant 117 : index
      %792 = memref.load %arg6[%c117] : memref<250xf32, #tpu.memory_space<smem>>
      %793 = vector.broadcast %792 : f32 to vector<28x128xf32>
      %794 = arith.mulf %793, %62 : vector<28x128xf32>
      %795 = arith.addf %791, %794 : vector<28x128xf32>
      %c118 = arith.constant 118 : index
      %796 = memref.load %arg6[%c118] : memref<250xf32, #tpu.memory_space<smem>>
      %797 = vector.broadcast %796 : f32 to vector<28x128xf32>
      %798 = arith.mulf %797, %63 : vector<28x128xf32>
      %799 = arith.addf %795, %798 : vector<28x128xf32>
      %c119 = arith.constant 119 : index
      %800 = memref.load %arg6[%c119] : memref<250xf32, #tpu.memory_space<smem>>
      %801 = vector.broadcast %800 : f32 to vector<28x128xf32>
      %802 = arith.mulf %801, %64 : vector<28x128xf32>
      %803 = arith.addf %799, %802 : vector<28x128xf32>
      %c120 = arith.constant 120 : index
      %804 = memref.load %arg6[%c120] : memref<250xf32, #tpu.memory_space<smem>>
      %805 = vector.broadcast %804 : f32 to vector<28x128xf32>
      %806 = arith.mulf %805, %65 : vector<28x128xf32>
      %807 = arith.addf %803, %806 : vector<28x128xf32>
      %c121 = arith.constant 121 : index
      %808 = memref.load %arg6[%c121] : memref<250xf32, #tpu.memory_space<smem>>
      %809 = vector.broadcast %808 : f32 to vector<28x128xf32>
      %810 = arith.mulf %809, %66 : vector<28x128xf32>
      %811 = arith.addf %807, %810 : vector<28x128xf32>
      %c122 = arith.constant 122 : index
      %812 = memref.load %arg6[%c122] : memref<250xf32, #tpu.memory_space<smem>>
      %813 = vector.broadcast %812 : f32 to vector<28x128xf32>
      %814 = arith.mulf %813, %67 : vector<28x128xf32>
      %815 = arith.addf %811, %814 : vector<28x128xf32>
      %c123 = arith.constant 123 : index
      %816 = memref.load %arg6[%c123] : memref<250xf32, #tpu.memory_space<smem>>
      %817 = vector.broadcast %816 : f32 to vector<28x128xf32>
      %818 = arith.mulf %817, %68 : vector<28x128xf32>
      %819 = arith.addf %815, %818 : vector<28x128xf32>
      %c124 = arith.constant 124 : index
      %820 = memref.load %arg6[%c124] : memref<250xf32, #tpu.memory_space<smem>>
      %821 = vector.broadcast %820 : f32 to vector<28x128xf32>
      %822 = arith.mulf %821, %69 : vector<28x128xf32>
      %823 = arith.addf %819, %822 : vector<28x128xf32>
      %c4_105 = arith.constant 4 : index
      %824 = memref.load %arg7[%c4_105] : memref<10xf32, #tpu.memory_space<smem>>
      %825 = vector.broadcast %824 : f32 to vector<28x128xf32>
      %826 = arith.addf %823, %825 : vector<28x128xf32>
      %cst_106 = arith.constant 0.000000e+00 : f32
      %827 = vector.broadcast %cst_106 : f32 to vector<28x128xf32>
      %828 = arith.maximumf %826, %827 : vector<28x128xf32>
      %c4_107 = arith.constant 4 : index
      %829 = memref.load %arg8[%c4_107] : memref<10xf32, #tpu.memory_space<smem>>
      %830 = vector.broadcast %829 : f32 to vector<28x128xf32>
      %831 = arith.mulf %830, %828 : vector<28x128xf32>
      %832 = arith.addf %724, %831 : vector<28x128xf32>
      %c125 = arith.constant 125 : index
      %833 = memref.load %arg6[%c125] : memref<250xf32, #tpu.memory_space<smem>>
      %834 = vector.broadcast %833 : f32 to vector<28x128xf32>
      %835 = arith.mulf %834, %45 : vector<28x128xf32>
      %c126 = arith.constant 126 : index
      %836 = memref.load %arg6[%c126] : memref<250xf32, #tpu.memory_space<smem>>
      %837 = vector.broadcast %836 : f32 to vector<28x128xf32>
      %838 = arith.mulf %837, %46 : vector<28x128xf32>
      %839 = arith.addf %835, %838 : vector<28x128xf32>
      %c127 = arith.constant 127 : index
      %840 = memref.load %arg6[%c127] : memref<250xf32, #tpu.memory_space<smem>>
      %841 = vector.broadcast %840 : f32 to vector<28x128xf32>
      %842 = arith.mulf %841, %47 : vector<28x128xf32>
      %843 = arith.addf %839, %842 : vector<28x128xf32>
      %c128 = arith.constant 128 : index
      %844 = memref.load %arg6[%c128] : memref<250xf32, #tpu.memory_space<smem>>
      %845 = vector.broadcast %844 : f32 to vector<28x128xf32>
      %846 = arith.mulf %845, %48 : vector<28x128xf32>
      %847 = arith.addf %843, %846 : vector<28x128xf32>
      %c129 = arith.constant 129 : index
      %848 = memref.load %arg6[%c129] : memref<250xf32, #tpu.memory_space<smem>>
      %849 = vector.broadcast %848 : f32 to vector<28x128xf32>
      %850 = arith.mulf %849, %49 : vector<28x128xf32>
      %851 = arith.addf %847, %850 : vector<28x128xf32>
      %c130 = arith.constant 130 : index
      %852 = memref.load %arg6[%c130] : memref<250xf32, #tpu.memory_space<smem>>
      %853 = vector.broadcast %852 : f32 to vector<28x128xf32>
      %854 = arith.mulf %853, %50 : vector<28x128xf32>
      %855 = arith.addf %851, %854 : vector<28x128xf32>
      %c131 = arith.constant 131 : index
      %856 = memref.load %arg6[%c131] : memref<250xf32, #tpu.memory_space<smem>>
      %857 = vector.broadcast %856 : f32 to vector<28x128xf32>
      %858 = arith.mulf %857, %51 : vector<28x128xf32>
      %859 = arith.addf %855, %858 : vector<28x128xf32>
      %c132 = arith.constant 132 : index
      %860 = memref.load %arg6[%c132] : memref<250xf32, #tpu.memory_space<smem>>
      %861 = vector.broadcast %860 : f32 to vector<28x128xf32>
      %862 = arith.mulf %861, %52 : vector<28x128xf32>
      %863 = arith.addf %859, %862 : vector<28x128xf32>
      %c133 = arith.constant 133 : index
      %864 = memref.load %arg6[%c133] : memref<250xf32, #tpu.memory_space<smem>>
      %865 = vector.broadcast %864 : f32 to vector<28x128xf32>
      %866 = arith.mulf %865, %53 : vector<28x128xf32>
      %867 = arith.addf %863, %866 : vector<28x128xf32>
      %c134 = arith.constant 134 : index
      %868 = memref.load %arg6[%c134] : memref<250xf32, #tpu.memory_space<smem>>
      %869 = vector.broadcast %868 : f32 to vector<28x128xf32>
      %870 = arith.mulf %869, %54 : vector<28x128xf32>
      %871 = arith.addf %867, %870 : vector<28x128xf32>
      %c135 = arith.constant 135 : index
      %872 = memref.load %arg6[%c135] : memref<250xf32, #tpu.memory_space<smem>>
      %873 = vector.broadcast %872 : f32 to vector<28x128xf32>
      %874 = arith.mulf %873, %55 : vector<28x128xf32>
      %875 = arith.addf %871, %874 : vector<28x128xf32>
      %c136 = arith.constant 136 : index
      %876 = memref.load %arg6[%c136] : memref<250xf32, #tpu.memory_space<smem>>
      %877 = vector.broadcast %876 : f32 to vector<28x128xf32>
      %878 = arith.mulf %877, %56 : vector<28x128xf32>
      %879 = arith.addf %875, %878 : vector<28x128xf32>
      %c137 = arith.constant 137 : index
      %880 = memref.load %arg6[%c137] : memref<250xf32, #tpu.memory_space<smem>>
      %881 = vector.broadcast %880 : f32 to vector<28x128xf32>
      %882 = arith.mulf %881, %57 : vector<28x128xf32>
      %883 = arith.addf %879, %882 : vector<28x128xf32>
      %c138 = arith.constant 138 : index
      %884 = memref.load %arg6[%c138] : memref<250xf32, #tpu.memory_space<smem>>
      %885 = vector.broadcast %884 : f32 to vector<28x128xf32>
      %886 = arith.mulf %885, %58 : vector<28x128xf32>
      %887 = arith.addf %883, %886 : vector<28x128xf32>
      %c139 = arith.constant 139 : index
      %888 = memref.load %arg6[%c139] : memref<250xf32, #tpu.memory_space<smem>>
      %889 = vector.broadcast %888 : f32 to vector<28x128xf32>
      %890 = arith.mulf %889, %59 : vector<28x128xf32>
      %891 = arith.addf %887, %890 : vector<28x128xf32>
      %c140 = arith.constant 140 : index
      %892 = memref.load %arg6[%c140] : memref<250xf32, #tpu.memory_space<smem>>
      %893 = vector.broadcast %892 : f32 to vector<28x128xf32>
      %894 = arith.mulf %893, %60 : vector<28x128xf32>
      %895 = arith.addf %891, %894 : vector<28x128xf32>
      %c141 = arith.constant 141 : index
      %896 = memref.load %arg6[%c141] : memref<250xf32, #tpu.memory_space<smem>>
      %897 = vector.broadcast %896 : f32 to vector<28x128xf32>
      %898 = arith.mulf %897, %61 : vector<28x128xf32>
      %899 = arith.addf %895, %898 : vector<28x128xf32>
      %c142 = arith.constant 142 : index
      %900 = memref.load %arg6[%c142] : memref<250xf32, #tpu.memory_space<smem>>
      %901 = vector.broadcast %900 : f32 to vector<28x128xf32>
      %902 = arith.mulf %901, %62 : vector<28x128xf32>
      %903 = arith.addf %899, %902 : vector<28x128xf32>
      %c143 = arith.constant 143 : index
      %904 = memref.load %arg6[%c143] : memref<250xf32, #tpu.memory_space<smem>>
      %905 = vector.broadcast %904 : f32 to vector<28x128xf32>
      %906 = arith.mulf %905, %63 : vector<28x128xf32>
      %907 = arith.addf %903, %906 : vector<28x128xf32>
      %c144 = arith.constant 144 : index
      %908 = memref.load %arg6[%c144] : memref<250xf32, #tpu.memory_space<smem>>
      %909 = vector.broadcast %908 : f32 to vector<28x128xf32>
      %910 = arith.mulf %909, %64 : vector<28x128xf32>
      %911 = arith.addf %907, %910 : vector<28x128xf32>
      %c145 = arith.constant 145 : index
      %912 = memref.load %arg6[%c145] : memref<250xf32, #tpu.memory_space<smem>>
      %913 = vector.broadcast %912 : f32 to vector<28x128xf32>
      %914 = arith.mulf %913, %65 : vector<28x128xf32>
      %915 = arith.addf %911, %914 : vector<28x128xf32>
      %c146 = arith.constant 146 : index
      %916 = memref.load %arg6[%c146] : memref<250xf32, #tpu.memory_space<smem>>
      %917 = vector.broadcast %916 : f32 to vector<28x128xf32>
      %918 = arith.mulf %917, %66 : vector<28x128xf32>
      %919 = arith.addf %915, %918 : vector<28x128xf32>
      %c147 = arith.constant 147 : index
      %920 = memref.load %arg6[%c147] : memref<250xf32, #tpu.memory_space<smem>>
      %921 = vector.broadcast %920 : f32 to vector<28x128xf32>
      %922 = arith.mulf %921, %67 : vector<28x128xf32>
      %923 = arith.addf %919, %922 : vector<28x128xf32>
      %c148 = arith.constant 148 : index
      %924 = memref.load %arg6[%c148] : memref<250xf32, #tpu.memory_space<smem>>
      %925 = vector.broadcast %924 : f32 to vector<28x128xf32>
      %926 = arith.mulf %925, %68 : vector<28x128xf32>
      %927 = arith.addf %923, %926 : vector<28x128xf32>
      %c149 = arith.constant 149 : index
      %928 = memref.load %arg6[%c149] : memref<250xf32, #tpu.memory_space<smem>>
      %929 = vector.broadcast %928 : f32 to vector<28x128xf32>
      %930 = arith.mulf %929, %69 : vector<28x128xf32>
      %931 = arith.addf %927, %930 : vector<28x128xf32>
      %c5_108 = arith.constant 5 : index
      %932 = memref.load %arg7[%c5_108] : memref<10xf32, #tpu.memory_space<smem>>
      %933 = vector.broadcast %932 : f32 to vector<28x128xf32>
      %934 = arith.addf %931, %933 : vector<28x128xf32>
      %cst_109 = arith.constant 0.000000e+00 : f32
      %935 = vector.broadcast %cst_109 : f32 to vector<28x128xf32>
      %936 = arith.maximumf %934, %935 : vector<28x128xf32>
      %c5_110 = arith.constant 5 : index
      %937 = memref.load %arg8[%c5_110] : memref<10xf32, #tpu.memory_space<smem>>
      %938 = vector.broadcast %937 : f32 to vector<28x128xf32>
      %939 = arith.mulf %938, %936 : vector<28x128xf32>
      %940 = arith.addf %832, %939 : vector<28x128xf32>
      %c150 = arith.constant 150 : index
      %941 = memref.load %arg6[%c150] : memref<250xf32, #tpu.memory_space<smem>>
      %942 = vector.broadcast %941 : f32 to vector<28x128xf32>
      %943 = arith.mulf %942, %45 : vector<28x128xf32>
      %c151 = arith.constant 151 : index
      %944 = memref.load %arg6[%c151] : memref<250xf32, #tpu.memory_space<smem>>
      %945 = vector.broadcast %944 : f32 to vector<28x128xf32>
      %946 = arith.mulf %945, %46 : vector<28x128xf32>
      %947 = arith.addf %943, %946 : vector<28x128xf32>
      %c152 = arith.constant 152 : index
      %948 = memref.load %arg6[%c152] : memref<250xf32, #tpu.memory_space<smem>>
      %949 = vector.broadcast %948 : f32 to vector<28x128xf32>
      %950 = arith.mulf %949, %47 : vector<28x128xf32>
      %951 = arith.addf %947, %950 : vector<28x128xf32>
      %c153 = arith.constant 153 : index
      %952 = memref.load %arg6[%c153] : memref<250xf32, #tpu.memory_space<smem>>
      %953 = vector.broadcast %952 : f32 to vector<28x128xf32>
      %954 = arith.mulf %953, %48 : vector<28x128xf32>
      %955 = arith.addf %951, %954 : vector<28x128xf32>
      %c154 = arith.constant 154 : index
      %956 = memref.load %arg6[%c154] : memref<250xf32, #tpu.memory_space<smem>>
      %957 = vector.broadcast %956 : f32 to vector<28x128xf32>
      %958 = arith.mulf %957, %49 : vector<28x128xf32>
      %959 = arith.addf %955, %958 : vector<28x128xf32>
      %c155 = arith.constant 155 : index
      %960 = memref.load %arg6[%c155] : memref<250xf32, #tpu.memory_space<smem>>
      %961 = vector.broadcast %960 : f32 to vector<28x128xf32>
      %962 = arith.mulf %961, %50 : vector<28x128xf32>
      %963 = arith.addf %959, %962 : vector<28x128xf32>
      %c156 = arith.constant 156 : index
      %964 = memref.load %arg6[%c156] : memref<250xf32, #tpu.memory_space<smem>>
      %965 = vector.broadcast %964 : f32 to vector<28x128xf32>
      %966 = arith.mulf %965, %51 : vector<28x128xf32>
      %967 = arith.addf %963, %966 : vector<28x128xf32>
      %c157 = arith.constant 157 : index
      %968 = memref.load %arg6[%c157] : memref<250xf32, #tpu.memory_space<smem>>
      %969 = vector.broadcast %968 : f32 to vector<28x128xf32>
      %970 = arith.mulf %969, %52 : vector<28x128xf32>
      %971 = arith.addf %967, %970 : vector<28x128xf32>
      %c158 = arith.constant 158 : index
      %972 = memref.load %arg6[%c158] : memref<250xf32, #tpu.memory_space<smem>>
      %973 = vector.broadcast %972 : f32 to vector<28x128xf32>
      %974 = arith.mulf %973, %53 : vector<28x128xf32>
      %975 = arith.addf %971, %974 : vector<28x128xf32>
      %c159 = arith.constant 159 : index
      %976 = memref.load %arg6[%c159] : memref<250xf32, #tpu.memory_space<smem>>
      %977 = vector.broadcast %976 : f32 to vector<28x128xf32>
      %978 = arith.mulf %977, %54 : vector<28x128xf32>
      %979 = arith.addf %975, %978 : vector<28x128xf32>
      %c160 = arith.constant 160 : index
      %980 = memref.load %arg6[%c160] : memref<250xf32, #tpu.memory_space<smem>>
      %981 = vector.broadcast %980 : f32 to vector<28x128xf32>
      %982 = arith.mulf %981, %55 : vector<28x128xf32>
      %983 = arith.addf %979, %982 : vector<28x128xf32>
      %c161 = arith.constant 161 : index
      %984 = memref.load %arg6[%c161] : memref<250xf32, #tpu.memory_space<smem>>
      %985 = vector.broadcast %984 : f32 to vector<28x128xf32>
      %986 = arith.mulf %985, %56 : vector<28x128xf32>
      %987 = arith.addf %983, %986 : vector<28x128xf32>
      %c162 = arith.constant 162 : index
      %988 = memref.load %arg6[%c162] : memref<250xf32, #tpu.memory_space<smem>>
      %989 = vector.broadcast %988 : f32 to vector<28x128xf32>
      %990 = arith.mulf %989, %57 : vector<28x128xf32>
      %991 = arith.addf %987, %990 : vector<28x128xf32>
      %c163 = arith.constant 163 : index
      %992 = memref.load %arg6[%c163] : memref<250xf32, #tpu.memory_space<smem>>
      %993 = vector.broadcast %992 : f32 to vector<28x128xf32>
      %994 = arith.mulf %993, %58 : vector<28x128xf32>
      %995 = arith.addf %991, %994 : vector<28x128xf32>
      %c164 = arith.constant 164 : index
      %996 = memref.load %arg6[%c164] : memref<250xf32, #tpu.memory_space<smem>>
      %997 = vector.broadcast %996 : f32 to vector<28x128xf32>
      %998 = arith.mulf %997, %59 : vector<28x128xf32>
      %999 = arith.addf %995, %998 : vector<28x128xf32>
      %c165 = arith.constant 165 : index
      %1000 = memref.load %arg6[%c165] : memref<250xf32, #tpu.memory_space<smem>>
      %1001 = vector.broadcast %1000 : f32 to vector<28x128xf32>
      %1002 = arith.mulf %1001, %60 : vector<28x128xf32>
      %1003 = arith.addf %999, %1002 : vector<28x128xf32>
      %c166 = arith.constant 166 : index
      %1004 = memref.load %arg6[%c166] : memref<250xf32, #tpu.memory_space<smem>>
      %1005 = vector.broadcast %1004 : f32 to vector<28x128xf32>
      %1006 = arith.mulf %1005, %61 : vector<28x128xf32>
      %1007 = arith.addf %1003, %1006 : vector<28x128xf32>
      %c167 = arith.constant 167 : index
      %1008 = memref.load %arg6[%c167] : memref<250xf32, #tpu.memory_space<smem>>
      %1009 = vector.broadcast %1008 : f32 to vector<28x128xf32>
      %1010 = arith.mulf %1009, %62 : vector<28x128xf32>
      %1011 = arith.addf %1007, %1010 : vector<28x128xf32>
      %c168 = arith.constant 168 : index
      %1012 = memref.load %arg6[%c168] : memref<250xf32, #tpu.memory_space<smem>>
      %1013 = vector.broadcast %1012 : f32 to vector<28x128xf32>
      %1014 = arith.mulf %1013, %63 : vector<28x128xf32>
      %1015 = arith.addf %1011, %1014 : vector<28x128xf32>
      %c169 = arith.constant 169 : index
      %1016 = memref.load %arg6[%c169] : memref<250xf32, #tpu.memory_space<smem>>
      %1017 = vector.broadcast %1016 : f32 to vector<28x128xf32>
      %1018 = arith.mulf %1017, %64 : vector<28x128xf32>
      %1019 = arith.addf %1015, %1018 : vector<28x128xf32>
      %c170 = arith.constant 170 : index
      %1020 = memref.load %arg6[%c170] : memref<250xf32, #tpu.memory_space<smem>>
      %1021 = vector.broadcast %1020 : f32 to vector<28x128xf32>
      %1022 = arith.mulf %1021, %65 : vector<28x128xf32>
      %1023 = arith.addf %1019, %1022 : vector<28x128xf32>
      %c171 = arith.constant 171 : index
      %1024 = memref.load %arg6[%c171] : memref<250xf32, #tpu.memory_space<smem>>
      %1025 = vector.broadcast %1024 : f32 to vector<28x128xf32>
      %1026 = arith.mulf %1025, %66 : vector<28x128xf32>
      %1027 = arith.addf %1023, %1026 : vector<28x128xf32>
      %c172 = arith.constant 172 : index
      %1028 = memref.load %arg6[%c172] : memref<250xf32, #tpu.memory_space<smem>>
      %1029 = vector.broadcast %1028 : f32 to vector<28x128xf32>
      %1030 = arith.mulf %1029, %67 : vector<28x128xf32>
      %1031 = arith.addf %1027, %1030 : vector<28x128xf32>
      %c173 = arith.constant 173 : index
      %1032 = memref.load %arg6[%c173] : memref<250xf32, #tpu.memory_space<smem>>
      %1033 = vector.broadcast %1032 : f32 to vector<28x128xf32>
      %1034 = arith.mulf %1033, %68 : vector<28x128xf32>
      %1035 = arith.addf %1031, %1034 : vector<28x128xf32>
      %c174 = arith.constant 174 : index
      %1036 = memref.load %arg6[%c174] : memref<250xf32, #tpu.memory_space<smem>>
      %1037 = vector.broadcast %1036 : f32 to vector<28x128xf32>
      %1038 = arith.mulf %1037, %69 : vector<28x128xf32>
      %1039 = arith.addf %1035, %1038 : vector<28x128xf32>
      %c6_111 = arith.constant 6 : index
      %1040 = memref.load %arg7[%c6_111] : memref<10xf32, #tpu.memory_space<smem>>
      %1041 = vector.broadcast %1040 : f32 to vector<28x128xf32>
      %1042 = arith.addf %1039, %1041 : vector<28x128xf32>
      %cst_112 = arith.constant 0.000000e+00 : f32
      %1043 = vector.broadcast %cst_112 : f32 to vector<28x128xf32>
      %1044 = arith.maximumf %1042, %1043 : vector<28x128xf32>
      %c6_113 = arith.constant 6 : index
      %1045 = memref.load %arg8[%c6_113] : memref<10xf32, #tpu.memory_space<smem>>
      %1046 = vector.broadcast %1045 : f32 to vector<28x128xf32>
      %1047 = arith.mulf %1046, %1044 : vector<28x128xf32>
      %1048 = arith.addf %940, %1047 : vector<28x128xf32>
      %c175 = arith.constant 175 : index
      %1049 = memref.load %arg6[%c175] : memref<250xf32, #tpu.memory_space<smem>>
      %1050 = vector.broadcast %1049 : f32 to vector<28x128xf32>
      %1051 = arith.mulf %1050, %45 : vector<28x128xf32>
      %c176 = arith.constant 176 : index
      %1052 = memref.load %arg6[%c176] : memref<250xf32, #tpu.memory_space<smem>>
      %1053 = vector.broadcast %1052 : f32 to vector<28x128xf32>
      %1054 = arith.mulf %1053, %46 : vector<28x128xf32>
      %1055 = arith.addf %1051, %1054 : vector<28x128xf32>
      %c177 = arith.constant 177 : index
      %1056 = memref.load %arg6[%c177] : memref<250xf32, #tpu.memory_space<smem>>
      %1057 = vector.broadcast %1056 : f32 to vector<28x128xf32>
      %1058 = arith.mulf %1057, %47 : vector<28x128xf32>
      %1059 = arith.addf %1055, %1058 : vector<28x128xf32>
      %c178 = arith.constant 178 : index
      %1060 = memref.load %arg6[%c178] : memref<250xf32, #tpu.memory_space<smem>>
      %1061 = vector.broadcast %1060 : f32 to vector<28x128xf32>
      %1062 = arith.mulf %1061, %48 : vector<28x128xf32>
      %1063 = arith.addf %1059, %1062 : vector<28x128xf32>
      %c179 = arith.constant 179 : index
      %1064 = memref.load %arg6[%c179] : memref<250xf32, #tpu.memory_space<smem>>
      %1065 = vector.broadcast %1064 : f32 to vector<28x128xf32>
      %1066 = arith.mulf %1065, %49 : vector<28x128xf32>
      %1067 = arith.addf %1063, %1066 : vector<28x128xf32>
      %c180 = arith.constant 180 : index
      %1068 = memref.load %arg6[%c180] : memref<250xf32, #tpu.memory_space<smem>>
      %1069 = vector.broadcast %1068 : f32 to vector<28x128xf32>
      %1070 = arith.mulf %1069, %50 : vector<28x128xf32>
      %1071 = arith.addf %1067, %1070 : vector<28x128xf32>
      %c181 = arith.constant 181 : index
      %1072 = memref.load %arg6[%c181] : memref<250xf32, #tpu.memory_space<smem>>
      %1073 = vector.broadcast %1072 : f32 to vector<28x128xf32>
      %1074 = arith.mulf %1073, %51 : vector<28x128xf32>
      %1075 = arith.addf %1071, %1074 : vector<28x128xf32>
      %c182 = arith.constant 182 : index
      %1076 = memref.load %arg6[%c182] : memref<250xf32, #tpu.memory_space<smem>>
      %1077 = vector.broadcast %1076 : f32 to vector<28x128xf32>
      %1078 = arith.mulf %1077, %52 : vector<28x128xf32>
      %1079 = arith.addf %1075, %1078 : vector<28x128xf32>
      %c183 = arith.constant 183 : index
      %1080 = memref.load %arg6[%c183] : memref<250xf32, #tpu.memory_space<smem>>
      %1081 = vector.broadcast %1080 : f32 to vector<28x128xf32>
      %1082 = arith.mulf %1081, %53 : vector<28x128xf32>
      %1083 = arith.addf %1079, %1082 : vector<28x128xf32>
      %c184 = arith.constant 184 : index
      %1084 = memref.load %arg6[%c184] : memref<250xf32, #tpu.memory_space<smem>>
      %1085 = vector.broadcast %1084 : f32 to vector<28x128xf32>
      %1086 = arith.mulf %1085, %54 : vector<28x128xf32>
      %1087 = arith.addf %1083, %1086 : vector<28x128xf32>
      %c185 = arith.constant 185 : index
      %1088 = memref.load %arg6[%c185] : memref<250xf32, #tpu.memory_space<smem>>
      %1089 = vector.broadcast %1088 : f32 to vector<28x128xf32>
      %1090 = arith.mulf %1089, %55 : vector<28x128xf32>
      %1091 = arith.addf %1087, %1090 : vector<28x128xf32>
      %c186 = arith.constant 186 : index
      %1092 = memref.load %arg6[%c186] : memref<250xf32, #tpu.memory_space<smem>>
      %1093 = vector.broadcast %1092 : f32 to vector<28x128xf32>
      %1094 = arith.mulf %1093, %56 : vector<28x128xf32>
      %1095 = arith.addf %1091, %1094 : vector<28x128xf32>
      %c187 = arith.constant 187 : index
      %1096 = memref.load %arg6[%c187] : memref<250xf32, #tpu.memory_space<smem>>
      %1097 = vector.broadcast %1096 : f32 to vector<28x128xf32>
      %1098 = arith.mulf %1097, %57 : vector<28x128xf32>
      %1099 = arith.addf %1095, %1098 : vector<28x128xf32>
      %c188 = arith.constant 188 : index
      %1100 = memref.load %arg6[%c188] : memref<250xf32, #tpu.memory_space<smem>>
      %1101 = vector.broadcast %1100 : f32 to vector<28x128xf32>
      %1102 = arith.mulf %1101, %58 : vector<28x128xf32>
      %1103 = arith.addf %1099, %1102 : vector<28x128xf32>
      %c189 = arith.constant 189 : index
      %1104 = memref.load %arg6[%c189] : memref<250xf32, #tpu.memory_space<smem>>
      %1105 = vector.broadcast %1104 : f32 to vector<28x128xf32>
      %1106 = arith.mulf %1105, %59 : vector<28x128xf32>
      %1107 = arith.addf %1103, %1106 : vector<28x128xf32>
      %c190 = arith.constant 190 : index
      %1108 = memref.load %arg6[%c190] : memref<250xf32, #tpu.memory_space<smem>>
      %1109 = vector.broadcast %1108 : f32 to vector<28x128xf32>
      %1110 = arith.mulf %1109, %60 : vector<28x128xf32>
      %1111 = arith.addf %1107, %1110 : vector<28x128xf32>
      %c191 = arith.constant 191 : index
      %1112 = memref.load %arg6[%c191] : memref<250xf32, #tpu.memory_space<smem>>
      %1113 = vector.broadcast %1112 : f32 to vector<28x128xf32>
      %1114 = arith.mulf %1113, %61 : vector<28x128xf32>
      %1115 = arith.addf %1111, %1114 : vector<28x128xf32>
      %c192 = arith.constant 192 : index
      %1116 = memref.load %arg6[%c192] : memref<250xf32, #tpu.memory_space<smem>>
      %1117 = vector.broadcast %1116 : f32 to vector<28x128xf32>
      %1118 = arith.mulf %1117, %62 : vector<28x128xf32>
      %1119 = arith.addf %1115, %1118 : vector<28x128xf32>
      %c193 = arith.constant 193 : index
      %1120 = memref.load %arg6[%c193] : memref<250xf32, #tpu.memory_space<smem>>
      %1121 = vector.broadcast %1120 : f32 to vector<28x128xf32>
      %1122 = arith.mulf %1121, %63 : vector<28x128xf32>
      %1123 = arith.addf %1119, %1122 : vector<28x128xf32>
      %c194 = arith.constant 194 : index
      %1124 = memref.load %arg6[%c194] : memref<250xf32, #tpu.memory_space<smem>>
      %1125 = vector.broadcast %1124 : f32 to vector<28x128xf32>
      %1126 = arith.mulf %1125, %64 : vector<28x128xf32>
      %1127 = arith.addf %1123, %1126 : vector<28x128xf32>
      %c195 = arith.constant 195 : index
      %1128 = memref.load %arg6[%c195] : memref<250xf32, #tpu.memory_space<smem>>
      %1129 = vector.broadcast %1128 : f32 to vector<28x128xf32>
      %1130 = arith.mulf %1129, %65 : vector<28x128xf32>
      %1131 = arith.addf %1127, %1130 : vector<28x128xf32>
      %c196 = arith.constant 196 : index
      %1132 = memref.load %arg6[%c196] : memref<250xf32, #tpu.memory_space<smem>>
      %1133 = vector.broadcast %1132 : f32 to vector<28x128xf32>
      %1134 = arith.mulf %1133, %66 : vector<28x128xf32>
      %1135 = arith.addf %1131, %1134 : vector<28x128xf32>
      %c197 = arith.constant 197 : index
      %1136 = memref.load %arg6[%c197] : memref<250xf32, #tpu.memory_space<smem>>
      %1137 = vector.broadcast %1136 : f32 to vector<28x128xf32>
      %1138 = arith.mulf %1137, %67 : vector<28x128xf32>
      %1139 = arith.addf %1135, %1138 : vector<28x128xf32>
      %c198 = arith.constant 198 : index
      %1140 = memref.load %arg6[%c198] : memref<250xf32, #tpu.memory_space<smem>>
      %1141 = vector.broadcast %1140 : f32 to vector<28x128xf32>
      %1142 = arith.mulf %1141, %68 : vector<28x128xf32>
      %1143 = arith.addf %1139, %1142 : vector<28x128xf32>
      %c199 = arith.constant 199 : index
      %1144 = memref.load %arg6[%c199] : memref<250xf32, #tpu.memory_space<smem>>
      %1145 = vector.broadcast %1144 : f32 to vector<28x128xf32>
      %1146 = arith.mulf %1145, %69 : vector<28x128xf32>
      %1147 = arith.addf %1143, %1146 : vector<28x128xf32>
      %c7_114 = arith.constant 7 : index
      %1148 = memref.load %arg7[%c7_114] : memref<10xf32, #tpu.memory_space<smem>>
      %1149 = vector.broadcast %1148 : f32 to vector<28x128xf32>
      %1150 = arith.addf %1147, %1149 : vector<28x128xf32>
      %cst_115 = arith.constant 0.000000e+00 : f32
      %1151 = vector.broadcast %cst_115 : f32 to vector<28x128xf32>
      %1152 = arith.maximumf %1150, %1151 : vector<28x128xf32>
      %c7_116 = arith.constant 7 : index
      %1153 = memref.load %arg8[%c7_116] : memref<10xf32, #tpu.memory_space<smem>>
      %1154 = vector.broadcast %1153 : f32 to vector<28x128xf32>
      %1155 = arith.mulf %1154, %1152 : vector<28x128xf32>
      %1156 = arith.addf %1048, %1155 : vector<28x128xf32>
      %c200 = arith.constant 200 : index
      %1157 = memref.load %arg6[%c200] : memref<250xf32, #tpu.memory_space<smem>>
      %1158 = vector.broadcast %1157 : f32 to vector<28x128xf32>
      %1159 = arith.mulf %1158, %45 : vector<28x128xf32>
      %c201 = arith.constant 201 : index
      %1160 = memref.load %arg6[%c201] : memref<250xf32, #tpu.memory_space<smem>>
      %1161 = vector.broadcast %1160 : f32 to vector<28x128xf32>
      %1162 = arith.mulf %1161, %46 : vector<28x128xf32>
      %1163 = arith.addf %1159, %1162 : vector<28x128xf32>
      %c202 = arith.constant 202 : index
      %1164 = memref.load %arg6[%c202] : memref<250xf32, #tpu.memory_space<smem>>
      %1165 = vector.broadcast %1164 : f32 to vector<28x128xf32>
      %1166 = arith.mulf %1165, %47 : vector<28x128xf32>
      %1167 = arith.addf %1163, %1166 : vector<28x128xf32>
      %c203 = arith.constant 203 : index
      %1168 = memref.load %arg6[%c203] : memref<250xf32, #tpu.memory_space<smem>>
      %1169 = vector.broadcast %1168 : f32 to vector<28x128xf32>
      %1170 = arith.mulf %1169, %48 : vector<28x128xf32>
      %1171 = arith.addf %1167, %1170 : vector<28x128xf32>
      %c204 = arith.constant 204 : index
      %1172 = memref.load %arg6[%c204] : memref<250xf32, #tpu.memory_space<smem>>
      %1173 = vector.broadcast %1172 : f32 to vector<28x128xf32>
      %1174 = arith.mulf %1173, %49 : vector<28x128xf32>
      %1175 = arith.addf %1171, %1174 : vector<28x128xf32>
      %c205 = arith.constant 205 : index
      %1176 = memref.load %arg6[%c205] : memref<250xf32, #tpu.memory_space<smem>>
      %1177 = vector.broadcast %1176 : f32 to vector<28x128xf32>
      %1178 = arith.mulf %1177, %50 : vector<28x128xf32>
      %1179 = arith.addf %1175, %1178 : vector<28x128xf32>
      %c206 = arith.constant 206 : index
      %1180 = memref.load %arg6[%c206] : memref<250xf32, #tpu.memory_space<smem>>
      %1181 = vector.broadcast %1180 : f32 to vector<28x128xf32>
      %1182 = arith.mulf %1181, %51 : vector<28x128xf32>
      %1183 = arith.addf %1179, %1182 : vector<28x128xf32>
      %c207 = arith.constant 207 : index
      %1184 = memref.load %arg6[%c207] : memref<250xf32, #tpu.memory_space<smem>>
      %1185 = vector.broadcast %1184 : f32 to vector<28x128xf32>
      %1186 = arith.mulf %1185, %52 : vector<28x128xf32>
      %1187 = arith.addf %1183, %1186 : vector<28x128xf32>
      %c208 = arith.constant 208 : index
      %1188 = memref.load %arg6[%c208] : memref<250xf32, #tpu.memory_space<smem>>
      %1189 = vector.broadcast %1188 : f32 to vector<28x128xf32>
      %1190 = arith.mulf %1189, %53 : vector<28x128xf32>
      %1191 = arith.addf %1187, %1190 : vector<28x128xf32>
      %c209 = arith.constant 209 : index
      %1192 = memref.load %arg6[%c209] : memref<250xf32, #tpu.memory_space<smem>>
      %1193 = vector.broadcast %1192 : f32 to vector<28x128xf32>
      %1194 = arith.mulf %1193, %54 : vector<28x128xf32>
      %1195 = arith.addf %1191, %1194 : vector<28x128xf32>
      %c210 = arith.constant 210 : index
      %1196 = memref.load %arg6[%c210] : memref<250xf32, #tpu.memory_space<smem>>
      %1197 = vector.broadcast %1196 : f32 to vector<28x128xf32>
      %1198 = arith.mulf %1197, %55 : vector<28x128xf32>
      %1199 = arith.addf %1195, %1198 : vector<28x128xf32>
      %c211 = arith.constant 211 : index
      %1200 = memref.load %arg6[%c211] : memref<250xf32, #tpu.memory_space<smem>>
      %1201 = vector.broadcast %1200 : f32 to vector<28x128xf32>
      %1202 = arith.mulf %1201, %56 : vector<28x128xf32>
      %1203 = arith.addf %1199, %1202 : vector<28x128xf32>
      %c212 = arith.constant 212 : index
      %1204 = memref.load %arg6[%c212] : memref<250xf32, #tpu.memory_space<smem>>
      %1205 = vector.broadcast %1204 : f32 to vector<28x128xf32>
      %1206 = arith.mulf %1205, %57 : vector<28x128xf32>
      %1207 = arith.addf %1203, %1206 : vector<28x128xf32>
      %c213 = arith.constant 213 : index
      %1208 = memref.load %arg6[%c213] : memref<250xf32, #tpu.memory_space<smem>>
      %1209 = vector.broadcast %1208 : f32 to vector<28x128xf32>
      %1210 = arith.mulf %1209, %58 : vector<28x128xf32>
      %1211 = arith.addf %1207, %1210 : vector<28x128xf32>
      %c214 = arith.constant 214 : index
      %1212 = memref.load %arg6[%c214] : memref<250xf32, #tpu.memory_space<smem>>
      %1213 = vector.broadcast %1212 : f32 to vector<28x128xf32>
      %1214 = arith.mulf %1213, %59 : vector<28x128xf32>
      %1215 = arith.addf %1211, %1214 : vector<28x128xf32>
      %c215 = arith.constant 215 : index
      %1216 = memref.load %arg6[%c215] : memref<250xf32, #tpu.memory_space<smem>>
      %1217 = vector.broadcast %1216 : f32 to vector<28x128xf32>
      %1218 = arith.mulf %1217, %60 : vector<28x128xf32>
      %1219 = arith.addf %1215, %1218 : vector<28x128xf32>
      %c216 = arith.constant 216 : index
      %1220 = memref.load %arg6[%c216] : memref<250xf32, #tpu.memory_space<smem>>
      %1221 = vector.broadcast %1220 : f32 to vector<28x128xf32>
      %1222 = arith.mulf %1221, %61 : vector<28x128xf32>
      %1223 = arith.addf %1219, %1222 : vector<28x128xf32>
      %c217 = arith.constant 217 : index
      %1224 = memref.load %arg6[%c217] : memref<250xf32, #tpu.memory_space<smem>>
      %1225 = vector.broadcast %1224 : f32 to vector<28x128xf32>
      %1226 = arith.mulf %1225, %62 : vector<28x128xf32>
      %1227 = arith.addf %1223, %1226 : vector<28x128xf32>
      %c218 = arith.constant 218 : index
      %1228 = memref.load %arg6[%c218] : memref<250xf32, #tpu.memory_space<smem>>
      %1229 = vector.broadcast %1228 : f32 to vector<28x128xf32>
      %1230 = arith.mulf %1229, %63 : vector<28x128xf32>
      %1231 = arith.addf %1227, %1230 : vector<28x128xf32>
      %c219 = arith.constant 219 : index
      %1232 = memref.load %arg6[%c219] : memref<250xf32, #tpu.memory_space<smem>>
      %1233 = vector.broadcast %1232 : f32 to vector<28x128xf32>
      %1234 = arith.mulf %1233, %64 : vector<28x128xf32>
      %1235 = arith.addf %1231, %1234 : vector<28x128xf32>
      %c220 = arith.constant 220 : index
      %1236 = memref.load %arg6[%c220] : memref<250xf32, #tpu.memory_space<smem>>
      %1237 = vector.broadcast %1236 : f32 to vector<28x128xf32>
      %1238 = arith.mulf %1237, %65 : vector<28x128xf32>
      %1239 = arith.addf %1235, %1238 : vector<28x128xf32>
      %c221 = arith.constant 221 : index
      %1240 = memref.load %arg6[%c221] : memref<250xf32, #tpu.memory_space<smem>>
      %1241 = vector.broadcast %1240 : f32 to vector<28x128xf32>
      %1242 = arith.mulf %1241, %66 : vector<28x128xf32>
      %1243 = arith.addf %1239, %1242 : vector<28x128xf32>
      %c222 = arith.constant 222 : index
      %1244 = memref.load %arg6[%c222] : memref<250xf32, #tpu.memory_space<smem>>
      %1245 = vector.broadcast %1244 : f32 to vector<28x128xf32>
      %1246 = arith.mulf %1245, %67 : vector<28x128xf32>
      %1247 = arith.addf %1243, %1246 : vector<28x128xf32>
      %c223 = arith.constant 223 : index
      %1248 = memref.load %arg6[%c223] : memref<250xf32, #tpu.memory_space<smem>>
      %1249 = vector.broadcast %1248 : f32 to vector<28x128xf32>
      %1250 = arith.mulf %1249, %68 : vector<28x128xf32>
      %1251 = arith.addf %1247, %1250 : vector<28x128xf32>
      %c224 = arith.constant 224 : index
      %1252 = memref.load %arg6[%c224] : memref<250xf32, #tpu.memory_space<smem>>
      %1253 = vector.broadcast %1252 : f32 to vector<28x128xf32>
      %1254 = arith.mulf %1253, %69 : vector<28x128xf32>
      %1255 = arith.addf %1251, %1254 : vector<28x128xf32>
      %c8_117 = arith.constant 8 : index
      %1256 = memref.load %arg7[%c8_117] : memref<10xf32, #tpu.memory_space<smem>>
      %1257 = vector.broadcast %1256 : f32 to vector<28x128xf32>
      %1258 = arith.addf %1255, %1257 : vector<28x128xf32>
      %cst_118 = arith.constant 0.000000e+00 : f32
      %1259 = vector.broadcast %cst_118 : f32 to vector<28x128xf32>
      %1260 = arith.maximumf %1258, %1259 : vector<28x128xf32>
      %c8_119 = arith.constant 8 : index
      %1261 = memref.load %arg8[%c8_119] : memref<10xf32, #tpu.memory_space<smem>>
      %1262 = vector.broadcast %1261 : f32 to vector<28x128xf32>
      %1263 = arith.mulf %1262, %1260 : vector<28x128xf32>
      %1264 = arith.addf %1156, %1263 : vector<28x128xf32>
      %c225 = arith.constant 225 : index
      %1265 = memref.load %arg6[%c225] : memref<250xf32, #tpu.memory_space<smem>>
      %1266 = vector.broadcast %1265 : f32 to vector<28x128xf32>
      %1267 = arith.mulf %1266, %45 : vector<28x128xf32>
      %c226 = arith.constant 226 : index
      %1268 = memref.load %arg6[%c226] : memref<250xf32, #tpu.memory_space<smem>>
      %1269 = vector.broadcast %1268 : f32 to vector<28x128xf32>
      %1270 = arith.mulf %1269, %46 : vector<28x128xf32>
      %1271 = arith.addf %1267, %1270 : vector<28x128xf32>
      %c227 = arith.constant 227 : index
      %1272 = memref.load %arg6[%c227] : memref<250xf32, #tpu.memory_space<smem>>
      %1273 = vector.broadcast %1272 : f32 to vector<28x128xf32>
      %1274 = arith.mulf %1273, %47 : vector<28x128xf32>
      %1275 = arith.addf %1271, %1274 : vector<28x128xf32>
      %c228 = arith.constant 228 : index
      %1276 = memref.load %arg6[%c228] : memref<250xf32, #tpu.memory_space<smem>>
      %1277 = vector.broadcast %1276 : f32 to vector<28x128xf32>
      %1278 = arith.mulf %1277, %48 : vector<28x128xf32>
      %1279 = arith.addf %1275, %1278 : vector<28x128xf32>
      %c229 = arith.constant 229 : index
      %1280 = memref.load %arg6[%c229] : memref<250xf32, #tpu.memory_space<smem>>
      %1281 = vector.broadcast %1280 : f32 to vector<28x128xf32>
      %1282 = arith.mulf %1281, %49 : vector<28x128xf32>
      %1283 = arith.addf %1279, %1282 : vector<28x128xf32>
      %c230 = arith.constant 230 : index
      %1284 = memref.load %arg6[%c230] : memref<250xf32, #tpu.memory_space<smem>>
      %1285 = vector.broadcast %1284 : f32 to vector<28x128xf32>
      %1286 = arith.mulf %1285, %50 : vector<28x128xf32>
      %1287 = arith.addf %1283, %1286 : vector<28x128xf32>
      %c231 = arith.constant 231 : index
      %1288 = memref.load %arg6[%c231] : memref<250xf32, #tpu.memory_space<smem>>
      %1289 = vector.broadcast %1288 : f32 to vector<28x128xf32>
      %1290 = arith.mulf %1289, %51 : vector<28x128xf32>
      %1291 = arith.addf %1287, %1290 : vector<28x128xf32>
      %c232 = arith.constant 232 : index
      %1292 = memref.load %arg6[%c232] : memref<250xf32, #tpu.memory_space<smem>>
      %1293 = vector.broadcast %1292 : f32 to vector<28x128xf32>
      %1294 = arith.mulf %1293, %52 : vector<28x128xf32>
      %1295 = arith.addf %1291, %1294 : vector<28x128xf32>
      %c233 = arith.constant 233 : index
      %1296 = memref.load %arg6[%c233] : memref<250xf32, #tpu.memory_space<smem>>
      %1297 = vector.broadcast %1296 : f32 to vector<28x128xf32>
      %1298 = arith.mulf %1297, %53 : vector<28x128xf32>
      %1299 = arith.addf %1295, %1298 : vector<28x128xf32>
      %c234 = arith.constant 234 : index
      %1300 = memref.load %arg6[%c234] : memref<250xf32, #tpu.memory_space<smem>>
      %1301 = vector.broadcast %1300 : f32 to vector<28x128xf32>
      %1302 = arith.mulf %1301, %54 : vector<28x128xf32>
      %1303 = arith.addf %1299, %1302 : vector<28x128xf32>
      %c235 = arith.constant 235 : index
      %1304 = memref.load %arg6[%c235] : memref<250xf32, #tpu.memory_space<smem>>
      %1305 = vector.broadcast %1304 : f32 to vector<28x128xf32>
      %1306 = arith.mulf %1305, %55 : vector<28x128xf32>
      %1307 = arith.addf %1303, %1306 : vector<28x128xf32>
      %c236 = arith.constant 236 : index
      %1308 = memref.load %arg6[%c236] : memref<250xf32, #tpu.memory_space<smem>>
      %1309 = vector.broadcast %1308 : f32 to vector<28x128xf32>
      %1310 = arith.mulf %1309, %56 : vector<28x128xf32>
      %1311 = arith.addf %1307, %1310 : vector<28x128xf32>
      %c237 = arith.constant 237 : index
      %1312 = memref.load %arg6[%c237] : memref<250xf32, #tpu.memory_space<smem>>
      %1313 = vector.broadcast %1312 : f32 to vector<28x128xf32>
      %1314 = arith.mulf %1313, %57 : vector<28x128xf32>
      %1315 = arith.addf %1311, %1314 : vector<28x128xf32>
      %c238 = arith.constant 238 : index
      %1316 = memref.load %arg6[%c238] : memref<250xf32, #tpu.memory_space<smem>>
      %1317 = vector.broadcast %1316 : f32 to vector<28x128xf32>
      %1318 = arith.mulf %1317, %58 : vector<28x128xf32>
      %1319 = arith.addf %1315, %1318 : vector<28x128xf32>
      %c239 = arith.constant 239 : index
      %1320 = memref.load %arg6[%c239] : memref<250xf32, #tpu.memory_space<smem>>
      %1321 = vector.broadcast %1320 : f32 to vector<28x128xf32>
      %1322 = arith.mulf %1321, %59 : vector<28x128xf32>
      %1323 = arith.addf %1319, %1322 : vector<28x128xf32>
      %c240 = arith.constant 240 : index
      %1324 = memref.load %arg6[%c240] : memref<250xf32, #tpu.memory_space<smem>>
      %1325 = vector.broadcast %1324 : f32 to vector<28x128xf32>
      %1326 = arith.mulf %1325, %60 : vector<28x128xf32>
      %1327 = arith.addf %1323, %1326 : vector<28x128xf32>
      %c241 = arith.constant 241 : index
      %1328 = memref.load %arg6[%c241] : memref<250xf32, #tpu.memory_space<smem>>
      %1329 = vector.broadcast %1328 : f32 to vector<28x128xf32>
      %1330 = arith.mulf %1329, %61 : vector<28x128xf32>
      %1331 = arith.addf %1327, %1330 : vector<28x128xf32>
      %c242 = arith.constant 242 : index
      %1332 = memref.load %arg6[%c242] : memref<250xf32, #tpu.memory_space<smem>>
      %1333 = vector.broadcast %1332 : f32 to vector<28x128xf32>
      %1334 = arith.mulf %1333, %62 : vector<28x128xf32>
      %1335 = arith.addf %1331, %1334 : vector<28x128xf32>
      %c243 = arith.constant 243 : index
      %1336 = memref.load %arg6[%c243] : memref<250xf32, #tpu.memory_space<smem>>
      %1337 = vector.broadcast %1336 : f32 to vector<28x128xf32>
      %1338 = arith.mulf %1337, %63 : vector<28x128xf32>
      %1339 = arith.addf %1335, %1338 : vector<28x128xf32>
      %c244 = arith.constant 244 : index
      %1340 = memref.load %arg6[%c244] : memref<250xf32, #tpu.memory_space<smem>>
      %1341 = vector.broadcast %1340 : f32 to vector<28x128xf32>
      %1342 = arith.mulf %1341, %64 : vector<28x128xf32>
      %1343 = arith.addf %1339, %1342 : vector<28x128xf32>
      %c245 = arith.constant 245 : index
      %1344 = memref.load %arg6[%c245] : memref<250xf32, #tpu.memory_space<smem>>
      %1345 = vector.broadcast %1344 : f32 to vector<28x128xf32>
      %1346 = arith.mulf %1345, %65 : vector<28x128xf32>
      %1347 = arith.addf %1343, %1346 : vector<28x128xf32>
      %c246 = arith.constant 246 : index
      %1348 = memref.load %arg6[%c246] : memref<250xf32, #tpu.memory_space<smem>>
      %1349 = vector.broadcast %1348 : f32 to vector<28x128xf32>
      %1350 = arith.mulf %1349, %66 : vector<28x128xf32>
      %1351 = arith.addf %1347, %1350 : vector<28x128xf32>
      %c247 = arith.constant 247 : index
      %1352 = memref.load %arg6[%c247] : memref<250xf32, #tpu.memory_space<smem>>
      %1353 = vector.broadcast %1352 : f32 to vector<28x128xf32>
      %1354 = arith.mulf %1353, %67 : vector<28x128xf32>
      %1355 = arith.addf %1351, %1354 : vector<28x128xf32>
      %c248 = arith.constant 248 : index
      %1356 = memref.load %arg6[%c248] : memref<250xf32, #tpu.memory_space<smem>>
      %1357 = vector.broadcast %1356 : f32 to vector<28x128xf32>
      %1358 = arith.mulf %1357, %68 : vector<28x128xf32>
      %1359 = arith.addf %1355, %1358 : vector<28x128xf32>
      %c249 = arith.constant 249 : index
      %1360 = memref.load %arg6[%c249] : memref<250xf32, #tpu.memory_space<smem>>
      %1361 = vector.broadcast %1360 : f32 to vector<28x128xf32>
      %1362 = arith.mulf %1361, %69 : vector<28x128xf32>
      %1363 = arith.addf %1359, %1362 : vector<28x128xf32>
      %c9_120 = arith.constant 9 : index
      %1364 = memref.load %arg7[%c9_120] : memref<10xf32, #tpu.memory_space<smem>>
      %1365 = vector.broadcast %1364 : f32 to vector<28x128xf32>
      %1366 = arith.addf %1363, %1365 : vector<28x128xf32>
      %cst_121 = arith.constant 0.000000e+00 : f32
      %1367 = vector.broadcast %cst_121 : f32 to vector<28x128xf32>
      %1368 = arith.maximumf %1366, %1367 : vector<28x128xf32>
      %c9_122 = arith.constant 9 : index
      %1369 = memref.load %arg8[%c9_122] : memref<10xf32, #tpu.memory_space<smem>>
      %1370 = vector.broadcast %1369 : f32 to vector<28x128xf32>
      %1371 = arith.mulf %1370, %1368 : vector<28x128xf32>
      %1372 = arith.addf %1264, %1371 : vector<28x128xf32>
      %c0_123 = arith.constant 0 : index
      %1373 = memref.load %arg9[%c0_123] : memref<1xf32, #tpu.memory_space<smem>>
      %1374 = vector.broadcast %1373 : f32 to vector<28x128xf32>
      %1375 = arith.addf %1372, %1374 : vector<28x128xf32>
      %cst_124 = arith.constant 0.000000e+00 : f32
      %1376 = vector.broadcast %cst_124 : f32 to vector<28x128xf32>
      %1377 = arith.maximumf %1375, %1376 : vector<28x128xf32>
      %1378 = arith.addf %293, %1377 : vector<28x128xf32>
      %cst_125 = arith.constant 5.000000e-01 : f32
      %1379 = vector.broadcast %cst_125 : f32 to vector<28x128xf32>
      %1380 = arith.mulf %1378, %1379 : vector<28x128xf32>
      %c32_i32 = arith.constant 32 : i32
      %1381 = arith.muli %arg16, %c32_i32 : i32
      %1382 = tpu.assume_multiple %1381, 32 : i32
      %1383 = arith.index_cast %1382 : i32 to index
      %c0_126 = arith.constant 0 : index
      %1384 = vector.load %arg15[%1383, %c0_126] : memref<896x128xf32, #tpu.memory_space<vmem>>, vector<28x128xf32>
      tpu.vector_store %arg15[%1383, %c0_126], %1380 {strides = array<i32>} : memref<896x128xf32, #tpu.memory_space<vmem>>, vector<28x128xf32>,
    }
    %c28_i32_1 = arith.constant 28 : i32
    %c0_2 = arith.constant 0 : index
    %c0_3 = arith.constant 0 : index
    %3 = vector.load %arg10[%c0_2, %c0_3] : memref<128x896xbf16, #tpu.memory_space<vmem>>, vector<128x896xbf16>
    %c0_4 = arith.constant 0 : index
    %c0_5 = arith.constant 0 : index
    %4 = vector.load %arg15[%c0_4, %c0_5] : memref<896x128xf32, #tpu.memory_space<vmem>>, vector<896x128xf32>
    %5 = arith.truncf %4 : vector<896x128xf32> to vector<896x128xbf16>
    %cst_6 = arith.constant dense<0.000000e+00> : vector<128x128xf32>
    %6 = tpu.matmul %3, %5, %cst_6 {dimension_numbers = #tpu.dot_dimension_numbers<[1], [0], [0], [1], [0, 0, 1, 1], [], []>} : vector<128x896xbf16>, vector<896x128xbf16>, vector<128x128xf32> -> vector<128x128xf32>
    %c0_7 = arith.constant 0 : index
    %c0_8 = arith.constant 0 : index
    %7 = vector.load %arg11[%c0_7, %c0_8] : memref<128x1xf32, #tpu.memory_space<vmem>>, vector<128x1xf32>
    %8 = vector.broadcast %7 : vector<128x1xf32> to vector<128x128xf32>
    %9 = arith.addf %6, %8 : vector<128x128xf32>
    %cst_9 = arith.constant 0.000000e+00 : f32
    %10 = vector.broadcast %cst_9 : f32 to vector<128x128xf32>
    %11 = arith.maximumf %9, %10 : vector<128x128xf32>
    %c0_10 = arith.constant 0 : index
    %c0_11 = arith.constant 0 : index
    %12 = vector.load %arg12[%c0_10, %c0_11] : memref<128x1xf32, #tpu.memory_space<vmem>>, vector<128x1xf32>
    %13 = vector.broadcast %12 : vector<128x1xf32> to vector<128x128xf32>
    %14 = arith.mulf %11, %13 : vector<128x128xf32>
    %cst_12 = arith.constant dense<0.000000e+00> : vector<128xf32>
    %15 = vector.multi_reduction <add>, %14, %cst_12 [0] : vector<128x128xf32> to vector<128xf32>
    %16 = vector.shape_cast %15 : vector<128xf32> to vector<1x128xf32>
    %c0_13 = arith.constant 0 : index
    %17 = memref.load %arg13[%c0_13] : memref<1xf32, #tpu.memory_space<smem>>
    %18 = vector.broadcast %17 : f32 to vector<1x128xf32>
    %19 = arith.addf %16, %18 : vector<1x128xf32>
    %cst_14 = arith.constant 0.000000e+00 : f32
    %20 = vector.broadcast %cst_14 : f32 to vector<1x128xf32>
    %21 = arith.maximumf %19, %20 : vector<1x128xf32>
    %c0_15 = arith.constant 0 : index
    %c0_16 = arith.constant 0 : index
    %c0_17 = arith.constant 0 : index
    %22 = vector.load %arg14[%c0_15, %c0_16, %c0_17] : memref<1x1x128xf32, #tpu.memory_space<vmem>>, vector<1x1x128xf32>
    %23 = vector.shape_cast %22 : vector<1x1x128xf32> to vector<1x128xf32>
    %24 = vector.shape_cast %21 : vector<1x128xf32> to vector<1x1x128xf32>
    tpu.vector_store %arg14[%c0_15, %c0_16, %c0_17], %24 {strides = array<i32>} : memref<1x1x128xf32, #tpu.memory_space<vmem>>, vector<1x1x128xf32>,
    return
  }
  func.func @transform_0(%arg0: i32) -> (i32, i32, i32) {
    %c0_i32 = arith.constant 0 : i32
    %c0_i32_0 = arith.constant 0 : i32
    %c0_i32_1 = arith.constant 0 : i32
    return %c0_i32, %c0_i32_0, %arg0 : i32, i32, i32
  }
  func.func @transform_1(%arg0: i32) -> i32 {
    %c0_i32 = arith.constant 0 : i32
    %c0_i32_0 = arith.constant 0 : i32
    return %c0_i32 : i32
  }
  func.func @transform_2(%arg0: i32) -> i32 {
    %c0_i32 = arith.constant 0 : i32
    %c0_i32_0 = arith.constant 0 : i32
    return %c0_i32 : i32
  }
  func.func @transform_3(%arg0: i32) -> i32 {
    %c0_i32 = arith.constant 0 : i32
    %c0_i32_0 = arith.constant 0 : i32
    return %c0_i32 : i32
  }
  func.func @transform_4(%arg0: i32) -> i32 {
    %c0_i32 = arith.constant 0 : i32
    %c0_i32_0 = arith.constant 0 : i32
    return %c0_i32 : i32
  }
  func.func @transform_5(%arg0: i32) -> i32 {
    %c0_i32 = arith.constant 0 : i32
    %c0_i32_0 = arith.constant 0 : i32
    return %c0_i32 : i32
  }
  func.func @transform_6(%arg0: i32) -> i32 {
    %c0_i32 = arith.constant 0 : i32
    %c0_i32_0 = arith.constant 0 : i32
    return %c0_i32 : i32
  }
  func.func @transform_7(%arg0: i32) -> i32 {
    %c0_i32 = arith.constant 0 : i32
    %c0_i32_0 = arith.constant 0 : i32
    return %c0_i32 : i32
  }
  func.func @transform_8(%arg0: i32) -> i32 {
    %c0_i32 = arith.constant 0 : i32
    %c0_i32_0 = arith.constant 0 : i32
    return %c0_i32 : i32
  }
  func.func @transform_9(%arg0: i32) -> (i32, i32) {
    %c0_i32 = arith.constant 0 : i32
    %c0_i32_0 = arith.constant 0 : i32
    %c0_i32_1 = arith.constant 0 : i32
    return %c0_i32, %c0_i32_0 : i32, i32
  }
  func.func @transform_10(%arg0: i32) -> (i32, i32) {
    %c0_i32 = arith.constant 0 : i32
    %c0_i32_0 = arith.constant 0 : i32
    %c0_i32_1 = arith.constant 0 : i32
    return %c0_i32, %c0_i32_0 : i32, i32
  }
  func.func @transform_11(%arg0: i32) -> (i32, i32) {
    %c0_i32 = arith.constant 0 : i32
    %c0_i32_0 = arith.constant 0 : i32
    %c0_i32_1 = arith.constant 0 : i32
    return %c0_i32, %c0_i32_0 : i32, i32
  }
  func.func @transform_12(%arg0: i32) -> i32 {
    %c0_i32 = arith.constant 0 : i32
    %c0_i32_0 = arith.constant 0 : i32
    return %c0_i32 : i32
  }
  func.func @transform_13(%arg0: i32) -> (i32, i32, i32) {
    %c0_i32 = arith.constant 0 : i32
    %c0_i32_0 = arith.constant 0 : i32
    %c0_i32_1 = arith.constant 0 : i32
    return %arg0, %c0_i32, %c0_i32_0 : i32, i32, i32
  }
}

</mosaic_0001>

<llo_original>
// kernel: model_forward.1
$region0: #{model_forward.1}
  #allocation0 [shape = 'u32[]', space=smem, size = 0x4, offset = 0x4, fixed_abs, tag = 'smem constant byte address 0x4 - core index']
  #allocation1 [shape = 'u32[144,128]{1,0:T(1,128)}', space=vmem, size = 0x12000, scoped, tag = 'internal scratch']
  #allocation2 [shape = 'f32[896,128]{1,0:T(8,128)}', space=vmem, size = 0x70000, scoped, tag = 'scratch operand']
  #allocation3 [shape = 'f32[1]{0:T(128)S(6)}', space=smem, size = 0x200, scoped, tag = 'scoped memory for model_forward.1']
  #allocation4 [shape = 'f32[1]{0:T(128)S(6)}', space=smem, size = 0x200, scoped, tag = 'scoped memory for model_forward.1']
  #allocation5 [shape = 'f32[1]{0:T(128)S(6)}', space=smem, size = 0x200, scoped, tag = 'scoped memory for model_forward.1']
  %s0 = inlined_call_operand.vmem [shape: f32[32,32,128], index: 0, kind: input, shape index: {}]
  %s1 = inlined_call_operand.vmem [shape: f32[45], index: 1, kind: input, shape index: {}]
  %s2 = inlined_call_operand.vmem [shape: f32[5], index: 2, kind: input, shape index: {}]
  %s3 = inlined_call_operand.vmem [shape: f32[5], index: 3, kind: input, shape index: {}]
  %s4 = inlined_call_operand.<no memory space> [shape: f32[1], index: 4, kind: input, shape index: {}]
  %s5 = inlined_call_operand.vmem [shape: f32[250], index: 5, kind: input, shape index: {}]
  %s6 = inlined_call_operand.vmem [shape: f32[10], index: 6, kind: input, shape index: {}]
  %s7 = inlined_call_operand.vmem [shape: f32[10], index: 7, kind: input, shape index: {}]
  %s8 = inlined_call_operand.<no memory space> [shape: f32[1], index: 8, kind: input, shape index: {}]
  %s9 = inlined_call_operand.vmem [shape: bf16[128,896], index: 9, kind: input, shape index: {}]
  %s10 = inlined_call_operand.vmem [shape: f32[128,1], index: 10, kind: input, shape index: {}]
  %s11 = inlined_call_operand.vmem [shape: f32[128,1], index: 11, kind: input, shape index: {}]
  %s12 = inlined_call_operand.<no memory space> [shape: f32[1], index: 12, kind: input, shape index: {}]
  %s13 = inlined_call_operand.vmem [shape: f32[1,1,128], index: 13, kind: output, shape index: {}]
  %s14 = sld [smem:[#allocation0]]
  $region93: #{model_forward.1} parent=0
    _
  %s16 = ssub.s32 1, %s14
  %s17 = scalar_select 0, %s16, %s14
  %18 = sst [smem:[#allocation3]] %s4
  %19 = sst [smem:[#allocation4]] %s8
  %20 = sst [smem:[#allocation5]] %s12
  $region1: #{model_forward.1} parent=0
    #allocation6 [shape = 'u8[512]{0}', space=smem, size = 0x200, scoped, tag = 'input window, operand 1, single buffered']
    #allocation7 [shape = 's32[1]{0}', space=sflag, size = 0x4, scoped, tag = 'scoped memory for model_forward.1']
    #allocation8 [shape = 'u8[512]{0}', space=smem, size = 0x200, scoped, tag = 'input window, operand 2, single buffered']
    #allocation9 [shape = 's32[1]{0}', space=sflag, size = 0x4, scoped, tag = 'scoped memory for model_forward.1']
    #allocation10 [shape = 'u8[512]{0}', space=smem, size = 0x200, scoped, tag = 'input window, operand 3, single buffered']
    #allocation11 [shape = 'u8[1024]{0}', space=smem, size = 0x400, scoped, tag = 'input window, operand 5, single buffered']
    #allocation12 [shape = 's32[1]{0}', space=sflag, size = 0x4, scoped, tag = 'scoped memory for model_forward.1']
    #allocation13 [shape = 'u8[512]{0}', space=smem, size = 0x200, scoped, tag = 'input window, operand 6, single buffered']
    #allocation14 [shape = 'u8[512]{0}', space=smem, size = 0x200, scoped, tag = 'input window, operand 7, single buffered']
    #allocation15 [shape = 's32[1]{0}', space=sflag, size = 0x4, scoped, tag = 'scoped memory for model_forward.1']
    %21 = vsyncpa [#allocation7], 0
    %22 = vsyncpa [#allocation9], 0
    %23 = vsyncpa [#allocation12], 0
    %24 = vsyncpa [#allocation15], 0
    // Predicated region
    $region2: #{model_forward.1} parent=1 // pred_check
      _
    $region3: #{model_forward.1} parent=1 // pred_check_branch
      %26 = sbr.rel (0) target = $region5
    $region4: #{model_forward.1} parent=1 // pred_region
      _
    $region5: #{model_forward.1} parent=1 // pred_fallthru
      _
    // Predicated region
    $region6: #{model_forward.1} parent=1 // pred_check
      _
    $region7: #{model_forward.1} parent=1 // pred_check_branch
      %28 = sbr.rel (0) target = $region9
    $region8: #{model_forward.1} parent=1 // pred_region
      %s30 = ssub.s32 16, 16
      %31 = vsyncadd [#allocation7], %s30
      %s33 = sshll.u32 %s1, 4
      %s34 = int_to_ptr.vmem [resolvable:$true] %s33
      %36 = dma.vmem_to_smem %s34, 16, [#allocation6], [#allocation7]
    $region9: #{model_forward.1} parent=1 // pred_fallthru
      _
    // Predicated region
    $region10: #{model_forward.1} parent=1 // pred_check
      _
    $region11: #{model_forward.1} parent=1 // pred_check_branch
      %38 = sbr.rel (0) target = $region13
    $region12: #{model_forward.1} parent=1 // pred_region
      %s40 = ssub.s32 16, 16
      %41 = vsyncadd [#allocation9], %s40
      %s43 = sshll.u32 %s2, 4
      %s44 = int_to_ptr.vmem [resolvable:$true] %s43
      %46 = dma.vmem_to_smem %s44, 16, [#allocation8], [#allocation9]
    $region13: #{model_forward.1} parent=1 // pred_fallthru
      _
    // Predicated region
    $region14: #{model_forward.1} parent=1 // pred_check
      _
    $region15: #{model_forward.1} parent=1 // pred_check_branch
      %48 = sbr.rel (0) target = $region17
    $region16: #{model_forward.1} parent=1 // pred_region
      %s50 = ssub.s32 16, 16
      %51 = vsyncadd [#allocation9], %s50
      %s53 = sshll.u32 %s3, 4
      %s54 = int_to_ptr.vmem [resolvable:$true] %s53
      %56 = dma.vmem_to_smem %s54, 16, [#allocation10], [#allocation9]
    $region17: #{model_forward.1} parent=1 // pred_fallthru
      _
    // Predicated region
    $region18: #{model_forward.1} parent=1 // pred_check
      _
    $region19: #{model_forward.1} parent=1 // pred_check_branch
      %58 = sbr.rel (0) target = $region21
    $region20: #{model_forward.1} parent=1 // pred_region
      _
    $region21: #{model_forward.1} parent=1 // pred_fallthru
      _
    // Predicated region
    $region22: #{model_forward.1} parent=1 // pred_check
      _
    $region23: #{model_forward.1} parent=1 // pred_check_branch
      %60 = sbr.rel (0) target = $region25
    $region24: #{model_forward.1} parent=1 // pred_region
      %s62 = ssub.s32 32, 32
      %63 = vsyncadd [#allocation12], %s62
      %s65 = sshll.u32 %s5, 4
      %s66 = int_to_ptr.vmem [resolvable:$true] %s65
      %68 = dma.vmem_to_smem %s66, 32, [#allocation11], [#allocation12]
    $region25: #{model_forward.1} parent=1 // pred_fallthru
      _
    // Predicated region
    $region26: #{model_forward.1} parent=1 // pred_check
      _
    $region27: #{model_forward.1} parent=1 // pred_check_branch
      %70 = sbr.rel (0) target = $region29
    $region28: #{model_forward.1} parent=1 // pred_region
      %s72 = ssub.s32 16, 16
      %73 = vsyncadd [#allocation12], %s72
      %s75 = sshll.u32 %s6, 4
      %s76 = int_to_ptr.vmem [resolvable:$true] %s75
      %78 = dma.vmem_to_smem %s76, 16, [#allocation13], [#allocation12]
    $region29: #{model_forward.1} parent=1 // pred_fallthru
      _
    // Predicated region
    $region30: #{model_forward.1} parent=1 // pred_check
      _
    $region31: #{model_forward.1} parent=1 // pred_check_branch
      %80 = sbr.rel (0) target = $region33
    $region32: #{model_forward.1} parent=1 // pred_region
      %s82 = ssub.s32 16, 16
      %83 = vsyncadd [#allocation15], %s82
      %s85 = sshll.u32 %s7, 4
      %s86 = int_to_ptr.vmem [resolvable:$true] %s85
      %88 = dma.vmem_to_smem %s86, 16, [#allocation14], [#allocation15]
    $region33: #{model_forward.1} parent=1 // pred_fallthru
      _
    // Predicated region
    $region34: #{model_forward.1} parent=1 // pred_check
      _
    $region35: #{model_forward.1} parent=1 // pred_check_branch
      %90 = sbr.rel (0) target = $region37
    $region36: #{model_forward.1} parent=1 // pred_region
      _
    $region37: #{model_forward.1} parent=1 // pred_fallthru
      _
    // Predicated region
    $region38: #{model_forward.1} parent=1 // pred_check
      _
    $region39: #{model_forward.1} parent=1 // pred_check_branch
      %92 = sbr.rel (0) target = $region41
    $region40: #{model_forward.1} parent=1 // pred_region
      _
    $region41: #{model_forward.1} parent=1 // pred_fallthru
      _
    // Predicated region
    $region42: #{model_forward.1} parent=1 // pred_check
      _
    $region43: #{model_forward.1} parent=1 // pred_check_branch
      %94 = sbr.rel (0) target = $region45
    $region44: #{model_forward.1} parent=1 // pred_region
      _
    $region45: #{model_forward.1} parent=1 // pred_fallthru
      _
    // Predicated region
    $region46: #{model_forward.1} parent=1 // pred_check
      _
    $region47: #{model_forward.1} parent=1 // pred_check_branch
      %96 = sbr.rel (0) target = $region49
    $region48: #{model_forward.1} parent=1 // pred_region
      _
    $region49: #{model_forward.1} parent=1 // pred_fallthru
      _
    // Predicated region
    $region50: #{model_forward.1} parent=1 // pred_check
      _
    $region51: #{model_forward.1} parent=1 // pred_check_branch
      %98 = sbr.rel (0) target = $region53
    $region52: #{model_forward.1} parent=1 // pred_region
      _
    $region53: #{model_forward.1} parent=1 // pred_fallthru
      _
    // Predicated region
    $region54: #{model_forward.1} parent=1 // pred_check
      _
    $region55: #{model_forward.1} parent=1 // pred_check_branch
      %100 = sbr.rel (0) target = $region57
    $region56: #{model_forward.1} parent=1 // pred_region
      %101 = dma.done [#allocation7], 16
    $region57: #{model_forward.1} parent=1 // pred_fallthru
      _
    // Predicated region
    $region58: #{model_forward.1} parent=1 // pred_check
      _
    $region59: #{model_forward.1} parent=1 // pred_check_branch
      %103 = sbr.rel (0) target = $region61
    $region60: #{model_forward.1} parent=1 // pred_region
      %104 = dma.done [#allocation9], 16
    $region61: #{model_forward.1} parent=1 // pred_fallthru
      _
    // Predicated region
    $region62: #{model_forward.1} parent=1 // pred_check
      _
    $region63: #{model_forward.1} parent=1 // pred_check_branch
      %106 = sbr.rel (0) target = $region65
    $region64: #{model_forward.1} parent=1 // pred_region
      %107 = dma.done [#allocation9], 16
    $region65: #{model_forward.1} parent=1 // pred_fallthru
      _
    // Predicated region
    $region66: #{model_forward.1} parent=1 // pred_check
      _
    $region67: #{model_forward.1} parent=1 // pred_check_branch
      %109 = sbr.rel (0) target = $region69
    $region68: #{model_forward.1} parent=1 // pred_region
      %110 = dma.done [#allocation12], 32
    $region69: #{model_forward.1} parent=1 // pred_fallthru
      _
    // Predicated region
    $region70: #{model_forward.1} parent=1 // pred_check
      _
    $region71: #{model_forward.1} parent=1 // pred_check_branch
      %112 = sbr.rel (0) target = $region73
    $region72: #{model_forward.1} parent=1 // pred_region
      %113 = dma.done [#allocation12], 16
    $region73: #{model_forward.1} parent=1 // pred_fallthru
      _
    // Predicated region
    $region74: #{model_forward.1} parent=1 // pred_check
      _
    $region75: #{model_forward.1} parent=1 // pred_check_branch
      %115 = sbr.rel (0) target = $region77
    $region76: #{model_forward.1} parent=1 // pred_region
      %116 = dma.done [#allocation15], 16
    $region77: #{model_forward.1} parent=1 // pred_fallthru
      _
    %117 = sfence
    %119 = vst [vmem:[#allocation2] sm:$0xff] 0.0
    %120 = vst [vmem:[#allocation2 + $0x8] sm:$0xff] 0.0
    %121 = vst [vmem:[#allocation2 + $0x10] sm:$0xff] 0.0
    %122 = vst [vmem:[#allocation2 + $0x18] sm:$0xff] 0.0
    %123 = vst [vmem:[#allocation2 + $0x20] sm:$0xff] 0.0
    %124 = vst [vmem:[#allocation2 + $0x28] sm:$0xff] 0.0
    %125 = vst [vmem:[#allocation2 + $0x30] sm:$0xff] 0.0
    %126 = vst [vmem:[#allocation2 + $0x38] sm:$0xff] 0.0
    %127 = vst [vmem:[#allocation2 + $0x40] sm:$0xff] 0.0
    %128 = vst [vmem:[#allocation2 + $0x48] sm:$0xff] 0.0
    %129 = vst [vmem:[#allocation2 + $0x50] sm:$0xff] 0.0
    %130 = vst [vmem:[#allocation2 + $0x58] sm:$0xff] 0.0
    %131 = vst [vmem:[#allocation2 + $0x60] sm:$0xff] 0.0
    %132 = vst [vmem:[#allocation2 + $0x68] sm:$0xff] 0.0
    %133 = vst [vmem:[#allocation2 + $0x70] sm:$0xff] 0.0
    %134 = vst [vmem:[#allocation2 + $0x78] sm:$0xff] 0.0
    %135 = vst [vmem:[#allocation2 + $0x80] sm:$0xff] 0.0
    %136 = vst [vmem:[#allocation2 + $0x88] sm:$0xff] 0.0
    %137 = vst [vmem:[#allocation2 + $0x90] sm:$0xff] 0.0
    %138 = vst [vmem:[#allocation2 + $0x98] sm:$0xff] 0.0
    %139 = vst [vmem:[#allocation2 + $0xa0] sm:$0xff] 0.0
    %140 = vst [vmem:[#allocation2 + $0xa8] sm:$0xff] 0.0
    %141 = vst [vmem:[#allocation2 + $0xb0] sm:$0xff] 0.0
    %142 = vst [vmem:[#allocation2 + $0xb8] sm:$0xff] 0.0
    %143 = vst [vmem:[#allocation2 + $0xc0] sm:$0xff] 0.0
    %144 = vst [vmem:[#allocation2 + $0xc8] sm:$0xff] 0.0
    %145 = vst [vmem:[#allocation2 + $0xd0] sm:$0xff] 0.0
    %146 = vst [vmem:[#allocation2 + $0xd8] sm:$0xff] 0.0
    %147 = vst [vmem:[#allocation2 + $0xe0] sm:$0xff] 0.0
    %148 = vst [vmem:[#allocation2 + $0xe8] sm:$0xff] 0.0
    %149 = vst [vmem:[#allocation2 + $0xf0] sm:$0xff] 0.0
    %150 = vst [vmem:[#allocation2 + $0xf8] sm:$0xff] 0.0
    %151 = vst [vmem:[#allocation2 + $0x100] sm:$0xff] 0.0
    %152 = vst [vmem:[#allocation2 + $0x108] sm:$0xff] 0.0
    %153 = vst [vmem:[#allocation2 + $0x110] sm:$0xff] 0.0
    %154 = vst [vmem:[#allocation2 + $0x118] sm:$0xff] 0.0
    %155 = vst [vmem:[#allocation2 + $0x120] sm:$0xff] 0.0
    %156 = vst [vmem:[#allocation2 + $0x128] sm:$0xff] 0.0
    %157 = vst [vmem:[#allocation2 + $0x130] sm:$0xff] 0.0
    %158 = vst [vmem:[#allocation2 + $0x138] sm:$0xff] 0.0
    %159 = vst [vmem:[#allocation2 + $0x140] sm:$0xff] 0.0
    %160 = vst [vmem:[#allocation2 + $0x148] sm:$0xff] 0.0
    %161 = vst [vmem:[#allocation2 + $0x150] sm:$0xff] 0.0
    %162 = vst [vmem:[#allocation2 + $0x158] sm:$0xff] 0.0
    %163 = vst [vmem:[#allocation2 + $0x160] sm:$0xff] 0.0
    %164 = vst [vmem:[#allocation2 + $0x168] sm:$0xff] 0.0
    %165 = vst [vmem:[#allocation2 + $0x170] sm:$0xff] 0.0
    %166 = vst [vmem:[#allocation2 + $0x178] sm:$0xff] 0.0
    %167 = vst [vmem:[#allocation2 + $0x180] sm:$0xff] 0.0
    %168 = vst [vmem:[#allocation2 + $0x188] sm:$0xff] 0.0
    %169 = vst [vmem:[#allocation2 + $0x190] sm:$0xff] 0.0
    %170 = vst [vmem:[#allocation2 + $0x198] sm:$0xff] 0.0
    %171 = vst [vmem:[#allocation2 + $0x1a0] sm:$0xff] 0.0
    %172 = vst [vmem:[#allocation2 + $0x1a8] sm:$0xff] 0.0
    %173 = vst [vmem:[#allocation2 + $0x1b0] sm:$0xff] 0.0
    %174 = vst [vmem:[#allocation2 + $0x1b8] sm:$0xff] 0.0
    %175 = vst [vmem:[#allocation2 + $0x1c0] sm:$0xff] 0.0
    %176 = vst [vmem:[#allocation2 + $0x1c8] sm:$0xff] 0.0
    %177 = vst [vmem:[#allocation2 + $0x1d0] sm:$0xff] 0.0
    %178 = vst [vmem:[#allocation2 + $0x1d8] sm:$0xff] 0.0
    %179 = vst [vmem:[#allocation2 + $0x1e0] sm:$0xff] 0.0
    %180 = vst [vmem:[#allocation2 + $0x1e8] sm:$0xff] 0.0
    %181 = vst [vmem:[#allocation2 + $0x1f0] sm:$0xff] 0.0
    %182 = vst [vmem:[#allocation2 + $0x1f8] sm:$0xff] 0.0
    %183 = vst [vmem:[#allocation2 + $0x200] sm:$0xff] 0.0
    %184 = vst [vmem:[#allocation2 + $0x208] sm:$0xff] 0.0
    %185 = vst [vmem:[#allocation2 + $0x210] sm:$0xff] 0.0
    %186 = vst [vmem:[#allocation2 + $0x218] sm:$0xff] 0.0
    %187 = vst [vmem:[#allocation2 + $0x220] sm:$0xff] 0.0
    %188 = vst [vmem:[#allocation2 + $0x228] sm:$0xff] 0.0
    %189 = vst [vmem:[#allocation2 + $0x230] sm:$0xff] 0.0
    %190 = vst [vmem:[#allocation2 + $0x238] sm:$0xff] 0.0
    %191 = vst [vmem:[#allocation2 + $0x240] sm:$0xff] 0.0
    %192 = vst [vmem:[#allocation2 + $0x248] sm:$0xff] 0.0
    %193 = vst [vmem:[#allocation2 + $0x250] sm:$0xff] 0.0
    %194 = vst [vmem:[#allocation2 + $0x258] sm:$0xff] 0.0
    %195 = vst [vmem:[#allocation2 + $0x260] sm:$0xff] 0.0
    %196 = vst [vmem:[#allocation2 + $0x268] sm:$0xff] 0.0
    %197 = vst [vmem:[#allocation2 + $0x270] sm:$0xff] 0.0
    %198 = vst [vmem:[#allocation2 + $0x278] sm:$0xff] 0.0
    %199 = vst [vmem:[#allocation2 + $0x280] sm:$0xff] 0.0
    %200 = vst [vmem:[#allocation2 + $0x288] sm:$0xff] 0.0
    %201 = vst [vmem:[#allocation2 + $0x290] sm:$0xff] 0.0
    %202 = vst [vmem:[#allocation2 + $0x298] sm:$0xff] 0.0
    %203 = vst [vmem:[#allocation2 + $0x2a0] sm:$0xff] 0.0
    %204 = vst [vmem:[#allocation2 + $0x2a8] sm:$0xff] 0.0
    %205 = vst [vmem:[#allocation2 + $0x2b0] sm:$0xff] 0.0
    %206 = vst [vmem:[#allocation2 + $0x2b8] sm:$0xff] 0.0
    %207 = vst [vmem:[#allocation2 + $0x2c0] sm:$0xff] 0.0
    %208 = vst [vmem:[#allocation2 + $0x2c8] sm:$0xff] 0.0
    %209 = vst [vmem:[#allocation2 + $0x2d0] sm:$0xff] 0.0
    %210 = vst [vmem:[#allocation2 + $0x2d8] sm:$0xff] 0.0
    %211 = vst [vmem:[#allocation2 + $0x2e0] sm:$0xff] 0.0
    %212 = vst [vmem:[#allocation2 + $0x2e8] sm:$0xff] 0.0
    %213 = vst [vmem:[#allocation2 + $0x2f0] sm:$0xff] 0.0
    %214 = vst [vmem:[#allocation2 + $0x2f8] sm:$0xff] 0.0
    %215 = vst [vmem:[#allocation2 + $0x300] sm:$0xff] 0.0
    %216 = vst [vmem:[#allocation2 + $0x308] sm:$0xff] 0.0
    %217 = vst [vmem:[#allocation2 + $0x310] sm:$0xff] 0.0
    %218 = vst [vmem:[#allocation2 + $0x318] sm:$0xff] 0.0
    %219 = vst [vmem:[#allocation2 + $0x320] sm:$0xff] 0.0
    %220 = vst [vmem:[#allocation2 + $0x328] sm:$0xff] 0.0
    %221 = vst [vmem:[#allocation2 + $0x330] sm:$0xff] 0.0
    %222 = vst [vmem:[#allocation2 + $0x338] sm:$0xff] 0.0
    %223 = vst [vmem:[#allocation2 + $0x340] sm:$0xff] 0.0
    %224 = vst [vmem:[#allocation2 + $0x348] sm:$0xff] 0.0
    %225 = vst [vmem:[#allocation2 + $0x350] sm:$0xff] 0.0
    %226 = vst [vmem:[#allocation2 + $0x358] sm:$0xff] 0.0
    %227 = vst [vmem:[#allocation2 + $0x360] sm:$0xff] 0.0
    %228 = vst [vmem:[#allocation2 + $0x368] sm:$0xff] 0.0
    %229 = vst [vmem:[#allocation2 + $0x370] sm:$0xff] 0.0
    %230 = vst [vmem:[#allocation2 + $0x378] sm:$0xff] 0.0
    loop: start=0, step=1, limit=28
    $region78: #{model_forward.1} parent=1 // loop_pre_header
      _
    $region79: #{model_forward.1} parent=1 // loop_header
      %s232 = sphi 0, %s236
      %p233 = scmp.ge.s32.totalorder %s232, 28
    $region80: #{model_forward.1} parent=1 // loop_header_branch
      %235 = sbr.rel (%p233) target = $region84
    $region81: #{model_forward.1} parent=1 // loop_body
      %s237 = smul.u32 %s232, 32
      %s238 = scalar_lea.vmem %s0, %s237
      %v239 = vld [vmem:[%s238] sm:$0xff]
      %v240 = vld [vmem:[%s238 + $0x8] sm:$0xff]
      %v241 = vld [vmem:[%s238 + $0x10] sm:$0xff]
      %v242 = vld [vmem:[%s238 + $0x18] sm:$0xff]
      %s243 = sadd.s32 %s232, 1
      %s244 = smul.u32 %s243, 32
      %s245 = scalar_lea.vmem %s0, %s244
      %v246 = vld [vmem:[%s245] sm:$0xff]
      %v247 = vld [vmem:[%s245 + $0x8] sm:$0xff]
      %v248 = vld [vmem:[%s245 + $0x10] sm:$0xff]
      %v249 = vld [vmem:[%s245 + $0x18] sm:$0xff]
      %s250 = sadd.s32 %s232, 2
      %s251 = smul.u32 %s250, 32
      %s252 = scalar_lea.vmem %s0, %s251
      %v253 = vld [vmem:[%s252] sm:$0xff]
      %v254 = vld [vmem:[%s252 + $0x8] sm:$0xff]
      %v255 = vld [vmem:[%s252 + $0x10] sm:$0xff]
      %v256 = vld [vmem:[%s252 + $0x18] sm:$0xff]
      %s257 = sadd.s32 %s232, 3
      %s258 = smul.u32 %s257, 32
      %s259 = scalar_lea.vmem %s0, %s258
      %v260 = vld [vmem:[%s259] sm:$0xff]
      %v261 = vld [vmem:[%s259 + $0x8] sm:$0xff]
      %v262 = vld [vmem:[%s259 + $0x10] sm:$0xff]
      %v263 = vld [vmem:[%s259 + $0x18] sm:$0xff]
      %s264 = sadd.s32 %s232, 4
      %s265 = smul.u32 %s264, 32
      %s266 = scalar_lea.vmem %s0, %s265
      %v267 = vld [vmem:[%s266] sm:$0xff]
      %v268 = vld [vmem:[%s266 + $0x8] sm:$0xff]
      %v269 = vld [vmem:[%s266 + $0x10] sm:$0xff]
      %v270 = vld [vmem:[%s266 + $0x18] sm:$0xff]
      %s271 = sld [smem:[#allocation6]]
      %v272 = vstv %s271
      %v273 = vmul.f32 %v272, %v246
      %v274 = vmul.f32 %v272, %v247
      %v275 = vmul.f32 %v272, %v248
      %v276 = vmul.f32 %v272, %v249
      %s277 = sld [smem:[#allocation6 + $0x1]]
      %v278 = vstv %s277
      %v279 = vmul.f32 %v278, %v246
      %v280 = vmul.f32 %v278, %v247
      %v281 = vmul.f32 %v278, %v248
      %v282 = vmul.f32 %v278, %v249
      %vm287 = vcmask 1046528
      %v288 = vrot.slane %v279, 1
      %v289 = vrot.slane %v280, 1
      %v290 = vsel %vm287, %v288, %v289
      %v291 = vrot.slane %v281, 1
      %v292 = vsel %vm287, %v289, %v291
      %v293 = vrot.slane %v282, 1
      %v294 = vsel %vm287, %v291, %v293
      %v299 = vadd.f32 %v273, %v290
      %v300 = vadd.f32 %v274, %v292
      %v301 = vadd.f32 %v275, %v294
      %v302 = vadd.f32 %v276, %v293
      %s303 = sld [smem:[#allocation6 + $0x2]]
      %v304 = vstv %s303
      %v305 = vmul.f32 %v304, %v246
      %v306 = vmul.f32 %v304, %v247
      %v307 = vmul.f32 %v304, %v248
      %v308 = vmul.f32 %v304, %v249
      %vm313 = vcmask 1045504
      %v314 = vrot.slane %v305, 2
      %v315 = vrot.slane %v306, 2
      %v316 = vsel %vm313, %v314, %v315
      %v317 = vrot.slane %v307, 2
      %v318 = vsel %vm313, %v315, %v317
      %v319 = vrot.slane %v308, 2
      %v320 = vsel %vm313, %v317, %v319
      %v325 = vadd.f32 %v299, %v316
      %v326 = vadd.f32 %v300, %v318
      %v327 = vadd.f32 %v301, %v320
      %v328 = vadd.f32 %v302, %v319
      %s329 = sld [smem:[#allocation6 + $0x3]]
      %v330 = vstv %s329
      %v331 = vmul.f32 %v330, %v253
      %v332 = vmul.f32 %v330, %v254
      %v333 = vmul.f32 %v330, %v255
      %v334 = vmul.f32 %v330, %v256
      %v335 = vadd.f32 %v325, %v331
      %v336 = vadd.f32 %v326, %v332
      %v337 = vadd.f32 %v327, %v333
      %v338 = vadd.f32 %v328, %v334
      %s339 = sld [smem:[#allocation6 + $0x4]]
      %v340 = vstv %s339
      %v341 = vmul.f32 %v340, %v253
      %v342 = vmul.f32 %v340, %v254
      %v343 = vmul.f32 %v340, %v255
      %v344 = vmul.f32 %v340, %v256
      %v349 = vrot.slane %v341, 1
      %v350 = vrot.slane %v342, 1
      %v351 = vsel %vm287, %v349, %v350
      %v352 = vrot.slane %v343, 1
      %v353 = vsel %vm287, %v350, %v352
      %v354 = vrot.slane %v344, 1
      %v355 = vsel %vm287, %v352, %v354
      %v360 = vadd.f32 %v335, %v351
      %v361 = vadd.f32 %v336, %v353
      %v362 = vadd.f32 %v337, %v355
      %v363 = vadd.f32 %v338, %v354
      %s364 = sld [smem:[#allocation6 + $0x5]]
      %v365 = vstv %s364
      %v366 = vmul.f32 %v365, %v253
      %v367 = vmul.f32 %v365, %v254
      %v368 = vmul.f32 %v365, %v255
      %v369 = vmul.f32 %v365, %v256
      %v374 = vrot.slane %v366, 2
      %v375 = vrot.slane %v367, 2
      %v376 = vsel %vm313, %v374, %v375
      %v377 = vrot.slane %v368, 2
      %v378 = vsel %vm313, %v375, %v377
      %v379 = vrot.slane %v369, 2
      %v380 = vsel %vm313, %v377, %v379
      %v385 = vadd.f32 %v360, %v376
      %v386 = vadd.f32 %v361, %v378
      %v387 = vadd.f32 %v362, %v380
      %v388 = vadd.f32 %v363, %v379
      %s389 = sld [smem:[#allocation6 + $0x6]]
      %v390 = vstv %s389
      %v391 = vmul.f32 %v390, %v260
      %v392 = vmul.f32 %v390, %v261
      %v393 = vmul.f32 %v390, %v262
      %v394 = vmul.f32 %v390, %v263
      %v395 = vadd.f32 %v385, %v391
      %v396 = vadd.f32 %v386, %v392
      %v397 = vadd.f32 %v387, %v393
      %v398 = vadd.f32 %v388, %v394
      %s399 = sld [smem:[#allocation6 + $0x7]]
      %v400 = vstv %s399
      %v401 = vmul.f32 %v400, %v260
      %v402 = vmul.f32 %v400, %v261
      %v403 = vmul.f32 %v400, %v262
      %v404 = vmul.f32 %v400, %v263
      %v409 = vrot.slane %v401, 1
      %v410 = vrot.slane %v402, 1
      %v411 = vsel %vm287, %v409, %v410
      %v412 = vrot.slane %v403, 1
      %v413 = vsel %vm287, %v410, %v412
      %v414 = vrot.slane %v404, 1
      %v415 = vsel %vm287, %v412, %v414
      %v420 = vadd.f32 %v395, %v411
      %v421 = vadd.f32 %v396, %v413
      %v422 = vadd.f32 %v397, %v415
      %v423 = vadd.f32 %v398, %v414
      %s424 = sld [smem:[#allocation6 + $0x8]]
      %v425 = vstv %s424
      %v426 = vmul.f32 %v425, %v260
      %v427 = vmul.f32 %v425, %v261
      %v428 = vmul.f32 %v425, %v262
      %v429 = vmul.f32 %v425, %v263
      %v434 = vrot.slane %v426, 2
      %v435 = vrot.slane %v427, 2
      %v436 = vsel %vm313, %v434, %v435
      %v437 = vrot.slane %v428, 2
      %v438 = vsel %vm313, %v435, %v437
      %v439 = vrot.slane %v429, 2
      %v440 = vsel %vm313, %v437, %v439
      %v445 = vadd.f32 %v420, %v436
      %v446 = vadd.f32 %v421, %v438
      %v447 = vadd.f32 %v422, %v440
      %v448 = vadd.f32 %v423, %v439
      %s449 = sld [smem:[#allocation8]]
      %v450 = vstv %s449
      %v451 = vadd.f32 %v445, %v450
      %v452 = vadd.f32 %v446, %v450
      %v453 = vadd.f32 %v447, %v450
      %v454 = vadd.f32 %v448, %v450
      %v455 = vmax.f32 %v451, 0.0
      %v456 = vmax.f32 %v452, 0.0
      %v457 = vmax.f32 %v453, 0.0
      %v458 = vmax.f32 %v454, 0.0
      %s459 = sld [smem:[#allocation10]]
      %v460 = vstv %s459
      %v461 = vmul.f32 %v460, %v455
      %v462 = vmul.f32 %v460, %v456
      %v463 = vmul.f32 %v460, %v457
      %v464 = vmul.f32 %v460, %v458
      %s465 = sld [smem:[#allocation6 + $0x9]]
      %v466 = vstv %s465
      %v467 = vmul.f32 %v466, %v246
      %v468 = vmul.f32 %v466, %v247
      %v469 = vmul.f32 %v466, %v248
      %v470 = vmul.f32 %v466, %v249
      %s471 = sld [smem:[#allocation6 + $0xa]]
      %v472 = vstv %s471
      %v473 = vmul.f32 %v472, %v246
      %v474 = vmul.f32 %v472, %v247
      %v475 = vmul.f32 %v472, %v248
      %v476 = vmul.f32 %v472, %v249
      %v481 = vrot.slane %v473, 1
      %v482 = vrot.slane %v474, 1
      %v483 = vsel %vm287, %v481, %v482
      %v484 = vrot.slane %v475, 1
      %v485 = vsel %vm287, %v482, %v484
      %v486 = vrot.slane %v476, 1
      %v487 = vsel %vm287, %v484, %v486
      %v492 = vadd.f32 %v467, %v483
      %v493 = vadd.f32 %v468, %v485
      %v494 = vadd.f32 %v469, %v487
      %v495 = vadd.f32 %v470, %v486
      %s496 = sld [smem:[#allocation6 + $0xb]]
      %v497 = vstv %s496
      %v498 = vmul.f32 %v497, %v246
      %v499 = vmul.f32 %v497, %v247
      %v500 = vmul.f32 %v497, %v248
      %v501 = vmul.f32 %v497, %v249
      %v506 = vrot.slane %v498, 2
      %v507 = vrot.slane %v499, 2
      %v508 = vsel %vm313, %v506, %v507
      %v509 = vrot.slane %v500, 2
      %v510 = vsel %vm313, %v507, %v509
      %v511 = vrot.slane %v501, 2
      %v512 = vsel %vm313, %v509, %v511
      %v517 = vadd.f32 %v492, %v508
      %v518 = vadd.f32 %v493, %v510
      %v519 = vadd.f32 %v494, %v512
      %v520 = vadd.f32 %v495, %v511
      %s521 = sld [smem:[#allocation6 + $0xc]]
      %v522 = vstv %s521
      %v523 = vmul.f32 %v522, %v253
      %v524 = vmul.f32 %v522, %v254
      %v525 = vmul.f32 %v522, %v255
      %v526 = vmul.f32 %v522, %v256
      %v527 = vadd.f32 %v517, %v523
      %v528 = vadd.f32 %v518, %v524
      %v529 = vadd.f32 %v519, %v525
      %v530 = vadd.f32 %v520, %v526
      %s531 = sld [smem:[#allocation6 + $0xd]]
      %v532 = vstv %s531
      %v533 = vmul.f32 %v532, %v253
      %v534 = vmul.f32 %v532, %v254
      %v535 = vmul.f32 %v532, %v255
      %v536 = vmul.f32 %v532, %v256
      %v541 = vrot.slane %v533, 1
      %v542 = vrot.slane %v534, 1
      %v543 = vsel %vm287, %v541, %v542
      %v544 = vrot.slane %v535, 1
      %v545 = vsel %vm287, %v542, %v544
      %v546 = vrot.slane %v536, 1
      %v547 = vsel %vm287, %v544, %v546
      %v552 = vadd.f32 %v527, %v543
      %v553 = vadd.f32 %v528, %v545
      %v554 = vadd.f32 %v529, %v547
      %v555 = vadd.f32 %v530, %v546
      %s556 = sld [smem:[#allocation6 + $0xe]]
      %v557 = vstv %s556
      %v558 = vmul.f32 %v557, %v253
      %v559 = vmul.f32 %v557, %v254
      %v560 = vmul.f32 %v557, %v255
      %v561 = vmul.f32 %v557, %v256
      %v566 = vrot.slane %v558, 2
      %v567 = vrot.slane %v559, 2
      %v568 = vsel %vm313, %v566, %v567
      %v569 = vrot.slane %v560, 2
      %v570 = vsel %vm313, %v567, %v569
      %v571 = vrot.slane %v561, 2
      %v572 = vsel %vm313, %v569, %v571
      %v577 = vadd.f32 %v552, %v568
      %v578 = vadd.f32 %v553, %v570
      %v579 = vadd.f32 %v554, %v572
      %v580 = vadd.f32 %v555, %v571
      %s581 = sld [smem:[#allocation6 + $0xf]]
      %v582 = vstv %s581
      %v583 = vmul.f32 %v582, %v260
      %v584 = vmul.f32 %v582, %v261
      %v585 = vmul.f32 %v582, %v262
      %v586 = vmul.f32 %v582, %v263
      %v587 = vadd.f32 %v577, %v583
      %v588 = vadd.f32 %v578, %v584
      %v589 = vadd.f32 %v579, %v585
      %v590 = vadd.f32 %v580, %v586
      %s591 = sld [smem:[#allocation6 + $0x10]]
      %v592 = vstv %s591
      %v593 = vmul.f32 %v592, %v260
      %v594 = vmul.f32 %v592, %v261
      %v595 = vmul.f32 %v592, %v262
      %v596 = vmul.f32 %v592, %v263
      %v601 = vrot.slane %v593, 1
      %v602 = vrot.slane %v594, 1
      %v603 = vsel %vm287, %v601, %v602
      %v604 = vrot.slane %v595, 1
      %v605 = vsel %vm287, %v602, %v604
      %v606 = vrot.slane %v596, 1
      %v607 = vsel %vm287, %v604, %v606
      %v612 = vadd.f32 %v587, %v603
      %v613 = vadd.f32 %v588, %v605
      %v614 = vadd.f32 %v589, %v607
      %v615 = vadd.f32 %v590, %v606
      %s616 = sld [smem:[#allocation6 + $0x11]]
      %v617 = vstv %s616
      %v618 = vmul.f32 %v617, %v260
      %v619 = vmul.f32 %v617, %v261
      %v620 = vmul.f32 %v617, %v262
      %v621 = vmul.f32 %v617, %v263
      %v626 = vrot.slane %v618, 2
      %v627 = vrot.slane %v619, 2
      %v628 = vsel %vm313, %v626, %v627
      %v629 = vrot.slane %v620, 2
      %v630 = vsel %vm313, %v627, %v629
      %v631 = vrot.slane %v621, 2
      %v632 = vsel %vm313, %v629, %v631
      %v637 = vadd.f32 %v612, %v628
      %v638 = vadd.f32 %v613, %v630
      %v639 = vadd.f32 %v614, %v632
      %v640 = vadd.f32 %v615, %v631
      %s641 = sld [smem:[#allocation8 + $0x1]]
      %v642 = vstv %s641
      %v643 = vadd.f32 %v637, %v642
      %v644 = vadd.f32 %v638, %v642
      %v645 = vadd.f32 %v639, %v642
      %v646 = vadd.f32 %v640, %v642
      %v647 = vmax.f32 %v643, 0.0
      %v648 = vmax.f32 %v644, 0.0
      %v649 = vmax.f32 %v645, 0.0
      %v650 = vmax.f32 %v646, 0.0
      %s651 = sld [smem:[#allocation10 + $0x1]]
      %v652 = vstv %s651
      %v653 = vmul.f32 %v652, %v647
      %v654 = vmul.f32 %v652, %v648
      %v655 = vmul.f32 %v652, %v649
      %v656 = vmul.f32 %v652, %v650
      %v657 = vadd.f32 %v461, %v653
      %v658 = vadd.f32 %v462, %v654
      %v659 = vadd.f32 %v463, %v655
      %v660 = vadd.f32 %v464, %v656
      %s661 = sld [smem:[#allocation6 + $0x12]]
      %v662 = vstv %s661
      %v663 = vmul.f32 %v662, %v246
      %v664 = vmul.f32 %v662, %v247
      %v665 = vmul.f32 %v662, %v248
      %v666 = vmul.f32 %v662, %v249
      %s667 = sld [smem:[#allocation6 + $0x13]]
      %v668 = vstv %s667
      %v669 = vmul.f32 %v668, %v246
      %v670 = vmul.f32 %v668, %v247
      %v671 = vmul.f32 %v668, %v248
      %v672 = vmul.f32 %v668, %v249
      %v677 = vrot.slane %v669, 1
      %v678 = vrot.slane %v670, 1
      %v679 = vsel %vm287, %v677, %v678
      %v680 = vrot.slane %v671, 1
      %v681 = vsel %vm287, %v678, %v680
      %v682 = vrot.slane %v672, 1
      %v683 = vsel %vm287, %v680, %v682
      %v688 = vadd.f32 %v663, %v679
      %v689 = vadd.f32 %v664, %v681
      %v690 = vadd.f32 %v665, %v683
      %v691 = vadd.f32 %v666, %v682
      %s692 = sld [smem:[#allocation6 + $0x14]]
      %v693 = vstv %s692
      %v694 = vmul.f32 %v693, %v246
      %v695 = vmul.f32 %v693, %v247
      %v696 = vmul.f32 %v693, %v248
      %v697 = vmul.f32 %v693, %v249
      %v702 = vrot.slane %v694, 2
      %v703 = vrot.slane %v695, 2
      %v704 = vsel %vm313, %v702, %v703
      %v705 = vrot.slane %v696, 2
      %v706 = vsel %vm313, %v703, %v705
      %v707 = vrot.slane %v697, 2
      %v708 = vsel %vm313, %v705, %v707
      %v713 = vadd.f32 %v688, %v704
      %v714 = vadd.f32 %v689, %v706
      %v715 = vadd.f32 %v690, %v708
      %v716 = vadd.f32 %v691, %v707
      %s717 = sld [smem:[#allocation6 + $0x15]]
      %v718 = vstv %s717
      %v719 = vmul.f32 %v718, %v253
      %v720 = vmul.f32 %v718, %v254
      %v721 = vmul.f32 %v718, %v255
      %v722 = vmul.f32 %v718, %v256
      %v723 = vadd.f32 %v713, %v719
      %v724 = vadd.f32 %v714, %v720
      %v725 = vadd.f32 %v715, %v721
      %v726 = vadd.f32 %v716, %v722
      %s727 = sld [smem:[#allocation6 + $0x16]]
      %v728 = vstv %s727
      %v729 = vmul.f32 %v728, %v253
      %v730 = vmul.f32 %v728, %v254
      %v731 = vmul.f32 %v728, %v255
      %v732 = vmul.f32 %v728, %v256
      %v737 = vrot.slane %v729, 1
      %v738 = vrot.slane %v730, 1
      %v739 = vsel %vm287, %v737, %v738
      %v740 = vrot.slane %v731, 1
      %v741 = vsel %vm287, %v738, %v740
      %v742 = vrot.slane %v732, 1
      %v743 = vsel %vm287, %v740, %v742
      %v748 = vadd.f32 %v723, %v739
      %v749 = vadd.f32 %v724, %v741
      %v750 = vadd.f32 %v725, %v743
      %v751 = vadd.f32 %v726, %v742
      %s752 = sld [smem:[#allocation6 + $0x17]]
      %v753 = vstv %s752
      %v754 = vmul.f32 %v753, %v253
      %v755 = vmul.f32 %v753, %v254
      %v756 = vmul.f32 %v753, %v255
      %v757 = vmul.f32 %v753, %v256
      %v762 = vrot.slane %v754, 2
      %v763 = vrot.slane %v755, 2
      %v764 = vsel %vm313, %v762, %v763
      %v765 = vrot.slane %v756, 2
      %v766 = vsel %vm313, %v763, %v765
      %v767 = vrot.slane %v757, 2
      %v768 = vsel %vm313, %v765, %v767
      %v773 = vadd.f32 %v748, %v764
      %v774 = vadd.f32 %v749, %v766
      %v775 = vadd.f32 %v750, %v768
      %v776 = vadd.f32 %v751, %v767
      %s777 = sld [smem:[#allocation6 + $0x18]]
      %v778 = vstv %s777
      %v779 = vmul.f32 %v778, %v260
      %v780 = vmul.f32 %v778, %v261
      %v781 = vmul.f32 %v778, %v262
      %v782 = vmul.f32 %v778, %v263
      %v783 = vadd.f32 %v773, %v779
      %v784 = vadd.f32 %v774, %v780
      %v785 = vadd.f32 %v775, %v781
      %v786 = vadd.f32 %v776, %v782
      %s787 = sld [smem:[#allocation6 + $0x19]]
      %v788 = vstv %s787
      %v789 = vmul.f32 %v788, %v260
      %v790 = vmul.f32 %v788, %v261
      %v791 = vmul.f32 %v788, %v262
      %v792 = vmul.f32 %v788, %v263
      %v797 = vrot.slane %v789, 1
      %v798 = vrot.slane %v790, 1
      %v799 = vsel %vm287, %v797, %v798
      %v800 = vrot.slane %v791, 1
      %v801 = vsel %vm287, %v798, %v800
      %v802 = vrot.slane %v792, 1
      %v803 = vsel %vm287, %v800, %v802
      %v808 = vadd.f32 %v783, %v799
      %v809 = vadd.f32 %v784, %v801
      %v810 = vadd.f32 %v785, %v803
      %v811 = vadd.f32 %v786, %v802
      %s812 = sld [smem:[#allocation6 + $0x1a]]
      %v813 = vstv %s812
      %v814 = vmul.f32 %v813, %v260
      %v815 = vmul.f32 %v813, %v261
      %v816 = vmul.f32 %v813, %v262
      %v817 = vmul.f32 %v813, %v263
      %v822 = vrot.slane %v814, 2
      %v823 = vrot.slane %v815, 2
      %v824 = vsel %vm313, %v822, %v823
      %v825 = vrot.slane %v816, 2
      %v826 = vsel %vm313, %v823, %v825
      %v827 = vrot.slane %v817, 2
      %v828 = vsel %vm313, %v825, %v827
      %v833 = vadd.f32 %v808, %v824
      %v834 = vadd.f32 %v809, %v826
      %v835 = vadd.f32 %v810, %v828
      %v836 = vadd.f32 %v811, %v827
      %s837 = sld [smem:[#allocation8 + $0x2]]
      %v838 = vstv %s837
      %v839 = vadd.f32 %v833, %v838
      %v840 = vadd.f32 %v834, %v838
      %v841 = vadd.f32 %v835, %v838
      %v842 = vadd.f32 %v836, %v838
      %v843 = vmax.f32 %v839, 0.0
      %v844 = vmax.f32 %v840, 0.0
      %v845 = vmax.f32 %v841, 0.0
      %v846 = vmax.f32 %v842, 0.0
      %s847 = sld [smem:[#allocation10 + $0x2]]
      %v848 = vstv %s847
      %v849 = vmul.f32 %v848, %v843
      %v850 = vmul.f32 %v848, %v844
      %v851 = vmul.f32 %v848, %v845
      %v852 = vmul.f32 %v848, %v846
      %v853 = vadd.f32 %v657, %v849
      %v854 = vadd.f32 %v658, %v850
      %v855 = vadd.f32 %v659, %v851
      %v856 = vadd.f32 %v660, %v852
      %s857 = sld [smem:[#allocation6 + $0x1b]]
      %v858 = vstv %s857
      %v859 = vmul.f32 %v858, %v246
      %v860 = vmul.f32 %v858, %v247
      %v861 = vmul.f32 %v858, %v248
      %v862 = vmul.f32 %v858, %v249
      %s863 = sld [smem:[#allocation6 + $0x1c]]
      %v864 = vstv %s863
      %v865 = vmul.f32 %v864, %v246
      %v866 = vmul.f32 %v864, %v247
      %v867 = vmul.f32 %v864, %v248
      %v868 = vmul.f32 %v864, %v249
      %v873 = vrot.slane %v865, 1
      %v874 = vrot.slane %v866, 1
      %v875 = vsel %vm287, %v873, %v874
      %v876 = vrot.slane %v867, 1
      %v877 = vsel %vm287, %v874, %v876
      %v878 = vrot.slane %v868, 1
      %v879 = vsel %vm287, %v876, %v878
      %v884 = vadd.f32 %v859, %v875
      %v885 = vadd.f32 %v860, %v877
      %v886 = vadd.f32 %v861, %v879
      %v887 = vadd.f32 %v862, %v878
      %s888 = sld [smem:[#allocation6 + $0x1d]]
      %v889 = vstv %s888
      %v890 = vmul.f32 %v889, %v246
      %v891 = vmul.f32 %v889, %v247
      %v892 = vmul.f32 %v889, %v248
      %v893 = vmul.f32 %v889, %v249
      %v898 = vrot.slane %v890, 2
      %v899 = vrot.slane %v891, 2
      %v900 = vsel %vm313, %v898, %v899
      %v901 = vrot.slane %v892, 2
      %v902 = vsel %vm313, %v899, %v901
      %v903 = vrot.slane %v893, 2
      %v904 = vsel %vm313, %v901, %v903
      %v909 = vadd.f32 %v884, %v900
      %v910 = vadd.f32 %v885, %v902
      %v911 = vadd.f32 %v886, %v904
      %v912 = vadd.f32 %v887, %v903
      %s913 = sld [smem:[#allocation6 + $0x1e]]
      %v914 = vstv %s913
      %v915 = vmul.f32 %v914, %v253
      %v916 = vmul.f32 %v914, %v254
      %v917 = vmul.f32 %v914, %v255
      %v918 = vmul.f32 %v914, %v256
      %v919 = vadd.f32 %v909, %v915
      %v920 = vadd.f32 %v910, %v916
      %v921 = vadd.f32 %v911, %v917
      %v922 = vadd.f32 %v912, %v918
      %s923 = sld [smem:[#allocation6 + $0x1f]]
      %v924 = vstv %s923
      %v925 = vmul.f32 %v924, %v253
      %v926 = vmul.f32 %v924, %v254
      %v927 = vmul.f32 %v924, %v255
      %v928 = vmul.f32 %v924, %v256
      %v933 = vrot.slane %v925, 1
      %v934 = vrot.slane %v926, 1
      %v935 = vsel %vm287, %v933, %v934
      %v936 = vrot.slane %v927, 1
      %v937 = vsel %vm287, %v934, %v936
      %v938 = vrot.slane %v928, 1
      %v939 = vsel %vm287, %v936, %v938
      %v944 = vadd.f32 %v919, %v935
      %v945 = vadd.f32 %v920, %v937
      %v946 = vadd.f32 %v921, %v939
      %v947 = vadd.f32 %v922, %v938
      %s948 = sld [smem:[#allocation6 + $0x20]]
      %v949 = vstv %s948
      %v950 = vmul.f32 %v949, %v253
      %v951 = vmul.f32 %v949, %v254
      %v952 = vmul.f32 %v949, %v255
      %v953 = vmul.f32 %v949, %v256
      %v958 = vrot.slane %v950, 2
      %v959 = vrot.slane %v951, 2
      %v960 = vsel %vm313, %v958, %v959
      %v961 = vrot.slane %v952, 2
      %v962 = vsel %vm313, %v959, %v961
      %v963 = vrot.slane %v953, 2
      %v964 = vsel %vm313, %v961, %v963
      %v969 = vadd.f32 %v944, %v960
      %v970 = vadd.f32 %v945, %v962
      %v971 = vadd.f32 %v946, %v964
      %v972 = vadd.f32 %v947, %v963
      %s973 = sld [smem:[#allocation6 + $0x21]]
      %v974 = vstv %s973
      %v975 = vmul.f32 %v974, %v260
      %v976 = vmul.f32 %v974, %v261
      %v977 = vmul.f32 %v974, %v262
      %v978 = vmul.f32 %v974, %v263
      %v979 = vadd.f32 %v969, %v975
      %v980 = vadd.f32 %v970, %v976
      %v981 = vadd.f32 %v971, %v977
      %v982 = vadd.f32 %v972, %v978
      %s983 = sld [smem:[#allocation6 + $0x22]]
      %v984 = vstv %s983
      %v985 = vmul.f32 %v984, %v260
      %v986 = vmul.f32 %v984, %v261
      %v987 = vmul.f32 %v984, %v262
      %v988 = vmul.f32 %v984, %v263
      %v993 = vrot.slane %v985, 1
      %v994 = vrot.slane %v986, 1
      %v995 = vsel %vm287, %v993, %v994
      %v996 = vrot.slane %v987, 1
      %v997 = vsel %vm287, %v994, %v996
      %v998 = vrot.slane %v988, 1
      %v999 = vsel %vm287, %v996, %v998
      %v1004 = vadd.f32 %v979, %v995
      %v1005 = vadd.f32 %v980, %v997
      %v1006 = vadd.f32 %v981, %v999
      %v1007 = vadd.f32 %v982, %v998
      %s1008 = sld [smem:[#allocation6 + $0x23]]
      %v1009 = vstv %s1008
      %v1010 = vmul.f32 %v1009, %v260
      %v1011 = vmul.f32 %v1009, %v261
      %v1012 = vmul.f32 %v1009, %v262
      %v1013 = vmul.f32 %v1009, %v263
      %v1018 = vrot.slane %v1010, 2
      %v1019 = vrot.slane %v1011, 2
      %v1020 = vsel %vm313, %v1018, %v1019
      %v1021 = vrot.slane %v1012, 2
      %v1022 = vsel %vm313, %v1019, %v1021
      %v1023 = vrot.slane %v1013, 2
      %v1024 = vsel %vm313, %v1021, %v1023
      %v1029 = vadd.f32 %v1004, %v1020
      %v1030 = vadd.f32 %v1005, %v1022
      %v1031 = vadd.f32 %v1006, %v1024
      %v1032 = vadd.f32 %v1007, %v1023
      %s1033 = sld [smem:[#allocation8 + $0x3]]
      %v1034 = vstv %s1033
      %v1035 = vadd.f32 %v1029, %v1034
      %v1036 = vadd.f32 %v1030, %v1034
      %v1037 = vadd.f32 %v1031, %v1034
      %v1038 = vadd.f32 %v1032, %v1034
      %v1039 = vmax.f32 %v1035, 0.0
      %v1040 = vmax.f32 %v1036, 0.0
      %v1041 = vmax.f32 %v1037, 0.0
      %v1042 = vmax.f32 %v1038, 0.0
      %s1043 = sld [smem:[#allocation10 + $0x3]]
      %v1044 = vstv %s1043
      %v1045 = vmul.f32 %v1044, %v1039
      %v1046 = vmul.f32 %v1044, %v1040
      %v1047 = vmul.f32 %v1044, %v1041
      %v1048 = vmul.f32 %v1044, %v1042
      %v1049 = vadd.f32 %v853, %v1045
      %v1050 = vadd.f32 %v854, %v1046
      %v1051 = vadd.f32 %v855, %v1047
      %v1052 = vadd.f32 %v856, %v1048
      %s1053 = sld [smem:[#allocation6 + $0x24]]
      %v1054 = vstv %s1053
      %v1055 = vmul.f32 %v1054, %v246
      %v1056 = vmul.f32 %v1054, %v247
      %v1057 = vmul.f32 %v1054, %v248
      %v1058 = vmul.f32 %v1054, %v249
      %s1059 = sld [smem:[#allocation6 + $0x25]]
      %v1060 = vstv %s1059
      %v1061 = vmul.f32 %v1060, %v246
      %v1062 = vmul.f32 %v1060, %v247
      %v1063 = vmul.f32 %v1060, %v248
      %v1064 = vmul.f32 %v1060, %v249
      %v1069 = vrot.slane %v1061, 1
      %v1070 = vrot.slane %v1062, 1
      %v1071 = vsel %vm287, %v1069, %v1070
      %v1072 = vrot.slane %v1063, 1
      %v1073 = vsel %vm287, %v1070, %v1072
      %v1074 = vrot.slane %v1064, 1
      %v1075 = vsel %vm287, %v1072, %v1074
      %v1080 = vadd.f32 %v1055, %v1071
      %v1081 = vadd.f32 %v1056, %v1073
      %v1082 = vadd.f32 %v1057, %v1075
      %v1083 = vadd.f32 %v1058, %v1074
      %s1084 = sld [smem:[#allocation6 + $0x26]]
      %v1085 = vstv %s1084
      %v1086 = vmul.f32 %v1085, %v246
      %v1087 = vmul.f32 %v1085, %v247
      %v1088 = vmul.f32 %v1085, %v248
      %v1089 = vmul.f32 %v1085, %v249
      %v1094 = vrot.slane %v1086, 2
      %v1095 = vrot.slane %v1087, 2
      %v1096 = vsel %vm313, %v1094, %v1095
      %v1097 = vrot.slane %v1088, 2
      %v1098 = vsel %vm313, %v1095, %v1097
      %v1099 = vrot.slane %v1089, 2
      %v1100 = vsel %vm313, %v1097, %v1099
      %v1105 = vadd.f32 %v1080, %v1096
      %v1106 = vadd.f32 %v1081, %v1098
      %v1107 = vadd.f32 %v1082, %v1100
      %v1108 = vadd.f32 %v1083, %v1099
      %s1109 = sld [smem:[#allocation6 + $0x27]]
      %v1110 = vstv %s1109
      %v1111 = vmul.f32 %v1110, %v253
      %v1112 = vmul.f32 %v1110, %v254
      %v1113 = vmul.f32 %v1110, %v255
      %v1114 = vmul.f32 %v1110, %v256
      %v1115 = vadd.f32 %v1105, %v1111
      %v1116 = vadd.f32 %v1106, %v1112
      %v1117 = vadd.f32 %v1107, %v1113
      %v1118 = vadd.f32 %v1108, %v1114
      %s1119 = sld [smem:[#allocation6 + $0x28]]
      %v1120 = vstv %s1119
      %v1121 = vmul.f32 %v1120, %v253
      %v1122 = vmul.f32 %v1120, %v254
      %v1123 = vmul.f32 %v1120, %v255
      %v1124 = vmul.f32 %v1120, %v256
      %v1129 = vrot.slane %v1121, 1
      %v1130 = vrot.slane %v1122, 1
      %v1131 = vsel %vm287, %v1129, %v1130
      %v1132 = vrot.slane %v1123, 1
      %v1133 = vsel %vm287, %v1130, %v1132
      %v1134 = vrot.slane %v1124, 1
      %v1135 = vsel %vm287, %v1132, %v1134
      %v1140 = vadd.f32 %v1115, %v1131
      %v1141 = vadd.f32 %v1116, %v1133
      %v1142 = vadd.f32 %v1117, %v1135
      %v1143 = vadd.f32 %v1118, %v1134
      %s1144 = sld [smem:[#allocation6 + $0x29]]
      %v1145 = vstv %s1144
      %v1146 = vmul.f32 %v1145, %v253
      %v1147 = vmul.f32 %v1145, %v254
      %v1148 = vmul.f32 %v1145, %v255
      %v1149 = vmul.f32 %v1145, %v256
      %v1154 = vrot.slane %v1146, 2
      %v1155 = vrot.slane %v1147, 2
      %v1156 = vsel %vm313, %v1154, %v1155
      %v1157 = vrot.slane %v1148, 2
      %v1158 = vsel %vm313, %v1155, %v1157
      %v1159 = vrot.slane %v1149, 2
      %v1160 = vsel %vm313, %v1157, %v1159
      %v1165 = vadd.f32 %v1140, %v1156
      %v1166 = vadd.f32 %v1141, %v1158
      %v1167 = vadd.f32 %v1142, %v1160
      %v1168 = vadd.f32 %v1143, %v1159
      %s1169 = sld [smem:[#allocation6 + $0x2a]]
      %v1170 = vstv %s1169
      %v1171 = vmul.f32 %v1170, %v260
      %v1172 = vmul.f32 %v1170, %v261
      %v1173 = vmul.f32 %v1170, %v262
      %v1174 = vmul.f32 %v1170, %v263
      %v1175 = vadd.f32 %v1165, %v1171
      %v1176 = vadd.f32 %v1166, %v1172
      %v1177 = vadd.f32 %v1167, %v1173
      %v1178 = vadd.f32 %v1168, %v1174
      %s1179 = sld [smem:[#allocation6 + $0x2b]]
      %v1180 = vstv %s1179
      %v1181 = vmul.f32 %v1180, %v260
      %v1182 = vmul.f32 %v1180, %v261
      %v1183 = vmul.f32 %v1180, %v262
      %v1184 = vmul.f32 %v1180, %v263
      %v1189 = vrot.slane %v1181, 1
      %v1190 = vrot.slane %v1182, 1
      %v1191 = vsel %vm287, %v1189, %v1190
      %v1192 = vrot.slane %v1183, 1
      %v1193 = vsel %vm287, %v1190, %v1192
      %v1194 = vrot.slane %v1184, 1
      %v1195 = vsel %vm287, %v1192, %v1194
      %v1200 = vadd.f32 %v1175, %v1191
      %v1201 = vadd.f32 %v1176, %v1193
      %v1202 = vadd.f32 %v1177, %v1195
      %v1203 = vadd.f32 %v1178, %v1194
      %s1204 = sld [smem:[#allocation6 + $0x2c]]
      %v1205 = vstv %s1204
      %v1206 = vmul.f32 %v1205, %v260
      %v1207 = vmul.f32 %v1205, %v261
      %v1208 = vmul.f32 %v1205, %v262
      %v1209 = vmul.f32 %v1205, %v263
      %v1214 = vrot.slane %v1206, 2
      %v1215 = vrot.slane %v1207, 2
      %v1216 = vsel %vm313, %v1214, %v1215
      %v1217 = vrot.slane %v1208, 2
      %v1218 = vsel %vm313, %v1215, %v1217
      %v1219 = vrot.slane %v1209, 2
      %v1220 = vsel %vm313, %v1217, %v1219
      %v1225 = vadd.f32 %v1200, %v1216
      %v1226 = vadd.f32 %v1201, %v1218
      %v1227 = vadd.f32 %v1202, %v1220
      %v1228 = vadd.f32 %v1203, %v1219
      %s1229 = sld [smem:[#allocation8 + $0x4]]
      %v1230 = vstv %s1229
      %v1231 = vadd.f32 %v1225, %v1230
      %v1232 = vadd.f32 %v1226, %v1230
      %v1233 = vadd.f32 %v1227, %v1230
      %v1234 = vadd.f32 %v1228, %v1230
      %v1235 = vmax.f32 %v1231, 0.0
      %v1236 = vmax.f32 %v1232, 0.0
      %v1237 = vmax.f32 %v1233, 0.0
      %v1238 = vmax.f32 %v1234, 0.0
      %s1239 = sld [smem:[#allocation10 + $0x4]]
      %v1240 = vstv %s1239
      %v1241 = vmul.f32 %v1240, %v1235
      %v1242 = vmul.f32 %v1240, %v1236
      %v1243 = vmul.f32 %v1240, %v1237
      %v1244 = vmul.f32 %v1240, %v1238
      %v1245 = vadd.f32 %v1049, %v1241
      %v1246 = vadd.f32 %v1050, %v1242
      %v1247 = vadd.f32 %v1051, %v1243
      %v1248 = vadd.f32 %v1052, %v1244
      %s1249 = sld [smem:[#allocation3]]
      %v1250 = vstv %s1249
      %v1251 = vadd.f32 %v1245, %v1250
      %v1252 = vadd.f32 %v1246, %v1250
      %v1253 = vadd.f32 %v1247, %v1250
      %v1254 = vadd.f32 %v1248, %v1250
      %v1255 = vmax.f32 %v1251, 0.0
      %v1256 = vmax.f32 %v1252, 0.0
      %v1257 = vmax.f32 %v1253, 0.0
      %v1258 = vmax.f32 %v1254, 0.0
      %s1259 = sld [smem:[#allocation11]]
      %v1260 = vstv %s1259
      %v1261 = vmul.f32 %v1260, %v239
      %v1262 = vmul.f32 %v1260, %v240
      %v1263 = vmul.f32 %v1260, %v241
      %v1264 = vmul.f32 %v1260, %v242
      %s1265 = sld [smem:[#allocation11 + $0x1]]
      %v1266 = vstv %s1265
      %v1267 = vmul.f32 %v1266, %v239
      %v1268 = vmul.f32 %v1266, %v240
      %v1269 = vmul.f32 %v1266, %v241
      %v1270 = vmul.f32 %v1266, %v242
      %v1275 = vrot.slane %v1267, 1
      %v1276 = vrot.slane %v1268, 1
      %v1277 = vsel %vm287, %v1275, %v1276
      %v1278 = vrot.slane %v1269, 1
      %v1279 = vsel %vm287, %v1276, %v1278
      %v1280 = vrot.slane %v1270, 1
      %v1281 = vsel %vm287, %v1278, %v1280
      %v1286 = vadd.f32 %v1261, %v1277
      %v1287 = vadd.f32 %v1262, %v1279
      %v1288 = vadd.f32 %v1263, %v1281
      %v1289 = vadd.f32 %v1264, %v1280
      %s1290 = sld [smem:[#allocation11 + $0x2]]
      %v1291 = vstv %s1290
      %v1292 = vmul.f32 %v1291, %v239
      %v1293 = vmul.f32 %v1291, %v240
      %v1294 = vmul.f32 %v1291, %v241
      %v1295 = vmul.f32 %v1291, %v242
      %v1300 = vrot.slane %v1292, 2
      %v1301 = vrot.slane %v1293, 2
      %v1302 = vsel %vm313, %v1300, %v1301
      %v1303 = vrot.slane %v1294, 2
      %v1304 = vsel %vm313, %v1301, %v1303
      %v1305 = vrot.slane %v1295, 2
      %v1306 = vsel %vm313, %v1303, %v1305
      %v1311 = vadd.f32 %v1286, %v1302
      %v1312 = vadd.f32 %v1287, %v1304
      %v1313 = vadd.f32 %v1288, %v1306
      %v1314 = vadd.f32 %v1289, %v1305
      %s1315 = sld [smem:[#allocation11 + $0x3]]
      %v1316 = vstv %s1315
      %v1317 = vmul.f32 %v1316, %v239
      %v1318 = vmul.f32 %v1316, %v240
      %v1319 = vmul.f32 %v1316, %v241
      %v1320 = vmul.f32 %v1316, %v242
      %vm1325 = vcmask 1044480
      %v1326 = vrot.slane %v1317, 3
      %v1327 = vrot.slane %v1318, 3
      %v1328 = vsel %vm1325, %v1326, %v1327
      %v1329 = vrot.slane %v1319, 3
      %v1330 = vsel %vm1325, %v1327, %v1329
      %v1331 = vrot.slane %v1320, 3
      %v1332 = vsel %vm1325, %v1329, %v1331
      %v1337 = vadd.f32 %v1311, %v1328
      %v1338 = vadd.f32 %v1312, %v1330
      %v1339 = vadd.f32 %v1313, %v1332
      %v1340 = vadd.f32 %v1314, %v1331
      %s1341 = sld [smem:[#allocation11 + $0x4]]
      %v1342 = vstv %s1341
      %v1343 = vmul.f32 %v1342, %v239
      %v1344 = vmul.f32 %v1342, %v240
      %v1345 = vmul.f32 %v1342, %v241
      %v1346 = vmul.f32 %v1342, %v242
      %vm1351 = vcmask 1043456
      %v1352 = vrot.slane %v1343, 4
      %v1353 = vrot.slane %v1344, 4
      %v1354 = vsel %vm1351, %v1352, %v1353
      %v1355 = vrot.slane %v1345, 4
      %v1356 = vsel %vm1351, %v1353, %v1355
      %v1357 = vrot.slane %v1346, 4
      %v1358 = vsel %vm1351, %v1355, %v1357
      %v1363 = vadd.f32 %v1337, %v1354
      %v1364 = vadd.f32 %v1338, %v1356
      %v1365 = vadd.f32 %v1339, %v1358
      %v1366 = vadd.f32 %v1340, %v1357
      %s1367 = sld [smem:[#allocation11 + $0x5]]
      %v1368 = vstv %s1367
      %v1369 = vmul.f32 %v1368, %v246
      %v1370 = vmul.f32 %v1368, %v247
      %v1371 = vmul.f32 %v1368, %v248
      %v1372 = vmul.f32 %v1368, %v249
      %v1373 = vadd.f32 %v1363, %v1369
      %v1374 = vadd.f32 %v1364, %v1370
      %v1375 = vadd.f32 %v1365, %v1371
      %v1376 = vadd.f32 %v1366, %v1372
      %s1377 = sld [smem:[#allocation11 + $0x6]]
      %v1378 = vstv %s1377
      %v1379 = vmul.f32 %v1378, %v246
      %v1380 = vmul.f32 %v1378, %v247
      %v1381 = vmul.f32 %v1378, %v248
      %v1382 = vmul.f32 %v1378, %v249
      %v1387 = vrot.slane %v1379, 1
      %v1388 = vrot.slane %v1380, 1
      %v1389 = vsel %vm287, %v1387, %v1388
      %v1390 = vrot.slane %v1381, 1
      %v1391 = vsel %vm287, %v1388, %v1390
      %v1392 = vrot.slane %v1382, 1
      %v1393 = vsel %vm287, %v1390, %v1392
      %v1398 = vadd.f32 %v1373, %v1389
      %v1399 = vadd.f32 %v1374, %v1391
      %v1400 = vadd.f32 %v1375, %v1393
      %v1401 = vadd.f32 %v1376, %v1392
      %s1402 = sld [smem:[#allocation11 + $0x7]]
      %v1403 = vstv %s1402
      %v1404 = vmul.f32 %v1403, %v246
      %v1405 = vmul.f32 %v1403, %v247
      %v1406 = vmul.f32 %v1403, %v248
      %v1407 = vmul.f32 %v1403, %v249
      %v1412 = vrot.slane %v1404, 2
      %v1413 = vrot.slane %v1405, 2
      %v1414 = vsel %vm313, %v1412, %v1413
      %v1415 = vrot.slane %v1406, 2
      %v1416 = vsel %vm313, %v1413, %v1415
      %v1417 = vrot.slane %v1407, 2
      %v1418 = vsel %vm313, %v1415, %v1417
      %v1423 = vadd.f32 %v1398, %v1414
      %v1424 = vadd.f32 %v1399, %v1416
      %v1425 = vadd.f32 %v1400, %v1418
      %v1426 = vadd.f32 %v1401, %v1417
      %s1427 = sld [smem:[#allocation11 + $0x8]]
      %v1428 = vstv %s1427
      %v1429 = vmul.f32 %v1428, %v246
      %v1430 = vmul.f32 %v1428, %v247
      %v1431 = vmul.f32 %v1428, %v248
      %v1432 = vmul.f32 %v1428, %v249
      %v1437 = vrot.slane %v1429, 3
      %v1438 = vrot.slane %v1430, 3
      %v1439 = vsel %vm1325, %v1437, %v1438
      %v1440 = vrot.slane %v1431, 3
      %v1441 = vsel %vm1325, %v1438, %v1440
      %v1442 = vrot.slane %v1432, 3
      %v1443 = vsel %vm1325, %v1440, %v1442
      %v1448 = vadd.f32 %v1423, %v1439
      %v1449 = vadd.f32 %v1424, %v1441
      %v1450 = vadd.f32 %v1425, %v1443
      %v1451 = vadd.f32 %v1426, %v1442
      %s1452 = sld [smem:[#allocation11 + $0x9]]
      %v1453 = vstv %s1452
      %v1454 = vmul.f32 %v1453, %v246
      %v1455 = vmul.f32 %v1453, %v247
      %v1456 = vmul.f32 %v1453, %v248
      %v1457 = vmul.f32 %v1453, %v249
      %v1462 = vrot.slane %v1454, 4
      %v1463 = vrot.slane %v1455, 4
      %v1464 = vsel %vm1351, %v1462, %v1463
      %v1465 = vrot.slane %v1456, 4
      %v1466 = vsel %vm1351, %v1463, %v1465
      %v1467 = vrot.slane %v1457, 4
      %v1468 = vsel %vm1351, %v1465, %v1467
      %v1473 = vadd.f32 %v1448, %v1464
      %v1474 = vadd.f32 %v1449, %v1466
      %v1475 = vadd.f32 %v1450, %v1468
      %v1476 = vadd.f32 %v1451, %v1467
      %s1477 = sld [smem:[#allocation11 + $0xa]]
      %v1478 = vstv %s1477
      %v1479 = vmul.f32 %v1478, %v253
      %v1480 = vmul.f32 %v1478, %v254
      %v1481 = vmul.f32 %v1478, %v255
      %v1482 = vmul.f32 %v1478, %v256
      %v1483 = vadd.f32 %v1473, %v1479
      %v1484 = vadd.f32 %v1474, %v1480
      %v1485 = vadd.f32 %v1475, %v1481
      %v1486 = vadd.f32 %v1476, %v1482
      %s1487 = sld [smem:[#allocation11 + $0xb]]
      %v1488 = vstv %s1487
      %v1489 = vmul.f32 %v1488, %v253
      %v1490 = vmul.f32 %v1488, %v254
      %v1491 = vmul.f32 %v1488, %v255
      %v1492 = vmul.f32 %v1488, %v256
      %v1497 = vrot.slane %v1489, 1
      %v1498 = vrot.slane %v1490, 1
      %v1499 = vsel %vm287, %v1497, %v1498
      %v1500 = vrot.slane %v1491, 1
      %v1501 = vsel %vm287, %v1498, %v1500
      %v1502 = vrot.slane %v1492, 1
      %v1503 = vsel %vm287, %v1500, %v1502
      %v1508 = vadd.f32 %v1483, %v1499
      %v1509 = vadd.f32 %v1484, %v1501
      %v1510 = vadd.f32 %v1485, %v1503
      %v1511 = vadd.f32 %v1486, %v1502
      %s1512 = sld [smem:[#allocation11 + $0xc]]
      %v1513 = vstv %s1512
      %v1514 = vmul.f32 %v1513, %v253
      %v1515 = vmul.f32 %v1513, %v254
      %v1516 = vmul.f32 %v1513, %v255
      %v1517 = vmul.f32 %v1513, %v256
      %v1522 = vrot.slane %v1514, 2
      %v1523 = vrot.slane %v1515, 2
      %v1524 = vsel %vm313, %v1522, %v1523
      %v1525 = vrot.slane %v1516, 2
      %v1526 = vsel %vm313, %v1523, %v1525
      %v1527 = vrot.slane %v1517, 2
      %v1528 = vsel %vm313, %v1525, %v1527
      %v1533 = vadd.f32 %v1508, %v1524
      %v1534 = vadd.f32 %v1509, %v1526
      %v1535 = vadd.f32 %v1510, %v1528
      %v1536 = vadd.f32 %v1511, %v1527
      %s1537 = sld [smem:[#allocation11 + $0xd]]
      %v1538 = vstv %s1537
      %v1539 = vmul.f32 %v1538, %v253
      %v1540 = vmul.f32 %v1538, %v254
      %v1541 = vmul.f32 %v1538, %v255
      %v1542 = vmul.f32 %v1538, %v256
      %v1547 = vrot.slane %v1539, 3
      %v1548 = vrot.slane %v1540, 3
      %v1549 = vsel %vm1325, %v1547, %v1548
      %v1550 = vrot.slane %v1541, 3
      %v1551 = vsel %vm1325, %v1548, %v1550
      %v1552 = vrot.slane %v1542, 3
      %v1553 = vsel %vm1325, %v1550, %v1552
      %v1558 = vadd.f32 %v1533, %v1549
      %v1559 = vadd.f32 %v1534, %v1551
      %v1560 = vadd.f32 %v1535, %v1553
      %v1561 = vadd.f32 %v1536, %v1552
      %s1562 = sld [smem:[#allocation11 + $0xe]]
      %v1563 = vstv %s1562
      %v1564 = vmul.f32 %v1563, %v253
      %v1565 = vmul.f32 %v1563, %v254
      %v1566 = vmul.f32 %v1563, %v255
      %v1567 = vmul.f32 %v1563, %v256
      %v1572 = vrot.slane %v1564, 4
      %v1573 = vrot.slane %v1565, 4
      %v1574 = vsel %vm1351, %v1572, %v1573
      %v1575 = vrot.slane %v1566, 4
      %v1576 = vsel %vm1351, %v1573, %v1575
      %v1577 = vrot.slane %v1567, 4
      %v1578 = vsel %vm1351, %v1575, %v1577
      %v1583 = vadd.f32 %v1558, %v1574
      %v1584 = vadd.f32 %v1559, %v1576
      %v1585 = vadd.f32 %v1560, %v1578
      %v1586 = vadd.f32 %v1561, %v1577
      %s1587 = sld [smem:[#allocation11 + $0xf]]
      %v1588 = vstv %s1587
      %v1589 = vmul.f32 %v1588, %v260
      %v1590 = vmul.f32 %v1588, %v261
      %v1591 = vmul.f32 %v1588, %v262
      %v1592 = vmul.f32 %v1588, %v263
      %v1593 = vadd.f32 %v1583, %v1589
      %v1594 = vadd.f32 %v1584, %v1590
      %v1595 = vadd.f32 %v1585, %v1591
      %v1596 = vadd.f32 %v1586, %v1592
      %s1597 = sld [smem:[#allocation11 + $0x10]]
      %v1598 = vstv %s1597
      %v1599 = vmul.f32 %v1598, %v260
      %v1600 = vmul.f32 %v1598, %v261
      %v1601 = vmul.f32 %v1598, %v262
      %v1602 = vmul.f32 %v1598, %v263
      %v1607 = vrot.slane %v1599, 1
      %v1608 = vrot.slane %v1600, 1
      %v1609 = vsel %vm287, %v1607, %v1608
      %v1610 = vrot.slane %v1601, 1
      %v1611 = vsel %vm287, %v1608, %v1610
      %v1612 = vrot.slane %v1602, 1
      %v1613 = vsel %vm287, %v1610, %v1612
      %v1618 = vadd.f32 %v1593, %v1609
      %v1619 = vadd.f32 %v1594, %v1611
      %v1620 = vadd.f32 %v1595, %v1613
      %v1621 = vadd.f32 %v1596, %v1612
      %s1622 = sld [smem:[#allocation11 + $0x11]]
      %v1623 = vstv %s1622
      %v1624 = vmul.f32 %v1623, %v260
      %v1625 = vmul.f32 %v1623, %v261
      %v1626 = vmul.f32 %v1623, %v262
      %v1627 = vmul.f32 %v1623, %v263
      %v1632 = vrot.slane %v1624, 2
      %v1633 = vrot.slane %v1625, 2
      %v1634 = vsel %vm313, %v1632, %v1633
      %v1635 = vrot.slane %v1626, 2
      %v1636 = vsel %vm313, %v1633, %v1635
      %v1637 = vrot.slane %v1627, 2
      %v1638 = vsel %vm313, %v1635, %v1637
      %v1643 = vadd.f32 %v1618, %v1634
      %v1644 = vadd.f32 %v1619, %v1636
      %v1645 = vadd.f32 %v1620, %v1638
      %v1646 = vadd.f32 %v1621, %v1637
      %s1647 = sld [smem:[#allocation11 + $0x12]]
      %v1648 = vstv %s1647
      %v1649 = vmul.f32 %v1648, %v260
      %v1650 = vmul.f32 %v1648, %v261
      %v1651 = vmul.f32 %v1648, %v262
      %v1652 = vmul.f32 %v1648, %v263
      %v1657 = vrot.slane %v1649, 3
      %v1658 = vrot.slane %v1650, 3
      %v1659 = vsel %vm1325, %v1657, %v1658
      %v1660 = vrot.slane %v1651, 3
      %v1661 = vsel %vm1325, %v1658, %v1660
      %v1662 = vrot.slane %v1652, 3
      %v1663 = vsel %vm1325, %v1660, %v1662
      %v1668 = vadd.f32 %v1643, %v1659
      %v1669 = vadd.f32 %v1644, %v1661
      %v1670 = vadd.f32 %v1645, %v1663
      %v1671 = vadd.f32 %v1646, %v1662
      %s1672 = sld [smem:[#allocation11 + $0x13]]
      %v1673 = vstv %s1672
      %v1674 = vmul.f32 %v1673, %v260
      %v1675 = vmul.f32 %v1673, %v261
      %v1676 = vmul.f32 %v1673, %v262
      %v1677 = vmul.f32 %v1673, %v263
      %v1682 = vrot.slane %v1674, 4
      %v1683 = vrot.slane %v1675, 4
      %v1684 = vsel %vm1351, %v1682, %v1683
      %v1685 = vrot.slane %v1676, 4
      %v1686 = vsel %vm1351, %v1683, %v1685
      %v1687 = vrot.slane %v1677, 4
      %v1688 = vsel %vm1351, %v1685, %v1687
      %v1693 = vadd.f32 %v1668, %v1684
      %v1694 = vadd.f32 %v1669, %v1686
      %v1695 = vadd.f32 %v1670, %v1688
      %v1696 = vadd.f32 %v1671, %v1687
      %s1697 = sld [smem:[#allocation11 + $0x14]]
      %v1698 = vstv %s1697
      %v1699 = vmul.f32 %v1698, %v267
      %v1700 = vmul.f32 %v1698, %v268
      %v1701 = vmul.f32 %v1698, %v269
      %v1702 = vmul.f32 %v1698, %v270
      %v1703 = vadd.f32 %v1693, %v1699
      %v1704 = vadd.f32 %v1694, %v1700
      %v1705 = vadd.f32 %v1695, %v1701
      %v1706 = vadd.f32 %v1696, %v1702
      %s1707 = sld [smem:[#allocation11 + $0x15]]
      %v1708 = vstv %s1707
      %v1709 = vmul.f32 %v1708, %v267
      %v1710 = vmul.f32 %v1708, %v268
      %v1711 = vmul.f32 %v1708, %v269
      %v1712 = vmul.f32 %v1708, %v270
      %v1717 = vrot.slane %v1709, 1
      %v1718 = vrot.slane %v1710, 1
      %v1719 = vsel %vm287, %v1717, %v1718
      %v1720 = vrot.slane %v1711, 1
      %v1721 = vsel %vm287, %v1718, %v1720
      %v1722 = vrot.slane %v1712, 1
      %v1723 = vsel %vm287, %v1720, %v1722
      %v1728 = vadd.f32 %v1703, %v1719
      %v1729 = vadd.f32 %v1704, %v1721
      %v1730 = vadd.f32 %v1705, %v1723
      %v1731 = vadd.f32 %v1706, %v1722
      %s1732 = sld [smem:[#allocation11 + $0x16]]
      %v1733 = vstv %s1732
      %v1734 = vmul.f32 %v1733, %v267
      %v1735 = vmul.f32 %v1733, %v268
      %v1736 = vmul.f32 %v1733, %v269
      %v1737 = vmul.f32 %v1733, %v270
      %v1742 = vrot.slane %v1734, 2
      %v1743 = vrot.slane %v1735, 2
      %v1744 = vsel %vm313, %v1742, %v1743
      %v1745 = vrot.slane %v1736, 2
      %v1746 = vsel %vm313, %v1743, %v1745
      %v1747 = vrot.slane %v1737, 2
      %v1748 = vsel %vm313, %v1745, %v1747
      %v1753 = vadd.f32 %v1728, %v1744
      %v1754 = vadd.f32 %v1729, %v1746
      %v1755 = vadd.f32 %v1730, %v1748
      %v1756 = vadd.f32 %v1731, %v1747
      %s1757 = sld [smem:[#allocation11 + $0x17]]
      %v1758 = vstv %s1757
      %v1759 = vmul.f32 %v1758, %v267
      %v1760 = vmul.f32 %v1758, %v268
      %v1761 = vmul.f32 %v1758, %v269
      %v1762 = vmul.f32 %v1758, %v270
      %v1767 = vrot.slane %v1759, 3
      %v1768 = vrot.slane %v1760, 3
      %v1769 = vsel %vm1325, %v1767, %v1768
      %v1770 = vrot.slane %v1761, 3
      %v1771 = vsel %vm1325, %v1768, %v1770
      %v1772 = vrot.slane %v1762, 3
      %v1773 = vsel %vm1325, %v1770, %v1772
      %v1778 = vadd.f32 %v1753, %v1769
      %v1779 = vadd.f32 %v1754, %v1771
      %v1780 = vadd.f32 %v1755, %v1773
      %v1781 = vadd.f32 %v1756, %v1772
      %s1782 = sld [smem:[#allocation11 + $0x18]]
      %v1783 = vstv %s1782
      %v1784 = vmul.f32 %v1783, %v267
      %v1785 = vmul.f32 %v1783, %v268
      %v1786 = vmul.f32 %v1783, %v269
      %v1787 = vmul.f32 %v1783, %v270
      %v1792 = vrot.slane %v1784, 4
      %v1793 = vrot.slane %v1785, 4
      %v1794 = vsel %vm1351, %v1792, %v1793
      %v1795 = vrot.slane %v1786, 4
      %v1796 = vsel %vm1351, %v1793, %v1795
      %v1797 = vrot.slane %v1787, 4
      %v1798 = vsel %vm1351, %v1795, %v1797
      %v1803 = vadd.f32 %v1778, %v1794
      %v1804 = vadd.f32 %v1779, %v1796
      %v1805 = vadd.f32 %v1780, %v1798
      %v1806 = vadd.f32 %v1781, %v1797
      %s1807 = sld [smem:[#allocation13]]
      %v1808 = vstv %s1807
      %v1809 = vadd.f32 %v1803, %v1808
      %v1810 = vadd.f32 %v1804, %v1808
      %v1811 = vadd.f32 %v1805, %v1808
      %v1812 = vadd.f32 %v1806, %v1808
      %v1813 = vmax.f32 %v1809, 0.0
      %v1814 = vmax.f32 %v1810, 0.0
      %v1815 = vmax.f32 %v1811, 0.0
      %v1816 = vmax.f32 %v1812, 0.0
      %s1817 = sld [smem:[#allocation14]]
      %v1818 = vstv %s1817
      %v1819 = vmul.f32 %v1818, %v1813
      %v1820 = vmul.f32 %v1818, %v1814
      %v1821 = vmul.f32 %v1818, %v1815
      %v1822 = vmul.f32 %v1818, %v1816
      %s1823 = sld [smem:[#allocation11 + $0x19]]
      %v1824 = vstv %s1823
      %v1825 = vmul.f32 %v1824, %v239
      %v1826 = vmul.f32 %v1824, %v240
      %v1827 = vmul.f32 %v1824, %v241
      %v1828 = vmul.f32 %v1824, %v242
      %s1829 = sld [smem:[#allocation11 + $0x1a]]
      %v1830 = vstv %s1829
      %v1831 = vmul.f32 %v1830, %v239
      %v1832 = vmul.f32 %v1830, %v240
      %v1833 = vmul.f32 %v1830, %v241
      %v1834 = vmul.f32 %v1830, %v242
      %v1839 = vrot.slane %v1831, 1
      %v1840 = vrot.slane %v1832, 1
      %v1841 = vsel %vm287, %v1839, %v1840
      %v1842 = vrot.slane %v1833, 1
      %v1843 = vsel %vm287, %v1840, %v1842
      %v1844 = vrot.slane %v1834, 1
      %v1845 = vsel %vm287, %v1842, %v1844
      %v1850 = vadd.f32 %v1825, %v1841
      %v1851 = vadd.f32 %v1826, %v1843
      %v1852 = vadd.f32 %v1827, %v1845
      %v1853 = vadd.f32 %v1828, %v1844
      %s1854 = sld [smem:[#allocation11 + $0x1b]]
      %v1855 = vstv %s1854
      %v1856 = vmul.f32 %v1855, %v239
      %v1857 = vmul.f32 %v1855, %v240
      %v1858 = vmul.f32 %v1855, %v241
      %v1859 = vmul.f32 %v1855, %v242
      %v1864 = vrot.slane %v1856, 2
      %v1865 = vrot.slane %v1857, 2
      %v1866 = vsel %vm313, %v1864, %v1865
      %v1867 = vrot.slane %v1858, 2
      %v1868 = vsel %vm313, %v1865, %v1867
      %v1869 = vrot.slane %v1859, 2
      %v1870 = vsel %vm313, %v1867, %v1869
      %v1875 = vadd.f32 %v1850, %v1866
      %v1876 = vadd.f32 %v1851, %v1868
      %v1877 = vadd.f32 %v1852, %v1870
      %v1878 = vadd.f32 %v1853, %v1869
      %s1879 = sld [smem:[#allocation11 + $0x1c]]
      %v1880 = vstv %s1879
      %v1881 = vmul.f32 %v1880, %v239
      %v1882 = vmul.f32 %v1880, %v240
      %v1883 = vmul.f32 %v1880, %v241
      %v1884 = vmul.f32 %v1880, %v242
      %v1889 = vrot.slane %v1881, 3
      %v1890 = vrot.slane %v1882, 3
      %v1891 = vsel %vm1325, %v1889, %v1890
      %v1892 = vrot.slane %v1883, 3
      %v1893 = vsel %vm1325, %v1890, %v1892
      %v1894 = vrot.slane %v1884, 3
      %v1895 = vsel %vm1325, %v1892, %v1894
      %v1900 = vadd.f32 %v1875, %v1891
      %v1901 = vadd.f32 %v1876, %v1893
      %v1902 = vadd.f32 %v1877, %v1895
      %v1903 = vadd.f32 %v1878, %v1894
      %s1904 = sld [smem:[#allocation11 + $0x1d]]
      %v1905 = vstv %s1904
      %v1906 = vmul.f32 %v1905, %v239
      %v1907 = vmul.f32 %v1905, %v240
      %v1908 = vmul.f32 %v1905, %v241
      %v1909 = vmul.f32 %v1905, %v242
      %v1914 = vrot.slane %v1906, 4
      %v1915 = vrot.slane %v1907, 4
      %v1916 = vsel %vm1351, %v1914, %v1915
      %v1917 = vrot.slane %v1908, 4
      %v1918 = vsel %vm1351, %v1915, %v1917
      %v1919 = vrot.slane %v1909, 4
      %v1920 = vsel %vm1351, %v1917, %v1919
      %v1925 = vadd.f32 %v1900, %v1916
      %v1926 = vadd.f32 %v1901, %v1918
      %v1927 = vadd.f32 %v1902, %v1920
      %v1928 = vadd.f32 %v1903, %v1919
      %s1929 = sld [smem:[#allocation11 + $0x1e]]
      %v1930 = vstv %s1929
      %v1931 = vmul.f32 %v1930, %v246
      %v1932 = vmul.f32 %v1930, %v247
      %v1933 = vmul.f32 %v1930, %v248
      %v1934 = vmul.f32 %v1930, %v249
      %v1935 = vadd.f32 %v1925, %v1931
      %v1936 = vadd.f32 %v1926, %v1932
      %v1937 = vadd.f32 %v1927, %v1933
      %v1938 = vadd.f32 %v1928, %v1934
      %s1939 = sld [smem:[#allocation11 + $0x1f]]
      %v1940 = vstv %s1939
      %v1941 = vmul.f32 %v1940, %v246
      %v1942 = vmul.f32 %v1940, %v247
      %v1943 = vmul.f32 %v1940, %v248
      %v1944 = vmul.f32 %v1940, %v249
      %v1949 = vrot.slane %v1941, 1
      %v1950 = vrot.slane %v1942, 1
      %v1951 = vsel %vm287, %v1949, %v1950
      %v1952 = vrot.slane %v1943, 1
      %v1953 = vsel %vm287, %v1950, %v1952
      %v1954 = vrot.slane %v1944, 1
      %v1955 = vsel %vm287, %v1952, %v1954
      %v1960 = vadd.f32 %v1935, %v1951
      %v1961 = vadd.f32 %v1936, %v1953
      %v1962 = vadd.f32 %v1937, %v1955
      %v1963 = vadd.f32 %v1938, %v1954
      %s1964 = sld [smem:[#allocation11 + $0x20]]
      %v1965 = vstv %s1964
      %v1966 = vmul.f32 %v1965, %v246
      %v1967 = vmul.f32 %v1965, %v247
      %v1968 = vmul.f32 %v1965, %v248
      %v1969 = vmul.f32 %v1965, %v249
      %v1974 = vrot.slane %v1966, 2
      %v1975 = vrot.slane %v1967, 2
      %v1976 = vsel %vm313, %v1974, %v1975
      %v1977 = vrot.slane %v1968, 2
      %v1978 = vsel %vm313, %v1975, %v1977
      %v1979 = vrot.slane %v1969, 2
      %v1980 = vsel %vm313, %v1977, %v1979
      %v1985 = vadd.f32 %v1960, %v1976
      %v1986 = vadd.f32 %v1961, %v1978
      %v1987 = vadd.f32 %v1962, %v1980
      %v1988 = vadd.f32 %v1963, %v1979
      %s1989 = sld [smem:[#allocation11 + $0x21]]
      %v1990 = vstv %s1989
      %v1991 = vmul.f32 %v1990, %v246
      %v1992 = vmul.f32 %v1990, %v247
      %v1993 = vmul.f32 %v1990, %v248
      %v1994 = vmul.f32 %v1990, %v249
      %v1999 = vrot.slane %v1991, 3
      %v2000 = vrot.slane %v1992, 3
      %v2001 = vsel %vm1325, %v1999, %v2000
      %v2002 = vrot.slane %v1993, 3
      %v2003 = vsel %vm1325, %v2000, %v2002
      %v2004 = vrot.slane %v1994, 3
      %v2005 = vsel %vm1325, %v2002, %v2004
      %v2010 = vadd.f32 %v1985, %v2001
      %v2011 = vadd.f32 %v1986, %v2003
      %v2012 = vadd.f32 %v1987, %v2005
      %v2013 = vadd.f32 %v1988, %v2004
      %s2014 = sld [smem:[#allocation11 + $0x22]]
      %v2015 = vstv %s2014
      %v2016 = vmul.f32 %v2015, %v246
      %v2017 = vmul.f32 %v2015, %v247
      %v2018 = vmul.f32 %v2015, %v248
      %v2019 = vmul.f32 %v2015, %v249
      %v2024 = vrot.slane %v2016, 4
      %v2025 = vrot.slane %v2017, 4
      %v2026 = vsel %vm1351, %v2024, %v2025
      %v2027 = vrot.slane %v2018, 4
      %v2028 = vsel %vm1351, %v2025, %v2027
      %v2029 = vrot.slane %v2019, 4
      %v2030 = vsel %vm1351, %v2027, %v2029
      %v2035 = vadd.f32 %v2010, %v2026
      %v2036 = vadd.f32 %v2011, %v2028
      %v2037 = vadd.f32 %v2012, %v2030
      %v2038 = vadd.f32 %v2013, %v2029
      %s2039 = sld [smem:[#allocation11 + $0x23]]
      %v2040 = vstv %s2039
      %v2041 = vmul.f32 %v2040, %v253
      %v2042 = vmul.f32 %v2040, %v254
      %v2043 = vmul.f32 %v2040, %v255
      %v2044 = vmul.f32 %v2040, %v256
      %v2045 = vadd.f32 %v2035, %v2041
      %v2046 = vadd.f32 %v2036, %v2042
      %v2047 = vadd.f32 %v2037, %v2043
      %v2048 = vadd.f32 %v2038, %v2044
      %s2049 = sld [smem:[#allocation11 + $0x24]]
      %v2050 = vstv %s2049
      %v2051 = vmul.f32 %v2050, %v253
      %v2052 = vmul.f32 %v2050, %v254
      %v2053 = vmul.f32 %v2050, %v255
      %v2054 = vmul.f32 %v2050, %v256
      %v2059 = vrot.slane %v2051, 1
      %v2060 = vrot.slane %v2052, 1
      %v2061 = vsel %vm287, %v2059, %v2060
      %v2062 = vrot.slane %v2053, 1
      %v2063 = vsel %vm287, %v2060, %v2062
      %v2064 = vrot.slane %v2054, 1
      %v2065 = vsel %vm287, %v2062, %v2064
      %v2070 = vadd.f32 %v2045, %v2061
      %v2071 = vadd.f32 %v2046, %v2063
      %v2072 = vadd.f32 %v2047, %v2065
      %v2073 = vadd.f32 %v2048, %v2064
      %s2074 = sld [smem:[#allocation11 + $0x25]]
      %v2075 = vstv %s2074
      %v2076 = vmul.f32 %v2075, %v253
      %v2077 = vmul.f32 %v2075, %v254
      %v2078 = vmul.f32 %v2075, %v255
      %v2079 = vmul.f32 %v2075, %v256
      %v2084 = vrot.slane %v2076, 2
      %v2085 = vrot.slane %v2077, 2
      %v2086 = vsel %vm313, %v2084, %v2085
      %v2087 = vrot.slane %v2078, 2
      %v2088 = vsel %vm313, %v2085, %v2087
      %v2089 = vrot.slane %v2079, 2
      %v2090 = vsel %vm313, %v2087, %v2089
      %v2095 = vadd.f32 %v2070, %v2086
      %v2096 = vadd.f32 %v2071, %v2088
      %v2097 = vadd.f32 %v2072, %v2090
      %v2098 = vadd.f32 %v2073, %v2089
      %s2099 = sld [smem:[#allocation11 + $0x26]]
      %v2100 = vstv %s2099
      %v2101 = vmul.f32 %v2100, %v253
      %v2102 = vmul.f32 %v2100, %v254
      %v2103 = vmul.f32 %v2100, %v255
      %v2104 = vmul.f32 %v2100, %v256
      %v2109 = vrot.slane %v2101, 3
      %v2110 = vrot.slane %v2102, 3
      %v2111 = vsel %vm1325, %v2109, %v2110
      %v2112 = vrot.slane %v2103, 3
      %v2113 = vsel %vm1325, %v2110, %v2112
      %v2114 = vrot.slane %v2104, 3
      %v2115 = vsel %vm1325, %v2112, %v2114
      %v2120 = vadd.f32 %v2095, %v2111
      %v2121 = vadd.f32 %v2096, %v2113
      %v2122 = vadd.f32 %v2097, %v2115
      %v2123 = vadd.f32 %v2098, %v2114
      %s2124 = sld [smem:[#allocation11 + $0x27]]
      %v2125 = vstv %s2124
      %v2126 = vmul.f32 %v2125, %v253
      %v2127 = vmul.f32 %v2125, %v254
      %v2128 = vmul.f32 %v2125, %v255
      %v2129 = vmul.f32 %v2125, %v256
      %v2134 = vrot.slane %v2126, 4
      %v2135 = vrot.slane %v2127, 4
      %v2136 = vsel %vm1351, %v2134, %v2135
      %v2137 = vrot.slane %v2128, 4
      %v2138 = vsel %vm1351, %v2135, %v2137
      %v2139 = vrot.slane %v2129, 4
      %v2140 = vsel %vm1351, %v2137, %v2139
      %v2145 = vadd.f32 %v2120, %v2136
      %v2146 = vadd.f32 %v2121, %v2138
      %v2147 = vadd.f32 %v2122, %v2140
      %v2148 = vadd.f32 %v2123, %v2139
      %s2149 = sld [smem:[#allocation11 + $0x28]]
      %v2150 = vstv %s2149
      %v2151 = vmul.f32 %v2150, %v260
      %v2152 = vmul.f32 %v2150, %v261
      %v2153 = vmul.f32 %v2150, %v262
      %v2154 = vmul.f32 %v2150, %v263
      %v2155 = vadd.f32 %v2145, %v2151
      %v2156 = vadd.f32 %v2146, %v2152
      %v2157 = vadd.f32 %v2147, %v2153
      %v2158 = vadd.f32 %v2148, %v2154
      %s2159 = sld [smem:[#allocation11 + $0x29]]
      %v2160 = vstv %s2159
      %v2161 = vmul.f32 %v2160, %v260
      %v2162 = vmul.f32 %v2160, %v261
      %v2163 = vmul.f32 %v2160, %v262
      %v2164 = vmul.f32 %v2160, %v263
      %v2169 = vrot.slane %v2161, 1
      %v2170 = vrot.slane %v2162, 1
      %v2171 = vsel %vm287, %v2169, %v2170
      %v2172 = vrot.slane %v2163, 1
      %v2173 = vsel %vm287, %v2170, %v2172
      %v2174 = vrot.slane %v2164, 1
      %v2175 = vsel %vm287, %v2172, %v2174
      %v2180 = vadd.f32 %v2155, %v2171
      %v2181 = vadd.f32 %v2156, %v2173
      %v2182 = vadd.f32 %v2157, %v2175
      %v2183 = vadd.f32 %v2158, %v2174
      %s2184 = sld [smem:[#allocation11 + $0x2a]]
      %v2185 = vstv %s2184
      %v2186 = vmul.f32 %v2185, %v260
      %v2187 = vmul.f32 %v2185, %v261
      %v2188 = vmul.f32 %v2185, %v262
      %v2189 = vmul.f32 %v2185, %v263
      %v2194 = vrot.slane %v2186, 2
      %v2195 = vrot.slane %v2187, 2
      %v2196 = vsel %vm313, %v2194, %v2195
      %v2197 = vrot.slane %v2188, 2
      %v2198 = vsel %vm313, %v2195, %v2197
      %v2199 = vrot.slane %v2189, 2
      %v2200 = vsel %vm313, %v2197, %v2199
      %v2205 = vadd.f32 %v2180, %v2196
      %v2206 = vadd.f32 %v2181, %v2198
      %v2207 = vadd.f32 %v2182, %v2200
      %v2208 = vadd.f32 %v2183, %v2199
      %s2209 = sld [smem:[#allocation11 + $0x2b]]
      %v2210 = vstv %s2209
      %v2211 = vmul.f32 %v2210, %v260
      %v2212 = vmul.f32 %v2210, %v261
      %v2213 = vmul.f32 %v2210, %v262
      %v2214 = vmul.f32 %v2210, %v263
      %v2219 = vrot.slane %v2211, 3
      %v2220 = vrot.slane %v2212, 3
      %v2221 = vsel %vm1325, %v2219, %v2220
      %v2222 = vrot.slane %v2213, 3
      %v2223 = vsel %vm1325, %v2220, %v2222
      %v2224 = vrot.slane %v2214, 3
      %v2225 = vsel %vm1325, %v2222, %v2224
      %v2230 = vadd.f32 %v2205, %v2221
      %v2231 = vadd.f32 %v2206, %v2223
      %v2232 = vadd.f32 %v2207, %v2225
      %v2233 = vadd.f32 %v2208, %v2224
      %s2234 = sld [smem:[#allocation11 + $0x2c]]
      %v2235 = vstv %s2234
      %v2236 = vmul.f32 %v2235, %v260
      %v2237 = vmul.f32 %v2235, %v261
      %v2238 = vmul.f32 %v2235, %v262
      %v2239 = vmul.f32 %v2235, %v263
      %v2244 = vrot.slane %v2236, 4
      %v2245 = vrot.slane %v2237, 4
      %v2246 = vsel %vm1351, %v2244, %v2245
      %v2247 = vrot.slane %v2238, 4
      %v2248 = vsel %vm1351, %v2245, %v2247
      %v2249 = vrot.slane %v2239, 4
      %v2250 = vsel %vm1351, %v2247, %v2249
      %v2255 = vadd.f32 %v2230, %v2246
      %v2256 = vadd.f32 %v2231, %v2248
      %v2257 = vadd.f32 %v2232, %v2250
      %v2258 = vadd.f32 %v2233, %v2249
      %s2259 = sld [smem:[#allocation11 + $0x2d]]
      %v2260 = vstv %s2259
      %v2261 = vmul.f32 %v2260, %v267
      %v2262 = vmul.f32 %v2260, %v268
      %v2263 = vmul.f32 %v2260, %v269
      %v2264 = vmul.f32 %v2260, %v270
      %v2265 = vadd.f32 %v2255, %v2261
      %v2266 = vadd.f32 %v2256, %v2262
      %v2267 = vadd.f32 %v2257, %v2263
      %v2268 = vadd.f32 %v2258, %v2264
      %s2269 = sld [smem:[#allocation11 + $0x2e]]
      %v2270 = vstv %s2269
      %v2271 = vmul.f32 %v2270, %v267
      %v2272 = vmul.f32 %v2270, %v268
      %v2273 = vmul.f32 %v2270, %v269
      %v2274 = vmul.f32 %v2270, %v270
      %v2279 = vrot.slane %v2271, 1
      %v2280 = vrot.slane %v2272, 1
      %v2281 = vsel %vm287, %v2279, %v2280
      %v2282 = vrot.slane %v2273, 1
      %v2283 = vsel %vm287, %v2280, %v2282
      %v2284 = vrot.slane %v2274, 1
      %v2285 = vsel %vm287, %v2282, %v2284
      %v2290 = vadd.f32 %v2265, %v2281
      %v2291 = vadd.f32 %v2266, %v2283
      %v2292 = vadd.f32 %v2267, %v2285
      %v2293 = vadd.f32 %v2268, %v2284
      %s2294 = sld [smem:[#allocation11 + $0x2f]]
      %v2295 = vstv %s2294
      %v2296 = vmul.f32 %v2295, %v267
      %v2297 = vmul.f32 %v2295, %v268
      %v2298 = vmul.f32 %v2295, %v269
      %v2299 = vmul.f32 %v2295, %v270
      %v2304 = vrot.slane %v2296, 2
      %v2305 = vrot.slane %v2297, 2
      %v2306 = vsel %vm313, %v2304, %v2305
      %v2307 = vrot.slane %v2298, 2
      %v2308 = vsel %vm313, %v2305, %v2307
      %v2309 = vrot.slane %v2299, 2
      %v2310 = vsel %vm313, %v2307, %v2309
      %v2315 = vadd.f32 %v2290, %v2306
      %v2316 = vadd.f32 %v2291, %v2308
      %v2317 = vadd.f32 %v2292, %v2310
      %v2318 = vadd.f32 %v2293, %v2309
      %s2319 = sld [smem:[#allocation11 + $0x30]]
      %v2320 = vstv %s2319
      %v2321 = vmul.f32 %v2320, %v267
      %v2322 = vmul.f32 %v2320, %v268
      %v2323 = vmul.f32 %v2320, %v269
      %v2324 = vmul.f32 %v2320, %v270
      %v2329 = vrot.slane %v2321, 3
      %v2330 = vrot.slane %v2322, 3
      %v2331 = vsel %vm1325, %v2329, %v2330
      %v2332 = vrot.slane %v2323, 3
      %v2333 = vsel %vm1325, %v2330, %v2332
      %v2334 = vrot.slane %v2324, 3
      %v2335 = vsel %vm1325, %v2332, %v2334
      %v2340 = vadd.f32 %v2315, %v2331
      %v2341 = vadd.f32 %v2316, %v2333
      %v2342 = vadd.f32 %v2317, %v2335
      %v2343 = vadd.f32 %v2318, %v2334
      %s2344 = sld [smem:[#allocation11 + $0x31]]
      %v2345 = vstv %s2344
      %v2346 = vmul.f32 %v2345, %v267
      %v2347 = vmul.f32 %v2345, %v268
      %v2348 = vmul.f32 %v2345, %v269
      %v2349 = vmul.f32 %v2345, %v270
      %v2354 = vrot.slane %v2346, 4
      %v2355 = vrot.slane %v2347, 4
      %v2356 = vsel %vm1351, %v2354, %v2355
      %v2357 = vrot.slane %v2348, 4
      %v2358 = vsel %vm1351, %v2355, %v2357
      %v2359 = vrot.slane %v2349, 4
      %v2360 = vsel %vm1351, %v2357, %v2359
      %v2365 = vadd.f32 %v2340, %v2356
      %v2366 = vadd.f32 %v2341, %v2358
      %v2367 = vadd.f32 %v2342, %v2360
      %v2368 = vadd.f32 %v2343, %v2359
      %s2369 = sld [smem:[#allocation13 + $0x1]]
      %v2370 = vstv %s2369
      %v2371 = vadd.f32 %v2365, %v2370
      %v2372 = vadd.f32 %v2366, %v2370
      %v2373 = vadd.f32 %v2367, %v2370
      %v2374 = vadd.f32 %v2368, %v2370
      %v2375 = vmax.f32 %v2371, 0.0
      %v2376 = vmax.f32 %v2372, 0.0
      %v2377 = vmax.f32 %v2373, 0.0
      %v2378 = vmax.f32 %v2374, 0.0
      %s2379 = sld [smem:[#allocation14 + $0x1]]
      %v2380 = vstv %s2379
      %v2381 = vmul.f32 %v2380, %v2375
      %v2382 = vmul.f32 %v2380, %v2376
      %v2383 = vmul.f32 %v2380, %v2377
      %v2384 = vmul.f32 %v2380, %v2378
      %v2385 = vadd.f32 %v1819, %v2381
      %v2386 = vadd.f32 %v1820, %v2382
      %v2387 = vadd.f32 %v1821, %v2383
      %v2388 = vadd.f32 %v1822, %v2384
      %s2389 = sld [smem:[#allocation11 + $0x32]]
      %v2390 = vstv %s2389
      %v2391 = vmul.f32 %v2390, %v239
      %v2392 = vmul.f32 %v2390, %v240
      %v2393 = vmul.f32 %v2390, %v241
      %v2394 = vmul.f32 %v2390, %v242
      %s2395 = sld [smem:[#allocation11 + $0x33]]
      %v2396 = vstv %s2395
      %v2397 = vmul.f32 %v2396, %v239
      %v2398 = vmul.f32 %v2396, %v240
      %v2399 = vmul.f32 %v2396, %v241
      %v2400 = vmul.f32 %v2396, %v242
      %v2405 = vrot.slane %v2397, 1
      %v2406 = vrot.slane %v2398, 1
      %v2407 = vsel %vm287, %v2405, %v2406
      %v2408 = vrot.slane %v2399, 1
      %v2409 = vsel %vm287, %v2406, %v2408
      %v2410 = vrot.slane %v2400, 1
      %v2411 = vsel %vm287, %v2408, %v2410
      %v2416 = vadd.f32 %v2391, %v2407
      %v2417 = vadd.f32 %v2392, %v2409
      %v2418 = vadd.f32 %v2393, %v2411
      %v2419 = vadd.f32 %v2394, %v2410
      %s2420 = sld [smem:[#allocation11 + $0x34]]
      %v2421 = vstv %s2420
      %v2422 = vmul.f32 %v2421, %v239
      %v2423 = vmul.f32 %v2421, %v240
      %v2424 = vmul.f32 %v2421, %v241
      %v2425 = vmul.f32 %v2421, %v242
      %v2430 = vrot.slane %v2422, 2
      %v2431 = vrot.slane %v2423, 2
      %v2432 = vsel %vm313, %v2430, %v2431
      %v2433 = vrot.slane %v2424, 2
      %v2434 = vsel %vm313, %v2431, %v2433
      %v2435 = vrot.slane %v2425, 2
      %v2436 = vsel %vm313, %v2433, %v2435
      %v2441 = vadd.f32 %v2416, %v2432
      %v2442 = vadd.f32 %v2417, %v2434
      %v2443 = vadd.f32 %v2418, %v2436
      %v2444 = vadd.f32 %v2419, %v2435
      %s2445 = sld [smem:[#allocation11 + $0x35]]
      %v2446 = vstv %s2445
      %v2447 = vmul.f32 %v2446, %v239
      %v2448 = vmul.f32 %v2446, %v240
      %v2449 = vmul.f32 %v2446, %v241
      %v2450 = vmul.f32 %v2446, %v242
      %v2455 = vrot.slane %v2447, 3
      %v2456 = vrot.slane %v2448, 3
      %v2457 = vsel %vm1325, %v2455, %v2456
      %v2458 = vrot.slane %v2449, 3
      %v2459 = vsel %vm1325, %v2456, %v2458
      %v2460 = vrot.slane %v2450, 3
      %v2461 = vsel %vm1325, %v2458, %v2460
      %v2466 = vadd.f32 %v2441, %v2457
      %v2467 = vadd.f32 %v2442, %v2459
      %v2468 = vadd.f32 %v2443, %v2461
      %v2469 = vadd.f32 %v2444, %v2460
      %s2470 = sld [smem:[#allocation11 + $0x36]]
      %v2471 = vstv %s2470
      %v2472 = vmul.f32 %v2471, %v239
      %v2473 = vmul.f32 %v2471, %v240
      %v2474 = vmul.f32 %v2471, %v241
      %v2475 = vmul.f32 %v2471, %v242
      %v2480 = vrot.slane %v2472, 4
      %v2481 = vrot.slane %v2473, 4
      %v2482 = vsel %vm1351, %v2480, %v2481
      %v2483 = vrot.slane %v2474, 4
      %v2484 = vsel %vm1351, %v2481, %v2483
      %v2485 = vrot.slane %v2475, 4
      %v2486 = vsel %vm1351, %v2483, %v2485
      %v2491 = vadd.f32 %v2466, %v2482
      %v2492 = vadd.f32 %v2467, %v2484
      %v2493 = vadd.f32 %v2468, %v2486
      %v2494 = vadd.f32 %v2469, %v2485
      %s2495 = sld [smem:[#allocation11 + $0x37]]
      %v2496 = vstv %s2495
      %v2497 = vmul.f32 %v2496, %v246
      %v2498 = vmul.f32 %v2496, %v247
      %v2499 = vmul.f32 %v2496, %v248
      %v2500 = vmul.f32 %v2496, %v249
      %v2501 = vadd.f32 %v2491, %v2497
      %v2502 = vadd.f32 %v2492, %v2498
      %v2503 = vadd.f32 %v2493, %v2499
      %v2504 = vadd.f32 %v2494, %v2500
      %s2505 = sld [smem:[#allocation11 + $0x38]]
      %v2506 = vstv %s2505
      %v2507 = vmul.f32 %v2506, %v246
      %v2508 = vmul.f32 %v2506, %v247
      %v2509 = vmul.f32 %v2506, %v248
      %v2510 = vmul.f32 %v2506, %v249
      %v2515 = vrot.slane %v2507, 1
      %v2516 = vrot.slane %v2508, 1
      %v2517 = vsel %vm287, %v2515, %v2516
      %v2518 = vrot.slane %v2509, 1
      %v2519 = vsel %vm287, %v2516, %v2518
      %v2520 = vrot.slane %v2510, 1
      %v2521 = vsel %vm287, %v2518, %v2520
      %v2526 = vadd.f32 %v2501, %v2517
      %v2527 = vadd.f32 %v2502, %v2519
      %v2528 = vadd.f32 %v2503, %v2521
      %v2529 = vadd.f32 %v2504, %v2520
      %s2530 = sld [smem:[#allocation11 + $0x39]]
      %v2531 = vstv %s2530
      %v2532 = vmul.f32 %v2531, %v246
      %v2533 = vmul.f32 %v2531, %v247
      %v2534 = vmul.f32 %v2531, %v248
      %v2535 = vmul.f32 %v2531, %v249
      %v2540 = vrot.slane %v2532, 2
      %v2541 = vrot.slane %v2533, 2
      %v2542 = vsel %vm313, %v2540, %v2541
      %v2543 = vrot.slane %v2534, 2
      %v2544 = vsel %vm313, %v2541, %v2543
      %v2545 = vrot.slane %v2535, 2
      %v2546 = vsel %vm313, %v2543, %v2545
      %v2551 = vadd.f32 %v2526, %v2542
      %v2552 = vadd.f32 %v2527, %v2544
      %v2553 = vadd.f32 %v2528, %v2546
      %v2554 = vadd.f32 %v2529, %v2545
      %s2555 = sld [smem:[#allocation11 + $0x3a]]
      %v2556 = vstv %s2555
      %v2557 = vmul.f32 %v2556, %v246
      %v2558 = vmul.f32 %v2556, %v247
      %v2559 = vmul.f32 %v2556, %v248
      %v2560 = vmul.f32 %v2556, %v249
      %v2565 = vrot.slane %v2557, 3
      %v2566 = vrot.slane %v2558, 3
      %v2567 = vsel %vm1325, %v2565, %v2566
      %v2568 = vrot.slane %v2559, 3
      %v2569 = vsel %vm1325, %v2566, %v2568
      %v2570 = vrot.slane %v2560, 3
      %v2571 = vsel %vm1325, %v2568, %v2570
      %v2576 = vadd.f32 %v2551, %v2567
      %v2577 = vadd.f32 %v2552, %v2569
      %v2578 = vadd.f32 %v2553, %v2571
      %v2579 = vadd.f32 %v2554, %v2570
      %s2580 = sld [smem:[#allocation11 + $0x3b]]
      %v2581 = vstv %s2580
      %v2582 = vmul.f32 %v2581, %v246
      %v2583 = vmul.f32 %v2581, %v247
      %v2584 = vmul.f32 %v2581, %v248
      %v2585 = vmul.f32 %v2581, %v249
      %v2590 = vrot.slane %v2582, 4
      %v2591 = vrot.slane %v2583, 4
      %v2592 = vsel %vm1351, %v2590, %v2591
      %v2593 = vrot.slane %v2584, 4
      %v2594 = vsel %vm1351, %v2591, %v2593
      %v2595 = vrot.slane %v2585, 4
      %v2596 = vsel %vm1351, %v2593, %v2595
      %v2601 = vadd.f32 %v2576, %v2592
      %v2602 = vadd.f32 %v2577, %v2594
      %v2603 = vadd.f32 %v2578, %v2596
      %v2604 = vadd.f32 %v2579, %v2595
      %s2605 = sld [smem:[#allocation11 + $0x3c]]
      %v2606 = vstv %s2605
      %v2607 = vmul.f32 %v2606, %v253
      %v2608 = vmul.f32 %v2606, %v254
      %v2609 = vmul.f32 %v2606, %v255
      %v2610 = vmul.f32 %v2606, %v256
      %v2611 = vadd.f32 %v2601, %v2607
      %v2612 = vadd.f32 %v2602, %v2608
      %v2613 = vadd.f32 %v2603, %v2609
      %v2614 = vadd.f32 %v2604, %v2610
      %s2615 = sld [smem:[#allocation11 + $0x3d]]
      %v2616 = vstv %s2615
      %v2617 = vmul.f32 %v2616, %v253
      %v2618 = vmul.f32 %v2616, %v254
      %v2619 = vmul.f32 %v2616, %v255
      %v2620 = vmul.f32 %v2616, %v256
      %v2625 = vrot.slane %v2617, 1
      %v2626 = vrot.slane %v2618, 1
      %v2627 = vsel %vm287, %v2625, %v2626
      %v2628 = vrot.slane %v2619, 1
      %v2629 = vsel %vm287, %v2626, %v2628
      %v2630 = vrot.slane %v2620, 1
      %v2631 = vsel %vm287, %v2628, %v2630
      %v2636 = vadd.f32 %v2611, %v2627
      %v2637 = vadd.f32 %v2612, %v2629
      %v2638 = vadd.f32 %v2613, %v2631
      %v2639 = vadd.f32 %v2614, %v2630
      %s2640 = sld [smem:[#allocation11 + $0x3e]]
      %v2641 = vstv %s2640
      %v2642 = vmul.f32 %v2641, %v253
      %v2643 = vmul.f32 %v2641, %v254
      %v2644 = vmul.f32 %v2641, %v255
      %v2645 = vmul.f32 %v2641, %v256
      %v2650 = vrot.slane %v2642, 2
      %v2651 = vrot.slane %v2643, 2
      %v2652 = vsel %vm313, %v2650, %v2651
      %v2653 = vrot.slane %v2644, 2
      %v2654 = vsel %vm313, %v2651, %v2653
      %v2655 = vrot.slane %v2645, 2
      %v2656 = vsel %vm313, %v2653, %v2655
      %v2661 = vadd.f32 %v2636, %v2652
      %v2662 = vadd.f32 %v2637, %v2654
      %v2663 = vadd.f32 %v2638, %v2656
      %v2664 = vadd.f32 %v2639, %v2655
      %s2665 = sld [smem:[#allocation11 + $0x3f]]
      %v2666 = vstv %s2665
      %v2667 = vmul.f32 %v2666, %v253
      %v2668 = vmul.f32 %v2666, %v254
      %v2669 = vmul.f32 %v2666, %v255
      %v2670 = vmul.f32 %v2666, %v256
      %v2675 = vrot.slane %v2667, 3
      %v2676 = vrot.slane %v2668, 3
      %v2677 = vsel %vm1325, %v2675, %v2676
      %v2678 = vrot.slane %v2669, 3
      %v2679 = vsel %vm1325, %v2676, %v2678
      %v2680 = vrot.slane %v2670, 3
      %v2681 = vsel %vm1325, %v2678, %v2680
      %v2686 = vadd.f32 %v2661, %v2677
      %v2687 = vadd.f32 %v2662, %v2679
      %v2688 = vadd.f32 %v2663, %v2681
      %v2689 = vadd.f32 %v2664, %v2680
      %s2690 = sld [smem:[#allocation11 + $0x40]]
      %v2691 = vstv %s2690
      %v2692 = vmul.f32 %v2691, %v253
      %v2693 = vmul.f32 %v2691, %v254
      %v2694 = vmul.f32 %v2691, %v255
      %v2695 = vmul.f32 %v2691, %v256
      %v2700 = vrot.slane %v2692, 4
      %v2701 = vrot.slane %v2693, 4
      %v2702 = vsel %vm1351, %v2700, %v2701
      %v2703 = vrot.slane %v2694, 4
      %v2704 = vsel %vm1351, %v2701, %v2703
      %v2705 = vrot.slane %v2695, 4
      %v2706 = vsel %vm1351, %v2703, %v2705
      %v2711 = vadd.f32 %v2686, %v2702
      %v2712 = vadd.f32 %v2687, %v2704
      %v2713 = vadd.f32 %v2688, %v2706
      %v2714 = vadd.f32 %v2689, %v2705
      %s2715 = sld [smem:[#allocation11 + $0x41]]
      %v2716 = vstv %s2715
      %v2717 = vmul.f32 %v2716, %v260
      %v2718 = vmul.f32 %v2716, %v261
      %v2719 = vmul.f32 %v2716, %v262
      %v2720 = vmul.f32 %v2716, %v263
      %v2721 = vadd.f32 %v2711, %v2717
      %v2722 = vadd.f32 %v2712, %v2718
      %v2723 = vadd.f32 %v2713, %v2719
      %v2724 = vadd.f32 %v2714, %v2720
      %s2725 = sld [smem:[#allocation11 + $0x42]]
      %v2726 = vstv %s2725
      %v2727 = vmul.f32 %v2726, %v260
      %v2728 = vmul.f32 %v2726, %v261
      %v2729 = vmul.f32 %v2726, %v262
      %v2730 = vmul.f32 %v2726, %v263
      %v2735 = vrot.slane %v2727, 1
      %v2736 = vrot.slane %v2728, 1
      %v2737 = vsel %vm287, %v2735, %v2736
      %v2738 = vrot.slane %v2729, 1
      %v2739 = vsel %vm287, %v2736, %v2738
      %v2740 = vrot.slane %v2730, 1
      %v2741 = vsel %vm287, %v2738, %v2740
      %v2746 = vadd.f32 %v2721, %v2737
      %v2747 = vadd.f32 %v2722, %v2739
      %v2748 = vadd.f32 %v2723, %v2741
      %v2749 = vadd.f32 %v2724, %v2740
      %s2750 = sld [smem:[#allocation11 + $0x43]]
      %v2751 = vstv %s2750
      %v2752 = vmul.f32 %v2751, %v260
      %v2753 = vmul.f32 %v2751, %v261
      %v2754 = vmul.f32 %v2751, %v262
      %v2755 = vmul.f32 %v2751, %v263
      %v2760 = vrot.slane %v2752, 2
      %v2761 = vrot.slane %v2753, 2
      %v2762 = vsel %vm313, %v2760, %v2761
      %v2763 = vrot.slane %v2754, 2
      %v2764 = vsel %vm313, %v2761, %v2763
      %v2765 = vrot.slane %v2755, 2
      %v2766 = vsel %vm313, %v2763, %v2765
      %v2771 = vadd.f32 %v2746, %v2762
      %v2772 = vadd.f32 %v2747, %v2764
      %v2773 = vadd.f32 %v2748, %v2766
      %v2774 = vadd.f32 %v2749, %v2765
      %s2775 = sld [smem:[#allocation11 + $0x44]]
      %v2776 = vstv %s2775
      %v2777 = vmul.f32 %v2776, %v260
      %v2778 = vmul.f32 %v2776, %v261
      %v2779 = vmul.f32 %v2776, %v262
      %v2780 = vmul.f32 %v2776, %v263
      %v2785 = vrot.slane %v2777, 3
      %v2786 = vrot.slane %v2778, 3
      %v2787 = vsel %vm1325, %v2785, %v2786
      %v2788 = vrot.slane %v2779, 3
      %v2789 = vsel %vm1325, %v2786, %v2788
      %v2790 = vrot.slane %v2780, 3
      %v2791 = vsel %vm1325, %v2788, %v2790
      %v2796 = vadd.f32 %v2771, %v2787
      %v2797 = vadd.f32 %v2772, %v2789
      %v2798 = vadd.f32 %v2773, %v2791
      %v2799 = vadd.f32 %v2774, %v2790
      %s2800 = sld [smem:[#allocation11 + $0x45]]
      %v2801 = vstv %s2800
      %v2802 = vmul.f32 %v2801, %v260
      %v2803 = vmul.f32 %v2801, %v261
      %v2804 = vmul.f32 %v2801, %v262
      %v2805 = vmul.f32 %v2801, %v263
      %v2810 = vrot.slane %v2802, 4
      %v2811 = vrot.slane %v2803, 4
      %v2812 = vsel %vm1351, %v2810, %v2811
      %v2813 = vrot.slane %v2804, 4
      %v2814 = vsel %vm1351, %v2811, %v2813
      %v2815 = vrot.slane %v2805, 4
      %v2816 = vsel %vm1351, %v2813, %v2815
      %v2821 = vadd.f32 %v2796, %v2812
      %v2822 = vadd.f32 %v2797, %v2814
      %v2823 = vadd.f32 %v2798, %v2816
      %v2824 = vadd.f32 %v2799, %v2815
      %s2825 = sld [smem:[#allocation11 + $0x46]]
      %v2826 = vstv %s2825
      %v2827 = vmul.f32 %v2826, %v267
      %v2828 = vmul.f32 %v2826, %v268
      %v2829 = vmul.f32 %v2826, %v269
      %v2830 = vmul.f32 %v2826, %v270
      %v2831 = vadd.f32 %v2821, %v2827
      %v2832 = vadd.f32 %v2822, %v2828
      %v2833 = vadd.f32 %v2823, %v2829
      %v2834 = vadd.f32 %v2824, %v2830
      %s2835 = sld [smem:[#allocation11 + $0x47]]
      %v2836 = vstv %s2835
      %v2837 = vmul.f32 %v2836, %v267
      %v2838 = vmul.f32 %v2836, %v268
      %v2839 = vmul.f32 %v2836, %v269
      %v2840 = vmul.f32 %v2836, %v270
      %v2845 = vrot.slane %v2837, 1
      %v2846 = vrot.slane %v2838, 1
      %v2847 = vsel %vm287, %v2845, %v2846
      %v2848 = vrot.slane %v2839, 1
      %v2849 = vsel %vm287, %v2846, %v2848
      %v2850 = vrot.slane %v2840, 1
      %v2851 = vsel %vm287, %v2848, %v2850
      %v2856 = vadd.f32 %v2831, %v2847
      %v2857 = vadd.f32 %v2832, %v2849
      %v2858 = vadd.f32 %v2833, %v2851
      %v2859 = vadd.f32 %v2834, %v2850
      %s2860 = sld [smem:[#allocation11 + $0x48]]
      %v2861 = vstv %s2860
      %v2862 = vmul.f32 %v2861, %v267
      %v2863 = vmul.f32 %v2861, %v268
      %v2864 = vmul.f32 %v2861, %v269
      %v2865 = vmul.f32 %v2861, %v270
      %v2870 = vrot.slane %v2862, 2
      %v2871 = vrot.slane %v2863, 2
      %v2872 = vsel %vm313, %v2870, %v2871
      %v2873 = vrot.slane %v2864, 2
      %v2874 = vsel %vm313, %v2871, %v2873
      %v2875 = vrot.slane %v2865, 2
      %v2876 = vsel %vm313, %v2873, %v2875
      %v2881 = vadd.f32 %v2856, %v2872
      %v2882 = vadd.f32 %v2857, %v2874
      %v2883 = vadd.f32 %v2858, %v2876
      %v2884 = vadd.f32 %v2859, %v2875
      %s2885 = sld [smem:[#allocation11 + $0x49]]
      %v2886 = vstv %s2885
      %v2887 = vmul.f32 %v2886, %v267
      %v2888 = vmul.f32 %v2886, %v268
      %v2889 = vmul.f32 %v2886, %v269
      %v2890 = vmul.f32 %v2886, %v270
      %v2895 = vrot.slane %v2887, 3
      %v2896 = vrot.slane %v2888, 3
      %v2897 = vsel %vm1325, %v2895, %v2896
      %v2898 = vrot.slane %v2889, 3
      %v2899 = vsel %vm1325, %v2896, %v2898
      %v2900 = vrot.slane %v2890, 3
      %v2901 = vsel %vm1325, %v2898, %v2900
      %v2906 = vadd.f32 %v2881, %v2897
      %v2907 = vadd.f32 %v2882, %v2899
      %v2908 = vadd.f32 %v2883, %v2901
      %v2909 = vadd.f32 %v2884, %v2900
      %s2910 = sld [smem:[#allocation11 + $0x4a]]
      %v2911 = vstv %s2910
      %v2912 = vmul.f32 %v2911, %v267
      %v2913 = vmul.f32 %v2911, %v268
      %v2914 = vmul.f32 %v2911, %v269
      %v2915 = vmul.f32 %v2911, %v270
      %v2920 = vrot.slane %v2912, 4
      %v2921 = vrot.slane %v2913, 4
      %v2922 = vsel %vm1351, %v2920, %v2921
      %v2923 = vrot.slane %v2914, 4
      %v2924 = vsel %vm1351, %v2921, %v2923
      %v2925 = vrot.slane %v2915, 4
      %v2926 = vsel %vm1351, %v2923, %v2925
      %v2931 = vadd.f32 %v2906, %v2922
      %v2932 = vadd.f32 %v2907, %v2924
      %v2933 = vadd.f32 %v2908, %v2926
      %v2934 = vadd.f32 %v2909, %v2925
      %s2935 = sld [smem:[#allocation13 + $0x2]]
      %v2936 = vstv %s2935
      %v2937 = vadd.f32 %v2931, %v2936
      %v2938 = vadd.f32 %v2932, %v2936
      %v2939 = vadd.f32 %v2933, %v2936
      %v2940 = vadd.f32 %v2934, %v2936
      %v2941 = vmax.f32 %v2937, 0.0
      %v2942 = vmax.f32 %v2938, 0.0
      %v2943 = vmax.f32 %v2939, 0.0
      %v2944 = vmax.f32 %v2940, 0.0
      %s2945 = sld [smem:[#allocation14 + $0x2]]
      %v2946 = vstv %s2945
      %v2947 = vmul.f32 %v2946, %v2941
      %v2948 = vmul.f32 %v2946, %v2942
      %v2949 = vmul.f32 %v2946, %v2943
      %v2950 = vmul.f32 %v2946, %v2944
      %v2951 = vadd.f32 %v2385, %v2947
      %v2952 = vadd.f32 %v2386, %v2948
      %v2953 = vadd.f32 %v2387, %v2949
      %v2954 = vadd.f32 %v2388, %v2950
      %s2955 = sld [smem:[#allocation11 + $0x4b]]
      %v2956 = vstv %s2955
      %v2957 = vmul.f32 %v2956, %v239
      %v2958 = vmul.f32 %v2956, %v240
      %v2959 = vmul.f32 %v2956, %v241
      %v2960 = vmul.f32 %v2956, %v242
      %s2961 = sld [smem:[#allocation11 + $0x4c]]
      %v2962 = vstv %s2961
      %v2963 = vmul.f32 %v2962, %v239
      %v2964 = vmul.f32 %v2962, %v240
      %v2965 = vmul.f32 %v2962, %v241
      %v2966 = vmul.f32 %v2962, %v242
      %v2971 = vrot.slane %v2963, 1
      %v2972 = vrot.slane %v2964, 1
      %v2973 = vsel %vm287, %v2971, %v2972
      %v2974 = vrot.slane %v2965, 1
      %v2975 = vsel %vm287, %v2972, %v2974
      %v2976 = vrot.slane %v2966, 1
      %v2977 = vsel %vm287, %v2974, %v2976
      %v2982 = vadd.f32 %v2957, %v2973
      %v2983 = vadd.f32 %v2958, %v2975
      %v2984 = vadd.f32 %v2959, %v2977
      %v2985 = vadd.f32 %v2960, %v2976
      %s2986 = sld [smem:[#allocation11 + $0x4d]]
      %v2987 = vstv %s2986
      %v2988 = vmul.f32 %v2987, %v239
      %v2989 = vmul.f32 %v2987, %v240
      %v2990 = vmul.f32 %v2987, %v241
      %v2991 = vmul.f32 %v2987, %v242
      %v2996 = vrot.slane %v2988, 2
      %v2997 = vrot.slane %v2989, 2
      %v2998 = vsel %vm313, %v2996, %v2997
      %v2999 = vrot.slane %v2990, 2
      %v3000 = vsel %vm313, %v2997, %v2999
      %v3001 = vrot.slane %v2991, 2
      %v3002 = vsel %vm313, %v2999, %v3001
      %v3007 = vadd.f32 %v2982, %v2998
      %v3008 = vadd.f32 %v2983, %v3000
      %v3009 = vadd.f32 %v2984, %v3002
      %v3010 = vadd.f32 %v2985, %v3001
      %s3011 = sld [smem:[#allocation11 + $0x4e]]
      %v3012 = vstv %s3011
      %v3013 = vmul.f32 %v3012, %v239
      %v3014 = vmul.f32 %v3012, %v240
      %v3015 = vmul.f32 %v3012, %v241
      %v3016 = vmul.f32 %v3012, %v242
      %v3021 = vrot.slane %v3013, 3
      %v3022 = vrot.slane %v3014, 3
      %v3023 = vsel %vm1325, %v3021, %v3022
      %v3024 = vrot.slane %v3015, 3
      %v3025 = vsel %vm1325, %v3022, %v3024
      %v3026 = vrot.slane %v3016, 3
      %v3027 = vsel %vm1325, %v3024, %v3026
      %v3032 = vadd.f32 %v3007, %v3023
      %v3033 = vadd.f32 %v3008, %v3025
      %v3034 = vadd.f32 %v3009, %v3027
      %v3035 = vadd.f32 %v3010, %v3026
      %s3036 = sld [smem:[#allocation11 + $0x4f]]
      %v3037 = vstv %s3036
      %v3038 = vmul.f32 %v3037, %v239
      %v3039 = vmul.f32 %v3037, %v240
      %v3040 = vmul.f32 %v3037, %v241
      %v3041 = vmul.f32 %v3037, %v242
      %v3046 = vrot.slane %v3038, 4
      %v3047 = vrot.slane %v3039, 4
      %v3048 = vsel %vm1351, %v3046, %v3047
      %v3049 = vrot.slane %v3040, 4
      %v3050 = vsel %vm1351, %v3047, %v3049
      %v3051 = vrot.slane %v3041, 4
      %v3052 = vsel %vm1351, %v3049, %v3051
      %v3057 = vadd.f32 %v3032, %v3048
      %v3058 = vadd.f32 %v3033, %v3050
      %v3059 = vadd.f32 %v3034, %v3052
      %v3060 = vadd.f32 %v3035, %v3051
      %s3061 = sld [smem:[#allocation11 + $0x50]]
      %v3062 = vstv %s3061
      %v3063 = vmul.f32 %v3062, %v246
      %v3064 = vmul.f32 %v3062, %v247
      %v3065 = vmul.f32 %v3062, %v248
      %v3066 = vmul.f32 %v3062, %v249
      %v3067 = vadd.f32 %v3057, %v3063
      %v3068 = vadd.f32 %v3058, %v3064
      %v3069 = vadd.f32 %v3059, %v3065
      %v3070 = vadd.f32 %v3060, %v3066
      %s3071 = sld [smem:[#allocation11 + $0x51]]
      %v3072 = vstv %s3071
      %v3073 = vmul.f32 %v3072, %v246
      %v3074 = vmul.f32 %v3072, %v247
      %v3075 = vmul.f32 %v3072, %v248
      %v3076 = vmul.f32 %v3072, %v249
      %v3081 = vrot.slane %v3073, 1
      %v3082 = vrot.slane %v3074, 1
      %v3083 = vsel %vm287, %v3081, %v3082
      %v3084 = vrot.slane %v3075, 1
      %v3085 = vsel %vm287, %v3082, %v3084
      %v3086 = vrot.slane %v3076, 1
      %v3087 = vsel %vm287, %v3084, %v3086
      %v3092 = vadd.f32 %v3067, %v3083
      %v3093 = vadd.f32 %v3068, %v3085
      %v3094 = vadd.f32 %v3069, %v3087
      %v3095 = vadd.f32 %v3070, %v3086
      %s3096 = sld [smem:[#allocation11 + $0x52]]
      %v3097 = vstv %s3096
      %v3098 = vmul.f32 %v3097, %v246
      %v3099 = vmul.f32 %v3097, %v247
      %v3100 = vmul.f32 %v3097, %v248
      %v3101 = vmul.f32 %v3097, %v249
      %v3106 = vrot.slane %v3098, 2
      %v3107 = vrot.slane %v3099, 2
      %v3108 = vsel %vm313, %v3106, %v3107
      %v3109 = vrot.slane %v3100, 2
      %v3110 = vsel %vm313, %v3107, %v3109
      %v3111 = vrot.slane %v3101, 2
      %v3112 = vsel %vm313, %v3109, %v3111
      %v3117 = vadd.f32 %v3092, %v3108
      %v3118 = vadd.f32 %v3093, %v3110
      %v3119 = vadd.f32 %v3094, %v3112
      %v3120 = vadd.f32 %v3095, %v3111
      %s3121 = sld [smem:[#allocation11 + $0x53]]
      %v3122 = vstv %s3121
      %v3123 = vmul.f32 %v3122, %v246
      %v3124 = vmul.f32 %v3122, %v247
      %v3125 = vmul.f32 %v3122, %v248
      %v3126 = vmul.f32 %v3122, %v249
      %v3131 = vrot.slane %v3123, 3
      %v3132 = vrot.slane %v3124, 3
      %v3133 = vsel %vm1325, %v3131, %v3132
      %v3134 = vrot.slane %v3125, 3
      %v3135 = vsel %vm1325, %v3132, %v3134
      %v3136 = vrot.slane %v3126, 3
      %v3137 = vsel %vm1325, %v3134, %v3136
      %v3142 = vadd.f32 %v3117, %v3133
      %v3143 = vadd.f32 %v3118, %v3135
      %v3144 = vadd.f32 %v3119, %v3137
      %v3145 = vadd.f32 %v3120, %v3136
      %s3146 = sld [smem:[#allocation11 + $0x54]]
      %v3147 = vstv %s3146
      %v3148 = vmul.f32 %v3147, %v246
      %v3149 = vmul.f32 %v3147, %v247
      %v3150 = vmul.f32 %v3147, %v248
      %v3151 = vmul.f32 %v3147, %v249
      %v3156 = vrot.slane %v3148, 4
      %v3157 = vrot.slane %v3149, 4
      %v3158 = vsel %vm1351, %v3156, %v3157
      %v3159 = vrot.slane %v3150, 4
      %v3160 = vsel %vm1351, %v3157, %v3159
      %v3161 = vrot.slane %v3151, 4
      %v3162 = vsel %vm1351, %v3159, %v3161
      %v3167 = vadd.f32 %v3142, %v3158
      %v3168 = vadd.f32 %v3143, %v3160
      %v3169 = vadd.f32 %v3144, %v3162
      %v3170 = vadd.f32 %v3145, %v3161
      %s3171 = sld [smem:[#allocation11 + $0x55]]
      %v3172 = vstv %s3171
      %v3173 = vmul.f32 %v3172, %v253
      %v3174 = vmul.f32 %v3172, %v254
      %v3175 = vmul.f32 %v3172, %v255
      %v3176 = vmul.f32 %v3172, %v256
      %v3177 = vadd.f32 %v3167, %v3173
      %v3178 = vadd.f32 %v3168, %v3174
      %v3179 = vadd.f32 %v3169, %v3175
      %v3180 = vadd.f32 %v3170, %v3176
      %s3181 = sld [smem:[#allocation11 + $0x56]]
      %v3182 = vstv %s3181
      %v3183 = vmul.f32 %v3182, %v253
      %v3184 = vmul.f32 %v3182, %v254
      %v3185 = vmul.f32 %v3182, %v255
      %v3186 = vmul.f32 %v3182, %v256
      %v3191 = vrot.slane %v3183, 1
      %v3192 = vrot.slane %v3184, 1
      %v3193 = vsel %vm287, %v3191, %v3192
      %v3194 = vrot.slane %v3185, 1
      %v3195 = vsel %vm287, %v3192, %v3194
      %v3196 = vrot.slane %v3186, 1
      %v3197 = vsel %vm287, %v3194, %v3196
      %v3202 = vadd.f32 %v3177, %v3193
      %v3203 = vadd.f32 %v3178, %v3195
      %v3204 = vadd.f32 %v3179, %v3197
      %v3205 = vadd.f32 %v3180, %v3196
      %s3206 = sld [smem:[#allocation11 + $0x57]]
      %v3207 = vstv %s3206
      %v3208 = vmul.f32 %v3207, %v253
      %v3209 = vmul.f32 %v3207, %v254
      %v3210 = vmul.f32 %v3207, %v255
      %v3211 = vmul.f32 %v3207, %v256
      %v3216 = vrot.slane %v3208, 2
      %v3217 = vrot.slane %v3209, 2
      %v3218 = vsel %vm313, %v3216, %v3217
      %v3219 = vrot.slane %v3210, 2
      %v3220 = vsel %vm313, %v3217, %v3219
      %v3221 = vrot.slane %v3211, 2
      %v3222 = vsel %vm313, %v3219, %v3221
      %v3227 = vadd.f32 %v3202, %v3218
      %v3228 = vadd.f32 %v3203, %v3220
      %v3229 = vadd.f32 %v3204, %v3222
      %v3230 = vadd.f32 %v3205, %v3221
      %s3231 = sld [smem:[#allocation11 + $0x58]]
      %v3232 = vstv %s3231
      %v3233 = vmul.f32 %v3232, %v253
      %v3234 = vmul.f32 %v3232, %v254
      %v3235 = vmul.f32 %v3232, %v255
      %v3236 = vmul.f32 %v3232, %v256
      %v3241 = vrot.slane %v3233, 3
      %v3242 = vrot.slane %v3234, 3
      %v3243 = vsel %vm1325, %v3241, %v3242
      %v3244 = vrot.slane %v3235, 3
      %v3245 = vsel %vm1325, %v3242, %v3244
      %v3246 = vrot.slane %v3236, 3
      %v3247 = vsel %vm1325, %v3244, %v3246
      %v3252 = vadd.f32 %v3227, %v3243
      %v3253 = vadd.f32 %v3228, %v3245
      %v3254 = vadd.f32 %v3229, %v3247
      %v3255 = vadd.f32 %v3230, %v3246
      %s3256 = sld [smem:[#allocation11 + $0x59]]
      %v3257 = vstv %s3256
      %v3258 = vmul.f32 %v3257, %v253
      %v3259 = vmul.f32 %v3257, %v254
      %v3260 = vmul.f32 %v3257, %v255
      %v3261 = vmul.f32 %v3257, %v256
      %v3266 = vrot.slane %v3258, 4
      %v3267 = vrot.slane %v3259, 4
      %v3268 = vsel %vm1351, %v3266, %v3267
      %v3269 = vrot.slane %v3260, 4
      %v3270 = vsel %vm1351, %v3267, %v3269
      %v3271 = vrot.slane %v3261, 4
      %v3272 = vsel %vm1351, %v3269, %v3271
      %v3277 = vadd.f32 %v3252, %v3268
      %v3278 = vadd.f32 %v3253, %v3270
      %v3279 = vadd.f32 %v3254, %v3272
      %v3280 = vadd.f32 %v3255, %v3271
      %s3281 = sld [smem:[#allocation11 + $0x5a]]
      %v3282 = vstv %s3281
      %v3283 = vmul.f32 %v3282, %v260
      %v3284 = vmul.f32 %v3282, %v261
      %v3285 = vmul.f32 %v3282, %v262
      %v3286 = vmul.f32 %v3282, %v263
      %v3287 = vadd.f32 %v3277, %v3283
      %v3288 = vadd.f32 %v3278, %v3284
      %v3289 = vadd.f32 %v3279, %v3285
      %v3290 = vadd.f32 %v3280, %v3286
      %s3291 = sld [smem:[#allocation11 + $0x5b]]
      %v3292 = vstv %s3291
      %v3293 = vmul.f32 %v3292, %v260
      %v3294 = vmul.f32 %v3292, %v261
      %v3295 = vmul.f32 %v3292, %v262
      %v3296 = vmul.f32 %v3292, %v263
      %v3301 = vrot.slane %v3293, 1
      %v3302 = vrot.slane %v3294, 1
      %v3303 = vsel %vm287, %v3301, %v3302
      %v3304 = vrot.slane %v3295, 1
      %v3305 = vsel %vm287, %v3302, %v3304
      %v3306 = vrot.slane %v3296, 1
      %v3307 = vsel %vm287, %v3304, %v3306
      %v3312 = vadd.f32 %v3287, %v3303
      %v3313 = vadd.f32 %v3288, %v3305
      %v3314 = vadd.f32 %v3289, %v3307
      %v3315 = vadd.f32 %v3290, %v3306
      %s3316 = sld [smem:[#allocation11 + $0x5c]]
      %v3317 = vstv %s3316
      %v3318 = vmul.f32 %v3317, %v260
      %v3319 = vmul.f32 %v3317, %v261
      %v3320 = vmul.f32 %v3317, %v262
      %v3321 = vmul.f32 %v3317, %v263
      %v3326 = vrot.slane %v3318, 2
      %v3327 = vrot.slane %v3319, 2
      %v3328 = vsel %vm313, %v3326, %v3327
      %v3329 = vrot.slane %v3320, 2
      %v3330 = vsel %vm313, %v3327, %v3329
      %v3331 = vrot.slane %v3321, 2
      %v3332 = vsel %vm313, %v3329, %v3331
      %v3337 = vadd.f32 %v3312, %v3328
      %v3338 = vadd.f32 %v3313, %v3330
      %v3339 = vadd.f32 %v3314, %v3332
      %v3340 = vadd.f32 %v3315, %v3331
      %s3341 = sld [smem:[#allocation11 + $0x5d]]
      %v3342 = vstv %s3341
      %v3343 = vmul.f32 %v3342, %v260
      %v3344 = vmul.f32 %v3342, %v261
      %v3345 = vmul.f32 %v3342, %v262
      %v3346 = vmul.f32 %v3342, %v263
      %v3351 = vrot.slane %v3343, 3
      %v3352 = vrot.slane %v3344, 3
      %v3353 = vsel %vm1325, %v3351, %v3352
      %v3354 = vrot.slane %v3345, 3
      %v3355 = vsel %vm1325, %v3352, %v3354
      %v3356 = vrot.slane %v3346, 3
      %v3357 = vsel %vm1325, %v3354, %v3356
      %v3362 = vadd.f32 %v3337, %v3353
      %v3363 = vadd.f32 %v3338, %v3355
      %v3364 = vadd.f32 %v3339, %v3357
      %v3365 = vadd.f32 %v3340, %v3356
      %s3366 = sld [smem:[#allocation11 + $0x5e]]
      %v3367 = vstv %s3366
      %v3368 = vmul.f32 %v3367, %v260
      %v3369 = vmul.f32 %v3367, %v261
      %v3370 = vmul.f32 %v3367, %v262
      %v3371 = vmul.f32 %v3367, %v263
      %v3376 = vrot.slane %v3368, 4
      %v3377 = vrot.slane %v3369, 4
      %v3378 = vsel %vm1351, %v3376, %v3377
      %v3379 = vrot.slane %v3370, 4
      %v3380 = vsel %vm1351, %v3377, %v3379
      %v3381 = vrot.slane %v3371, 4
      %v3382 = vsel %vm1351, %v3379, %v3381
      %v3387 = vadd.f32 %v3362, %v3378
      %v3388 = vadd.f32 %v3363, %v3380
      %v3389 = vadd.f32 %v3364, %v3382
      %v3390 = vadd.f32 %v3365, %v3381
      %s3391 = sld [smem:[#allocation11 + $0x5f]]
      %v3392 = vstv %s3391
      %v3393 = vmul.f32 %v3392, %v267
      %v3394 = vmul.f32 %v3392, %v268
      %v3395 = vmul.f32 %v3392, %v269
      %v3396 = vmul.f32 %v3392, %v270
      %v3397 = vadd.f32 %v3387, %v3393
      %v3398 = vadd.f32 %v3388, %v3394
      %v3399 = vadd.f32 %v3389, %v3395
      %v3400 = vadd.f32 %v3390, %v3396
      %s3401 = sld [smem:[#allocation11 + $0x60]]
      %v3402 = vstv %s3401
      %v3403 = vmul.f32 %v3402, %v267
      %v3404 = vmul.f32 %v3402, %v268
      %v3405 = vmul.f32 %v3402, %v269
      %v3406 = vmul.f32 %v3402, %v270
      %v3411 = vrot.slane %v3403, 1
      %v3412 = vrot.slane %v3404, 1
      %v3413 = vsel %vm287, %v3411, %v3412
      %v3414 = vrot.slane %v3405, 1
      %v3415 = vsel %vm287, %v3412, %v3414
      %v3416 = vrot.slane %v3406, 1
      %v3417 = vsel %vm287, %v3414, %v3416
      %v3422 = vadd.f32 %v3397, %v3413
      %v3423 = vadd.f32 %v3398, %v3415
      %v3424 = vadd.f32 %v3399, %v3417
      %v3425 = vadd.f32 %v3400, %v3416
      %s3426 = sld [smem:[#allocation11 + $0x61]]
      %v3427 = vstv %s3426
      %v3428 = vmul.f32 %v3427, %v267
      %v3429 = vmul.f32 %v3427, %v268
      %v3430 = vmul.f32 %v3427, %v269
      %v3431 = vmul.f32 %v3427, %v270
      %v3436 = vrot.slane %v3428, 2
      %v3437 = vrot.slane %v3429, 2
      %v3438 = vsel %vm313, %v3436, %v3437
      %v3439 = vrot.slane %v3430, 2
      %v3440 = vsel %vm313, %v3437, %v3439
      %v3441 = vrot.slane %v3431, 2
      %v3442 = vsel %vm313, %v3439, %v3441
      %v3447 = vadd.f32 %v3422, %v3438
      %v3448 = vadd.f32 %v3423, %v3440
      %v3449 = vadd.f32 %v3424, %v3442
      %v3450 = vadd.f32 %v3425, %v3441
      %s3451 = sld [smem:[#allocation11 + $0x62]]
      %v3452 = vstv %s3451
      %v3453 = vmul.f32 %v3452, %v267
      %v3454 = vmul.f32 %v3452, %v268
      %v3455 = vmul.f32 %v3452, %v269
      %v3456 = vmul.f32 %v3452, %v270
      %v3461 = vrot.slane %v3453, 3
      %v3462 = vrot.slane %v3454, 3
      %v3463 = vsel %vm1325, %v3461, %v3462
      %v3464 = vrot.slane %v3455, 3
      %v3465 = vsel %vm1325, %v3462, %v3464
      %v3466 = vrot.slane %v3456, 3
      %v3467 = vsel %vm1325, %v3464, %v3466
      %v3472 = vadd.f32 %v3447, %v3463
      %v3473 = vadd.f32 %v3448, %v3465
      %v3474 = vadd.f32 %v3449, %v3467
      %v3475 = vadd.f32 %v3450, %v3466
      %s3476 = sld [smem:[#allocation11 + $0x63]]
      %v3477 = vstv %s3476
      %v3478 = vmul.f32 %v3477, %v267
      %v3479 = vmul.f32 %v3477, %v268
      %v3480 = vmul.f32 %v3477, %v269
      %v3481 = vmul.f32 %v3477, %v270
      %v3486 = vrot.slane %v3478, 4
      %v3487 = vrot.slane %v3479, 4
      %v3488 = vsel %vm1351, %v3486, %v3487
      %v3489 = vrot.slane %v3480, 4
      %v3490 = vsel %vm1351, %v3487, %v3489
      %v3491 = vrot.slane %v3481, 4
      %v3492 = vsel %vm1351, %v3489, %v3491
      %v3497 = vadd.f32 %v3472, %v3488
      %v3498 = vadd.f32 %v3473, %v3490
      %v3499 = vadd.f32 %v3474, %v3492
      %v3500 = vadd.f32 %v3475, %v3491
      %s3501 = sld [smem:[#allocation13 + $0x3]]
      %v3502 = vstv %s3501
      %v3503 = vadd.f32 %v3497, %v3502
      %v3504 = vadd.f32 %v3498, %v3502
      %v3505 = vadd.f32 %v3499, %v3502
      %v3506 = vadd.f32 %v3500, %v3502
      %v3507 = vmax.f32 %v3503, 0.0
      %v3508 = vmax.f32 %v3504, 0.0
      %v3509 = vmax.f32 %v3505, 0.0
      %v3510 = vmax.f32 %v3506, 0.0
      %s3511 = sld [smem:[#allocation14 + $0x3]]
      %v3512 = vstv %s3511
      %v3513 = vmul.f32 %v3512, %v3507
      %v3514 = vmul.f32 %v3512, %v3508
      %v3515 = vmul.f32 %v3512, %v3509
      %v3516 = vmul.f32 %v3512, %v3510
      %v3517 = vadd.f32 %v2951, %v3513
      %v3518 = vadd.f32 %v2952, %v3514
      %v3519 = vadd.f32 %v2953, %v3515
      %v3520 = vadd.f32 %v2954, %v3516
      %s3521 = sld [smem:[#allocation11 + $0x64]]
      %v3522 = vstv %s3521
      %v3523 = vmul.f32 %v3522, %v239
      %v3524 = vmul.f32 %v3522, %v240
      %v3525 = vmul.f32 %v3522, %v241
      %v3526 = vmul.f32 %v3522, %v242
      %s3527 = sld [smem:[#allocation11 + $0x65]]
      %v3528 = vstv %s3527
      %v3529 = vmul.f32 %v3528, %v239
      %v3530 = vmul.f32 %v3528, %v240
      %v3531 = vmul.f32 %v3528, %v241
      %v3532 = vmul.f32 %v3528, %v242
      %v3537 = vrot.slane %v3529, 1
      %v3538 = vrot.slane %v3530, 1
      %v3539 = vsel %vm287, %v3537, %v3538
      %v3540 = vrot.slane %v3531, 1
      %v3541 = vsel %vm287, %v3538, %v3540
      %v3542 = vrot.slane %v3532, 1
      %v3543 = vsel %vm287, %v3540, %v3542
      %v3548 = vadd.f32 %v3523, %v3539
      %v3549 = vadd.f32 %v3524, %v3541
      %v3550 = vadd.f32 %v3525, %v3543
      %v3551 = vadd.f32 %v3526, %v3542
      %s3552 = sld [smem:[#allocation11 + $0x66]]
      %v3553 = vstv %s3552
      %v3554 = vmul.f32 %v3553, %v239
      %v3555 = vmul.f32 %v3553, %v240
      %v3556 = vmul.f32 %v3553, %v241
      %v3557 = vmul.f32 %v3553, %v242
      %v3562 = vrot.slane %v3554, 2
      %v3563 = vrot.slane %v3555, 2
      %v3564 = vsel %vm313, %v3562, %v3563
      %v3565 = vrot.slane %v3556, 2
      %v3566 = vsel %vm313, %v3563, %v3565
      %v3567 = vrot.slane %v3557, 2
      %v3568 = vsel %vm313, %v3565, %v3567
      %v3573 = vadd.f32 %v3548, %v3564
      %v3574 = vadd.f32 %v3549, %v3566
      %v3575 = vadd.f32 %v3550, %v3568
      %v3576 = vadd.f32 %v3551, %v3567
      %s3577 = sld [smem:[#allocation11 + $0x67]]
      %v3578 = vstv %s3577
      %v3579 = vmul.f32 %v3578, %v239
      %v3580 = vmul.f32 %v3578, %v240
      %v3581 = vmul.f32 %v3578, %v241
      %v3582 = vmul.f32 %v3578, %v242
      %v3587 = vrot.slane %v3579, 3
      %v3588 = vrot.slane %v3580, 3
      %v3589 = vsel %vm1325, %v3587, %v3588
      %v3590 = vrot.slane %v3581, 3
      %v3591 = vsel %vm1325, %v3588, %v3590
      %v3592 = vrot.slane %v3582, 3
      %v3593 = vsel %vm1325, %v3590, %v3592
      %v3598 = vadd.f32 %v3573, %v3589
      %v3599 = vadd.f32 %v3574, %v3591
      %v3600 = vadd.f32 %v3575, %v3593
      %v3601 = vadd.f32 %v3576, %v3592
      %s3602 = sld [smem:[#allocation11 + $0x68]]
      %v3603 = vstv %s3602
      %v3604 = vmul.f32 %v3603, %v239
      %v3605 = vmul.f32 %v3603, %v240
      %v3606 = vmul.f32 %v3603, %v241
      %v3607 = vmul.f32 %v3603, %v242
      %v3612 = vrot.slane %v3604, 4
      %v3613 = vrot.slane %v3605, 4
      %v3614 = vsel %vm1351, %v3612, %v3613
      %v3615 = vrot.slane %v3606, 4
      %v3616 = vsel %vm1351, %v3613, %v3615
      %v3617 = vrot.slane %v3607, 4
      %v3618 = vsel %vm1351, %v3615, %v3617
      %v3623 = vadd.f32 %v3598, %v3614
      %v3624 = vadd.f32 %v3599, %v3616
      %v3625 = vadd.f32 %v3600, %v3618
      %v3626 = vadd.f32 %v3601, %v3617
      %s3627 = sld [smem:[#allocation11 + $0x69]]
      %v3628 = vstv %s3627
      %v3629 = vmul.f32 %v3628, %v246
      %v3630 = vmul.f32 %v3628, %v247
      %v3631 = vmul.f32 %v3628, %v248
      %v3632 = vmul.f32 %v3628, %v249
      %v3633 = vadd.f32 %v3623, %v3629
      %v3634 = vadd.f32 %v3624, %v3630
      %v3635 = vadd.f32 %v3625, %v3631
      %v3636 = vadd.f32 %v3626, %v3632
      %s3637 = sld [smem:[#allocation11 + $0x6a]]
      %v3638 = vstv %s3637
      %v3639 = vmul.f32 %v3638, %v246
      %v3640 = vmul.f32 %v3638, %v247
      %v3641 = vmul.f32 %v3638, %v248
      %v3642 = vmul.f32 %v3638, %v249
      %v3647 = vrot.slane %v3639, 1
      %v3648 = vrot.slane %v3640, 1
      %v3649 = vsel %vm287, %v3647, %v3648
      %v3650 = vrot.slane %v3641, 1
      %v3651 = vsel %vm287, %v3648, %v3650
      %v3652 = vrot.slane %v3642, 1
      %v3653 = vsel %vm287, %v3650, %v3652
      %v3658 = vadd.f32 %v3633, %v3649
      %v3659 = vadd.f32 %v3634, %v3651
      %v3660 = vadd.f32 %v3635, %v3653
      %v3661 = vadd.f32 %v3636, %v3652
      %s3662 = sld [smem:[#allocation11 + $0x6b]]
      %v3663 = vstv %s3662
      %v3664 = vmul.f32 %v3663, %v246
      %v3665 = vmul.f32 %v3663, %v247
      %v3666 = vmul.f32 %v3663, %v248
      %v3667 = vmul.f32 %v3663, %v249
      %v3672 = vrot.slane %v3664, 2
      %v3673 = vrot.slane %v3665, 2
      %v3674 = vsel %vm313, %v3672, %v3673
      %v3675 = vrot.slane %v3666, 2
      %v3676 = vsel %vm313, %v3673, %v3675
      %v3677 = vrot.slane %v3667, 2
      %v3678 = vsel %vm313, %v3675, %v3677
      %v3683 = vadd.f32 %v3658, %v3674
      %v3684 = vadd.f32 %v3659, %v3676
      %v3685 = vadd.f32 %v3660, %v3678
      %v3686 = vadd.f32 %v3661, %v3677
      %s3687 = sld [smem:[#allocation11 + $0x6c]]
      %v3688 = vstv %s3687
      %v3689 = vmul.f32 %v3688, %v246
      %v3690 = vmul.f32 %v3688, %v247
      %v3691 = vmul.f32 %v3688, %v248
      %v3692 = vmul.f32 %v3688, %v249
      %v3697 = vrot.slane %v3689, 3
      %v3698 = vrot.slane %v3690, 3
      %v3699 = vsel %vm1325, %v3697, %v3698
      %v3700 = vrot.slane %v3691, 3
      %v3701 = vsel %vm1325, %v3698, %v3700
      %v3702 = vrot.slane %v3692, 3
      %v3703 = vsel %vm1325, %v3700, %v3702
      %v3708 = vadd.f32 %v3683, %v3699
      %v3709 = vadd.f32 %v3684, %v3701
      %v3710 = vadd.f32 %v3685, %v3703
      %v3711 = vadd.f32 %v3686, %v3702
      %s3712 = sld [smem:[#allocation11 + $0x6d]]
      %v3713 = vstv %s3712
      %v3714 = vmul.f32 %v3713, %v246
      %v3715 = vmul.f32 %v3713, %v247
      %v3716 = vmul.f32 %v3713, %v248
      %v3717 = vmul.f32 %v3713, %v249
      %v3722 = vrot.slane %v3714, 4
      %v3723 = vrot.slane %v3715, 4
      %v3724 = vsel %vm1351, %v3722, %v3723
      %v3725 = vrot.slane %v3716, 4
      %v3726 = vsel %vm1351, %v3723, %v3725
      %v3727 = vrot.slane %v3717, 4
      %v3728 = vsel %vm1351, %v3725, %v3727
      %v3733 = vadd.f32 %v3708, %v3724
      %v3734 = vadd.f32 %v3709, %v3726
      %v3735 = vadd.f32 %v3710, %v3728
      %v3736 = vadd.f32 %v3711, %v3727
      %s3737 = sld [smem:[#allocation11 + $0x6e]]
      %v3738 = vstv %s3737
      %v3739 = vmul.f32 %v3738, %v253
      %v3740 = vmul.f32 %v3738, %v254
      %v3741 = vmul.f32 %v3738, %v255
      %v3742 = vmul.f32 %v3738, %v256
      %v3743 = vadd.f32 %v3733, %v3739
      %v3744 = vadd.f32 %v3734, %v3740
      %v3745 = vadd.f32 %v3735, %v3741
      %v3746 = vadd.f32 %v3736, %v3742
      %s3747 = sld [smem:[#allocation11 + $0x6f]]
      %v3748 = vstv %s3747
      %v3749 = vmul.f32 %v3748, %v253
      %v3750 = vmul.f32 %v3748, %v254
      %v3751 = vmul.f32 %v3748, %v255
      %v3752 = vmul.f32 %v3748, %v256
      %v3757 = vrot.slane %v3749, 1
      %v3758 = vrot.slane %v3750, 1
      %v3759 = vsel %vm287, %v3757, %v3758
      %v3760 = vrot.slane %v3751, 1
      %v3761 = vsel %vm287, %v3758, %v3760
      %v3762 = vrot.slane %v3752, 1
      %v3763 = vsel %vm287, %v3760, %v3762
      %v3768 = vadd.f32 %v3743, %v3759
      %v3769 = vadd.f32 %v3744, %v3761
      %v3770 = vadd.f32 %v3745, %v3763
      %v3771 = vadd.f32 %v3746, %v3762
      %s3772 = sld [smem:[#allocation11 + $0x70]]
      %v3773 = vstv %s3772
      %v3774 = vmul.f32 %v3773, %v253
      %v3775 = vmul.f32 %v3773, %v254
      %v3776 = vmul.f32 %v3773, %v255
      %v3777 = vmul.f32 %v3773, %v256
      %v3782 = vrot.slane %v3774, 2
      %v3783 = vrot.slane %v3775, 2
      %v3784 = vsel %vm313, %v3782, %v3783
      %v3785 = vrot.slane %v3776, 2
      %v3786 = vsel %vm313, %v3783, %v3785
      %v3787 = vrot.slane %v3777, 2
      %v3788 = vsel %vm313, %v3785, %v3787
      %v3793 = vadd.f32 %v3768, %v3784
      %v3794 = vadd.f32 %v3769, %v3786
      %v3795 = vadd.f32 %v3770, %v3788
      %v3796 = vadd.f32 %v3771, %v3787
      %s3797 = sld [smem:[#allocation11 + $0x71]]
      %v3798 = vstv %s3797
      %v3799 = vmul.f32 %v3798, %v253
      %v3800 = vmul.f32 %v3798, %v254
      %v3801 = vmul.f32 %v3798, %v255
      %v3802 = vmul.f32 %v3798, %v256
      %v3807 = vrot.slane %v3799, 3
      %v3808 = vrot.slane %v3800, 3
      %v3809 = vsel %vm1325, %v3807, %v3808
      %v3810 = vrot.slane %v3801, 3
      %v3811 = vsel %vm1325, %v3808, %v3810
      %v3812 = vrot.slane %v3802, 3
      %v3813 = vsel %vm1325, %v3810, %v3812
      %v3818 = vadd.f32 %v3793, %v3809
      %v3819 = vadd.f32 %v3794, %v3811
      %v3820 = vadd.f32 %v3795, %v3813
      %v3821 = vadd.f32 %v3796, %v3812
      %s3822 = sld [smem:[#allocation11 + $0x72]]
      %v3823 = vstv %s3822
      %v3824 = vmul.f32 %v3823, %v253
      %v3825 = vmul.f32 %v3823, %v254
      %v3826 = vmul.f32 %v3823, %v255
      %v3827 = vmul.f32 %v3823, %v256
      %v3832 = vrot.slane %v3824, 4
      %v3833 = vrot.slane %v3825, 4
      %v3834 = vsel %vm1351, %v3832, %v3833
      %v3835 = vrot.slane %v3826, 4
      %v3836 = vsel %vm1351, %v3833, %v3835
      %v3837 = vrot.slane %v3827, 4
      %v3838 = vsel %vm1351, %v3835, %v3837
      %v3843 = vadd.f32 %v3818, %v3834
      %v3844 = vadd.f32 %v3819, %v3836
      %v3845 = vadd.f32 %v3820, %v3838
      %v3846 = vadd.f32 %v3821, %v3837
      %s3847 = sld [smem:[#allocation11 + $0x73]]
      %v3848 = vstv %s3847
      %v3849 = vmul.f32 %v3848, %v260
      %v3850 = vmul.f32 %v3848, %v261
      %v3851 = vmul.f32 %v3848, %v262
      %v3852 = vmul.f32 %v3848, %v263
      %v3853 = vadd.f32 %v3843, %v3849
      %v3854 = vadd.f32 %v3844, %v3850
      %v3855 = vadd.f32 %v3845, %v3851
      %v3856 = vadd.f32 %v3846, %v3852
      %s3857 = sld [smem:[#allocation11 + $0x74]]
      %v3858 = vstv %s3857
      %v3859 = vmul.f32 %v3858, %v260
      %v3860 = vmul.f32 %v3858, %v261
      %v3861 = vmul.f32 %v3858, %v262
      %v3862 = vmul.f32 %v3858, %v263
      %v3867 = vrot.slane %v3859, 1
      %v3868 = vrot.slane %v3860, 1
      %v3869 = vsel %vm287, %v3867, %v3868
      %v3870 = vrot.slane %v3861, 1
      %v3871 = vsel %vm287, %v3868, %v3870
      %v3872 = vrot.slane %v3862, 1
      %v3873 = vsel %vm287, %v3870, %v3872
      %v3878 = vadd.f32 %v3853, %v3869
      %v3879 = vadd.f32 %v3854, %v3871
      %v3880 = vadd.f32 %v3855, %v3873
      %v3881 = vadd.f32 %v3856, %v3872
      %s3882 = sld [smem:[#allocation11 + $0x75]]
      %v3883 = vstv %s3882
      %v3884 = vmul.f32 %v3883, %v260
      %v3885 = vmul.f32 %v3883, %v261
      %v3886 = vmul.f32 %v3883, %v262
      %v3887 = vmul.f32 %v3883, %v263
      %v3892 = vrot.slane %v3884, 2
      %v3893 = vrot.slane %v3885, 2
      %v3894 = vsel %vm313, %v3892, %v3893
      %v3895 = vrot.slane %v3886, 2
      %v3896 = vsel %vm313, %v3893, %v3895
      %v3897 = vrot.slane %v3887, 2
      %v3898 = vsel %vm313, %v3895, %v3897
      %v3903 = vadd.f32 %v3878, %v3894
      %v3904 = vadd.f32 %v3879, %v3896
      %v3905 = vadd.f32 %v3880, %v3898
      %v3906 = vadd.f32 %v3881, %v3897
      %s3907 = sld [smem:[#allocation11 + $0x76]]
      %v3908 = vstv %s3907
      %v3909 = vmul.f32 %v3908, %v260
      %v3910 = vmul.f32 %v3908, %v261
      %v3911 = vmul.f32 %v3908, %v262
      %v3912 = vmul.f32 %v3908, %v263
      %v3917 = vrot.slane %v3909, 3
      %v3918 = vrot.slane %v3910, 3
      %v3919 = vsel %vm1325, %v3917, %v3918
      %v3920 = vrot.slane %v3911, 3
      %v3921 = vsel %vm1325, %v3918, %v3920
      %v3922 = vrot.slane %v3912, 3
      %v3923 = vsel %vm1325, %v3920, %v3922
      %v3928 = vadd.f32 %v3903, %v3919
      %v3929 = vadd.f32 %v3904, %v3921
      %v3930 = vadd.f32 %v3905, %v3923
      %v3931 = vadd.f32 %v3906, %v3922
      %s3932 = sld [smem:[#allocation11 + $0x77]]
      %v3933 = vstv %s3932
      %v3934 = vmul.f32 %v3933, %v260
      %v3935 = vmul.f32 %v3933, %v261
      %v3936 = vmul.f32 %v3933, %v262
      %v3937 = vmul.f32 %v3933, %v263
      %v3942 = vrot.slane %v3934, 4
      %v3943 = vrot.slane %v3935, 4
      %v3944 = vsel %vm1351, %v3942, %v3943
      %v3945 = vrot.slane %v3936, 4
      %v3946 = vsel %vm1351, %v3943, %v3945
      %v3947 = vrot.slane %v3937, 4
      %v3948 = vsel %vm1351, %v3945, %v3947
      %v3953 = vadd.f32 %v3928, %v3944
      %v3954 = vadd.f32 %v3929, %v3946
      %v3955 = vadd.f32 %v3930, %v3948
      %v3956 = vadd.f32 %v3931, %v3947
      %s3957 = sld [smem:[#allocation11 + $0x78]]
      %v3958 = vstv %s3957
      %v3959 = vmul.f32 %v3958, %v267
      %v3960 = vmul.f32 %v3958, %v268
      %v3961 = vmul.f32 %v3958, %v269
      %v3962 = vmul.f32 %v3958, %v270
      %v3963 = vadd.f32 %v3953, %v3959
      %v3964 = vadd.f32 %v3954, %v3960
      %v3965 = vadd.f32 %v3955, %v3961
      %v3966 = vadd.f32 %v3956, %v3962
      %s3967 = sld [smem:[#allocation11 + $0x79]]
      %v3968 = vstv %s3967
      %v3969 = vmul.f32 %v3968, %v267
      %v3970 = vmul.f32 %v3968, %v268
      %v3971 = vmul.f32 %v3968, %v269
      %v3972 = vmul.f32 %v3968, %v270
      %v3977 = vrot.slane %v3969, 1
      %v3978 = vrot.slane %v3970, 1
      %v3979 = vsel %vm287, %v3977, %v3978
      %v3980 = vrot.slane %v3971, 1
      %v3981 = vsel %vm287, %v3978, %v3980
      %v3982 = vrot.slane %v3972, 1
      %v3983 = vsel %vm287, %v3980, %v3982
      %v3988 = vadd.f32 %v3963, %v3979
      %v3989 = vadd.f32 %v3964, %v3981
      %v3990 = vadd.f32 %v3965, %v3983
      %v3991 = vadd.f32 %v3966, %v3982
      %s3992 = sld [smem:[#allocation11 + $0x7a]]
      %v3993 = vstv %s3992
      %v3994 = vmul.f32 %v3993, %v267
      %v3995 = vmul.f32 %v3993, %v268
      %v3996 = vmul.f32 %v3993, %v269
      %v3997 = vmul.f32 %v3993, %v270
      %v4002 = vrot.slane %v3994, 2
      %v4003 = vrot.slane %v3995, 2
      %v4004 = vsel %vm313, %v4002, %v4003
      %v4005 = vrot.slane %v3996, 2
      %v4006 = vsel %vm313, %v4003, %v4005
      %v4007 = vrot.slane %v3997, 2
      %v4008 = vsel %vm313, %v4005, %v4007
      %v4013 = vadd.f32 %v3988, %v4004
      %v4014 = vadd.f32 %v3989, %v4006
      %v4015 = vadd.f32 %v3990, %v4008
      %v4016 = vadd.f32 %v3991, %v4007
      %s4017 = sld [smem:[#allocation11 + $0x7b]]
      %v4018 = vstv %s4017
      %v4019 = vmul.f32 %v4018, %v267
      %v4020 = vmul.f32 %v4018, %v268
      %v4021 = vmul.f32 %v4018, %v269
      %v4022 = vmul.f32 %v4018, %v270
      %v4027 = vrot.slane %v4019, 3
      %v4028 = vrot.slane %v4020, 3
      %v4029 = vsel %vm1325, %v4027, %v4028
      %v4030 = vrot.slane %v4021, 3
      %v4031 = vsel %vm1325, %v4028, %v4030
      %v4032 = vrot.slane %v4022, 3
      %v4033 = vsel %vm1325, %v4030, %v4032
      %v4038 = vadd.f32 %v4013, %v4029
      %v4039 = vadd.f32 %v4014, %v4031
      %v4040 = vadd.f32 %v4015, %v4033
      %v4041 = vadd.f32 %v4016, %v4032
      %s4042 = sld [smem:[#allocation11 + $0x7c]]
      %v4043 = vstv %s4042
      %v4044 = vmul.f32 %v4043, %v267
      %v4045 = vmul.f32 %v4043, %v268
      %v4046 = vmul.f32 %v4043, %v269
      %v4047 = vmul.f32 %v4043, %v270
      %v4052 = vrot.slane %v4044, 4
      %v4053 = vrot.slane %v4045, 4
      %v4054 = vsel %vm1351, %v4052, %v4053
      %v4055 = vrot.slane %v4046, 4
      %v4056 = vsel %vm1351, %v4053, %v4055
      %v4057 = vrot.slane %v4047, 4
      %v4058 = vsel %vm1351, %v4055, %v4057
      %v4063 = vadd.f32 %v4038, %v4054
      %v4064 = vadd.f32 %v4039, %v4056
      %v4065 = vadd.f32 %v4040, %v4058
      %v4066 = vadd.f32 %v4041, %v4057
      %s4067 = sld [smem:[#allocation13 + $0x4]]
      %v4068 = vstv %s4067
      %v4069 = vadd.f32 %v4063, %v4068
      %v4070 = vadd.f32 %v4064, %v4068
      %v4071 = vadd.f32 %v4065, %v4068
      %v4072 = vadd.f32 %v4066, %v4068
      %v4073 = vmax.f32 %v4069, 0.0
      %v4074 = vmax.f32 %v4070, 0.0
      %v4075 = vmax.f32 %v4071, 0.0
      %v4076 = vmax.f32 %v4072, 0.0
      %s4077 = sld [smem:[#allocation14 + $0x4]]
      %v4078 = vstv %s4077
      %v4079 = vmul.f32 %v4078, %v4073
      %v4080 = vmul.f32 %v4078, %v4074
      %v4081 = vmul.f32 %v4078, %v4075
      %v4082 = vmul.f32 %v4078, %v4076
      %v4083 = vadd.f32 %v3517, %v4079
      %v4084 = vadd.f32 %v3518, %v4080
      %v4085 = vadd.f32 %v3519, %v4081
      %v4086 = vadd.f32 %v3520, %v4082
      %s4087 = sld [smem:[#allocation11 + $0x7d]]
      %v4088 = vstv %s4087
      %v4089 = vmul.f32 %v4088, %v239
      %v4090 = vmul.f32 %v4088, %v240
      %v4091 = vmul.f32 %v4088, %v241
      %v4092 = vmul.f32 %v4088, %v242
      %s4093 = sld [smem:[#allocation11 + $0x7e]]
      %v4094 = vstv %s4093
      %v4095 = vmul.f32 %v4094, %v239
      %v4096 = vmul.f32 %v4094, %v240
      %v4097 = vmul.f32 %v4094, %v241
      %v4098 = vmul.f32 %v4094, %v242
      %v4103 = vrot.slane %v4095, 1
      %v4104 = vrot.slane %v4096, 1
      %v4105 = vsel %vm287, %v4103, %v4104
      %v4106 = vrot.slane %v4097, 1
      %v4107 = vsel %vm287, %v4104, %v4106
      %v4108 = vrot.slane %v4098, 1
      %v4109 = vsel %vm287, %v4106, %v4108
      %v4114 = vadd.f32 %v4089, %v4105
      %v4115 = vadd.f32 %v4090, %v4107
      %v4116 = vadd.f32 %v4091, %v4109
      %v4117 = vadd.f32 %v4092, %v4108
      %s4118 = sld [smem:[#allocation11 + $0x7f]]
      %v4119 = vstv %s4118
      %v4120 = vmul.f32 %v4119, %v239
      %v4121 = vmul.f32 %v4119, %v240
      %v4122 = vmul.f32 %v4119, %v241
      %v4123 = vmul.f32 %v4119, %v242
      %v4128 = vrot.slane %v4120, 2
      %v4129 = vrot.slane %v4121, 2
      %v4130 = vsel %vm313, %v4128, %v4129
      %v4131 = vrot.slane %v4122, 2
      %v4132 = vsel %vm313, %v4129, %v4131
      %v4133 = vrot.slane %v4123, 2
      %v4134 = vsel %vm313, %v4131, %v4133
      %v4139 = vadd.f32 %v4114, %v4130
      %v4140 = vadd.f32 %v4115, %v4132
      %v4141 = vadd.f32 %v4116, %v4134
      %v4142 = vadd.f32 %v4117, %v4133
      %s4143 = sld [smem:[#allocation11 + $0x80]]
      %v4144 = vstv %s4143
      %v4145 = vmul.f32 %v4144, %v239
      %v4146 = vmul.f32 %v4144, %v240
      %v4147 = vmul.f32 %v4144, %v241
      %v4148 = vmul.f32 %v4144, %v242
      %v4153 = vrot.slane %v4145, 3
      %v4154 = vrot.slane %v4146, 3
      %v4155 = vsel %vm1325, %v4153, %v4154
      %v4156 = vrot.slane %v4147, 3
      %v4157 = vsel %vm1325, %v4154, %v4156
      %v4158 = vrot.slane %v4148, 3
      %v4159 = vsel %vm1325, %v4156, %v4158
      %v4164 = vadd.f32 %v4139, %v4155
      %v4165 = vadd.f32 %v4140, %v4157
      %v4166 = vadd.f32 %v4141, %v4159
      %v4167 = vadd.f32 %v4142, %v4158
      %s4168 = sld [smem:[#allocation11 + $0x81]]
      %v4169 = vstv %s4168
      %v4170 = vmul.f32 %v4169, %v239
      %v4171 = vmul.f32 %v4169, %v240
      %v4172 = vmul.f32 %v4169, %v241
      %v4173 = vmul.f32 %v4169, %v242
      %v4178 = vrot.slane %v4170, 4
      %v4179 = vrot.slane %v4171, 4
      %v4180 = vsel %vm1351, %v4178, %v4179
      %v4181 = vrot.slane %v4172, 4
      %v4182 = vsel %vm1351, %v4179, %v4181
      %v4183 = vrot.slane %v4173, 4
      %v4184 = vsel %vm1351, %v4181, %v4183
      %v4189 = vadd.f32 %v4164, %v4180
      %v4190 = vadd.f32 %v4165, %v4182
      %v4191 = vadd.f32 %v4166, %v4184
      %v4192 = vadd.f32 %v4167, %v4183
      %s4193 = sld [smem:[#allocation11 + $0x82]]
      %v4194 = vstv %s4193
      %v4195 = vmul.f32 %v4194, %v246
      %v4196 = vmul.f32 %v4194, %v247
      %v4197 = vmul.f32 %v4194, %v248
      %v4198 = vmul.f32 %v4194, %v249
      %v4199 = vadd.f32 %v4189, %v4195
      %v4200 = vadd.f32 %v4190, %v4196
      %v4201 = vadd.f32 %v4191, %v4197
      %v4202 = vadd.f32 %v4192, %v4198
      %s4203 = sld [smem:[#allocation11 + $0x83]]
      %v4204 = vstv %s4203
      %v4205 = vmul.f32 %v4204, %v246
      %v4206 = vmul.f32 %v4204, %v247
      %v4207 = vmul.f32 %v4204, %v248
      %v4208 = vmul.f32 %v4204, %v249
      %v4213 = vrot.slane %v4205, 1
      %v4214 = vrot.slane %v4206, 1
      %v4215 = vsel %vm287, %v4213, %v4214
      %v4216 = vrot.slane %v4207, 1
      %v4217 = vsel %vm287, %v4214, %v4216
      %v4218 = vrot.slane %v4208, 1
      %v4219 = vsel %vm287, %v4216, %v4218
      %v4224 = vadd.f32 %v4199, %v4215
      %v4225 = vadd.f32 %v4200, %v4217
      %v4226 = vadd.f32 %v4201, %v4219
      %v4227 = vadd.f32 %v4202, %v4218
      %s4228 = sld [smem:[#allocation11 + $0x84]]
      %v4229 = vstv %s4228
      %v4230 = vmul.f32 %v4229, %v246
      %v4231 = vmul.f32 %v4229, %v247
      %v4232 = vmul.f32 %v4229, %v248
      %v4233 = vmul.f32 %v4229, %v249
      %v4238 = vrot.slane %v4230, 2
      %v4239 = vrot.slane %v4231, 2
      %v4240 = vsel %vm313, %v4238, %v4239
      %v4241 = vrot.slane %v4232, 2
      %v4242 = vsel %vm313, %v4239, %v4241
      %v4243 = vrot.slane %v4233, 2
      %v4244 = vsel %vm313, %v4241, %v4243
      %v4249 = vadd.f32 %v4224, %v4240
      %v4250 = vadd.f32 %v4225, %v4242
      %v4251 = vadd.f32 %v4226, %v4244
      %v4252 = vadd.f32 %v4227, %v4243
      %s4253 = sld [smem:[#allocation11 + $0x85]]
      %v4254 = vstv %s4253
      %v4255 = vmul.f32 %v4254, %v246
      %v4256 = vmul.f32 %v4254, %v247
      %v4257 = vmul.f32 %v4254, %v248
      %v4258 = vmul.f32 %v4254, %v249
      %v4263 = vrot.slane %v4255, 3
      %v4264 = vrot.slane %v4256, 3
      %v4265 = vsel %vm1325, %v4263, %v4264
      %v4266 = vrot.slane %v4257, 3
      %v4267 = vsel %vm1325, %v4264, %v4266
      %v4268 = vrot.slane %v4258, 3
      %v4269 = vsel %vm1325, %v4266, %v4268
      %v4274 = vadd.f32 %v4249, %v4265
      %v4275 = vadd.f32 %v4250, %v4267
      %v4276 = vadd.f32 %v4251, %v4269
      %v4277 = vadd.f32 %v4252, %v4268
      %s4278 = sld [smem:[#allocation11 + $0x86]]
      %v4279 = vstv %s4278
      %v4280 = vmul.f32 %v4279, %v246
      %v4281 = vmul.f32 %v4279, %v247
      %v4282 = vmul.f32 %v4279, %v248
      %v4283 = vmul.f32 %v4279, %v249
      %v4288 = vrot.slane %v4280, 4
      %v4289 = vrot.slane %v4281, 4
      %v4290 = vsel %vm1351, %v4288, %v4289
      %v4291 = vrot.slane %v4282, 4
      %v4292 = vsel %vm1351, %v4289, %v4291
      %v4293 = vrot.slane %v4283, 4
      %v4294 = vsel %vm1351, %v4291, %v4293
      %v4299 = vadd.f32 %v4274, %v4290
      %v4300 = vadd.f32 %v4275, %v4292
      %v4301 = vadd.f32 %v4276, %v4294
      %v4302 = vadd.f32 %v4277, %v4293
      %s4303 = sld [smem:[#allocation11 + $0x87]]
      %v4304 = vstv %s4303
      %v4305 = vmul.f32 %v4304, %v253
      %v4306 = vmul.f32 %v4304, %v254
      %v4307 = vmul.f32 %v4304, %v255
      %v4308 = vmul.f32 %v4304, %v256
      %v4309 = vadd.f32 %v4299, %v4305
      %v4310 = vadd.f32 %v4300, %v4306
      %v4311 = vadd.f32 %v4301, %v4307
      %v4312 = vadd.f32 %v4302, %v4308
      %s4313 = sld [smem:[#allocation11 + $0x88]]
      %v4314 = vstv %s4313
      %v4315 = vmul.f32 %v4314, %v253
      %v4316 = vmul.f32 %v4314, %v254
      %v4317 = vmul.f32 %v4314, %v255
      %v4318 = vmul.f32 %v4314, %v256
      %v4323 = vrot.slane %v4315, 1
      %v4324 = vrot.slane %v4316, 1
      %v4325 = vsel %vm287, %v4323, %v4324
      %v4326 = vrot.slane %v4317, 1
      %v4327 = vsel %vm287, %v4324, %v4326
      %v4328 = vrot.slane %v4318, 1
      %v4329 = vsel %vm287, %v4326, %v4328
      %v4334 = vadd.f32 %v4309, %v4325
      %v4335 = vadd.f32 %v4310, %v4327
      %v4336 = vadd.f32 %v4311, %v4329
      %v4337 = vadd.f32 %v4312, %v4328
      %s4338 = sld [smem:[#allocation11 + $0x89]]
      %v4339 = vstv %s4338
      %v4340 = vmul.f32 %v4339, %v253
      %v4341 = vmul.f32 %v4339, %v254
      %v4342 = vmul.f32 %v4339, %v255
      %v4343 = vmul.f32 %v4339, %v256
      %v4348 = vrot.slane %v4340, 2
      %v4349 = vrot.slane %v4341, 2
      %v4350 = vsel %vm313, %v4348, %v4349
      %v4351 = vrot.slane %v4342, 2
      %v4352 = vsel %vm313, %v4349, %v4351
      %v4353 = vrot.slane %v4343, 2
      %v4354 = vsel %vm313, %v4351, %v4353
      %v4359 = vadd.f32 %v4334, %v4350
      %v4360 = vadd.f32 %v4335, %v4352
      %v4361 = vadd.f32 %v4336, %v4354
      %v4362 = vadd.f32 %v4337, %v4353
      %s4363 = sld [smem:[#allocation11 + $0x8a]]
      %v4364 = vstv %s4363
      %v4365 = vmul.f32 %v4364, %v253
      %v4366 = vmul.f32 %v4364, %v254
      %v4367 = vmul.f32 %v4364, %v255
      %v4368 = vmul.f32 %v4364, %v256
      %v4373 = vrot.slane %v4365, 3
      %v4374 = vrot.slane %v4366, 3
      %v4375 = vsel %vm1325, %v4373, %v4374
      %v4376 = vrot.slane %v4367, 3
      %v4377 = vsel %vm1325, %v4374, %v4376
      %v4378 = vrot.slane %v4368, 3
      %v4379 = vsel %vm1325, %v4376, %v4378
      %v4384 = vadd.f32 %v4359, %v4375
      %v4385 = vadd.f32 %v4360, %v4377
      %v4386 = vadd.f32 %v4361, %v4379
      %v4387 = vadd.f32 %v4362, %v4378
      %s4388 = sld [smem:[#allocation11 + $0x8b]]
      %v4389 = vstv %s4388
      %v4390 = vmul.f32 %v4389, %v253
      %v4391 = vmul.f32 %v4389, %v254
      %v4392 = vmul.f32 %v4389, %v255
      %v4393 = vmul.f32 %v4389, %v256
      %v4398 = vrot.slane %v4390, 4
      %v4399 = vrot.slane %v4391, 4
      %v4400 = vsel %vm1351, %v4398, %v4399
      %v4401 = vrot.slane %v4392, 4
      %v4402 = vsel %vm1351, %v4399, %v4401
      %v4403 = vrot.slane %v4393, 4
      %v4404 = vsel %vm1351, %v4401, %v4403
      %v4409 = vadd.f32 %v4384, %v4400
      %v4410 = vadd.f32 %v4385, %v4402
      %v4411 = vadd.f32 %v4386, %v4404
      %v4412 = vadd.f32 %v4387, %v4403
      %s4413 = sld [smem:[#allocation11 + $0x8c]]
      %v4414 = vstv %s4413
      %v4415 = vmul.f32 %v4414, %v260
      %v4416 = vmul.f32 %v4414, %v261
      %v4417 = vmul.f32 %v4414, %v262
      %v4418 = vmul.f32 %v4414, %v263
      %v4419 = vadd.f32 %v4409, %v4415
      %v4420 = vadd.f32 %v4410, %v4416
      %v4421 = vadd.f32 %v4411, %v4417
      %v4422 = vadd.f32 %v4412, %v4418
      %s4423 = sld [smem:[#allocation11 + $0x8d]]
      %v4424 = vstv %s4423
      %v4425 = vmul.f32 %v4424, %v260
      %v4426 = vmul.f32 %v4424, %v261
      %v4427 = vmul.f32 %v4424, %v262
      %v4428 = vmul.f32 %v4424, %v263
      %v4433 = vrot.slane %v4425, 1
      %v4434 = vrot.slane %v4426, 1
      %v4435 = vsel %vm287, %v4433, %v4434
      %v4436 = vrot.slane %v4427, 1
      %v4437 = vsel %vm287, %v4434, %v4436
      %v4438 = vrot.slane %v4428, 1
      %v4439 = vsel %vm287, %v4436, %v4438
      %v4444 = vadd.f32 %v4419, %v4435
      %v4445 = vadd.f32 %v4420, %v4437
      %v4446 = vadd.f32 %v4421, %v4439
      %v4447 = vadd.f32 %v4422, %v4438
      %s4448 = sld [smem:[#allocation11 + $0x8e]]
      %v4449 = vstv %s4448
      %v4450 = vmul.f32 %v4449, %v260
      %v4451 = vmul.f32 %v4449, %v261
      %v4452 = vmul.f32 %v4449, %v262
      %v4453 = vmul.f32 %v4449, %v263
      %v4458 = vrot.slane %v4450, 2
      %v4459 = vrot.slane %v4451, 2
      %v4460 = vsel %vm313, %v4458, %v4459
      %v4461 = vrot.slane %v4452, 2
      %v4462 = vsel %vm313, %v4459, %v4461
      %v4463 = vrot.slane %v4453, 2
      %v4464 = vsel %vm313, %v4461, %v4463
      %v4469 = vadd.f32 %v4444, %v4460
      %v4470 = vadd.f32 %v4445, %v4462
      %v4471 = vadd.f32 %v4446, %v4464
      %v4472 = vadd.f32 %v4447, %v4463
      %s4473 = sld [smem:[#allocation11 + $0x8f]]
      %v4474 = vstv %s4473
      %v4475 = vmul.f32 %v4474, %v260
      %v4476 = vmul.f32 %v4474, %v261
      %v4477 = vmul.f32 %v4474, %v262
      %v4478 = vmul.f32 %v4474, %v263
      %v4483 = vrot.slane %v4475, 3
      %v4484 = vrot.slane %v4476, 3
      %v4485 = vsel %vm1325, %v4483, %v4484
      %v4486 = vrot.slane %v4477, 3
      %v4487 = vsel %vm1325, %v4484, %v4486
      %v4488 = vrot.slane %v4478, 3
      %v4489 = vsel %vm1325, %v4486, %v4488
      %v4494 = vadd.f32 %v4469, %v4485
      %v4495 = vadd.f32 %v4470, %v4487
      %v4496 = vadd.f32 %v4471, %v4489
      %v4497 = vadd.f32 %v4472, %v4488
      %s4498 = sld [smem:[#allocation11 + $0x90]]
      %v4499 = vstv %s4498
      %v4500 = vmul.f32 %v4499, %v260
      %v4501 = vmul.f32 %v4499, %v261
      %v4502 = vmul.f32 %v4499, %v262
      %v4503 = vmul.f32 %v4499, %v263
      %v4508 = vrot.slane %v4500, 4
      %v4509 = vrot.slane %v4501, 4
      %v4510 = vsel %vm1351, %v4508, %v4509
      %v4511 = vrot.slane %v4502, 4
      %v4512 = vsel %vm1351, %v4509, %v4511
      %v4513 = vrot.slane %v4503, 4
      %v4514 = vsel %vm1351, %v4511, %v4513
      %v4519 = vadd.f32 %v4494, %v4510
      %v4520 = vadd.f32 %v4495, %v4512
      %v4521 = vadd.f32 %v4496, %v4514
      %v4522 = vadd.f32 %v4497, %v4513
      %s4523 = sld [smem:[#allocation11 + $0x91]]
      %v4524 = vstv %s4523
      %v4525 = vmul.f32 %v4524, %v267
      %v4526 = vmul.f32 %v4524, %v268
      %v4527 = vmul.f32 %v4524, %v269
      %v4528 = vmul.f32 %v4524, %v270
      %v4529 = vadd.f32 %v4519, %v4525
      %v4530 = vadd.f32 %v4520, %v4526
      %v4531 = vadd.f32 %v4521, %v4527
      %v4532 = vadd.f32 %v4522, %v4528
      %s4533 = sld [smem:[#allocation11 + $0x92]]
      %v4534 = vstv %s4533
      %v4535 = vmul.f32 %v4534, %v267
      %v4536 = vmul.f32 %v4534, %v268
      %v4537 = vmul.f32 %v4534, %v269
      %v4538 = vmul.f32 %v4534, %v270
      %v4543 = vrot.slane %v4535, 1
      %v4544 = vrot.slane %v4536, 1
      %v4545 = vsel %vm287, %v4543, %v4544
      %v4546 = vrot.slane %v4537, 1
      %v4547 = vsel %vm287, %v4544, %v4546
      %v4548 = vrot.slane %v4538, 1
      %v4549 = vsel %vm287, %v4546, %v4548
      %v4554 = vadd.f32 %v4529, %v4545
      %v4555 = vadd.f32 %v4530, %v4547
      %v4556 = vadd.f32 %v4531, %v4549
      %v4557 = vadd.f32 %v4532, %v4548
      %s4558 = sld [smem:[#allocation11 + $0x93]]
      %v4559 = vstv %s4558
      %v4560 = vmul.f32 %v4559, %v267
      %v4561 = vmul.f32 %v4559, %v268
      %v4562 = vmul.f32 %v4559, %v269
      %v4563 = vmul.f32 %v4559, %v270
      %v4568 = vrot.slane %v4560, 2
      %v4569 = vrot.slane %v4561, 2
      %v4570 = vsel %vm313, %v4568, %v4569
      %v4571 = vrot.slane %v4562, 2
      %v4572 = vsel %vm313, %v4569, %v4571
      %v4573 = vrot.slane %v4563, 2
      %v4574 = vsel %vm313, %v4571, %v4573
      %v4579 = vadd.f32 %v4554, %v4570
      %v4580 = vadd.f32 %v4555, %v4572
      %v4581 = vadd.f32 %v4556, %v4574
      %v4582 = vadd.f32 %v4557, %v4573
      %s4583 = sld [smem:[#allocation11 + $0x94]]
      %v4584 = vstv %s4583
      %v4585 = vmul.f32 %v4584, %v267
      %v4586 = vmul.f32 %v4584, %v268
      %v4587 = vmul.f32 %v4584, %v269
      %v4588 = vmul.f32 %v4584, %v270
      %v4593 = vrot.slane %v4585, 3
      %v4594 = vrot.slane %v4586, 3
      %v4595 = vsel %vm1325, %v4593, %v4594
      %v4596 = vrot.slane %v4587, 3
      %v4597 = vsel %vm1325, %v4594, %v4596
      %v4598 = vrot.slane %v4588, 3
      %v4599 = vsel %vm1325, %v4596, %v4598
      %v4604 = vadd.f32 %v4579, %v4595
      %v4605 = vadd.f32 %v4580, %v4597
      %v4606 = vadd.f32 %v4581, %v4599
      %v4607 = vadd.f32 %v4582, %v4598
      %s4608 = sld [smem:[#allocation11 + $0x95]]
      %v4609 = vstv %s4608
      %v4610 = vmul.f32 %v4609, %v267
      %v4611 = vmul.f32 %v4609, %v268
      %v4612 = vmul.f32 %v4609, %v269
      %v4613 = vmul.f32 %v4609, %v270
      %v4618 = vrot.slane %v4610, 4
      %v4619 = vrot.slane %v4611, 4
      %v4620 = vsel %vm1351, %v4618, %v4619
      %v4621 = vrot.slane %v4612, 4
      %v4622 = vsel %vm1351, %v4619, %v4621
      %v4623 = vrot.slane %v4613, 4
      %v4624 = vsel %vm1351, %v4621, %v4623
      %v4629 = vadd.f32 %v4604, %v4620
      %v4630 = vadd.f32 %v4605, %v4622
      %v4631 = vadd.f32 %v4606, %v4624
      %v4632 = vadd.f32 %v4607, %v4623
      %s4633 = sld [smem:[#allocation13 + $0x5]]
      %v4634 = vstv %s4633
      %v4635 = vadd.f32 %v4629, %v4634
      %v4636 = vadd.f32 %v4630, %v4634
      %v4637 = vadd.f32 %v4631, %v4634
      %v4638 = vadd.f32 %v4632, %v4634
      %v4639 = vmax.f32 %v4635, 0.0
      %v4640 = vmax.f32 %v4636, 0.0
      %v4641 = vmax.f32 %v4637, 0.0
      %v4642 = vmax.f32 %v4638, 0.0
      %s4643 = sld [smem:[#allocation14 + $0x5]]
      %v4644 = vstv %s4643
      %v4645 = vmul.f32 %v4644, %v4639
      %v4646 = vmul.f32 %v4644, %v4640
      %v4647 = vmul.f32 %v4644, %v4641
      %v4648 = vmul.f32 %v4644, %v4642
      %v4649 = vadd.f32 %v4083, %v4645
      %v4650 = vadd.f32 %v4084, %v4646
      %v4651 = vadd.f32 %v4085, %v4647
      %v4652 = vadd.f32 %v4086, %v4648
      %s4653 = sld [smem:[#allocation11 + $0x96]]
      %v4654 = vstv %s4653
      %v4655 = vmul.f32 %v4654, %v239
      %v4656 = vmul.f32 %v4654, %v240
      %v4657 = vmul.f32 %v4654, %v241
      %v4658 = vmul.f32 %v4654, %v242
      %s4659 = sld [smem:[#allocation11 + $0x97]]
      %v4660 = vstv %s4659
      %v4661 = vmul.f32 %v4660, %v239
      %v4662 = vmul.f32 %v4660, %v240
      %v4663 = vmul.f32 %v4660, %v241
      %v4664 = vmul.f32 %v4660, %v242
      %v4669 = vrot.slane %v4661, 1
      %v4670 = vrot.slane %v4662, 1
      %v4671 = vsel %vm287, %v4669, %v4670
      %v4672 = vrot.slane %v4663, 1
      %v4673 = vsel %vm287, %v4670, %v4672
      %v4674 = vrot.slane %v4664, 1
      %v4675 = vsel %vm287, %v4672, %v4674
      %v4680 = vadd.f32 %v4655, %v4671
      %v4681 = vadd.f32 %v4656, %v4673
      %v4682 = vadd.f32 %v4657, %v4675
      %v4683 = vadd.f32 %v4658, %v4674
      %s4684 = sld [smem:[#allocation11 + $0x98]]
      %v4685 = vstv %s4684
      %v4686 = vmul.f32 %v4685, %v239
      %v4687 = vmul.f32 %v4685, %v240
      %v4688 = vmul.f32 %v4685, %v241
      %v4689 = vmul.f32 %v4685, %v242
      %v4694 = vrot.slane %v4686, 2
      %v4695 = vrot.slane %v4687, 2
      %v4696 = vsel %vm313, %v4694, %v4695
      %v4697 = vrot.slane %v4688, 2
      %v4698 = vsel %vm313, %v4695, %v4697
      %v4699 = vrot.slane %v4689, 2
      %v4700 = vsel %vm313, %v4697, %v4699
      %v4705 = vadd.f32 %v4680, %v4696
      %v4706 = vadd.f32 %v4681, %v4698
      %v4707 = vadd.f32 %v4682, %v4700
      %v4708 = vadd.f32 %v4683, %v4699
      %s4709 = sld [smem:[#allocation11 + $0x99]]
      %v4710 = vstv %s4709
      %v4711 = vmul.f32 %v4710, %v239
      %v4712 = vmul.f32 %v4710, %v240
      %v4713 = vmul.f32 %v4710, %v241
      %v4714 = vmul.f32 %v4710, %v242
      %v4719 = vrot.slane %v4711, 3
      %v4720 = vrot.slane %v4712, 3
      %v4721 = vsel %vm1325, %v4719, %v4720
      %v4722 = vrot.slane %v4713, 3
      %v4723 = vsel %vm1325, %v4720, %v4722
      %v4724 = vrot.slane %v4714, 3
      %v4725 = vsel %vm1325, %v4722, %v4724
      %v4730 = vadd.f32 %v4705, %v4721
      %v4731 = vadd.f32 %v4706, %v4723
      %v4732 = vadd.f32 %v4707, %v4725
      %v4733 = vadd.f32 %v4708, %v4724
      %s4734 = sld [smem:[#allocation11 + $0x9a]]
      %v4735 = vstv %s4734
      %v4736 = vmul.f32 %v4735, %v239
      %v4737 = vmul.f32 %v4735, %v240
      %v4738 = vmul.f32 %v4735, %v241
      %v4739 = vmul.f32 %v4735, %v242
      %v4744 = vrot.slane %v4736, 4
      %v4745 = vrot.slane %v4737, 4
      %v4746 = vsel %vm1351, %v4744, %v4745
      %v4747 = vrot.slane %v4738, 4
      %v4748 = vsel %vm1351, %v4745, %v4747
      %v4749 = vrot.slane %v4739, 4
      %v4750 = vsel %vm1351, %v4747, %v4749
      %v4755 = vadd.f32 %v4730, %v4746
      %v4756 = vadd.f32 %v4731, %v4748
      %v4757 = vadd.f32 %v4732, %v4750
      %v4758 = vadd.f32 %v4733, %v4749
      %s4759 = sld [smem:[#allocation11 + $0x9b]]
      %v4760 = vstv %s4759
      %v4761 = vmul.f32 %v4760, %v246
      %v4762 = vmul.f32 %v4760, %v247
      %v4763 = vmul.f32 %v4760, %v248
      %v4764 = vmul.f32 %v4760, %v249
      %v4765 = vadd.f32 %v4755, %v4761
      %v4766 = vadd.f32 %v4756, %v4762
      %v4767 = vadd.f32 %v4757, %v4763
      %v4768 = vadd.f32 %v4758, %v4764
      %s4769 = sld [smem:[#allocation11 + $0x9c]]
      %v4770 = vstv %s4769
      %v4771 = vmul.f32 %v4770, %v246
      %v4772 = vmul.f32 %v4770, %v247
      %v4773 = vmul.f32 %v4770, %v248
      %v4774 = vmul.f32 %v4770, %v249
      %v4779 = vrot.slane %v4771, 1
      %v4780 = vrot.slane %v4772, 1
      %v4781 = vsel %vm287, %v4779, %v4780
      %v4782 = vrot.slane %v4773, 1
      %v4783 = vsel %vm287, %v4780, %v4782
      %v4784 = vrot.slane %v4774, 1
      %v4785 = vsel %vm287, %v4782, %v4784
      %v4790 = vadd.f32 %v4765, %v4781
      %v4791 = vadd.f32 %v4766, %v4783
      %v4792 = vadd.f32 %v4767, %v4785
      %v4793 = vadd.f32 %v4768, %v4784
      %s4794 = sld [smem:[#allocation11 + $0x9d]]
      %v4795 = vstv %s4794
      %v4796 = vmul.f32 %v4795, %v246
      %v4797 = vmul.f32 %v4795, %v247
      %v4798 = vmul.f32 %v4795, %v248
      %v4799 = vmul.f32 %v4795, %v249
      %v4804 = vrot.slane %v4796, 2
      %v4805 = vrot.slane %v4797, 2
      %v4806 = vsel %vm313, %v4804, %v4805
      %v4807 = vrot.slane %v4798, 2
      %v4808 = vsel %vm313, %v4805, %v4807
      %v4809 = vrot.slane %v4799, 2
      %v4810 = vsel %vm313, %v4807, %v4809
      %v4815 = vadd.f32 %v4790, %v4806
      %v4816 = vadd.f32 %v4791, %v4808
      %v4817 = vadd.f32 %v4792, %v4810
      %v4818 = vadd.f32 %v4793, %v4809
      %s4819 = sld [smem:[#allocation11 + $0x9e]]
      %v4820 = vstv %s4819
      %v4821 = vmul.f32 %v4820, %v246
      %v4822 = vmul.f32 %v4820, %v247
      %v4823 = vmul.f32 %v4820, %v248
      %v4824 = vmul.f32 %v4820, %v249
      %v4829 = vrot.slane %v4821, 3
      %v4830 = vrot.slane %v4822, 3
      %v4831 = vsel %vm1325, %v4829, %v4830
      %v4832 = vrot.slane %v4823, 3
      %v4833 = vsel %vm1325, %v4830, %v4832
      %v4834 = vrot.slane %v4824, 3
      %v4835 = vsel %vm1325, %v4832, %v4834
      %v4840 = vadd.f32 %v4815, %v4831
      %v4841 = vadd.f32 %v4816, %v4833
      %v4842 = vadd.f32 %v4817, %v4835
      %v4843 = vadd.f32 %v4818, %v4834
      %s4844 = sld [smem:[#allocation11 + $0x9f]]
      %v4845 = vstv %s4844
      %v4846 = vmul.f32 %v4845, %v246
      %v4847 = vmul.f32 %v4845, %v247
      %v4848 = vmul.f32 %v4845, %v248
      %v4849 = vmul.f32 %v4845, %v249
      %v4854 = vrot.slane %v4846, 4
      %v4855 = vrot.slane %v4847, 4
      %v4856 = vsel %vm1351, %v4854, %v4855
      %v4857 = vrot.slane %v4848, 4
      %v4858 = vsel %vm1351, %v4855, %v4857
      %v4859 = vrot.slane %v4849, 4
      %v4860 = vsel %vm1351, %v4857, %v4859
      %v4865 = vadd.f32 %v4840, %v4856
      %v4866 = vadd.f32 %v4841, %v4858
      %v4867 = vadd.f32 %v4842, %v4860
      %v4868 = vadd.f32 %v4843, %v4859
      %s4869 = sld [smem:[#allocation11 + $0xa0]]
      %v4870 = vstv %s4869
      %v4871 = vmul.f32 %v4870, %v253
      %v4872 = vmul.f32 %v4870, %v254
      %v4873 = vmul.f32 %v4870, %v255
      %v4874 = vmul.f32 %v4870, %v256
      %v4875 = vadd.f32 %v4865, %v4871
      %v4876 = vadd.f32 %v4866, %v4872
      %v4877 = vadd.f32 %v4867, %v4873
      %v4878 = vadd.f32 %v4868, %v4874
      %s4879 = sld [smem:[#allocation11 + $0xa1]]
      %v4880 = vstv %s4879
      %v4881 = vmul.f32 %v4880, %v253
      %v4882 = vmul.f32 %v4880, %v254
      %v4883 = vmul.f32 %v4880, %v255
      %v4884 = vmul.f32 %v4880, %v256
      %v4889 = vrot.slane %v4881, 1
      %v4890 = vrot.slane %v4882, 1
      %v4891 = vsel %vm287, %v4889, %v4890
      %v4892 = vrot.slane %v4883, 1
      %v4893 = vsel %vm287, %v4890, %v4892
      %v4894 = vrot.slane %v4884, 1
      %v4895 = vsel %vm287, %v4892, %v4894
      %v4900 = vadd.f32 %v4875, %v4891
      %v4901 = vadd.f32 %v4876, %v4893
      %v4902 = vadd.f32 %v4877, %v4895
      %v4903 = vadd.f32 %v4878, %v4894
      %s4904 = sld [smem:[#allocation11 + $0xa2]]
      %v4905 = vstv %s4904
      %v4906 = vmul.f32 %v4905, %v253
      %v4907 = vmul.f32 %v4905, %v254
      %v4908 = vmul.f32 %v4905, %v255
      %v4909 = vmul.f32 %v4905, %v256
      %v4914 = vrot.slane %v4906, 2
      %v4915 = vrot.slane %v4907, 2
      %v4916 = vsel %vm313, %v4914, %v4915
      %v4917 = vrot.slane %v4908, 2
      %v4918 = vsel %vm313, %v4915, %v4917
      %v4919 = vrot.slane %v4909, 2
      %v4920 = vsel %vm313, %v4917, %v4919
      %v4925 = vadd.f32 %v4900, %v4916
      %v4926 = vadd.f32 %v4901, %v4918
      %v4927 = vadd.f32 %v4902, %v4920
      %v4928 = vadd.f32 %v4903, %v4919
      %s4929 = sld [smem:[#allocation11 + $0xa3]]
      %v4930 = vstv %s4929
      %v4931 = vmul.f32 %v4930, %v253
      %v4932 = vmul.f32 %v4930, %v254
      %v4933 = vmul.f32 %v4930, %v255
      %v4934 = vmul.f32 %v4930, %v256
      %v4939 = vrot.slane %v4931, 3
      %v4940 = vrot.slane %v4932, 3
      %v4941 = vsel %vm1325, %v4939, %v4940
      %v4942 = vrot.slane %v4933, 3
      %v4943 = vsel %vm1325, %v4940, %v4942
      %v4944 = vrot.slane %v4934, 3
      %v4945 = vsel %vm1325, %v4942, %v4944
      %v4950 = vadd.f32 %v4925, %v4941
      %v4951 = vadd.f32 %v4926, %v4943
      %v4952 = vadd.f32 %v4927, %v4945
      %v4953 = vadd.f32 %v4928, %v4944
      %s4954 = sld [smem:[#allocation11 + $0xa4]]
      %v4955 = vstv %s4954
      %v4956 = vmul.f32 %v4955, %v253
      %v4957 = vmul.f32 %v4955, %v254
      %v4958 = vmul.f32 %v4955, %v255
      %v4959 = vmul.f32 %v4955, %v256
      %v4964 = vrot.slane %v4956, 4
      %v4965 = vrot.slane %v4957, 4
      %v4966 = vsel %vm1351, %v4964, %v4965
      %v4967 = vrot.slane %v4958, 4
      %v4968 = vsel %vm1351, %v4965, %v4967
      %v4969 = vrot.slane %v4959, 4
      %v4970 = vsel %vm1351, %v4967, %v4969
      %v4975 = vadd.f32 %v4950, %v4966
      %v4976 = vadd.f32 %v4951, %v4968
      %v4977 = vadd.f32 %v4952, %v4970
      %v4978 = vadd.f32 %v4953, %v4969
      %s4979 = sld [smem:[#allocation11 + $0xa5]]
      %v4980 = vstv %s4979
      %v4981 = vmul.f32 %v4980, %v260
      %v4982 = vmul.f32 %v4980, %v261
      %v4983 = vmul.f32 %v4980, %v262
      %v4984 = vmul.f32 %v4980, %v263
      %v4985 = vadd.f32 %v4975, %v4981
      %v4986 = vadd.f32 %v4976, %v4982
      %v4987 = vadd.f32 %v4977, %v4983
      %v4988 = vadd.f32 %v4978, %v4984
      %s4989 = sld [smem:[#allocation11 + $0xa6]]
      %v4990 = vstv %s4989
      %v4991 = vmul.f32 %v4990, %v260
      %v4992 = vmul.f32 %v4990, %v261
      %v4993 = vmul.f32 %v4990, %v262
      %v4994 = vmul.f32 %v4990, %v263
      %v4999 = vrot.slane %v4991, 1
      %v5000 = vrot.slane %v4992, 1
      %v5001 = vsel %vm287, %v4999, %v5000
      %v5002 = vrot.slane %v4993, 1
      %v5003 = vsel %vm287, %v5000, %v5002
      %v5004 = vrot.slane %v4994, 1
      %v5005 = vsel %vm287, %v5002, %v5004
      %v5010 = vadd.f32 %v4985, %v5001
      %v5011 = vadd.f32 %v4986, %v5003
      %v5012 = vadd.f32 %v4987, %v5005
      %v5013 = vadd.f32 %v4988, %v5004
      %s5014 = sld [smem:[#allocation11 + $0xa7]]
      %v5015 = vstv %s5014
      %v5016 = vmul.f32 %v5015, %v260
      %v5017 = vmul.f32 %v5015, %v261
      %v5018 = vmul.f32 %v5015, %v262
      %v5019 = vmul.f32 %v5015, %v263
      %v5024 = vrot.slane %v5016, 2
      %v5025 = vrot.slane %v5017, 2
      %v5026 = vsel %vm313, %v5024, %v5025
      %v5027 = vrot.slane %v5018, 2
      %v5028 = vsel %vm313, %v5025, %v5027
      %v5029 = vrot.slane %v5019, 2
      %v5030 = vsel %vm313, %v5027, %v5029
      %v5035 = vadd.f32 %v5010, %v5026
      %v5036 = vadd.f32 %v5011, %v5028
      %v5037 = vadd.f32 %v5012, %v5030
      %v5038 = vadd.f32 %v5013, %v5029
      %s5039 = sld [smem:[#allocation11 + $0xa8]]
      %v5040 = vstv %s5039
      %v5041 = vmul.f32 %v5040, %v260
      %v5042 = vmul.f32 %v5040, %v261
      %v5043 = vmul.f32 %v5040, %v262
      %v5044 = vmul.f32 %v5040, %v263
      %v5049 = vrot.slane %v5041, 3
      %v5050 = vrot.slane %v5042, 3
      %v5051 = vsel %vm1325, %v5049, %v5050
      %v5052 = vrot.slane %v5043, 3
      %v5053 = vsel %vm1325, %v5050, %v5052
      %v5054 = vrot.slane %v5044, 3
      %v5055 = vsel %vm1325, %v5052, %v5054
      %v5060 = vadd.f32 %v5035, %v5051
      %v5061 = vadd.f32 %v5036, %v5053
      %v5062 = vadd.f32 %v5037, %v5055
      %v5063 = vadd.f32 %v5038, %v5054
      %s5064 = sld [smem:[#allocation11 + $0xa9]]
      %v5065 = vstv %s5064
      %v5066 = vmul.f32 %v5065, %v260
      %v5067 = vmul.f32 %v5065, %v261
      %v5068 = vmul.f32 %v5065, %v262
      %v5069 = vmul.f32 %v5065, %v263
      %v5074 = vrot.slane %v5066, 4
      %v5075 = vrot.slane %v5067, 4
      %v5076 = vsel %vm1351, %v5074, %v5075
      %v5077 = vrot.slane %v5068, 4
      %v5078 = vsel %vm1351, %v5075, %v5077
      %v5079 = vrot.slane %v5069, 4
      %v5080 = vsel %vm1351, %v5077, %v5079
      %v5085 = vadd.f32 %v5060, %v5076
      %v5086 = vadd.f32 %v5061, %v5078
      %v5087 = vadd.f32 %v5062, %v5080
      %v5088 = vadd.f32 %v5063, %v5079
      %s5089 = sld [smem:[#allocation11 + $0xaa]]
      %v5090 = vstv %s5089
      %v5091 = vmul.f32 %v5090, %v267
      %v5092 = vmul.f32 %v5090, %v268
      %v5093 = vmul.f32 %v5090, %v269
      %v5094 = vmul.f32 %v5090, %v270
      %v5095 = vadd.f32 %v5085, %v5091
      %v5096 = vadd.f32 %v5086, %v5092
      %v5097 = vadd.f32 %v5087, %v5093
      %v5098 = vadd.f32 %v5088, %v5094
      %s5099 = sld [smem:[#allocation11 + $0xab]]
      %v5100 = vstv %s5099
      %v5101 = vmul.f32 %v5100, %v267
      %v5102 = vmul.f32 %v5100, %v268
      %v5103 = vmul.f32 %v5100, %v269
      %v5104 = vmul.f32 %v5100, %v270
      %v5109 = vrot.slane %v5101, 1
      %v5110 = vrot.slane %v5102, 1
      %v5111 = vsel %vm287, %v5109, %v5110
      %v5112 = vrot.slane %v5103, 1
      %v5113 = vsel %vm287, %v5110, %v5112
      %v5114 = vrot.slane %v5104, 1
      %v5115 = vsel %vm287, %v5112, %v5114
      %v5120 = vadd.f32 %v5095, %v5111
      %v5121 = vadd.f32 %v5096, %v5113
      %v5122 = vadd.f32 %v5097, %v5115
      %v5123 = vadd.f32 %v5098, %v5114
      %s5124 = sld [smem:[#allocation11 + $0xac]]
      %v5125 = vstv %s5124
      %v5126 = vmul.f32 %v5125, %v267
      %v5127 = vmul.f32 %v5125, %v268
      %v5128 = vmul.f32 %v5125, %v269
      %v5129 = vmul.f32 %v5125, %v270
      %v5134 = vrot.slane %v5126, 2
      %v5135 = vrot.slane %v5127, 2
      %v5136 = vsel %vm313, %v5134, %v5135
      %v5137 = vrot.slane %v5128, 2
      %v5138 = vsel %vm313, %v5135, %v5137
      %v5139 = vrot.slane %v5129, 2
      %v5140 = vsel %vm313, %v5137, %v5139
      %v5145 = vadd.f32 %v5120, %v5136
      %v5146 = vadd.f32 %v5121, %v5138
      %v5147 = vadd.f32 %v5122, %v5140
      %v5148 = vadd.f32 %v5123, %v5139
      %s5149 = sld [smem:[#allocation11 + $0xad]]
      %v5150 = vstv %s5149
      %v5151 = vmul.f32 %v5150, %v267
      %v5152 = vmul.f32 %v5150, %v268
      %v5153 = vmul.f32 %v5150, %v269
      %v5154 = vmul.f32 %v5150, %v270
      %v5159 = vrot.slane %v5151, 3
      %v5160 = vrot.slane %v5152, 3
      %v5161 = vsel %vm1325, %v5159, %v5160
      %v5162 = vrot.slane %v5153, 3
      %v5163 = vsel %vm1325, %v5160, %v5162
      %v5164 = vrot.slane %v5154, 3
      %v5165 = vsel %vm1325, %v5162, %v5164
      %v5170 = vadd.f32 %v5145, %v5161
      %v5171 = vadd.f32 %v5146, %v5163
      %v5172 = vadd.f32 %v5147, %v5165
      %v5173 = vadd.f32 %v5148, %v5164
      %s5174 = sld [smem:[#allocation11 + $0xae]]
      %v5175 = vstv %s5174
      %v5176 = vmul.f32 %v5175, %v267
      %v5177 = vmul.f32 %v5175, %v268
      %v5178 = vmul.f32 %v5175, %v269
      %v5179 = vmul.f32 %v5175, %v270
      %v5184 = vrot.slane %v5176, 4
      %v5185 = vrot.slane %v5177, 4
      %v5186 = vsel %vm1351, %v5184, %v5185
      %v5187 = vrot.slane %v5178, 4
      %v5188 = vsel %vm1351, %v5185, %v5187
      %v5189 = vrot.slane %v5179, 4
      %v5190 = vsel %vm1351, %v5187, %v5189
      %v5195 = vadd.f32 %v5170, %v5186
      %v5196 = vadd.f32 %v5171, %v5188
      %v5197 = vadd.f32 %v5172, %v5190
      %v5198 = vadd.f32 %v5173, %v5189
      %s5199 = sld [smem:[#allocation13 + $0x6]]
      %v5200 = vstv %s5199
      %v5201 = vadd.f32 %v5195, %v5200
      %v5202 = vadd.f32 %v5196, %v5200
      %v5203 = vadd.f32 %v5197, %v5200
      %v5204 = vadd.f32 %v5198, %v5200
      %v5205 = vmax.f32 %v5201, 0.0
      %v5206 = vmax.f32 %v5202, 0.0
      %v5207 = vmax.f32 %v5203, 0.0
      %v5208 = vmax.f32 %v5204, 0.0
      %s5209 = sld [smem:[#allocation14 + $0x6]]
      %v5210 = vstv %s5209
      %v5211 = vmul.f32 %v5210, %v5205
      %v5212 = vmul.f32 %v5210, %v5206
      %v5213 = vmul.f32 %v5210, %v5207
      %v5214 = vmul.f32 %v5210, %v5208
      %v5215 = vadd.f32 %v4649, %v5211
      %v5216 = vadd.f32 %v4650, %v5212
      %v5217 = vadd.f32 %v4651, %v5213
      %v5218 = vadd.f32 %v4652, %v5214
      %s5219 = sld [smem:[#allocation11 + $0xaf]]
      %v5220 = vstv %s5219
      %v5221 = vmul.f32 %v5220, %v239
      %v5222 = vmul.f32 %v5220, %v240
      %v5223 = vmul.f32 %v5220, %v241
      %v5224 = vmul.f32 %v5220, %v242
      %s5225 = sld [smem:[#allocation11 + $0xb0]]
      %v5226 = vstv %s5225
      %v5227 = vmul.f32 %v5226, %v239
      %v5228 = vmul.f32 %v5226, %v240
      %v5229 = vmul.f32 %v5226, %v241
      %v5230 = vmul.f32 %v5226, %v242
      %v5235 = vrot.slane %v5227, 1
      %v5236 = vrot.slane %v5228, 1
      %v5237 = vsel %vm287, %v5235, %v5236
      %v5238 = vrot.slane %v5229, 1
      %v5239 = vsel %vm287, %v5236, %v5238
      %v5240 = vrot.slane %v5230, 1
      %v5241 = vsel %vm287, %v5238, %v5240
      %v5246 = vadd.f32 %v5221, %v5237
      %v5247 = vadd.f32 %v5222, %v5239
      %v5248 = vadd.f32 %v5223, %v5241
      %v5249 = vadd.f32 %v5224, %v5240
      %s5250 = sld [smem:[#allocation11 + $0xb1]]
      %v5251 = vstv %s5250
      %v5252 = vmul.f32 %v5251, %v239
      %v5253 = vmul.f32 %v5251, %v240
      %v5254 = vmul.f32 %v5251, %v241
      %v5255 = vmul.f32 %v5251, %v242
      %v5260 = vrot.slane %v5252, 2
      %v5261 = vrot.slane %v5253, 2
      %v5262 = vsel %vm313, %v5260, %v5261
      %v5263 = vrot.slane %v5254, 2
      %v5264 = vsel %vm313, %v5261, %v5263
      %v5265 = vrot.slane %v5255, 2
      %v5266 = vsel %vm313, %v5263, %v5265
      %v5271 = vadd.f32 %v5246, %v5262
      %v5272 = vadd.f32 %v5247, %v5264
      %v5273 = vadd.f32 %v5248, %v5266
      %v5274 = vadd.f32 %v5249, %v5265
      %s5275 = sld [smem:[#allocation11 + $0xb2]]
      %v5276 = vstv %s5275
      %v5277 = vmul.f32 %v5276, %v239
      %v5278 = vmul.f32 %v5276, %v240
      %v5279 = vmul.f32 %v5276, %v241
      %v5280 = vmul.f32 %v5276, %v242
      %v5285 = vrot.slane %v5277, 3
      %v5286 = vrot.slane %v5278, 3
      %v5287 = vsel %vm1325, %v5285, %v5286
      %v5288 = vrot.slane %v5279, 3
      %v5289 = vsel %vm1325, %v5286, %v5288
      %v5290 = vrot.slane %v5280, 3
      %v5291 = vsel %vm1325, %v5288, %v5290
      %v5296 = vadd.f32 %v5271, %v5287
      %v5297 = vadd.f32 %v5272, %v5289
      %v5298 = vadd.f32 %v5273, %v5291
      %v5299 = vadd.f32 %v5274, %v5290
      %s5300 = sld [smem:[#allocation11 + $0xb3]]
      %v5301 = vstv %s5300
      %v5302 = vmul.f32 %v5301, %v239
      %v5303 = vmul.f32 %v5301, %v240
      %v5304 = vmul.f32 %v5301, %v241
      %v5305 = vmul.f32 %v5301, %v242
      %v5310 = vrot.slane %v5302, 4
      %v5311 = vrot.slane %v5303, 4
      %v5312 = vsel %vm1351, %v5310, %v5311
      %v5313 = vrot.slane %v5304, 4
      %v5314 = vsel %vm1351, %v5311, %v5313
      %v5315 = vrot.slane %v5305, 4
      %v5316 = vsel %vm1351, %v5313, %v5315
      %v5321 = vadd.f32 %v5296, %v5312
      %v5322 = vadd.f32 %v5297, %v5314
      %v5323 = vadd.f32 %v5298, %v5316
      %v5324 = vadd.f32 %v5299, %v5315
      %s5325 = sld [smem:[#allocation11 + $0xb4]]
      %v5326 = vstv %s5325
      %v5327 = vmul.f32 %v5326, %v246
      %v5328 = vmul.f32 %v5326, %v247
      %v5329 = vmul.f32 %v5326, %v248
      %v5330 = vmul.f32 %v5326, %v249
      %v5331 = vadd.f32 %v5321, %v5327
      %v5332 = vadd.f32 %v5322, %v5328
      %v5333 = vadd.f32 %v5323, %v5329
      %v5334 = vadd.f32 %v5324, %v5330
      %s5335 = sld [smem:[#allocation11 + $0xb5]]
      %v5336 = vstv %s5335
      %v5337 = vmul.f32 %v5336, %v246
      %v5338 = vmul.f32 %v5336, %v247
      %v5339 = vmul.f32 %v5336, %v248
      %v5340 = vmul.f32 %v5336, %v249
      %v5345 = vrot.slane %v5337, 1
      %v5346 = vrot.slane %v5338, 1
      %v5347 = vsel %vm287, %v5345, %v5346
      %v5348 = vrot.slane %v5339, 1
      %v5349 = vsel %vm287, %v5346, %v5348
      %v5350 = vrot.slane %v5340, 1
      %v5351 = vsel %vm287, %v5348, %v5350
      %v5356 = vadd.f32 %v5331, %v5347
      %v5357 = vadd.f32 %v5332, %v5349
      %v5358 = vadd.f32 %v5333, %v5351
      %v5359 = vadd.f32 %v5334, %v5350
      %s5360 = sld [smem:[#allocation11 + $0xb6]]
      %v5361 = vstv %s5360
      %v5362 = vmul.f32 %v5361, %v246
      %v5363 = vmul.f32 %v5361, %v247
      %v5364 = vmul.f32 %v5361, %v248
      %v5365 = vmul.f32 %v5361, %v249
      %v5370 = vrot.slane %v5362, 2
      %v5371 = vrot.slane %v5363, 2
      %v5372 = vsel %vm313, %v5370, %v5371
      %v5373 = vrot.slane %v5364, 2
      %v5374 = vsel %vm313, %v5371, %v5373
      %v5375 = vrot.slane %v5365, 2
      %v5376 = vsel %vm313, %v5373, %v5375
      %v5381 = vadd.f32 %v5356, %v5372
      %v5382 = vadd.f32 %v5357, %v5374
      %v5383 = vadd.f32 %v5358, %v5376
      %v5384 = vadd.f32 %v5359, %v5375
      %s5385 = sld [smem:[#allocation11 + $0xb7]]
      %v5386 = vstv %s5385
      %v5387 = vmul.f32 %v5386, %v246
      %v5388 = vmul.f32 %v5386, %v247
      %v5389 = vmul.f32 %v5386, %v248
      %v5390 = vmul.f32 %v5386, %v249
      %v5395 = vrot.slane %v5387, 3
      %v5396 = vrot.slane %v5388, 3
      %v5397 = vsel %vm1325, %v5395, %v5396
      %v5398 = vrot.slane %v5389, 3
      %v5399 = vsel %vm1325, %v5396, %v5398
      %v5400 = vrot.slane %v5390, 3
      %v5401 = vsel %vm1325, %v5398, %v5400
      %v5406 = vadd.f32 %v5381, %v5397
      %v5407 = vadd.f32 %v5382, %v5399
      %v5408 = vadd.f32 %v5383, %v5401
      %v5409 = vadd.f32 %v5384, %v5400
      %s5410 = sld [smem:[#allocation11 + $0xb8]]
      %v5411 = vstv %s5410
      %v5412 = vmul.f32 %v5411, %v246
      %v5413 = vmul.f32 %v5411, %v247
      %v5414 = vmul.f32 %v5411, %v248
      %v5415 = vmul.f32 %v5411, %v249
      %v5420 = vrot.slane %v5412, 4
      %v5421 = vrot.slane %v5413, 4
      %v5422 = vsel %vm1351, %v5420, %v5421
      %v5423 = vrot.slane %v5414, 4
      %v5424 = vsel %vm1351, %v5421, %v5423
      %v5425 = vrot.slane %v5415, 4
      %v5426 = vsel %vm1351, %v5423, %v5425
      %v5431 = vadd.f32 %v5406, %v5422
      %v5432 = vadd.f32 %v5407, %v5424
      %v5433 = vadd.f32 %v5408, %v5426
      %v5434 = vadd.f32 %v5409, %v5425
      %s5435 = sld [smem:[#allocation11 + $0xb9]]
      %v5436 = vstv %s5435
      %v5437 = vmul.f32 %v5436, %v253
      %v5438 = vmul.f32 %v5436, %v254
      %v5439 = vmul.f32 %v5436, %v255
      %v5440 = vmul.f32 %v5436, %v256
      %v5441 = vadd.f32 %v5431, %v5437
      %v5442 = vadd.f32 %v5432, %v5438
      %v5443 = vadd.f32 %v5433, %v5439
      %v5444 = vadd.f32 %v5434, %v5440
      %s5445 = sld [smem:[#allocation11 + $0xba]]
      %v5446 = vstv %s5445
      %v5447 = vmul.f32 %v5446, %v253
      %v5448 = vmul.f32 %v5446, %v254
      %v5449 = vmul.f32 %v5446, %v255
      %v5450 = vmul.f32 %v5446, %v256
      %v5455 = vrot.slane %v5447, 1
      %v5456 = vrot.slane %v5448, 1
      %v5457 = vsel %vm287, %v5455, %v5456
      %v5458 = vrot.slane %v5449, 1
      %v5459 = vsel %vm287, %v5456, %v5458
      %v5460 = vrot.slane %v5450, 1
      %v5461 = vsel %vm287, %v5458, %v5460
      %v5466 = vadd.f32 %v5441, %v5457
      %v5467 = vadd.f32 %v5442, %v5459
      %v5468 = vadd.f32 %v5443, %v5461
      %v5469 = vadd.f32 %v5444, %v5460
      %s5470 = sld [smem:[#allocation11 + $0xbb]]
      %v5471 = vstv %s5470
      %v5472 = vmul.f32 %v5471, %v253
      %v5473 = vmul.f32 %v5471, %v254
      %v5474 = vmul.f32 %v5471, %v255
      %v5475 = vmul.f32 %v5471, %v256
      %v5480 = vrot.slane %v5472, 2
      %v5481 = vrot.slane %v5473, 2
      %v5482 = vsel %vm313, %v5480, %v5481
      %v5483 = vrot.slane %v5474, 2
      %v5484 = vsel %vm313, %v5481, %v5483
      %v5485 = vrot.slane %v5475, 2
      %v5486 = vsel %vm313, %v5483, %v5485
      %v5491 = vadd.f32 %v5466, %v5482
      %v5492 = vadd.f32 %v5467, %v5484
      %v5493 = vadd.f32 %v5468, %v5486
      %v5494 = vadd.f32 %v5469, %v5485
      %s5495 = sld [smem:[#allocation11 + $0xbc]]
      %v5496 = vstv %s5495
      %v5497 = vmul.f32 %v5496, %v253
      %v5498 = vmul.f32 %v5496, %v254
      %v5499 = vmul.f32 %v5496, %v255
      %v5500 = vmul.f32 %v5496, %v256
      %v5505 = vrot.slane %v5497, 3
      %v5506 = vrot.slane %v5498, 3
      %v5507 = vsel %vm1325, %v5505, %v5506
      %v5508 = vrot.slane %v5499, 3
      %v5509 = vsel %vm1325, %v5506, %v5508
      %v5510 = vrot.slane %v5500, 3
      %v5511 = vsel %vm1325, %v5508, %v5510
      %v5516 = vadd.f32 %v5491, %v5507
      %v5517 = vadd.f32 %v5492, %v5509
      %v5518 = vadd.f32 %v5493, %v5511
      %v5519 = vadd.f32 %v5494, %v5510
      %s5520 = sld [smem:[#allocation11 + $0xbd]]
      %v5521 = vstv %s5520
      %v5522 = vmul.f32 %v5521, %v253
      %v5523 = vmul.f32 %v5521, %v254
      %v5524 = vmul.f32 %v5521, %v255
      %v5525 = vmul.f32 %v5521, %v256
      %v5530 = vrot.slane %v5522, 4
      %v5531 = vrot.slane %v5523, 4
      %v5532 = vsel %vm1351, %v5530, %v5531
      %v5533 = vrot.slane %v5524, 4
      %v5534 = vsel %vm1351, %v5531, %v5533
      %v5535 = vrot.slane %v5525, 4
      %v5536 = vsel %vm1351, %v5533, %v5535
      %v5541 = vadd.f32 %v5516, %v5532
      %v5542 = vadd.f32 %v5517, %v5534
      %v5543 = vadd.f32 %v5518, %v5536
      %v5544 = vadd.f32 %v5519, %v5535
      %s5545 = sld [smem:[#allocation11 + $0xbe]]
      %v5546 = vstv %s5545
      %v5547 = vmul.f32 %v5546, %v260
      %v5548 = vmul.f32 %v5546, %v261
      %v5549 = vmul.f32 %v5546, %v262
      %v5550 = vmul.f32 %v5546, %v263
      %v5551 = vadd.f32 %v5541, %v5547
      %v5552 = vadd.f32 %v5542, %v5548
      %v5553 = vadd.f32 %v5543, %v5549
      %v5554 = vadd.f32 %v5544, %v5550
      %s5555 = sld [smem:[#allocation11 + $0xbf]]
      %v5556 = vstv %s5555
      %v5557 = vmul.f32 %v5556, %v260
      %v5558 = vmul.f32 %v5556, %v261
      %v5559 = vmul.f32 %v5556, %v262
      %v5560 = vmul.f32 %v5556, %v263
      %v5565 = vrot.slane %v5557, 1
      %v5566 = vrot.slane %v5558, 1
      %v5567 = vsel %vm287, %v5565, %v5566
      %v5568 = vrot.slane %v5559, 1
      %v5569 = vsel %vm287, %v5566, %v5568
      %v5570 = vrot.slane %v5560, 1
      %v5571 = vsel %vm287, %v5568, %v5570
      %v5576 = vadd.f32 %v5551, %v5567
      %v5577 = vadd.f32 %v5552, %v5569
      %v5578 = vadd.f32 %v5553, %v5571
      %v5579 = vadd.f32 %v5554, %v5570
      %s5580 = sld [smem:[#allocation11 + $0xc0]]
      %v5581 = vstv %s5580
      %v5582 = vmul.f32 %v5581, %v260
      %v5583 = vmul.f32 %v5581, %v261
      %v5584 = vmul.f32 %v5581, %v262
      %v5585 = vmul.f32 %v5581, %v263
      %v5590 = vrot.slane %v5582, 2
      %v5591 = vrot.slane %v5583, 2
      %v5592 = vsel %vm313, %v5590, %v5591
      %v5593 = vrot.slane %v5584, 2
      %v5594 = vsel %vm313, %v5591, %v5593
      %v5595 = vrot.slane %v5585, 2
      %v5596 = vsel %vm313, %v5593, %v5595
      %v5601 = vadd.f32 %v5576, %v5592
      %v5602 = vadd.f32 %v5577, %v5594
      %v5603 = vadd.f32 %v5578, %v5596
      %v5604 = vadd.f32 %v5579, %v5595
      %s5605 = sld [smem:[#allocation11 + $0xc1]]
      %v5606 = vstv %s5605
      %v5607 = vmul.f32 %v5606, %v260
      %v5608 = vmul.f32 %v5606, %v261
      %v5609 = vmul.f32 %v5606, %v262
      %v5610 = vmul.f32 %v5606, %v263
      %v5615 = vrot.slane %v5607, 3
      %v5616 = vrot.slane %v5608, 3
      %v5617 = vsel %vm1325, %v5615, %v5616
      %v5618 = vrot.slane %v5609, 3
      %v5619 = vsel %vm1325, %v5616, %v5618
      %v5620 = vrot.slane %v5610, 3
      %v5621 = vsel %vm1325, %v5618, %v5620
      %v5626 = vadd.f32 %v5601, %v5617
      %v5627 = vadd.f32 %v5602, %v5619
      %v5628 = vadd.f32 %v5603, %v5621
      %v5629 = vadd.f32 %v5604, %v5620
      %s5630 = sld [smem:[#allocation11 + $0xc2]]
      %v5631 = vstv %s5630
      %v5632 = vmul.f32 %v5631, %v260
      %v5633 = vmul.f32 %v5631, %v261
      %v5634 = vmul.f32 %v5631, %v262
      %v5635 = vmul.f32 %v5631, %v263
      %v5640 = vrot.slane %v5632, 4
      %v5641 = vrot.slane %v5633, 4
      %v5642 = vsel %vm1351, %v5640, %v5641
      %v5643 = vrot.slane %v5634, 4
      %v5644 = vsel %vm1351, %v5641, %v5643
      %v5645 = vrot.slane %v5635, 4
      %v5646 = vsel %vm1351, %v5643, %v5645
      %v5651 = vadd.f32 %v5626, %v5642
      %v5652 = vadd.f32 %v5627, %v5644
      %v5653 = vadd.f32 %v5628, %v5646
      %v5654 = vadd.f32 %v5629, %v5645
      %s5655 = sld [smem:[#allocation11 + $0xc3]]
      %v5656 = vstv %s5655
      %v5657 = vmul.f32 %v5656, %v267
      %v5658 = vmul.f32 %v5656, %v268
      %v5659 = vmul.f32 %v5656, %v269
      %v5660 = vmul.f32 %v5656, %v270
      %v5661 = vadd.f32 %v5651, %v5657
      %v5662 = vadd.f32 %v5652, %v5658
      %v5663 = vadd.f32 %v5653, %v5659
      %v5664 = vadd.f32 %v5654, %v5660
      %s5665 = sld [smem:[#allocation11 + $0xc4]]
      %v5666 = vstv %s5665
      %v5667 = vmul.f32 %v5666, %v267
      %v5668 = vmul.f32 %v5666, %v268
      %v5669 = vmul.f32 %v5666, %v269
      %v5670 = vmul.f32 %v5666, %v270
      %v5675 = vrot.slane %v5667, 1
      %v5676 = vrot.slane %v5668, 1
      %v5677 = vsel %vm287, %v5675, %v5676
      %v5678 = vrot.slane %v5669, 1
      %v5679 = vsel %vm287, %v5676, %v5678
      %v5680 = vrot.slane %v5670, 1
      %v5681 = vsel %vm287, %v5678, %v5680
      %v5686 = vadd.f32 %v5661, %v5677
      %v5687 = vadd.f32 %v5662, %v5679
      %v5688 = vadd.f32 %v5663, %v5681
      %v5689 = vadd.f32 %v5664, %v5680
      %s5690 = sld [smem:[#allocation11 + $0xc5]]
      %v5691 = vstv %s5690
      %v5692 = vmul.f32 %v5691, %v267
      %v5693 = vmul.f32 %v5691, %v268
      %v5694 = vmul.f32 %v5691, %v269
      %v5695 = vmul.f32 %v5691, %v270
      %v5700 = vrot.slane %v5692, 2
      %v5701 = vrot.slane %v5693, 2
      %v5702 = vsel %vm313, %v5700, %v5701
      %v5703 = vrot.slane %v5694, 2
      %v5704 = vsel %vm313, %v5701, %v5703
      %v5705 = vrot.slane %v5695, 2
      %v5706 = vsel %vm313, %v5703, %v5705
      %v5711 = vadd.f32 %v5686, %v5702
      %v5712 = vadd.f32 %v5687, %v5704
      %v5713 = vadd.f32 %v5688, %v5706
      %v5714 = vadd.f32 %v5689, %v5705
      %s5715 = sld [smem:[#allocation11 + $0xc6]]
      %v5716 = vstv %s5715
      %v5717 = vmul.f32 %v5716, %v267
      %v5718 = vmul.f32 %v5716, %v268
      %v5719 = vmul.f32 %v5716, %v269
      %v5720 = vmul.f32 %v5716, %v270
      %v5725 = vrot.slane %v5717, 3
      %v5726 = vrot.slane %v5718, 3
      %v5727 = vsel %vm1325, %v5725, %v5726
      %v5728 = vrot.slane %v5719, 3
      %v5729 = vsel %vm1325, %v5726, %v5728
      %v5730 = vrot.slane %v5720, 3
      %v5731 = vsel %vm1325, %v5728, %v5730
      %v5736 = vadd.f32 %v5711, %v5727
      %v5737 = vadd.f32 %v5712, %v5729
      %v5738 = vadd.f32 %v5713, %v5731
      %v5739 = vadd.f32 %v5714, %v5730
      %s5740 = sld [smem:[#allocation11 + $0xc7]]
      %v5741 = vstv %s5740
      %v5742 = vmul.f32 %v5741, %v267
      %v5743 = vmul.f32 %v5741, %v268
      %v5744 = vmul.f32 %v5741, %v269
      %v5745 = vmul.f32 %v5741, %v270
      %v5750 = vrot.slane %v5742, 4
      %v5751 = vrot.slane %v5743, 4
      %v5752 = vsel %vm1351, %v5750, %v5751
      %v5753 = vrot.slane %v5744, 4
      %v5754 = vsel %vm1351, %v5751, %v5753
      %v5755 = vrot.slane %v5745, 4
      %v5756 = vsel %vm1351, %v5753, %v5755
      %v5761 = vadd.f32 %v5736, %v5752
      %v5762 = vadd.f32 %v5737, %v5754
      %v5763 = vadd.f32 %v5738, %v5756
      %v5764 = vadd.f32 %v5739, %v5755
      %s5765 = sld [smem:[#allocation13 + $0x7]]
      %v5766 = vstv %s5765
      %v5767 = vadd.f32 %v5761, %v5766
      %v5768 = vadd.f32 %v5762, %v5766
      %v5769 = vadd.f32 %v5763, %v5766
      %v5770 = vadd.f32 %v5764, %v5766
      %v5771 = vmax.f32 %v5767, 0.0
      %v5772 = vmax.f32 %v5768, 0.0
      %v5773 = vmax.f32 %v5769, 0.0
      %v5774 = vmax.f32 %v5770, 0.0
      %s5775 = sld [smem:[#allocation14 + $0x7]]
      %v5776 = vstv %s5775
      %v5777 = vmul.f32 %v5776, %v5771
      %v5778 = vmul.f32 %v5776, %v5772
      %v5779 = vmul.f32 %v5776, %v5773
      %v5780 = vmul.f32 %v5776, %v5774
      %v5781 = vadd.f32 %v5215, %v5777
      %v5782 = vadd.f32 %v5216, %v5778
      %v5783 = vadd.f32 %v5217, %v5779
      %v5784 = vadd.f32 %v5218, %v5780
      %s5785 = sld [smem:[#allocation11 + $0xc8]]
      %v5786 = vstv %s5785
      %v5787 = vmul.f32 %v5786, %v239
      %v5788 = vmul.f32 %v5786, %v240
      %v5789 = vmul.f32 %v5786, %v241
      %v5790 = vmul.f32 %v5786, %v242
      %s5791 = sld [smem:[#allocation11 + $0xc9]]
      %v5792 = vstv %s5791
      %v5793 = vmul.f32 %v5792, %v239
      %v5794 = vmul.f32 %v5792, %v240
      %v5795 = vmul.f32 %v5792, %v241
      %v5796 = vmul.f32 %v5792, %v242
      %v5801 = vrot.slane %v5793, 1
      %v5802 = vrot.slane %v5794, 1
      %v5803 = vsel %vm287, %v5801, %v5802
      %v5804 = vrot.slane %v5795, 1
      %v5805 = vsel %vm287, %v5802, %v5804
      %v5806 = vrot.slane %v5796, 1
      %v5807 = vsel %vm287, %v5804, %v5806
      %v5812 = vadd.f32 %v5787, %v5803
      %v5813 = vadd.f32 %v5788, %v5805
      %v5814 = vadd.f32 %v5789, %v5807
      %v5815 = vadd.f32 %v5790, %v5806
      %s5816 = sld [smem:[#allocation11 + $0xca]]
      %v5817 = vstv %s5816
      %v5818 = vmul.f32 %v5817, %v239
      %v5819 = vmul.f32 %v5817, %v240
      %v5820 = vmul.f32 %v5817, %v241
      %v5821 = vmul.f32 %v5817, %v242
      %v5826 = vrot.slane %v5818, 2
      %v5827 = vrot.slane %v5819, 2
      %v5828 = vsel %vm313, %v5826, %v5827
      %v5829 = vrot.slane %v5820, 2
      %v5830 = vsel %vm313, %v5827, %v5829
      %v5831 = vrot.slane %v5821, 2
      %v5832 = vsel %vm313, %v5829, %v5831
      %v5837 = vadd.f32 %v5812, %v5828
      %v5838 = vadd.f32 %v5813, %v5830
      %v5839 = vadd.f32 %v5814, %v5832
      %v5840 = vadd.f32 %v5815, %v5831
      %s5841 = sld [smem:[#allocation11 + $0xcb]]
      %v5842 = vstv %s5841
      %v5843 = vmul.f32 %v5842, %v239
      %v5844 = vmul.f32 %v5842, %v240
      %v5845 = vmul.f32 %v5842, %v241
      %v5846 = vmul.f32 %v5842, %v242
      %v5851 = vrot.slane %v5843, 3
      %v5852 = vrot.slane %v5844, 3
      %v5853 = vsel %vm1325, %v5851, %v5852
      %v5854 = vrot.slane %v5845, 3
      %v5855 = vsel %vm1325, %v5852, %v5854
      %v5856 = vrot.slane %v5846, 3
      %v5857 = vsel %vm1325, %v5854, %v5856
      %v5862 = vadd.f32 %v5837, %v5853
      %v5863 = vadd.f32 %v5838, %v5855
      %v5864 = vadd.f32 %v5839, %v5857
      %v5865 = vadd.f32 %v5840, %v5856
      %s5866 = sld [smem:[#allocation11 + $0xcc]]
      %v5867 = vstv %s5866
      %v5868 = vmul.f32 %v5867, %v239
      %v5869 = vmul.f32 %v5867, %v240
      %v5870 = vmul.f32 %v5867, %v241
      %v5871 = vmul.f32 %v5867, %v242
      %v5876 = vrot.slane %v5868, 4
      %v5877 = vrot.slane %v5869, 4
      %v5878 = vsel %vm1351, %v5876, %v5877
      %v5879 = vrot.slane %v5870, 4
      %v5880 = vsel %vm1351, %v5877, %v5879
      %v5881 = vrot.slane %v5871, 4
      %v5882 = vsel %vm1351, %v5879, %v5881
      %v5887 = vadd.f32 %v5862, %v5878
      %v5888 = vadd.f32 %v5863, %v5880
      %v5889 = vadd.f32 %v5864, %v5882
      %v5890 = vadd.f32 %v5865, %v5881
      %s5891 = sld [smem:[#allocation11 + $0xcd]]
      %v5892 = vstv %s5891
      %v5893 = vmul.f32 %v5892, %v246
      %v5894 = vmul.f32 %v5892, %v247
      %v5895 = vmul.f32 %v5892, %v248
      %v5896 = vmul.f32 %v5892, %v249
      %v5897 = vadd.f32 %v5887, %v5893
      %v5898 = vadd.f32 %v5888, %v5894
      %v5899 = vadd.f32 %v5889, %v5895
      %v5900 = vadd.f32 %v5890, %v5896
      %s5901 = sld [smem:[#allocation11 + $0xce]]
      %v5902 = vstv %s5901
      %v5903 = vmul.f32 %v5902, %v246
      %v5904 = vmul.f32 %v5902, %v247
      %v5905 = vmul.f32 %v5902, %v248
      %v5906 = vmul.f32 %v5902, %v249
      %v5911 = vrot.slane %v5903, 1
      %v5912 = vrot.slane %v5904, 1
      %v5913 = vsel %vm287, %v5911, %v5912
      %v5914 = vrot.slane %v5905, 1
      %v5915 = vsel %vm287, %v5912, %v5914
      %v5916 = vrot.slane %v5906, 1
      %v5917 = vsel %vm287, %v5914, %v5916
      %v5922 = vadd.f32 %v5897, %v5913
      %v5923 = vadd.f32 %v5898, %v5915
      %v5924 = vadd.f32 %v5899, %v5917
      %v5925 = vadd.f32 %v5900, %v5916
      %s5926 = sld [smem:[#allocation11 + $0xcf]]
      %v5927 = vstv %s5926
      %v5928 = vmul.f32 %v5927, %v246
      %v5929 = vmul.f32 %v5927, %v247
      %v5930 = vmul.f32 %v5927, %v248
      %v5931 = vmul.f32 %v5927, %v249
      %v5936 = vrot.slane %v5928, 2
      %v5937 = vrot.slane %v5929, 2
      %v5938 = vsel %vm313, %v5936, %v5937
      %v5939 = vrot.slane %v5930, 2
      %v5940 = vsel %vm313, %v5937, %v5939
      %v5941 = vrot.slane %v5931, 2
      %v5942 = vsel %vm313, %v5939, %v5941
      %v5947 = vadd.f32 %v5922, %v5938
      %v5948 = vadd.f32 %v5923, %v5940
      %v5949 = vadd.f32 %v5924, %v5942
      %v5950 = vadd.f32 %v5925, %v5941
      %s5951 = sld [smem:[#allocation11 + $0xd0]]
      %v5952 = vstv %s5951
      %v5953 = vmul.f32 %v5952, %v246
      %v5954 = vmul.f32 %v5952, %v247
      %v5955 = vmul.f32 %v5952, %v248
      %v5956 = vmul.f32 %v5952, %v249
      %v5961 = vrot.slane %v5953, 3
      %v5962 = vrot.slane %v5954, 3
      %v5963 = vsel %vm1325, %v5961, %v5962
      %v5964 = vrot.slane %v5955, 3
      %v5965 = vsel %vm1325, %v5962, %v5964
      %v5966 = vrot.slane %v5956, 3
      %v5967 = vsel %vm1325, %v5964, %v5966
      %v5972 = vadd.f32 %v5947, %v5963
      %v5973 = vadd.f32 %v5948, %v5965
      %v5974 = vadd.f32 %v5949, %v5967
      %v5975 = vadd.f32 %v5950, %v5966
      %s5976 = sld [smem:[#allocation11 + $0xd1]]
      %v5977 = vstv %s5976
      %v5978 = vmul.f32 %v5977, %v246
      %v5979 = vmul.f32 %v5977, %v247
      %v5980 = vmul.f32 %v5977, %v248
      %v5981 = vmul.f32 %v5977, %v249
      %v5986 = vrot.slane %v5978, 4
      %v5987 = vrot.slane %v5979, 4
      %v5988 = vsel %vm1351, %v5986, %v5987
      %v5989 = vrot.slane %v5980, 4
      %v5990 = vsel %vm1351, %v5987, %v5989
      %v5991 = vrot.slane %v5981, 4
      %v5992 = vsel %vm1351, %v5989, %v5991
      %v5997 = vadd.f32 %v5972, %v5988
      %v5998 = vadd.f32 %v5973, %v5990
      %v5999 = vadd.f32 %v5974, %v5992
      %v6000 = vadd.f32 %v5975, %v5991
      %s6001 = sld [smem:[#allocation11 + $0xd2]]
      %v6002 = vstv %s6001
      %v6003 = vmul.f32 %v6002, %v253
      %v6004 = vmul.f32 %v6002, %v254
      %v6005 = vmul.f32 %v6002, %v255
      %v6006 = vmul.f32 %v6002, %v256
      %v6007 = vadd.f32 %v5997, %v6003
      %v6008 = vadd.f32 %v5998, %v6004
      %v6009 = vadd.f32 %v5999, %v6005
      %v6010 = vadd.f32 %v6000, %v6006
      %s6011 = sld [smem:[#allocation11 + $0xd3]]
      %v6012 = vstv %s6011
      %v6013 = vmul.f32 %v6012, %v253
      %v6014 = vmul.f32 %v6012, %v254
      %v6015 = vmul.f32 %v6012, %v255
      %v6016 = vmul.f32 %v6012, %v256
      %v6021 = vrot.slane %v6013, 1
      %v6022 = vrot.slane %v6014, 1
      %v6023 = vsel %vm287, %v6021, %v6022
      %v6024 = vrot.slane %v6015, 1
      %v6025 = vsel %vm287, %v6022, %v6024
      %v6026 = vrot.slane %v6016, 1
      %v6027 = vsel %vm287, %v6024, %v6026
      %v6032 = vadd.f32 %v6007, %v6023
      %v6033 = vadd.f32 %v6008, %v6025
      %v6034 = vadd.f32 %v6009, %v6027
      %v6035 = vadd.f32 %v6010, %v6026
      %s6036 = sld [smem:[#allocation11 + $0xd4]]
      %v6037 = vstv %s6036
      %v6038 = vmul.f32 %v6037, %v253
      %v6039 = vmul.f32 %v6037, %v254
      %v6040 = vmul.f32 %v6037, %v255
      %v6041 = vmul.f32 %v6037, %v256
      %v6046 = vrot.slane %v6038, 2
      %v6047 = vrot.slane %v6039, 2
      %v6048 = vsel %vm313, %v6046, %v6047
      %v6049 = vrot.slane %v6040, 2
      %v6050 = vsel %vm313, %v6047, %v6049
      %v6051 = vrot.slane %v6041, 2
      %v6052 = vsel %vm313, %v6049, %v6051
      %v6057 = vadd.f32 %v6032, %v6048
      %v6058 = vadd.f32 %v6033, %v6050
      %v6059 = vadd.f32 %v6034, %v6052
      %v6060 = vadd.f32 %v6035, %v6051
      %s6061 = sld [smem:[#allocation11 + $0xd5]]
      %v6062 = vstv %s6061
      %v6063 = vmul.f32 %v6062, %v253
      %v6064 = vmul.f32 %v6062, %v254
      %v6065 = vmul.f32 %v6062, %v255
      %v6066 = vmul.f32 %v6062, %v256
      %v6071 = vrot.slane %v6063, 3
      %v6072 = vrot.slane %v6064, 3
      %v6073 = vsel %vm1325, %v6071, %v6072
      %v6074 = vrot.slane %v6065, 3
      %v6075 = vsel %vm1325, %v6072, %v6074
      %v6076 = vrot.slane %v6066, 3
      %v6077 = vsel %vm1325, %v6074, %v6076
      %v6082 = vadd.f32 %v6057, %v6073
      %v6083 = vadd.f32 %v6058, %v6075
      %v6084 = vadd.f32 %v6059, %v6077
      %v6085 = vadd.f32 %v6060, %v6076
      %s6086 = sld [smem:[#allocation11 + $0xd6]]
      %v6087 = vstv %s6086
      %v6088 = vmul.f32 %v6087, %v253
      %v6089 = vmul.f32 %v6087, %v254
      %v6090 = vmul.f32 %v6087, %v255
      %v6091 = vmul.f32 %v6087, %v256
      %v6096 = vrot.slane %v6088, 4
      %v6097 = vrot.slane %v6089, 4
      %v6098 = vsel %vm1351, %v6096, %v6097
      %v6099 = vrot.slane %v6090, 4
      %v6100 = vsel %vm1351, %v6097, %v6099
      %v6101 = vrot.slane %v6091, 4
      %v6102 = vsel %vm1351, %v6099, %v6101
      %v6107 = vadd.f32 %v6082, %v6098
      %v6108 = vadd.f32 %v6083, %v6100
      %v6109 = vadd.f32 %v6084, %v6102
      %v6110 = vadd.f32 %v6085, %v6101
      %s6111 = sld [smem:[#allocation11 + $0xd7]]
      %v6112 = vstv %s6111
      %v6113 = vmul.f32 %v6112, %v260
      %v6114 = vmul.f32 %v6112, %v261
      %v6115 = vmul.f32 %v6112, %v262
      %v6116 = vmul.f32 %v6112, %v263
      %v6117 = vadd.f32 %v6107, %v6113
      %v6118 = vadd.f32 %v6108, %v6114
      %v6119 = vadd.f32 %v6109, %v6115
      %v6120 = vadd.f32 %v6110, %v6116
      %s6121 = sld [smem:[#allocation11 + $0xd8]]
      %v6122 = vstv %s6121
      %v6123 = vmul.f32 %v6122, %v260
      %v6124 = vmul.f32 %v6122, %v261
      %v6125 = vmul.f32 %v6122, %v262
      %v6126 = vmul.f32 %v6122, %v263
      %v6131 = vrot.slane %v6123, 1
      %v6132 = vrot.slane %v6124, 1
      %v6133 = vsel %vm287, %v6131, %v6132
      %v6134 = vrot.slane %v6125, 1
      %v6135 = vsel %vm287, %v6132, %v6134
      %v6136 = vrot.slane %v6126, 1
      %v6137 = vsel %vm287, %v6134, %v6136
      %v6142 = vadd.f32 %v6117, %v6133
      %v6143 = vadd.f32 %v6118, %v6135
      %v6144 = vadd.f32 %v6119, %v6137
      %v6145 = vadd.f32 %v6120, %v6136
      %s6146 = sld [smem:[#allocation11 + $0xd9]]
      %v6147 = vstv %s6146
      %v6148 = vmul.f32 %v6147, %v260
      %v6149 = vmul.f32 %v6147, %v261
      %v6150 = vmul.f32 %v6147, %v262
      %v6151 = vmul.f32 %v6147, %v263
      %v6156 = vrot.slane %v6148, 2
      %v6157 = vrot.slane %v6149, 2
      %v6158 = vsel %vm313, %v6156, %v6157
      %v6159 = vrot.slane %v6150, 2
      %v6160 = vsel %vm313, %v6157, %v6159
      %v6161 = vrot.slane %v6151, 2
      %v6162 = vsel %vm313, %v6159, %v6161
      %v6167 = vadd.f32 %v6142, %v6158
      %v6168 = vadd.f32 %v6143, %v6160
      %v6169 = vadd.f32 %v6144, %v6162
      %v6170 = vadd.f32 %v6145, %v6161
      %s6171 = sld [smem:[#allocation11 + $0xda]]
      %v6172 = vstv %s6171
      %v6173 = vmul.f32 %v6172, %v260
      %v6174 = vmul.f32 %v6172, %v261
      %v6175 = vmul.f32 %v6172, %v262
      %v6176 = vmul.f32 %v6172, %v263
      %v6181 = vrot.slane %v6173, 3
      %v6182 = vrot.slane %v6174, 3
      %v6183 = vsel %vm1325, %v6181, %v6182
      %v6184 = vrot.slane %v6175, 3
      %v6185 = vsel %vm1325, %v6182, %v6184
      %v6186 = vrot.slane %v6176, 3
      %v6187 = vsel %vm1325, %v6184, %v6186
      %v6192 = vadd.f32 %v6167, %v6183
      %v6193 = vadd.f32 %v6168, %v6185
      %v6194 = vadd.f32 %v6169, %v6187
      %v6195 = vadd.f32 %v6170, %v6186
      %s6196 = sld [smem:[#allocation11 + $0xdb]]
      %v6197 = vstv %s6196
      %v6198 = vmul.f32 %v6197, %v260
      %v6199 = vmul.f32 %v6197, %v261
      %v6200 = vmul.f32 %v6197, %v262
      %v6201 = vmul.f32 %v6197, %v263
      %v6206 = vrot.slane %v6198, 4
      %v6207 = vrot.slane %v6199, 4
      %v6208 = vsel %vm1351, %v6206, %v6207
      %v6209 = vrot.slane %v6200, 4
      %v6210 = vsel %vm1351, %v6207, %v6209
      %v6211 = vrot.slane %v6201, 4
      %v6212 = vsel %vm1351, %v6209, %v6211
      %v6217 = vadd.f32 %v6192, %v6208
      %v6218 = vadd.f32 %v6193, %v6210
      %v6219 = vadd.f32 %v6194, %v6212
      %v6220 = vadd.f32 %v6195, %v6211
      %s6221 = sld [smem:[#allocation11 + $0xdc]]
      %v6222 = vstv %s6221
      %v6223 = vmul.f32 %v6222, %v267
      %v6224 = vmul.f32 %v6222, %v268
      %v6225 = vmul.f32 %v6222, %v269
      %v6226 = vmul.f32 %v6222, %v270
      %v6227 = vadd.f32 %v6217, %v6223
      %v6228 = vadd.f32 %v6218, %v6224
      %v6229 = vadd.f32 %v6219, %v6225
      %v6230 = vadd.f32 %v6220, %v6226
      %s6231 = sld [smem:[#allocation11 + $0xdd]]
      %v6232 = vstv %s6231
      %v6233 = vmul.f32 %v6232, %v267
      %v6234 = vmul.f32 %v6232, %v268
      %v6235 = vmul.f32 %v6232, %v269
      %v6236 = vmul.f32 %v6232, %v270
      %v6241 = vrot.slane %v6233, 1
      %v6242 = vrot.slane %v6234, 1
      %v6243 = vsel %vm287, %v6241, %v6242
      %v6244 = vrot.slane %v6235, 1
      %v6245 = vsel %vm287, %v6242, %v6244
      %v6246 = vrot.slane %v6236, 1
      %v6247 = vsel %vm287, %v6244, %v6246
      %v6252 = vadd.f32 %v6227, %v6243
      %v6253 = vadd.f32 %v6228, %v6245
      %v6254 = vadd.f32 %v6229, %v6247
      %v6255 = vadd.f32 %v6230, %v6246
      %s6256 = sld [smem:[#allocation11 + $0xde]]
      %v6257 = vstv %s6256
      %v6258 = vmul.f32 %v6257, %v267
      %v6259 = vmul.f32 %v6257, %v268
      %v6260 = vmul.f32 %v6257, %v269
      %v6261 = vmul.f32 %v6257, %v270
      %v6266 = vrot.slane %v6258, 2
      %v6267 = vrot.slane %v6259, 2
      %v6268 = vsel %vm313, %v6266, %v6267
      %v6269 = vrot.slane %v6260, 2
      %v6270 = vsel %vm313, %v6267, %v6269
      %v6271 = vrot.slane %v6261, 2
      %v6272 = vsel %vm313, %v6269, %v6271
      %v6277 = vadd.f32 %v6252, %v6268
      %v6278 = vadd.f32 %v6253, %v6270
      %v6279 = vadd.f32 %v6254, %v6272
      %v6280 = vadd.f32 %v6255, %v6271
      %s6281 = sld [smem:[#allocation11 + $0xdf]]
      %v6282 = vstv %s6281
      %v6283 = vmul.f32 %v6282, %v267
      %v6284 = vmul.f32 %v6282, %v268
      %v6285 = vmul.f32 %v6282, %v269
      %v6286 = vmul.f32 %v6282, %v270
      %v6291 = vrot.slane %v6283, 3
      %v6292 = vrot.slane %v6284, 3
      %v6293 = vsel %vm1325, %v6291, %v6292
      %v6294 = vrot.slane %v6285, 3
      %v6295 = vsel %vm1325, %v6292, %v6294
      %v6296 = vrot.slane %v6286, 3
      %v6297 = vsel %vm1325, %v6294, %v6296
      %v6302 = vadd.f32 %v6277, %v6293
      %v6303 = vadd.f32 %v6278, %v6295
      %v6304 = vadd.f32 %v6279, %v6297
      %v6305 = vadd.f32 %v6280, %v6296
      %s6306 = sld [smem:[#allocation11 + $0xe0]]
      %v6307 = vstv %s6306
      %v6308 = vmul.f32 %v6307, %v267
      %v6309 = vmul.f32 %v6307, %v268
      %v6310 = vmul.f32 %v6307, %v269
      %v6311 = vmul.f32 %v6307, %v270
      %v6316 = vrot.slane %v6308, 4
      %v6317 = vrot.slane %v6309, 4
      %v6318 = vsel %vm1351, %v6316, %v6317
      %v6319 = vrot.slane %v6310, 4
      %v6320 = vsel %vm1351, %v6317, %v6319
      %v6321 = vrot.slane %v6311, 4
      %v6322 = vsel %vm1351, %v6319, %v6321
      %v6327 = vadd.f32 %v6302, %v6318
      %v6328 = vadd.f32 %v6303, %v6320
      %v6329 = vadd.f32 %v6304, %v6322
      %v6330 = vadd.f32 %v6305, %v6321
      %s6331 = sld [smem:[#allocation13 + $0x8]]
      %v6332 = vstv %s6331
      %v6333 = vadd.f32 %v6327, %v6332
      %v6334 = vadd.f32 %v6328, %v6332
      %v6335 = vadd.f32 %v6329, %v6332
      %v6336 = vadd.f32 %v6330, %v6332
      %v6337 = vmax.f32 %v6333, 0.0
      %v6338 = vmax.f32 %v6334, 0.0
      %v6339 = vmax.f32 %v6335, 0.0
      %v6340 = vmax.f32 %v6336, 0.0
      %s6341 = sld [smem:[#allocation14 + $0x8]]
      %v6342 = vstv %s6341
      %v6343 = vmul.f32 %v6342, %v6337
      %v6344 = vmul.f32 %v6342, %v6338
      %v6345 = vmul.f32 %v6342, %v6339
      %v6346 = vmul.f32 %v6342, %v6340
      %v6347 = vadd.f32 %v5781, %v6343
      %v6348 = vadd.f32 %v5782, %v6344
      %v6349 = vadd.f32 %v5783, %v6345
      %v6350 = vadd.f32 %v5784, %v6346
      %s6351 = sld [smem:[#allocation11 + $0xe1]]
      %v6352 = vstv %s6351
      %v6353 = vmul.f32 %v6352, %v239
      %v6354 = vmul.f32 %v6352, %v240
      %v6355 = vmul.f32 %v6352, %v241
      %v6356 = vmul.f32 %v6352, %v242
      %s6357 = sld [smem:[#allocation11 + $0xe2]]
      %v6358 = vstv %s6357
      %v6359 = vmul.f32 %v6358, %v239
      %v6360 = vmul.f32 %v6358, %v240
      %v6361 = vmul.f32 %v6358, %v241
      %v6362 = vmul.f32 %v6358, %v242
      %v6367 = vrot.slane %v6359, 1
      %v6368 = vrot.slane %v6360, 1
      %v6369 = vsel %vm287, %v6367, %v6368
      %v6370 = vrot.slane %v6361, 1
      %v6371 = vsel %vm287, %v6368, %v6370
      %v6372 = vrot.slane %v6362, 1
      %v6373 = vsel %vm287, %v6370, %v6372
      %v6378 = vadd.f32 %v6353, %v6369
      %v6379 = vadd.f32 %v6354, %v6371
      %v6380 = vadd.f32 %v6355, %v6373
      %v6381 = vadd.f32 %v6356, %v6372
      %s6382 = sld [smem:[#allocation11 + $0xe3]]
      %v6383 = vstv %s6382
      %v6384 = vmul.f32 %v6383, %v239
      %v6385 = vmul.f32 %v6383, %v240
      %v6386 = vmul.f32 %v6383, %v241
      %v6387 = vmul.f32 %v6383, %v242
      %v6392 = vrot.slane %v6384, 2
      %v6393 = vrot.slane %v6385, 2
      %v6394 = vsel %vm313, %v6392, %v6393
      %v6395 = vrot.slane %v6386, 2
      %v6396 = vsel %vm313, %v6393, %v6395
      %v6397 = vrot.slane %v6387, 2
      %v6398 = vsel %vm313, %v6395, %v6397
      %v6403 = vadd.f32 %v6378, %v6394
      %v6404 = vadd.f32 %v6379, %v6396
      %v6405 = vadd.f32 %v6380, %v6398
      %v6406 = vadd.f32 %v6381, %v6397
      %s6407 = sld [smem:[#allocation11 + $0xe4]]
      %v6408 = vstv %s6407
      %v6409 = vmul.f32 %v6408, %v239
      %v6410 = vmul.f32 %v6408, %v240
      %v6411 = vmul.f32 %v6408, %v241
      %v6412 = vmul.f32 %v6408, %v242
      %v6417 = vrot.slane %v6409, 3
      %v6418 = vrot.slane %v6410, 3
      %v6419 = vsel %vm1325, %v6417, %v6418
      %v6420 = vrot.slane %v6411, 3
      %v6421 = vsel %vm1325, %v6418, %v6420
      %v6422 = vrot.slane %v6412, 3
      %v6423 = vsel %vm1325, %v6420, %v6422
      %v6428 = vadd.f32 %v6403, %v6419
      %v6429 = vadd.f32 %v6404, %v6421
      %v6430 = vadd.f32 %v6405, %v6423
      %v6431 = vadd.f32 %v6406, %v6422
      %s6432 = sld [smem:[#allocation11 + $0xe5]]
      %v6433 = vstv %s6432
      %v6434 = vmul.f32 %v6433, %v239
      %v6435 = vmul.f32 %v6433, %v240
      %v6436 = vmul.f32 %v6433, %v241
      %v6437 = vmul.f32 %v6433, %v242
      %v6442 = vrot.slane %v6434, 4
      %v6443 = vrot.slane %v6435, 4
      %v6444 = vsel %vm1351, %v6442, %v6443
      %v6445 = vrot.slane %v6436, 4
      %v6446 = vsel %vm1351, %v6443, %v6445
      %v6447 = vrot.slane %v6437, 4
      %v6448 = vsel %vm1351, %v6445, %v6447
      %v6453 = vadd.f32 %v6428, %v6444
      %v6454 = vadd.f32 %v6429, %v6446
      %v6455 = vadd.f32 %v6430, %v6448
      %v6456 = vadd.f32 %v6431, %v6447
      %s6457 = sld [smem:[#allocation11 + $0xe6]]
      %v6458 = vstv %s6457
      %v6459 = vmul.f32 %v6458, %v246
      %v6460 = vmul.f32 %v6458, %v247
      %v6461 = vmul.f32 %v6458, %v248
      %v6462 = vmul.f32 %v6458, %v249
      %v6463 = vadd.f32 %v6453, %v6459
      %v6464 = vadd.f32 %v6454, %v6460
      %v6465 = vadd.f32 %v6455, %v6461
      %v6466 = vadd.f32 %v6456, %v6462
      %s6467 = sld [smem:[#allocation11 + $0xe7]]
      %v6468 = vstv %s6467
      %v6469 = vmul.f32 %v6468, %v246
      %v6470 = vmul.f32 %v6468, %v247
      %v6471 = vmul.f32 %v6468, %v248
      %v6472 = vmul.f32 %v6468, %v249
      %v6477 = vrot.slane %v6469, 1
      %v6478 = vrot.slane %v6470, 1
      %v6479 = vsel %vm287, %v6477, %v6478
      %v6480 = vrot.slane %v6471, 1
      %v6481 = vsel %vm287, %v6478, %v6480
      %v6482 = vrot.slane %v6472, 1
      %v6483 = vsel %vm287, %v6480, %v6482
      %v6488 = vadd.f32 %v6463, %v6479
      %v6489 = vadd.f32 %v6464, %v6481
      %v6490 = vadd.f32 %v6465, %v6483
      %v6491 = vadd.f32 %v6466, %v6482
      %s6492 = sld [smem:[#allocation11 + $0xe8]]
      %v6493 = vstv %s6492
      %v6494 = vmul.f32 %v6493, %v246
      %v6495 = vmul.f32 %v6493, %v247
      %v6496 = vmul.f32 %v6493, %v248
      %v6497 = vmul.f32 %v6493, %v249
      %v6502 = vrot.slane %v6494, 2
      %v6503 = vrot.slane %v6495, 2
      %v6504 = vsel %vm313, %v6502, %v6503
      %v6505 = vrot.slane %v6496, 2
      %v6506 = vsel %vm313, %v6503, %v6505
      %v6507 = vrot.slane %v6497, 2
      %v6508 = vsel %vm313, %v6505, %v6507
      %v6513 = vadd.f32 %v6488, %v6504
      %v6514 = vadd.f32 %v6489, %v6506
      %v6515 = vadd.f32 %v6490, %v6508
      %v6516 = vadd.f32 %v6491, %v6507
      %s6517 = sld [smem:[#allocation11 + $0xe9]]
      %v6518 = vstv %s6517
      %v6519 = vmul.f32 %v6518, %v246
      %v6520 = vmul.f32 %v6518, %v247
      %v6521 = vmul.f32 %v6518, %v248
      %v6522 = vmul.f32 %v6518, %v249
      %v6527 = vrot.slane %v6519, 3
      %v6528 = vrot.slane %v6520, 3
      %v6529 = vsel %vm1325, %v6527, %v6528
      %v6530 = vrot.slane %v6521, 3
      %v6531 = vsel %vm1325, %v6528, %v6530
      %v6532 = vrot.slane %v6522, 3
      %v6533 = vsel %vm1325, %v6530, %v6532
      %v6538 = vadd.f32 %v6513, %v6529
      %v6539 = vadd.f32 %v6514, %v6531
      %v6540 = vadd.f32 %v6515, %v6533
      %v6541 = vadd.f32 %v6516, %v6532
      %s6542 = sld [smem:[#allocation11 + $0xea]]
      %v6543 = vstv %s6542
      %v6544 = vmul.f32 %v6543, %v246
      %v6545 = vmul.f32 %v6543, %v247
      %v6546 = vmul.f32 %v6543, %v248
      %v6547 = vmul.f32 %v6543, %v249
      %v6552 = vrot.slane %v6544, 4
      %v6553 = vrot.slane %v6545, 4
      %v6554 = vsel %vm1351, %v6552, %v6553
      %v6555 = vrot.slane %v6546, 4
      %v6556 = vsel %vm1351, %v6553, %v6555
      %v6557 = vrot.slane %v6547, 4
      %v6558 = vsel %vm1351, %v6555, %v6557
      %v6563 = vadd.f32 %v6538, %v6554
      %v6564 = vadd.f32 %v6539, %v6556
      %v6565 = vadd.f32 %v6540, %v6558
      %v6566 = vadd.f32 %v6541, %v6557
      %s6567 = sld [smem:[#allocation11 + $0xeb]]
      %v6568 = vstv %s6567
      %v6569 = vmul.f32 %v6568, %v253
      %v6570 = vmul.f32 %v6568, %v254
      %v6571 = vmul.f32 %v6568, %v255
      %v6572 = vmul.f32 %v6568, %v256
      %v6573 = vadd.f32 %v6563, %v6569
      %v6574 = vadd.f32 %v6564, %v6570
      %v6575 = vadd.f32 %v6565, %v6571
      %v6576 = vadd.f32 %v6566, %v6572
      %s6577 = sld [smem:[#allocation11 + $0xec]]
      %v6578 = vstv %s6577
      %v6579 = vmul.f32 %v6578, %v253
      %v6580 = vmul.f32 %v6578, %v254
      %v6581 = vmul.f32 %v6578, %v255
      %v6582 = vmul.f32 %v6578, %v256
      %v6587 = vrot.slane %v6579, 1
      %v6588 = vrot.slane %v6580, 1
      %v6589 = vsel %vm287, %v6587, %v6588
      %v6590 = vrot.slane %v6581, 1
      %v6591 = vsel %vm287, %v6588, %v6590
      %v6592 = vrot.slane %v6582, 1
      %v6593 = vsel %vm287, %v6590, %v6592
      %v6598 = vadd.f32 %v6573, %v6589
      %v6599 = vadd.f32 %v6574, %v6591
      %v6600 = vadd.f32 %v6575, %v6593
      %v6601 = vadd.f32 %v6576, %v6592
      %s6602 = sld [smem:[#allocation11 + $0xed]]
      %v6603 = vstv %s6602
      %v6604 = vmul.f32 %v6603, %v253
      %v6605 = vmul.f32 %v6603, %v254
      %v6606 = vmul.f32 %v6603, %v255
      %v6607 = vmul.f32 %v6603, %v256
      %v6612 = vrot.slane %v6604, 2
      %v6613 = vrot.slane %v6605, 2
      %v6614 = vsel %vm313, %v6612, %v6613
      %v6615 = vrot.slane %v6606, 2
      %v6616 = vsel %vm313, %v6613, %v6615
      %v6617 = vrot.slane %v6607, 2
      %v6618 = vsel %vm313, %v6615, %v6617
      %v6623 = vadd.f32 %v6598, %v6614
      %v6624 = vadd.f32 %v6599, %v6616
      %v6625 = vadd.f32 %v6600, %v6618
      %v6626 = vadd.f32 %v6601, %v6617
      %s6627 = sld [smem:[#allocation11 + $0xee]]
      %v6628 = vstv %s6627
      %v6629 = vmul.f32 %v6628, %v253
      %v6630 = vmul.f32 %v6628, %v254
      %v6631 = vmul.f32 %v6628, %v255
      %v6632 = vmul.f32 %v6628, %v256
      %v6637 = vrot.slane %v6629, 3
      %v6638 = vrot.slane %v6630, 3
      %v6639 = vsel %vm1325, %v6637, %v6638
      %v6640 = vrot.slane %v6631, 3
      %v6641 = vsel %vm1325, %v6638, %v6640
      %v6642 = vrot.slane %v6632, 3
      %v6643 = vsel %vm1325, %v6640, %v6642
      %v6648 = vadd.f32 %v6623, %v6639
      %v6649 = vadd.f32 %v6624, %v6641
      %v6650 = vadd.f32 %v6625, %v6643
      %v6651 = vadd.f32 %v6626, %v6642
      %s6652 = sld [smem:[#allocation11 + $0xef]]
      %v6653 = vstv %s6652
      %v6654 = vmul.f32 %v6653, %v253
      %v6655 = vmul.f32 %v6653, %v254
      %v6656 = vmul.f32 %v6653, %v255
      %v6657 = vmul.f32 %v6653, %v256
      %v6662 = vrot.slane %v6654, 4
      %v6663 = vrot.slane %v6655, 4
      %v6664 = vsel %vm1351, %v6662, %v6663
      %v6665 = vrot.slane %v6656, 4
      %v6666 = vsel %vm1351, %v6663, %v6665
      %v6667 = vrot.slane %v6657, 4
      %v6668 = vsel %vm1351, %v6665, %v6667
      %v6673 = vadd.f32 %v6648, %v6664
      %v6674 = vadd.f32 %v6649, %v6666
      %v6675 = vadd.f32 %v6650, %v6668
      %v6676 = vadd.f32 %v6651, %v6667
      %s6677 = sld [smem:[#allocation11 + $0xf0]]
      %v6678 = vstv %s6677
      %v6679 = vmul.f32 %v6678, %v260
      %v6680 = vmul.f32 %v6678, %v261
      %v6681 = vmul.f32 %v6678, %v262
      %v6682 = vmul.f32 %v6678, %v263
      %v6683 = vadd.f32 %v6673, %v6679
      %v6684 = vadd.f32 %v6674, %v6680
      %v6685 = vadd.f32 %v6675, %v6681
      %v6686 = vadd.f32 %v6676, %v6682
      %s6687 = sld [smem:[#allocation11 + $0xf1]]
      %v6688 = vstv %s6687
      %v6689 = vmul.f32 %v6688, %v260
      %v6690 = vmul.f32 %v6688, %v261
      %v6691 = vmul.f32 %v6688, %v262
      %v6692 = vmul.f32 %v6688, %v263
      %v6697 = vrot.slane %v6689, 1
      %v6698 = vrot.slane %v6690, 1
      %v6699 = vsel %vm287, %v6697, %v6698
      %v6700 = vrot.slane %v6691, 1
      %v6701 = vsel %vm287, %v6698, %v6700
      %v6702 = vrot.slane %v6692, 1
      %v6703 = vsel %vm287, %v6700, %v6702
      %v6708 = vadd.f32 %v6683, %v6699
      %v6709 = vadd.f32 %v6684, %v6701
      %v6710 = vadd.f32 %v6685, %v6703
      %v6711 = vadd.f32 %v6686, %v6702
      %s6712 = sld [smem:[#allocation11 + $0xf2]]
      %v6713 = vstv %s6712
      %v6714 = vmul.f32 %v6713, %v260
      %v6715 = vmul.f32 %v6713, %v261
      %v6716 = vmul.f32 %v6713, %v262
      %v6717 = vmul.f32 %v6713, %v263
      %v6722 = vrot.slane %v6714, 2
      %v6723 = vrot.slane %v6715, 2
      %v6724 = vsel %vm313, %v6722, %v6723
      %v6725 = vrot.slane %v6716, 2
      %v6726 = vsel %vm313, %v6723, %v6725
      %v6727 = vrot.slane %v6717, 2
      %v6728 = vsel %vm313, %v6725, %v6727
      %v6733 = vadd.f32 %v6708, %v6724
      %v6734 = vadd.f32 %v6709, %v6726
      %v6735 = vadd.f32 %v6710, %v6728
      %v6736 = vadd.f32 %v6711, %v6727
      %s6737 = sld [smem:[#allocation11 + $0xf3]]
      %v6738 = vstv %s6737
      %v6739 = vmul.f32 %v6738, %v260
      %v6740 = vmul.f32 %v6738, %v261
      %v6741 = vmul.f32 %v6738, %v262
      %v6742 = vmul.f32 %v6738, %v263
      %v6747 = vrot.slane %v6739, 3
      %v6748 = vrot.slane %v6740, 3
      %v6749 = vsel %vm1325, %v6747, %v6748
      %v6750 = vrot.slane %v6741, 3
      %v6751 = vsel %vm1325, %v6748, %v6750
      %v6752 = vrot.slane %v6742, 3
      %v6753 = vsel %vm1325, %v6750, %v6752
      %v6758 = vadd.f32 %v6733, %v6749
      %v6759 = vadd.f32 %v6734, %v6751
      %v6760 = vadd.f32 %v6735, %v6753
      %v6761 = vadd.f32 %v6736, %v6752
      %s6762 = sld [smem:[#allocation11 + $0xf4]]
      %v6763 = vstv %s6762
      %v6764 = vmul.f32 %v6763, %v260
      %v6765 = vmul.f32 %v6763, %v261
      %v6766 = vmul.f32 %v6763, %v262
      %v6767 = vmul.f32 %v6763, %v263
      %v6772 = vrot.slane %v6764, 4
      %v6773 = vrot.slane %v6765, 4
      %v6774 = vsel %vm1351, %v6772, %v6773
      %v6775 = vrot.slane %v6766, 4
      %v6776 = vsel %vm1351, %v6773, %v6775
      %v6777 = vrot.slane %v6767, 4
      %v6778 = vsel %vm1351, %v6775, %v6777
      %v6783 = vadd.f32 %v6758, %v6774
      %v6784 = vadd.f32 %v6759, %v6776
      %v6785 = vadd.f32 %v6760, %v6778
      %v6786 = vadd.f32 %v6761, %v6777
      %s6787 = sld [smem:[#allocation11 + $0xf5]]
      %v6788 = vstv %s6787
      %v6789 = vmul.f32 %v6788, %v267
      %v6790 = vmul.f32 %v6788, %v268
      %v6791 = vmul.f32 %v6788, %v269
      %v6792 = vmul.f32 %v6788, %v270
      %v6793 = vadd.f32 %v6783, %v6789
      %v6794 = vadd.f32 %v6784, %v6790
      %v6795 = vadd.f32 %v6785, %v6791
      %v6796 = vadd.f32 %v6786, %v6792
      %s6797 = sld [smem:[#allocation11 + $0xf6]]
      %v6798 = vstv %s6797
      %v6799 = vmul.f32 %v6798, %v267
      %v6800 = vmul.f32 %v6798, %v268
      %v6801 = vmul.f32 %v6798, %v269
      %v6802 = vmul.f32 %v6798, %v270
      %v6807 = vrot.slane %v6799, 1
      %v6808 = vrot.slane %v6800, 1
      %v6809 = vsel %vm287, %v6807, %v6808
      %v6810 = vrot.slane %v6801, 1
      %v6811 = vsel %vm287, %v6808, %v6810
      %v6812 = vrot.slane %v6802, 1
      %v6813 = vsel %vm287, %v6810, %v6812
      %v6818 = vadd.f32 %v6793, %v6809
      %v6819 = vadd.f32 %v6794, %v6811
      %v6820 = vadd.f32 %v6795, %v6813
      %v6821 = vadd.f32 %v6796, %v6812
      %s6822 = sld [smem:[#allocation11 + $0xf7]]
      %v6823 = vstv %s6822
      %v6824 = vmul.f32 %v6823, %v267
      %v6825 = vmul.f32 %v6823, %v268
      %v6826 = vmul.f32 %v6823, %v269
      %v6827 = vmul.f32 %v6823, %v270
      %v6832 = vrot.slane %v6824, 2
      %v6833 = vrot.slane %v6825, 2
      %v6834 = vsel %vm313, %v6832, %v6833
      %v6835 = vrot.slane %v6826, 2
      %v6836 = vsel %vm313, %v6833, %v6835
      %v6837 = vrot.slane %v6827, 2
      %v6838 = vsel %vm313, %v6835, %v6837
      %v6843 = vadd.f32 %v6818, %v6834
      %v6844 = vadd.f32 %v6819, %v6836
      %v6845 = vadd.f32 %v6820, %v6838
      %v6846 = vadd.f32 %v6821, %v6837
      %s6847 = sld [smem:[#allocation11 + $0xf8]]
      %v6848 = vstv %s6847
      %v6849 = vmul.f32 %v6848, %v267
      %v6850 = vmul.f32 %v6848, %v268
      %v6851 = vmul.f32 %v6848, %v269
      %v6852 = vmul.f32 %v6848, %v270
      %v6857 = vrot.slane %v6849, 3
      %v6858 = vrot.slane %v6850, 3
      %v6859 = vsel %vm1325, %v6857, %v6858
      %v6860 = vrot.slane %v6851, 3
      %v6861 = vsel %vm1325, %v6858, %v6860
      %v6862 = vrot.slane %v6852, 3
      %v6863 = vsel %vm1325, %v6860, %v6862
      %v6868 = vadd.f32 %v6843, %v6859
      %v6869 = vadd.f32 %v6844, %v6861
      %v6870 = vadd.f32 %v6845, %v6863
      %v6871 = vadd.f32 %v6846, %v6862
      %s6872 = sld [smem:[#allocation11 + $0xf9]]
      %v6873 = vstv %s6872
      %v6874 = vmul.f32 %v6873, %v267
      %v6875 = vmul.f32 %v6873, %v268
      %v6876 = vmul.f32 %v6873, %v269
      %v6877 = vmul.f32 %v6873, %v270
      %v6882 = vrot.slane %v6874, 4
      %v6883 = vrot.slane %v6875, 4
      %v6884 = vsel %vm1351, %v6882, %v6883
      %v6885 = vrot.slane %v6876, 4
      %v6886 = vsel %vm1351, %v6883, %v6885
      %v6887 = vrot.slane %v6877, 4
      %v6888 = vsel %vm1351, %v6885, %v6887
      %v6893 = vadd.f32 %v6868, %v6884
      %v6894 = vadd.f32 %v6869, %v6886
      %v6895 = vadd.f32 %v6870, %v6888
      %v6896 = vadd.f32 %v6871, %v6887
      %s6897 = sld [smem:[#allocation13 + $0x9]]
      %v6898 = vstv %s6897
      %v6899 = vadd.f32 %v6893, %v6898
      %v6900 = vadd.f32 %v6894, %v6898
      %v6901 = vadd.f32 %v6895, %v6898
      %v6902 = vadd.f32 %v6896, %v6898
      %v6903 = vmax.f32 %v6899, 0.0
      %v6904 = vmax.f32 %v6900, 0.0
      %v6905 = vmax.f32 %v6901, 0.0
      %v6906 = vmax.f32 %v6902, 0.0
      %s6907 = sld [smem:[#allocation14 + $0x9]]
      %v6908 = vstv %s6907
      %v6909 = vmul.f32 %v6908, %v6903
      %v6910 = vmul.f32 %v6908, %v6904
      %v6911 = vmul.f32 %v6908, %v6905
      %v6912 = vmul.f32 %v6908, %v6906
      %v6913 = vadd.f32 %v6347, %v6909
      %v6914 = vadd.f32 %v6348, %v6910
      %v6915 = vadd.f32 %v6349, %v6911
      %v6916 = vadd.f32 %v6350, %v6912
      %s6917 = sld [smem:[#allocation4]]
      %v6918 = vstv %s6917
      %v6919 = vadd.f32 %v6913, %v6918
      %v6920 = vadd.f32 %v6914, %v6918
      %v6921 = vadd.f32 %v6915, %v6918
      %v6922 = vadd.f32 %v6916, %v6918
      %v6923 = vmax.f32 %v6919, 0.0
      %v6924 = vmax.f32 %v6920, 0.0
      %v6925 = vmax.f32 %v6921, 0.0
      %v6926 = vmax.f32 %v6922, 0.0
      %vm6931 = vcmask 1040384
      %v6932 = vrot.slane %v6923, 7
      %v6933 = vrot.slane %v6924, 7
      %v6934 = vsel %vm6931, %v6932, %v6933
      %v6935 = vrot.slane %v6925, 7
      %v6936 = vsel %vm6931, %v6933, %v6935
      %v6937 = vrot.slane %v6926, 7
      %v6938 = vsel %vm6931, %v6935, %v6937
      %v6943 = vadd.f32 %v1255, %v6932
      %v6944 = vadd.f32 %v1256, %v6934
      %v6945 = vadd.f32 %v1257, %v6936
      %v6946 = vadd.f32 %v1258, %v6938
      %v6947 = vmul.f32 %v6943, 0.5
      %v6948 = vmul.f32 %v6944, 0.5
      %v6949 = vmul.f32 %v6945, 0.5
      %v6950 = vmul.f32 %v6946, 0.5
      %s6951 = scalar_lea.vmem [#allocation2], %s237
      %6952 = vst [vmem:[%s6951 - $0x1] sm:$0xfe] %v6947
      %6953 = vst [vmem:[%s6951 + $0x7] sm:$0xff] %v6948
      %6954 = vst [vmem:[%s6951 + $0xf] sm:$0xff] %v6949
      %6955 = vst [vmem:[%s6951 + $0x17] sm:$0x1f] %v6950
    $region82: #{model_forward.1} parent=1 // loop_footer
      %s236 = sadd.s32 1, %s232
    $region83: #{model_forward.1} parent=1 // loop_footer_branch
      %231 = sbr.rel target = $region79
    $region84: #{model_forward.1} parent=1 // loop_exit
      _
    %v6956 = vld [vmem:[%s9] sm:$0xff]
    %v6957 = vld [vmem:[%s9 + $0x8] sm:$0xff]
    %v6958 = vld [vmem:[%s9 + $0x10] sm:$0xff]
    %v6959 = vld [vmem:[%s9 + $0x18] sm:$0xf]
    %v6960 = vld [vmem:[%s9 + $0x1c] sm:$0xff]
    %v6961 = vld [vmem:[%s9 + $0x24] sm:$0xff]
    %v6962 = vld [vmem:[%s9 + $0x2c] sm:$0xff]
    %v6963 = vld [vmem:[%s9 + $0x34] sm:$0xf]
    %v6964 = vld [vmem:[%s9 + $0x38] sm:$0xff]
    %v6965 = vld [vmem:[%s9 + $0x40] sm:$0xff]
    %v6966 = vld [vmem:[%s9 + $0x48] sm:$0xff]
    %v6967 = vld [vmem:[%s9 + $0x50] sm:$0xf]
    %v6968 = vld [vmem:[%s9 + $0x54] sm:$0xff]
    %v6969 = vld [vmem:[%s9 + $0x5c] sm:$0xff]
    %v6970 = vld [vmem:[%s9 + $0x64] sm:$0xff]
    %v6971 = vld [vmem:[%s9 + $0x6c] sm:$0xf]
    %v6972 = vld [vmem:[%s9 + $0x70] sm:$0xff]
    %v6973 = vld [vmem:[%s9 + $0x78] sm:$0xff]
    %v6974 = vld [vmem:[%s9 + $0x80] sm:$0xff]
    %v6975 = vld [vmem:[%s9 + $0x88] sm:$0xf]
    %v6976 = vld [vmem:[%s9 + $0x8c] sm:$0xff]
    %v6977 = vld [vmem:[%s9 + $0x94] sm:$0xff]
    %v6978 = vld [vmem:[%s9 + $0x9c] sm:$0xff]
    %v6979 = vld [vmem:[%s9 + $0xa4] sm:$0xf]
    %v6980 = vld [vmem:[%s9 + $0xa8] sm:$0xff]
    %v6981 = vld [vmem:[%s9 + $0xb0] sm:$0xff]
    %v6982 = vld [vmem:[%s9 + $0xb8] sm:$0xff]
    %v6983 = vld [vmem:[%s9 + $0xc0] sm:$0xf]
    %v6984 = vld [vmem:[%s9 + $0xc4] sm:$0xff]
    %v6985 = vld [vmem:[%s9 + $0xcc] sm:$0xff]
    %v6986 = vld [vmem:[%s9 + $0xd4] sm:$0xff]
    %v6987 = vld [vmem:[%s9 + $0xdc] sm:$0xf]
    %v6988 = vld [vmem:[%s9 + $0xe0] sm:$0xff]
    %v6989 = vld [vmem:[%s9 + $0xe8] sm:$0xff]
    %v6990 = vld [vmem:[%s9 + $0xf0] sm:$0xff]
    %v6991 = vld [vmem:[%s9 + $0xf8] sm:$0xf]
    %v6992 = vld [vmem:[%s9 + $0xfc] sm:$0xff]
    %v6993 = vld [vmem:[%s9 + $0x104] sm:$0xff]
    %v6994 = vld [vmem:[%s9 + $0x10c] sm:$0xff]
    %v6995 = vld [vmem:[%s9 + $0x114] sm:$0xf]
    %v6996 = vld [vmem:[%s9 + $0x118] sm:$0xff]
    %v6997 = vld [vmem:[%s9 + $0x120] sm:$0xff]
    %v6998 = vld [vmem:[%s9 + $0x128] sm:$0xff]
    %v6999 = vld [vmem:[%s9 + $0x130] sm:$0xf]
    %v7000 = vld [vmem:[%s9 + $0x134] sm:$0xff]
    %v7001 = vld [vmem:[%s9 + $0x13c] sm:$0xff]
    %v7002 = vld [vmem:[%s9 + $0x144] sm:$0xff]
    %v7003 = vld [vmem:[%s9 + $0x14c] sm:$0xf]
    %v7004 = vld [vmem:[%s9 + $0x150] sm:$0xff]
    %v7005 = vld [vmem:[%s9 + $0x158] sm:$0xff]
    %v7006 = vld [vmem:[%s9 + $0x160] sm:$0xff]
    %v7007 = vld [vmem:[%s9 + $0x168] sm:$0xf]
    %v7008 = vld [vmem:[%s9 + $0x16c] sm:$0xff]
    %v7009 = vld [vmem:[%s9 + $0x174] sm:$0xff]
    %v7010 = vld [vmem:[%s9 + $0x17c] sm:$0xff]
    %v7011 = vld [vmem:[%s9 + $0x184] sm:$0xf]
    %v7012 = vld [vmem:[%s9 + $0x188] sm:$0xff]
    %v7013 = vld [vmem:[%s9 + $0x190] sm:$0xff]
    %v7014 = vld [vmem:[%s9 + $0x198] sm:$0xff]
    %v7015 = vld [vmem:[%s9 + $0x1a0] sm:$0xf]
    %v7016 = vld [vmem:[%s9 + $0x1a4] sm:$0xff]
    %v7017 = vld [vmem:[%s9 + $0x1ac] sm:$0xff]
    %v7018 = vld [vmem:[%s9 + $0x1b4] sm:$0xff]
    %v7019 = vld [vmem:[%s9 + $0x1bc] sm:$0xf]
    %v7020 = vld [vmem:[#allocation2] sm:$0xff]
    %v7021 = vld [vmem:[#allocation2 + $0x8] sm:$0xff]
    %v7022 = vld [vmem:[#allocation2 + $0x10] sm:$0xff]
    %v7023 = vld [vmem:[#allocation2 + $0x18] sm:$0xff]
    %v7024 = vld [vmem:[#allocation2 + $0x20] sm:$0xff]
    %v7025 = vld [vmem:[#allocation2 + $0x28] sm:$0xff]
    %v7026 = vld [vmem:[#allocation2 + $0x30] sm:$0xff]
    %v7027 = vld [vmem:[#allocation2 + $0x38] sm:$0xff]
    %v7028 = vld [vmem:[#allocation2 + $0x40] sm:$0xff]
    %v7029 = vld [vmem:[#allocation2 + $0x48] sm:$0xff]
    %v7030 = vld [vmem:[#allocation2 + $0x50] sm:$0xff]
    %v7031 = vld [vmem:[#allocation2 + $0x58] sm:$0xff]
    %v7032 = vld [vmem:[#allocation2 + $0x60] sm:$0xff]
    %v7033 = vld [vmem:[#allocation2 + $0x68] sm:$0xff]
    %v7034 = vld [vmem:[#allocation2 + $0x70] sm:$0xff]
    %v7035 = vld [vmem:[#allocation2 + $0x78] sm:$0xff]
    %v7036 = vld [vmem:[#allocation2 + $0x80] sm:$0xff]
    %v7037 = vld [vmem:[#allocation2 + $0x88] sm:$0xff]
    %v7038 = vld [vmem:[#allocation2 + $0x90] sm:$0xff]
    %v7039 = vld [vmem:[#allocation2 + $0x98] sm:$0xff]
    %v7040 = vld [vmem:[#allocation2 + $0xa0] sm:$0xff]
    %v7041 = vld [vmem:[#allocation2 + $0xa8] sm:$0xff]
    %v7042 = vld [vmem:[#allocation2 + $0xb0] sm:$0xff]
    %v7043 = vld [vmem:[#allocation2 + $0xb8] sm:$0xff]
    %v7044 = vld [vmem:[#allocation2 + $0xc0] sm:$0xff]
    %v7045 = vld [vmem:[#allocation2 + $0xc8] sm:$0xff]
    %v7046 = vld [vmem:[#allocation2 + $0xd0] sm:$0xff]
    %v7047 = vld [vmem:[#allocation2 + $0xd8] sm:$0xff]
    %v7048 = vld [vmem:[#allocation2 + $0xe0] sm:$0xff]
    %v7049 = vld [vmem:[#allocation2 + $0xe8] sm:$0xff]
    %v7050 = vld [vmem:[#allocation2 + $0xf0] sm:$0xff]
    %v7051 = vld [vmem:[#allocation2 + $0xf8] sm:$0xff]
    %v7052 = vld [vmem:[#allocation2 + $0x100] sm:$0xff]
    %v7053 = vld [vmem:[#allocation2 + $0x108] sm:$0xff]
    %v7054 = vld [vmem:[#allocation2 + $0x110] sm:$0xff]
    %v7055 = vld [vmem:[#allocation2 + $0x118] sm:$0xff]
    %v7056 = vld [vmem:[#allocation2 + $0x120] sm:$0xff]
    %v7057 = vld [vmem:[#allocation2 + $0x128] sm:$0xff]
    %v7058 = vld [vmem:[#allocation2 + $0x130] sm:$0xff]
    %v7059 = vld [vmem:[#allocation2 + $0x138] sm:$0xff]
    %v7060 = vld [vmem:[#allocation2 + $0x140] sm:$0xff]
    %v7061 = vld [vmem:[#allocation2 + $0x148] sm:$0xff]
    %v7062 = vld [vmem:[#allocation2 + $0x150] sm:$0xff]
    %v7063 = vld [vmem:[#allocation2 + $0x158] sm:$0xff]
    %v7064 = vld [vmem:[#allocation2 + $0x160] sm:$0xff]
    %v7065 = vld [vmem:[#allocation2 + $0x168] sm:$0xff]
    %v7066 = vld [vmem:[#allocation2 + $0x170] sm:$0xff]
    %v7067 = vld [vmem:[#allocation2 + $0x178] sm:$0xff]
    %v7068 = vld [vmem:[#allocation2 + $0x180] sm:$0xff]
    %v7069 = vld [vmem:[#allocation2 + $0x188] sm:$0xff]
    %v7070 = vld [vmem:[#allocation2 + $0x190] sm:$0xff]
    %v7071 = vld [vmem:[#allocation2 + $0x198] sm:$0xff]
    %v7072 = vld [vmem:[#allocation2 + $0x1a0] sm:$0xff]
    %v7073 = vld [vmem:[#allocation2 + $0x1a8] sm:$0xff]
    %v7074 = vld [vmem:[#allocation2 + $0x1b0] sm:$0xff]
    %v7075 = vld [vmem:[#allocation2 + $0x1b8] sm:$0xff]
    %v7076 = vld [vmem:[#allocation2 + $0x1c0] sm:$0xff]
    %v7077 = vld [vmem:[#allocation2 + $0x1c8] sm:$0xff]
    %v7078 = vld [vmem:[#allocation2 + $0x1d0] sm:$0xff]
    %v7079 = vld [vmem:[#allocation2 + $0x1d8] sm:$0xff]
    %v7080 = vld [vmem:[#allocation2 + $0x1e0] sm:$0xff]
    %v7081 = vld [vmem:[#allocation2 + $0x1e8] sm:$0xff]
    %v7082 = vld [vmem:[#allocation2 + $0x1f0] sm:$0xff]
    %v7083 = vld [vmem:[#allocation2 + $0x1f8] sm:$0xff]
    %v7084 = vld [vmem:[#allocation2 + $0x200] sm:$0xff]
    %v7085 = vld [vmem:[#allocation2 + $0x208] sm:$0xff]
    %v7086 = vld [vmem:[#allocation2 + $0x210] sm:$0xff]
    %v7087 = vld [vmem:[#allocation2 + $0x218] sm:$0xff]
    %v7088 = vld [vmem:[#allocation2 + $0x220] sm:$0xff]
    %v7089 = vld [vmem:[#allocation2 + $0x228] sm:$0xff]
    %v7090 = vld [vmem:[#allocation2 + $0x230] sm:$0xff]
    %v7091 = vld [vmem:[#allocation2 + $0x238] sm:$0xff]
    %v7092 = vld [vmem:[#allocation2 + $0x240] sm:$0xff]
    %v7093 = vld [vmem:[#allocation2 + $0x248] sm:$0xff]
    %v7094 = vld [vmem:[#allocation2 + $0x250] sm:$0xff]
    %v7095 = vld [vmem:[#allocation2 + $0x258] sm:$0xff]
    %v7096 = vld [vmem:[#allocation2 + $0x260] sm:$0xff]
    %v7097 = vld [vmem:[#allocation2 + $0x268] sm:$0xff]
    %v7098 = vld [vmem:[#allocation2 + $0x270] sm:$0xff]
    %v7099 = vld [vmem:[#allocation2 + $0x278] sm:$0xff]
    %v7100 = vld [vmem:[#allocation2 + $0x280] sm:$0xff]
    %v7101 = vld [vmem:[#allocation2 + $0x288] sm:$0xff]
    %v7102 = vld [vmem:[#allocation2 + $0x290] sm:$0xff]
    %v7103 = vld [vmem:[#allocation2 + $0x298] sm:$0xff]
    %v7104 = vld [vmem:[#allocation2 + $0x2a0] sm:$0xff]
    %v7105 = vld [vmem:[#allocation2 + $0x2a8] sm:$0xff]
    %v7106 = vld [vmem:[#allocation2 + $0x2b0] sm:$0xff]
    %v7107 = vld [vmem:[#allocation2 + $0x2b8] sm:$0xff]
    %v7108 = vld [vmem:[#allocation2 + $0x2c0] sm:$0xff]
    %v7109 = vld [vmem:[#allocation2 + $0x2c8] sm:$0xff]
    %v7110 = vld [vmem:[#allocation2 + $0x2d0] sm:$0xff]
    %v7111 = vld [vmem:[#allocation2 + $0x2d8] sm:$0xff]
    %v7112 = vld [vmem:[#allocation2 + $0x2e0] sm:$0xff]
    %v7113 = vld [vmem:[#allocation2 + $0x2e8] sm:$0xff]
    %v7114 = vld [vmem:[#allocation2 + $0x2f0] sm:$0xff]
    %v7115 = vld [vmem:[#allocation2 + $0x2f8] sm:$0xff]
    %v7116 = vld [vmem:[#allocation2 + $0x300] sm:$0xff]
    %v7117 = vld [vmem:[#allocation2 + $0x308] sm:$0xff]
    %v7118 = vld [vmem:[#allocation2 + $0x310] sm:$0xff]
    %v7119 = vld [vmem:[#allocation2 + $0x318] sm:$0xff]
    %v7120 = vld [vmem:[#allocation2 + $0x320] sm:$0xff]
    %v7121 = vld [vmem:[#allocation2 + $0x328] sm:$0xff]
    %v7122 = vld [vmem:[#allocation2 + $0x330] sm:$0xff]
    %v7123 = vld [vmem:[#allocation2 + $0x338] sm:$0xff]
    %v7124 = vld [vmem:[#allocation2 + $0x340] sm:$0xff]
    %v7125 = vld [vmem:[#allocation2 + $0x348] sm:$0xff]
    %v7126 = vld [vmem:[#allocation2 + $0x350] sm:$0xff]
    %v7127 = vld [vmem:[#allocation2 + $0x358] sm:$0xff]
    %v7128 = vld [vmem:[#allocation2 + $0x360] sm:$0xff]
    %v7129 = vld [vmem:[#allocation2 + $0x368] sm:$0xff]
    %v7130 = vld [vmem:[#allocation2 + $0x370] sm:$0xff]
    %v7131 = vld [vmem:[#allocation2 + $0x378] sm:$0xff]
    %v7132 = vpack.c.bf16 %v7021, %v7020
    %v7133 = vpack.c.bf16 %v7023, %v7022
    %v7134 = vpack.c.bf16 %v7025, %v7024
    %v7135 = vpack.c.bf16 %v7027, %v7026
    %v7136 = vpack.c.bf16 %v7029, %v7028
    %v7137 = vpack.c.bf16 %v7031, %v7030
    %v7138 = vpack.c.bf16 %v7033, %v7032
    %v7139 = vpack.c.bf16 %v7035, %v7034
    %v7140 = vpack.c.bf16 %v7037, %v7036
    %v7141 = vpack.c.bf16 %v7039, %v7038
    %v7142 = vpack.c.bf16 %v7041, %v7040
    %v7143 = vpack.c.bf16 %v7043, %v7042
    %v7144 = vpack.c.bf16 %v7045, %v7044
    %v7145 = vpack.c.bf16 %v7047, %v7046
    %v7146 = vpack.c.bf16 %v7049, %v7048
    %v7147 = vpack.c.bf16 %v7051, %v7050
    %v7148 = vpack.c.bf16 %v7053, %v7052
    %v7149 = vpack.c.bf16 %v7055, %v7054
    %v7150 = vpack.c.bf16 %v7057, %v7056
    %v7151 = vpack.c.bf16 %v7059, %v7058
    %v7152 = vpack.c.bf16 %v7061, %v7060
    %v7153 = vpack.c.bf16 %v7063, %v7062
    %v7154 = vpack.c.bf16 %v7065, %v7064
    %v7155 = vpack.c.bf16 %v7067, %v7066
    %v7156 = vpack.c.bf16 %v7069, %v7068
    %v7157 = vpack.c.bf16 %v7071, %v7070
    %v7158 = vpack.c.bf16 %v7073, %v7072
    %v7159 = vpack.c.bf16 %v7075, %v7074
    %v7160 = vpack.c.bf16 %v7077, %v7076
    %v7161 = vpack.c.bf16 %v7079, %v7078
    %v7162 = vpack.c.bf16 %v7081, %v7080
    %v7163 = vpack.c.bf16 %v7083, %v7082
    %v7164 = vpack.c.bf16 %v7085, %v7084
    %v7165 = vpack.c.bf16 %v7087, %v7086
    %v7166 = vpack.c.bf16 %v7089, %v7088
    %v7167 = vpack.c.bf16 %v7091, %v7090
    %v7168 = vpack.c.bf16 %v7093, %v7092
    %v7169 = vpack.c.bf16 %v7095, %v7094
    %v7170 = vpack.c.bf16 %v7097, %v7096
    %v7171 = vpack.c.bf16 %v7099, %v7098
    %v7172 = vpack.c.bf16 %v7101, %v7100
    %v7173 = vpack.c.bf16 %v7103, %v7102
    %v7174 = vpack.c.bf16 %v7105, %v7104
    %v7175 = vpack.c.bf16 %v7107, %v7106
    %v7176 = vpack.c.bf16 %v7109, %v7108
    %v7177 = vpack.c.bf16 %v7111, %v7110
    %v7178 = vpack.c.bf16 %v7113, %v7112
    %v7179 = vpack.c.bf16 %v7115, %v7114
    %v7180 = vpack.c.bf16 %v7117, %v7116
    %v7181 = vpack.c.bf16 %v7119, %v7118
    %v7182 = vpack.c.bf16 %v7121, %v7120
    %v7183 = vpack.c.bf16 %v7123, %v7122
    %v7184 = vpack.c.bf16 %v7125, %v7124
    %v7185 = vpack.c.bf16 %v7127, %v7126
    %v7186 = vpack.c.bf16 %v7129, %v7128
    %v7187 = vpack.c.bf16 %v7131, %v7130
    %v7188 = vld [vmem:[%s10] sm:$0xff]
    %v7189 = vld [vmem:[%s10 + $0x8] sm:$0xff]
    %v7190 = vld [vmem:[%s10 + $0x10] sm:$0xff]
    %v7191 = vld [vmem:[%s10 + $0x18] sm:$0xff]
    %v7192 = vld [vmem:[%s10 + $0x20] sm:$0xff]
    %v7193 = vld [vmem:[%s10 + $0x28] sm:$0xff]
    %v7194 = vld [vmem:[%s10 + $0x30] sm:$0xff]
    %v7195 = vld [vmem:[%s10 + $0x38] sm:$0xff]
    %v7196 = vld [vmem:[%s10 + $0x40] sm:$0xff]
    %v7197 = vld [vmem:[%s10 + $0x48] sm:$0xff]
    %v7198 = vld [vmem:[%s10 + $0x50] sm:$0xff]
    %v7199 = vld [vmem:[%s10 + $0x58] sm:$0xff]
    %v7200 = vld [vmem:[%s10 + $0x60] sm:$0xff]
    %v7201 = vld [vmem:[%s10 + $0x68] sm:$0xff]
    %v7202 = vld [vmem:[%s10 + $0x70] sm:$0xff]
    %v7203 = vld [vmem:[%s10 + $0x78] sm:$0xff]
    %7205 = vset.pattern.permute.xlu0 0
    %7206 = vperm.xlu0 %7205, %v7188
    %v7207 = vpop.permute.xlu0 %7206
    %7210 = vset.pattern.permute.xlu0 0
    %7211 = vperm.xlu0 %7210, %v7189
    %v7212 = vpop.permute.xlu0 %7211
    %7215 = vset.pattern.permute.xlu0 0
    %7216 = vperm.xlu0 %7215, %v7190
    %v7217 = vpop.permute.xlu0 %7216
    %7220 = vset.pattern.permute.xlu0 0
    %7221 = vperm.xlu0 %7220, %v7191
    %v7222 = vpop.permute.xlu0 %7221
    %7225 = vset.pattern.permute.xlu0 0
    %7226 = vperm.xlu0 %7225, %v7192
    %v7227 = vpop.permute.xlu0 %7226
    %7230 = vset.pattern.permute.xlu0 0
    %7231 = vperm.xlu0 %7230, %v7193
    %v7232 = vpop.permute.xlu0 %7231
    %7235 = vset.pattern.permute.xlu0 0
    %7236 = vperm.xlu0 %7235, %v7194
    %v7237 = vpop.permute.xlu0 %7236
    %7240 = vset.pattern.permute.xlu0 0
    %7241 = vperm.xlu0 %7240, %v7195
    %v7242 = vpop.permute.xlu0 %7241
    %7245 = vset.pattern.permute.xlu0 0
    %7246 = vperm.xlu0 %7245, %v7196
    %v7247 = vpop.permute.xlu0 %7246
    %7250 = vset.pattern.permute.xlu0 0
    %7251 = vperm.xlu0 %7250, %v7197
    %v7252 = vpop.permute.xlu0 %7251
    %7255 = vset.pattern.permute.xlu0 0
    %7256 = vperm.xlu0 %7255, %v7198
    %v7257 = vpop.permute.xlu0 %7256
    %7260 = vset.pattern.permute.xlu0 0
    %7261 = vperm.xlu0 %7260, %v7199
    %v7262 = vpop.permute.xlu0 %7261
    %7265 = vset.pattern.permute.xlu0 0
    %7266 = vperm.xlu0 %7265, %v7200
    %v7267 = vpop.permute.xlu0 %7266
    %7270 = vset.pattern.permute.xlu0 0
    %7271 = vperm.xlu0 %7270, %v7201
    %v7272 = vpop.permute.xlu0 %7271
    %7275 = vset.pattern.permute.xlu0 0
    %7276 = vperm.xlu0 %7275, %v7202
    %v7277 = vpop.permute.xlu0 %7276
    %7280 = vset.pattern.permute.xlu0 0
    %7281 = vperm.xlu0 %7280, %v7203
    %v7282 = vpop.permute.xlu0 %7281
    %v7348 = vunpack.c.l.b16 %v6956
    %v7349 = vunpack.c.h.b16 %v6956
    %v7350 = vunpack.c.l.b16 %v6957
    %v7351 = vunpack.c.h.b16 %v6957
    %v7352 = vunpack.c.l.b16 %v6958
    %v7353 = vunpack.c.h.b16 %v6958
    %v7354 = vunpack.c.l.b16 %v6959
    %v7355 = vunpack.c.l.b16 %v6960
    %v7356 = vunpack.c.h.b16 %v6960
    %v7357 = vunpack.c.l.b16 %v6961
    %v7358 = vunpack.c.h.b16 %v6961
    %v7359 = vunpack.c.l.b16 %v6962
    %v7360 = vunpack.c.h.b16 %v6962
    %v7361 = vunpack.c.l.b16 %v6963
    %v7362 = vunpack.c.l.b16 %v6964
    %v7363 = vunpack.c.h.b16 %v6964
    %v7364 = vunpack.c.l.b16 %v6965
    %v7365 = vunpack.c.h.b16 %v6965
    %v7366 = vunpack.c.l.b16 %v6966
    %v7367 = vunpack.c.h.b16 %v6966
    %v7368 = vunpack.c.l.b16 %v6967
    %v7369 = vunpack.c.l.b16 %v6968
    %v7370 = vunpack.c.h.b16 %v6968
    %v7371 = vunpack.c.l.b16 %v6969
    %v7372 = vunpack.c.h.b16 %v6969
    %v7373 = vunpack.c.l.b16 %v6970
    %v7374 = vunpack.c.h.b16 %v6970
    %v7375 = vunpack.c.l.b16 %v6971
    %v7376 = vunpack.c.l.b16 %v6972
    %v7377 = vunpack.c.h.b16 %v6972
    %v7378 = vunpack.c.l.b16 %v6973
    %v7379 = vunpack.c.h.b16 %v6973
    %v7380 = vunpack.c.l.b16 %v6974
    %v7381 = vunpack.c.h.b16 %v6974
    %v7382 = vunpack.c.l.b16 %v6975
    %v7383 = vunpack.c.l.b16 %v6976
    %v7384 = vunpack.c.h.b16 %v6976
    %v7385 = vunpack.c.l.b16 %v6977
    %v7386 = vunpack.c.h.b16 %v6977
    %v7387 = vunpack.c.l.b16 %v6978
    %v7388 = vunpack.c.h.b16 %v6978
    %v7389 = vunpack.c.l.b16 %v6979
    %v7390 = vunpack.c.l.b16 %v6980
    %v7391 = vunpack.c.h.b16 %v6980
    %v7392 = vunpack.c.l.b16 %v6981
    %v7393 = vunpack.c.h.b16 %v6981
    %v7394 = vunpack.c.l.b16 %v6982
    %v7395 = vunpack.c.h.b16 %v6982
    %v7396 = vunpack.c.l.b16 %v6983
    %v7397 = vunpack.c.l.b16 %v6984
    %v7398 = vunpack.c.h.b16 %v6984
    %v7399 = vunpack.c.l.b16 %v6985
    %v7400 = vunpack.c.h.b16 %v6985
    %v7401 = vunpack.c.l.b16 %v6986
    %v7402 = vunpack.c.h.b16 %v6986
    %v7403 = vunpack.c.l.b16 %v6987
    %v7404 = vunpack.c.l.b16 %v6988
    %v7405 = vunpack.c.h.b16 %v6988
    %v7406 = vunpack.c.l.b16 %v6989
    %v7407 = vunpack.c.h.b16 %v6989
    %v7408 = vunpack.c.l.b16 %v6990
    %v7409 = vunpack.c.h.b16 %v6990
    %v7410 = vunpack.c.l.b16 %v6991
    %v7411 = vunpack.c.l.b16 %v6992
    %v7412 = vunpack.c.h.b16 %v6992
    %v7413 = vunpack.c.l.b16 %v6993
    %v7414 = vunpack.c.h.b16 %v6993
    %v7415 = vunpack.c.l.b16 %v6994
    %v7416 = vunpack.c.h.b16 %v6994
    %v7417 = vunpack.c.l.b16 %v6995
    %v7418 = vunpack.c.l.b16 %v6996
    %v7419 = vunpack.c.h.b16 %v6996
    %v7420 = vunpack.c.l.b16 %v6997
    %v7421 = vunpack.c.h.b16 %v6997
    %v7422 = vunpack.c.l.b16 %v6998
    %v7423 = vunpack.c.h.b16 %v6998
    %v7424 = vunpack.c.l.b16 %v6999
    %v7425 = vunpack.c.l.b16 %v7000
    %v7426 = vunpack.c.h.b16 %v7000
    %v7427 = vunpack.c.l.b16 %v7001
    %v7428 = vunpack.c.h.b16 %v7001
    %v7429 = vunpack.c.l.b16 %v7002
    %v7430 = vunpack.c.h.b16 %v7002
    %v7431 = vunpack.c.l.b16 %v7003
    %v7432 = vunpack.c.l.b16 %v7004
    %v7433 = vunpack.c.h.b16 %v7004
    %v7434 = vunpack.c.l.b16 %v7005
    %v7435 = vunpack.c.h.b16 %v7005
    %v7436 = vunpack.c.l.b16 %v7006
    %v7437 = vunpack.c.h.b16 %v7006
    %v7438 = vunpack.c.l.b16 %v7007
    %v7439 = vunpack.c.l.b16 %v7008
    %v7440 = vunpack.c.h.b16 %v7008
    %v7441 = vunpack.c.l.b16 %v7009
    %v7442 = vunpack.c.h.b16 %v7009
    %v7443 = vunpack.c.l.b16 %v7010
    %v7444 = vunpack.c.h.b16 %v7010
    %v7445 = vunpack.c.l.b16 %v7011
    %v7446 = vunpack.c.l.b16 %v7012
    %v7447 = vunpack.c.h.b16 %v7012
    %v7448 = vunpack.c.l.b16 %v7013
    %v7449 = vunpack.c.h.b16 %v7013
    %v7450 = vunpack.c.l.b16 %v7014
    %v7451 = vunpack.c.h.b16 %v7014
    %v7452 = vunpack.c.l.b16 %v7015
    %v7453 = vunpack.c.l.b16 %v7016
    %v7454 = vunpack.c.h.b16 %v7016
    %v7455 = vunpack.c.l.b16 %v7017
    %v7456 = vunpack.c.h.b16 %v7017
    %v7457 = vunpack.c.l.b16 %v7018
    %v7458 = vunpack.c.h.b16 %v7018
    %v7459 = vunpack.c.l.b16 %v7019
    %v7460 = vpack.c.b16 %v7355, %v7348
    %v7461 = vpack.c.b16 %v7356, %v7349
    %v7462 = vpack.c.b16 %v7357, %v7350
    %v7463 = vpack.c.b16 %v7358, %v7351
    %v7464 = vpack.c.b16 %v7359, %v7352
    %v7465 = vpack.c.b16 %v7360, %v7353
    %v7466 = vpack.c.b16 %v7361, %v7354
    %v7467 = vpack.c.b16 %v7369, %v7362
    %v7468 = vpack.c.b16 %v7370, %v7363
    %v7469 = vpack.c.b16 %v7371, %v7364
    %v7470 = vpack.c.b16 %v7372, %v7365
    %v7471 = vpack.c.b16 %v7373, %v7366
    %v7472 = vpack.c.b16 %v7374, %v7367
    %v7473 = vpack.c.b16 %v7375, %v7368
    %v7474 = vpack.c.b16 %v7383, %v7376
    %v7475 = vpack.c.b16 %v7384, %v7377
    %v7476 = vpack.c.b16 %v7385, %v7378
    %v7477 = vpack.c.b16 %v7386, %v7379
    %v7478 = vpack.c.b16 %v7387, %v7380
    %v7479 = vpack.c.b16 %v7388, %v7381
    %v7480 = vpack.c.b16 %v7389, %v7382
    %v7481 = vpack.c.b16 %v7397, %v7390
    %v7482 = vpack.c.b16 %v7398, %v7391
    %v7483 = vpack.c.b16 %v7399, %v7392
    %v7484 = vpack.c.b16 %v7400, %v7393
    %v7485 = vpack.c.b16 %v7401, %v7394
    %v7486 = vpack.c.b16 %v7402, %v7395
    %v7487 = vpack.c.b16 %v7403, %v7396
    %v7488 = vpack.c.b16 %v7411, %v7404
    %v7489 = vpack.c.b16 %v7412, %v7405
    %v7490 = vpack.c.b16 %v7413, %v7406
    %v7491 = vpack.c.b16 %v7414, %v7407
    %v7492 = vpack.c.b16 %v7415, %v7408
    %v7493 = vpack.c.b16 %v7416, %v7409
    %v7494 = vpack.c.b16 %v7417, %v7410
    %v7495 = vpack.c.b16 %v7425, %v7418
    %v7496 = vpack.c.b16 %v7426, %v7419
    %v7497 = vpack.c.b16 %v7427, %v7420
    %v7498 = vpack.c.b16 %v7428, %v7421
    %v7499 = vpack.c.b16 %v7429, %v7422
    %v7500 = vpack.c.b16 %v7430, %v7423
    %v7501 = vpack.c.b16 %v7431, %v7424
    %v7502 = vpack.c.b16 %v7439, %v7432
    %v7503 = vpack.c.b16 %v7440, %v7433
    %v7504 = vpack.c.b16 %v7441, %v7434
    %v7505 = vpack.c.b16 %v7442, %v7435
    %v7506 = vpack.c.b16 %v7443, %v7436
    %v7507 = vpack.c.b16 %v7444, %v7437
    %v7508 = vpack.c.b16 %v7445, %v7438
    %v7509 = vpack.c.b16 %v7453, %v7446
    %v7510 = vpack.c.b16 %v7454, %v7447
    %v7511 = vpack.c.b16 %v7455, %v7448
    %v7512 = vpack.c.b16 %v7456, %v7449
    %v7513 = vpack.c.b16 %v7457, %v7450
    %v7514 = vpack.c.b16 %v7458, %v7451
    %v7515 = vpack.c.b16 %v7459, %v7452
    %7572 = vmatprep.subr.bf16.mxu0 0
    %7573 = vmatpush1.bf16.msra.mxu0 %v7132
    %7574 = vmatprep.subr.bf16.mxu0 0
    %7575 = vmatpush1.bf16.msra.mxu0 %v7133
    %7576 = vmatprep.subr.bf16.mxu0 0
    %7577 = vmatpush1.bf16.msra.mxu0 %v7134
    %7578 = vmatprep.subr.bf16.mxu0 0
    %7579 = vmatpush1.bf16.msra.mxu0 %v7135
    %7580 = vmatprep.subr.bf16.mxu0 0
    %7581 = vmatpush1.bf16.msra.mxu0 %v7136
    %7582 = vmatprep.subr.bf16.mxu0 0
    %7583 = vmatpush1.bf16.msra.mxu0 %v7137
    %7584 = vmatprep.subr.bf16.mxu0 0
    %7585 = vmatpush1.bf16.msra.mxu0 %v7138
    %7586 = vmatprep.subr.bf16.mxu0 0
    %7587 = vmatpush1.bf16.msra.mxu0 %v7139
    %7588 = vmatprep.subr.bf16.mxu0 0
    %7589 = vmatpush1.bf16.msra.mxu0 %v7140
    %7590 = vmatprep.subr.bf16.mxu0 0
    %7591 = vmatpush1.bf16.msra.mxu0 %v7141
    %7592 = vmatprep.subr.bf16.mxu0 0
    %7593 = vmatpush1.bf16.msra.mxu0 %v7142
    %7594 = vmatprep.subr.bf16.mxu0 0
    %7595 = vmatpush1.bf16.msra.mxu0 %v7143
    %7596 = vmatprep.subr.bf16.mxu0 0
    %7597 = vmatpush1.bf16.msra.mxu0 %v7144
    %7598 = vmatprep.subr.bf16.mxu0 0
    %7599 = vmatpush1.bf16.msra.mxu0 %v7145
    %7600 = vmatprep.subr.bf16.mxu0 0
    %7601 = vmatpush1.bf16.msra.mxu0 %v7146
    %7602 = vmatprep.subr.bf16.mxu0 0
    %7603 = vmatpush1.bf16.msra.mxu0 %v7147
    %7604 = vmatprep.mubr.bf16.mxu0 %v7461
    %7605 = vmatmul.mubr.bf16.gmra.mrb[0].mxu0 %v7460
    %v7606 = vpop.f32.mrb[0].mxu0
    %v7607 = vadd.f32 %v7207, %v7606
    %v7608 = vpop.f32.mrb[0].mxu0
    %v7609 = vpop.f32.mrb[0].mxu0
    %v7610 = vadd.f32 %v7212, %v7609
    %v7611 = vpop.f32.mrb[0].mxu0
    %7612 = vmatprep.mubr.bf16.mxu0 %v7468
    %7613 = vmatmul.mubr.bf16.gmra.mrb[0].mxu0 %v7467
    %v7614 = vpop.f32.mrb[0].mxu0
    %v7615 = vadd.f32 %v7217, %v7614
    %v7616 = vpop.f32.mrb[0].mxu0
    %v7617 = vpop.f32.mrb[0].mxu0
    %v7618 = vadd.f32 %v7222, %v7617
    %v7619 = vpop.f32.mrb[0].mxu0
    %7620 = vmatprep.mubr.bf16.mxu0 %v7475
    %7621 = vmatmul.mubr.bf16.gmra.mrb[0].mxu0 %v7474
    %v7622 = vpop.f32.mrb[0].mxu0
    %v7623 = vadd.f32 %v7227, %v7622
    %v7624 = vpop.f32.mrb[0].mxu0
    %v7625 = vpop.f32.mrb[0].mxu0
    %v7626 = vadd.f32 %v7232, %v7625
    %v7627 = vpop.f32.mrb[0].mxu0
    %7628 = vmatprep.mubr.bf16.mxu0 %v7482
    %7629 = vmatmul.mubr.bf16.gmra.mrb[0].mxu0 %v7481
    %v7630 = vpop.f32.mrb[0].mxu0
    %v7631 = vadd.f32 %v7237, %v7630
    %v7632 = vpop.f32.mrb[0].mxu0
    %v7633 = vpop.f32.mrb[0].mxu0
    %v7634 = vadd.f32 %v7242, %v7633
    %v7635 = vpop.f32.mrb[0].mxu0
    %7636 = vmatprep.mubr.bf16.mxu0 %v7489
    %7637 = vmatmul.mubr.bf16.gmra.mrb[0].mxu0 %v7488
    %v7638 = vpop.f32.mrb[0].mxu0
    %v7639 = vadd.f32 %v7247, %v7638
    %v7640 = vpop.f32.mrb[0].mxu0
    %v7641 = vpop.f32.mrb[0].mxu0
    %v7642 = vadd.f32 %v7252, %v7641
    %v7643 = vpop.f32.mrb[0].mxu0
    %7644 = vmatprep.mubr.bf16.mxu0 %v7496
    %7645 = vmatmul.mubr.bf16.gmra.mrb[0].mxu0 %v7495
    %v7646 = vpop.f32.mrb[0].mxu0
    %v7647 = vadd.f32 %v7257, %v7646
    %v7648 = vpop.f32.mrb[0].mxu0
    %v7649 = vpop.f32.mrb[0].mxu0
    %v7650 = vadd.f32 %v7262, %v7649
    %v7651 = vpop.f32.mrb[0].mxu0
    %7652 = vmatprep.mubr.bf16.mxu0 %v7503
    %7653 = vmatmul.mubr.bf16.gmra.mrb[0].mxu0 %v7502
    %v7654 = vpop.f32.mrb[0].mxu0
    %v7655 = vadd.f32 %v7267, %v7654
    %v7656 = vpop.f32.mrb[0].mxu0
    %v7657 = vpop.f32.mrb[0].mxu0
    %v7658 = vadd.f32 %v7272, %v7657
    %v7659 = vpop.f32.mrb[0].mxu0
    %7660 = vmatprep.mubr.bf16.mxu0 %v7510
    %7661 = vmatmul.mubr.bf16.gmra.mrb[0].mxu0 %v7509
    %v7662 = vpop.f32.mrb[0].mxu0
    %v7663 = vadd.f32 %v7277, %v7662
    %v7664 = vpop.f32.mrb[0].mxu0
    %v7665 = vpop.f32.mrb[0].mxu0
    %v7666 = vadd.f32 %v7282, %v7665
    %v7667 = vpop.f32.mrb[0].mxu0
    %7668 = vdwg.mxu0
    %7669 = vmatprep.subr.bf16.mxu0 0
    %7670 = vmatpush1.bf16.msra.mxu0 %v7148
    %7671 = vmatprep.subr.bf16.mxu0 0
    %7672 = vmatpush1.bf16.msra.mxu0 %v7149
    %7673 = vmatprep.subr.bf16.mxu0 0
    %7674 = vmatpush1.bf16.msra.mxu0 %v7150
    %7675 = vmatprep.subr.bf16.mxu0 0
    %7676 = vmatpush1.bf16.msra.mxu0 %v7151
    %7677 = vmatprep.subr.bf16.mxu0 0
    %7678 = vmatpush1.bf16.msra.mxu0 %v7152
    %7679 = vmatprep.subr.bf16.mxu0 0
    %7680 = vmatpush1.bf16.msra.mxu0 %v7153
    %7681 = vmatprep.subr.bf16.mxu0 0
    %7682 = vmatpush1.bf16.msra.mxu0 %v7154
    %7683 = vmatprep.subr.bf16.mxu0 0
    %7684 = vmatpush1.bf16.msra.mxu0 %v7155
    %7685 = vmatprep.subr.bf16.mxu0 0
    %7686 = vmatpush1.bf16.msra.mxu0 %v7156
    %7687 = vmatprep.subr.bf16.mxu0 0
    %7688 = vmatpush1.bf16.msra.mxu0 %v7157
    %7689 = vmatprep.subr.bf16.mxu0 0
    %7690 = vmatpush1.bf16.msra.mxu0 %v7158
    %7691 = vmatprep.subr.bf16.mxu0 0
    %7692 = vmatpush1.bf16.msra.mxu0 %v7159
    %7693 = vmatprep.subr.bf16.mxu0 0
    %7694 = vmatpush1.bf16.msra.mxu0 %v7160
    %7695 = vmatprep.subr.bf16.mxu0 0
    %7696 = vmatpush1.bf16.msra.mxu0 %v7161
    %7697 = vmatprep.subr.bf16.mxu0 0
    %7698 = vmatpush1.bf16.msra.mxu0 %v7162
    %7699 = vmatprep.subr.bf16.mxu0 0
    %7700 = vmatpush1.bf16.msra.mxu0 %v7163
    %7701 = vmatprep.mubr.bf16.mxu0 %v7463
    %7702 = vmatmul.mubr.bf16.gmra.mrb[0].mxu0 %v7462
    %v7703 = vpop.f32.mrb[0].mxu0
    %v7704 = vadd.f32 %v7607, %v7703
    %v7705 = vpop.f32.mrb[0].mxu0
    %v7706 = vpop.f32.mrb[0].mxu0
    %v7707 = vadd.f32 %v7610, %v7706
    %v7708 = vpop.f32.mrb[0].mxu0
    %7709 = vmatprep.mubr.bf16.mxu0 %v7470
    %7710 = vmatmul.mubr.bf16.gmra.mrb[0].mxu0 %v7469
    %v7711 = vpop.f32.mrb[0].mxu0
    %v7712 = vadd.f32 %v7615, %v7711
    %v7713 = vpop.f32.mrb[0].mxu0
    %v7714 = vpop.f32.mrb[0].mxu0
    %v7715 = vadd.f32 %v7618, %v7714
    %v7716 = vpop.f32.mrb[0].mxu0
    %7717 = vmatprep.mubr.bf16.mxu0 %v7477
    %7718 = vmatmul.mubr.bf16.gmra.mrb[0].mxu0 %v7476
    %v7719 = vpop.f32.mrb[0].mxu0
    %v7720 = vadd.f32 %v7623, %v7719
    %v7721 = vpop.f32.mrb[0].mxu0
    %v7722 = vpop.f32.mrb[0].mxu0
    %v7723 = vadd.f32 %v7626, %v7722
    %v7724 = vpop.f32.mrb[0].mxu0
    %7725 = vmatprep.mubr.bf16.mxu0 %v7484
    %7726 = vmatmul.mubr.bf16.gmra.mrb[0].mxu0 %v7483
    %v7727 = vpop.f32.mrb[0].mxu0
    %v7728 = vadd.f32 %v7631, %v7727
    %v7729 = vpop.f32.mrb[0].mxu0
    %v7730 = vpop.f32.mrb[0].mxu0
    %v7731 = vadd.f32 %v7634, %v7730
    %v7732 = vpop.f32.mrb[0].mxu0
    %7733 = vmatprep.mubr.bf16.mxu0 %v7491
    %7734 = vmatmul.mubr.bf16.gmra.mrb[0].mxu0 %v7490
    %v7735 = vpop.f32.mrb[0].mxu0
    %v7736 = vadd.f32 %v7639, %v7735
    %v7737 = vpop.f32.mrb[0].mxu0
    %v7738 = vpop.f32.mrb[0].mxu0
    %v7739 = vadd.f32 %v7642, %v7738
    %v7740 = vpop.f32.mrb[0].mxu0
    %7741 = vmatprep.mubr.bf16.mxu0 %v7498
    %7742 = vmatmul.mubr.bf16.gmra.mrb[0].mxu0 %v7497
    %v7743 = vpop.f32.mrb[0].mxu0
    %v7744 = vadd.f32 %v7647, %v7743
    %v7745 = vpop.f32.mrb[0].mxu0
    %v7746 = vpop.f32.mrb[0].mxu0
    %v7747 = vadd.f32 %v7650, %v7746
    %v7748 = vpop.f32.mrb[0].mxu0
    %7749 = vmatprep.mubr.bf16.mxu0 %v7505
    %7750 = vmatmul.mubr.bf16.gmra.mrb[0].mxu0 %v7504
    %v7751 = vpop.f32.mrb[0].mxu0
    %v7752 = vadd.f32 %v7655, %v7751
    %v7753 = vpop.f32.mrb[0].mxu0
    %v7754 = vpop.f32.mrb[0].mxu0
    %v7755 = vadd.f32 %v7658, %v7754
    %v7756 = vpop.f32.mrb[0].mxu0
    %7757 = vmatprep.mubr.bf16.mxu0 %v7512
    %7758 = vmatmul.mubr.bf16.gmra.mrb[0].mxu0 %v7511
    %v7759 = vpop.f32.mrb[0].mxu0
    %v7760 = vadd.f32 %v7663, %v7759
    %v7761 = vpop.f32.mrb[0].mxu0
    %v7762 = vpop.f32.mrb[0].mxu0
    %v7763 = vadd.f32 %v7666, %v7762
    %v7764 = vpop.f32.mrb[0].mxu0
    %7765 = vdwg.mxu0
    %7766 = vmatprep.subr.bf16.mxu0 0
    %7767 = vmatpush1.bf16.msra.mxu0 %v7164
    %7768 = vmatprep.subr.bf16.mxu0 0
    %7769 = vmatpush1.bf16.msra.mxu0 %v7165
    %7770 = vmatprep.subr.bf16.mxu0 0
    %7771 = vmatpush1.bf16.msra.mxu0 %v7166
    %7772 = vmatprep.subr.bf16.mxu0 0
    %7773 = vmatpush1.bf16.msra.mxu0 %v7167
    %7774 = vmatprep.subr.bf16.mxu0 0
    %7775 = vmatpush1.bf16.msra.mxu0 %v7168
    %7776 = vmatprep.subr.bf16.mxu0 0
    %7777 = vmatpush1.bf16.msra.mxu0 %v7169
    %7778 = vmatprep.subr.bf16.mxu0 0
    %7779 = vmatpush1.bf16.msra.mxu0 %v7170
    %7780 = vmatprep.subr.bf16.mxu0 0
    %7781 = vmatpush1.bf16.msra.mxu0 %v7171
    %7782 = vmatprep.subr.bf16.mxu0 0
    %7783 = vmatpush1.bf16.msra.mxu0 %v7172
    %7784 = vmatprep.subr.bf16.mxu0 0
    %7785 = vmatpush1.bf16.msra.mxu0 %v7173
    %7786 = vmatprep.subr.bf16.mxu0 0
    %7787 = vmatpush1.bf16.msra.mxu0 %v7174
    %7788 = vmatprep.subr.bf16.mxu0 0
    %7789 = vmatpush1.bf16.msra.mxu0 %v7175
    %7790 = vmatprep.subr.bf16.mxu0 0
    %7791 = vmatpush1.bf16.msra.mxu0 %v7176
    %7792 = vmatprep.subr.bf16.mxu0 0
    %7793 = vmatpush1.bf16.msra.mxu0 %v7177
    %7794 = vmatprep.subr.bf16.mxu0 0
    %7795 = vmatpush1.bf16.msra.mxu0 %v7178
    %7796 = vmatprep.subr.bf16.mxu0 0
    %7797 = vmatpush1.bf16.msra.mxu0 %v7179
    %7798 = vmatprep.mubr.bf16.mxu0 %v7465
    %7799 = vmatmul.mubr.bf16.gmra.mrb[0].mxu0 %v7464
    %v7800 = vpop.f32.mrb[0].mxu0
    %v7801 = vadd.f32 %v7704, %v7800
    %v7802 = vpop.f32.mrb[0].mxu0
    %v7803 = vpop.f32.mrb[0].mxu0
    %v7804 = vadd.f32 %v7707, %v7803
    %v7805 = vpop.f32.mrb[0].mxu0
    %7806 = vmatprep.mubr.bf16.mxu0 %v7472
    %7807 = vmatmul.mubr.bf16.gmra.mrb[0].mxu0 %v7471
    %v7808 = vpop.f32.mrb[0].mxu0
    %v7809 = vadd.f32 %v7712, %v7808
    %v7810 = vpop.f32.mrb[0].mxu0
    %v7811 = vpop.f32.mrb[0].mxu0
    %v7812 = vadd.f32 %v7715, %v7811
    %v7813 = vpop.f32.mrb[0].mxu0
    %7814 = vmatprep.mubr.bf16.mxu0 %v7479
    %7815 = vmatmul.mubr.bf16.gmra.mrb[0].mxu0 %v7478
    %v7816 = vpop.f32.mrb[0].mxu0
    %v7817 = vadd.f32 %v7720, %v7816
    %v7818 = vpop.f32.mrb[0].mxu0
    %v7819 = vpop.f32.mrb[0].mxu0
    %v7820 = vadd.f32 %v7723, %v7819
    %v7821 = vpop.f32.mrb[0].mxu0
    %7822 = vmatprep.mubr.bf16.mxu0 %v7486
    %7823 = vmatmul.mubr.bf16.gmra.mrb[0].mxu0 %v7485
    %v7824 = vpop.f32.mrb[0].mxu0
    %v7825 = vadd.f32 %v7728, %v7824
    %v7826 = vpop.f32.mrb[0].mxu0
    %v7827 = vpop.f32.mrb[0].mxu0
    %v7828 = vadd.f32 %v7731, %v7827
    %v7829 = vpop.f32.mrb[0].mxu0
    %7830 = vmatprep.mubr.bf16.mxu0 %v7493
    %7831 = vmatmul.mubr.bf16.gmra.mrb[0].mxu0 %v7492
    %v7832 = vpop.f32.mrb[0].mxu0
    %v7833 = vadd.f32 %v7736, %v7832
    %v7834 = vpop.f32.mrb[0].mxu0
    %v7835 = vpop.f32.mrb[0].mxu0
    %v7836 = vadd.f32 %v7739, %v7835
    %v7837 = vpop.f32.mrb[0].mxu0
    %7838 = vmatprep.mubr.bf16.mxu0 %v7500
    %7839 = vmatmul.mubr.bf16.gmra.mrb[0].mxu0 %v7499
    %v7840 = vpop.f32.mrb[0].mxu0
    %v7841 = vadd.f32 %v7744, %v7840
    %v7842 = vpop.f32.mrb[0].mxu0
    %v7843 = vpop.f32.mrb[0].mxu0
    %v7844 = vadd.f32 %v7747, %v7843
    %v7845 = vpop.f32.mrb[0].mxu0
    %7846 = vmatprep.mubr.bf16.mxu0 %v7507
    %7847 = vmatmul.mubr.bf16.gmra.mrb[0].mxu0 %v7506
    %v7848 = vpop.f32.mrb[0].mxu0
    %v7849 = vadd.f32 %v7752, %v7848
    %v7850 = vpop.f32.mrb[0].mxu0
    %v7851 = vpop.f32.mrb[0].mxu0
    %v7852 = vadd.f32 %v7755, %v7851
    %v7853 = vpop.f32.mrb[0].mxu0
    %7854 = vmatprep.mubr.bf16.mxu0 %v7514
    %7855 = vmatmul.mubr.bf16.gmra.mrb[0].mxu0 %v7513
    %v7856 = vpop.f32.mrb[0].mxu0
    %v7857 = vadd.f32 %v7760, %v7856
    %v7858 = vpop.f32.mrb[0].mxu0
    %v7859 = vpop.f32.mrb[0].mxu0
    %v7860 = vadd.f32 %v7763, %v7859
    %v7861 = vpop.f32.mrb[0].mxu0
    %7862 = vdwg.mxu0
    %7863 = vmatprep.subr.bf16.mxu0 0
    %7864 = vmatpush1.bf16.msra.mxu0 %v7180
    %7865 = vmatprep.subr.bf16.mxu0 0
    %7866 = vmatpush1.bf16.msra.mxu0 %v7181
    %7867 = vmatprep.subr.bf16.mxu0 0
    %7868 = vmatpush1.bf16.msra.mxu0 %v7182
    %7869 = vmatprep.subr.bf16.mxu0 0
    %7870 = vmatpush1.bf16.msra.mxu0 %v7183
    %7871 = vmatprep.subr.bf16.mxu0 0
    %7872 = vmatpush1.bf16.msra.mxu0 %v7184
    %7873 = vmatprep.subr.bf16.mxu0 0
    %7874 = vmatpush1.bf16.msra.mxu0 %v7185
    %7875 = vmatprep.subr.bf16.mxu0 0
    %7876 = vmatpush1.bf16.msra.mxu0 %v7186
    %7877 = vmatprep.subr.bf16.mxu0 0
    %7878 = vmatpush1.bf16.msra.mxu0 %v7187
    %7879 = vmatprep.subr.bf16.mxu0 0
    %7880 = vmatpush1.bf16.msra.mxu0 0
    %7881 = vmatprep.subr.bf16.mxu0 0
    %7882 = vmatpush1.bf16.msra.mxu0 0
    %7883 = vmatprep.subr.bf16.mxu0 0
    %7884 = vmatpush1.bf16.msra.mxu0 0
    %7885 = vmatprep.subr.bf16.mxu0 0
    %7886 = vmatpush1.bf16.msra.mxu0 0
    %7887 = vmatprep.subr.bf16.mxu0 0
    %7888 = vmatpush1.bf16.msra.mxu0 0
    %7889 = vmatprep.subr.bf16.mxu0 0
    %7890 = vmatpush1.bf16.msra.mxu0 0
    %7891 = vmatprep.subr.bf16.mxu0 0
    %7892 = vmatpush1.bf16.msra.mxu0 0
    %7893 = vmatprep.subr.bf16.mxu0 0
    %7894 = vmatpush1.bf16.msra.mxu0 0
    %7895 = vmatprep.mubr.bf16.mxu0 0
    %7896 = vmatmul.mubr.bf16.gmra.mrb[0].mxu0 %v7466
    %v7897 = vpop.f32.mrb[0].mxu0
    %v7898 = vadd.f32 %v7801, %v7897
    %v7899 = vpop.f32.mrb[0].mxu0
    %v7900 = vpop.f32.mrb[0].mxu0
    %v7901 = vadd.f32 %v7804, %v7900
    %v7902 = vpop.f32.mrb[0].mxu0
    %7903 = vmatprep.mubr.bf16.mxu0 0
    %7904 = vmatmul.mubr.bf16.gmra.mrb[0].mxu0 %v7473
    %v7905 = vpop.f32.mrb[0].mxu0
    %v7906 = vadd.f32 %v7809, %v7905
    %v7907 = vpop.f32.mrb[0].mxu0
    %v7908 = vpop.f32.mrb[0].mxu0
    %v7909 = vadd.f32 %v7812, %v7908
    %v7910 = vpop.f32.mrb[0].mxu0
    %7911 = vmatprep.mubr.bf16.mxu0 0
    %7912 = vmatmul.mubr.bf16.gmra.mrb[0].mxu0 %v7480
    %v7913 = vpop.f32.mrb[0].mxu0
    %v7914 = vadd.f32 %v7817, %v7913
    %v7915 = vpop.f32.mrb[0].mxu0
    %v7916 = vpop.f32.mrb[0].mxu0
    %v7917 = vadd.f32 %v7820, %v7916
    %v7918 = vpop.f32.mrb[0].mxu0
    %7919 = vmatprep.mubr.bf16.mxu0 0
    %7920 = vmatmul.mubr.bf16.gmra.mrb[0].mxu0 %v7487
    %v7921 = vpop.f32.mrb[0].mxu0
    %v7922 = vadd.f32 %v7825, %v7921
    %v7923 = vpop.f32.mrb[0].mxu0
    %v7924 = vpop.f32.mrb[0].mxu0
    %v7925 = vadd.f32 %v7828, %v7924
    %v7926 = vpop.f32.mrb[0].mxu0
    %7927 = vmatprep.mubr.bf16.mxu0 0
    %7928 = vmatmul.mubr.bf16.gmra.mrb[0].mxu0 %v7494
    %v7929 = vpop.f32.mrb[0].mxu0
    %v7930 = vadd.f32 %v7833, %v7929
    %v7931 = vpop.f32.mrb[0].mxu0
    %v7932 = vpop.f32.mrb[0].mxu0
    %v7933 = vadd.f32 %v7836, %v7932
    %v7934 = vpop.f32.mrb[0].mxu0
    %7935 = vmatprep.mubr.bf16.mxu0 0
    %7936 = vmatmul.mubr.bf16.gmra.mrb[0].mxu0 %v7501
    %v7937 = vpop.f32.mrb[0].mxu0
    %v7938 = vadd.f32 %v7841, %v7937
    %v7939 = vpop.f32.mrb[0].mxu0
    %v7940 = vpop.f32.mrb[0].mxu0
    %v7941 = vadd.f32 %v7844, %v7940
    %v7942 = vpop.f32.mrb[0].mxu0
    %7943 = vmatprep.mubr.bf16.mxu0 0
    %7944 = vmatmul.mubr.bf16.gmra.mrb[0].mxu0 %v7508
    %v7945 = vpop.f32.mrb[0].mxu0
    %v7946 = vadd.f32 %v7849, %v7945
    %v7947 = vpop.f32.mrb[0].mxu0
    %v7948 = vpop.f32.mrb[0].mxu0
    %v7949 = vadd.f32 %v7852, %v7948
    %v7950 = vpop.f32.mrb[0].mxu0
    %7951 = vmatprep.mubr.bf16.mxu0 0
    %7952 = vmatmul.mubr.bf16.gmra.mrb[0].mxu0 %v7515
    %v7953 = vpop.f32.mrb[0].mxu0
    %v7954 = vadd.f32 %v7857, %v7953
    %v7955 = vpop.f32.mrb[0].mxu0
    %v7956 = vpop.f32.mrb[0].mxu0
    %v7957 = vadd.f32 %v7860, %v7956
    %v7958 = vpop.f32.mrb[0].mxu0
    %7959 = vdwg.mxu0
    %v7960 = vmax.f32 %v7898, 0.0
    %v7961 = vmax.f32 %v7901, 0.0
    %v7962 = vmax.f32 %v7906, 0.0
    %v7963 = vmax.f32 %v7909, 0.0
    %v7964 = vmax.f32 %v7914, 0.0
    %v7965 = vmax.f32 %v7917, 0.0
    %v7966 = vmax.f32 %v7922, 0.0
    %v7967 = vmax.f32 %v7925, 0.0
    %v7968 = vmax.f32 %v7930, 0.0
    %v7969 = vmax.f32 %v7933, 0.0
    %v7970 = vmax.f32 %v7938, 0.0
    %v7971 = vmax.f32 %v7941, 0.0
    %v7972 = vmax.f32 %v7946, 0.0
    %v7973 = vmax.f32 %v7949, 0.0
    %v7974 = vmax.f32 %v7954, 0.0
    %v7975 = vmax.f32 %v7957, 0.0
    %v7976 = vld [vmem:[%s11] sm:$0xff]
    %v7977 = vld [vmem:[%s11 + $0x8] sm:$0xff]
    %v7978 = vld [vmem:[%s11 + $0x10] sm:$0xff]
    %v7979 = vld [vmem:[%s11 + $0x18] sm:$0xff]
    %v7980 = vld [vmem:[%s11 + $0x20] sm:$0xff]
    %v7981 = vld [vmem:[%s11 + $0x28] sm:$0xff]
    %v7982 = vld [vmem:[%s11 + $0x30] sm:$0xff]
    %v7983 = vld [vmem:[%s11 + $0x38] sm:$0xff]
    %v7984 = vld [vmem:[%s11 + $0x40] sm:$0xff]
    %v7985 = vld [vmem:[%s11 + $0x48] sm:$0xff]
    %v7986 = vld [vmem:[%s11 + $0x50] sm:$0xff]
    %v7987 = vld [vmem:[%s11 + $0x58] sm:$0xff]
    %v7988 = vld [vmem:[%s11 + $0x60] sm:$0xff]
    %v7989 = vld [vmem:[%s11 + $0x68] sm:$0xff]
    %v7990 = vld [vmem:[%s11 + $0x70] sm:$0xff]
    %v7991 = vld [vmem:[%s11 + $0x78] sm:$0xff]
    %7993 = vset.pattern.permute.xlu0 0
    %7994 = vperm.xlu0 %7993, %v7976
    %v7995 = vpop.permute.xlu0 %7994
    %7998 = vset.pattern.permute.xlu0 0
    %7999 = vperm.xlu0 %7998, %v7977
    %v8000 = vpop.permute.xlu0 %7999
    %8003 = vset.pattern.permute.xlu0 0
    %8004 = vperm.xlu0 %8003, %v7978
    %v8005 = vpop.permute.xlu0 %8004
    %8008 = vset.pattern.permute.xlu0 0
    %8009 = vperm.xlu0 %8008, %v7979
    %v8010 = vpop.permute.xlu0 %8009
    %8013 = vset.pattern.permute.xlu0 0
    %8014 = vperm.xlu0 %8013, %v7980
    %v8015 = vpop.permute.xlu0 %8014
    %8018 = vset.pattern.permute.xlu0 0
    %8019 = vperm.xlu0 %8018, %v7981
    %v8020 = vpop.permute.xlu0 %8019
    %8023 = vset.pattern.permute.xlu0 0
    %8024 = vperm.xlu0 %8023, %v7982
    %v8025 = vpop.permute.xlu0 %8024
    %8028 = vset.pattern.permute.xlu0 0
    %8029 = vperm.xlu0 %8028, %v7983
    %v8030 = vpop.permute.xlu0 %8029
    %8033 = vset.pattern.permute.xlu0 0
    %8034 = vperm.xlu0 %8033, %v7984
    %v8035 = vpop.permute.xlu0 %8034
    %8038 = vset.pattern.permute.xlu0 0
    %8039 = vperm.xlu0 %8038, %v7985
    %v8040 = vpop.permute.xlu0 %8039
    %8043 = vset.pattern.permute.xlu0 0
    %8044 = vperm.xlu0 %8043, %v7986
    %v8045 = vpop.permute.xlu0 %8044
    %8048 = vset.pattern.permute.xlu0 0
    %8049 = vperm.xlu0 %8048, %v7987
    %v8050 = vpop.permute.xlu0 %8049
    %8053 = vset.pattern.permute.xlu0 0
    %8054 = vperm.xlu0 %8053, %v7988
    %v8055 = vpop.permute.xlu0 %8054
    %8058 = vset.pattern.permute.xlu0 0
    %8059 = vperm.xlu0 %8058, %v7989
    %v8060 = vpop.permute.xlu0 %8059
    %8063 = vset.pattern.permute.xlu0 0
    %8064 = vperm.xlu0 %8063, %v7990
    %v8065 = vpop.permute.xlu0 %8064
    %8068 = vset.pattern.permute.xlu0 0
    %8069 = vperm.xlu0 %8068, %v7991
    %v8070 = vpop.permute.xlu0 %8069
    %v8072 = vmul.f32 %v7960, %v7995
    %v8073 = vmul.f32 %v7961, %v8000
    %v8074 = vmul.f32 %v7962, %v8005
    %v8075 = vmul.f32 %v7963, %v8010
    %v8076 = vmul.f32 %v7964, %v8015
    %v8077 = vmul.f32 %v7965, %v8020
    %v8078 = vmul.f32 %v7966, %v8025
    %v8079 = vmul.f32 %v7967, %v8030
    %v8080 = vmul.f32 %v7968, %v8035
    %v8081 = vmul.f32 %v7969, %v8040
    %v8082 = vmul.f32 %v7970, %v8045
    %v8083 = vmul.f32 %v7971, %v8050
    %v8084 = vmul.f32 %v7972, %v8055
    %v8085 = vmul.f32 %v7973, %v8060
    %v8086 = vmul.f32 %v7974, %v8065
    %v8087 = vmul.f32 %v7975, %v8070
    %v8088 = vadd.f32 %v8072, %v8073
    %v8089 = vadd.f32 %v8088, %v8074
    %v8090 = vadd.f32 %v8089, %v8075
    %v8091 = vadd.f32 %v8090, %v8076
    %v8092 = vadd.f32 %v8091, %v8077
    %v8093 = vadd.f32 %v8092, %v8078
    %v8094 = vadd.f32 %v8093, %v8079
    %v8095 = vadd.f32 %v8094, %v8080
    %v8096 = vadd.f32 %v8095, %v8081
    %v8097 = vadd.f32 %v8096, %v8082
    %v8098 = vadd.f32 %v8097, %v8083
    %v8099 = vadd.f32 %v8098, %v8084
    %v8100 = vadd.f32 %v8099, %v8085
    %v8101 = vadd.f32 %v8100, %v8086
    %v8102 = vadd.f32 %v8101, %v8087
    %v8103 = vrot.slane %v8102, 4
    %v8104 = vadd.f32 %v8102, %v8103
    %v8105 = vrot.slane %v8104, 2
    %v8106 = vadd.f32 %v8104, %v8105
    %v8107 = vrot.slane %v8106, 1
    %v8108 = vadd.f32 %v8106, %v8107
    %s8109 = sld [smem:[#allocation5]]
    %v8110 = vstv %s8109
    %v8111 = vadd.f32 %v8108, %v8110
    %v8112 = vmax.f32 %v8111, 0.0
    %8113 = vst [vmem:[%s13] sm:$0x1] %v8112
    // Predicated region
    $region85: #{model_forward.1} parent=1 // pred_check
      _
    $region86: #{model_forward.1} parent=1 // pred_check_branch
      %8115 = sbr.rel (0) target = $region88
    $region87: #{model_forward.1} parent=1 // pred_region
      _
    $region88: #{model_forward.1} parent=1 // pred_fallthru
      _
    // Predicated region
    $region89: #{model_forward.1} parent=1 // pred_check
      _
    $region90: #{model_forward.1} parent=1 // pred_check_branch
      %8117 = sbr.rel (0) target = $region92
    $region91: #{model_forward.1} parent=1 // pred_region
      _
    $region92: #{model_forward.1} parent=1 // pred_fallthru
      _
    %8118 = vsyncpa [#allocation7], 1
    %8119 = vsyncpa [#allocation9], 1
    %8120 = vsyncpa [#allocation12], 1
    %8121 = vsyncpa [#allocation15], 1

</llo_original>
